<compile_context>
chip_gen: v7x
topology: tpu7x:2x2x1
jax: 0.10.0
libtpu: 0.0.40
codegen_flags: <defaults>
</compile_context>

<pallas_src>
import functools

import jax
import jax.numpy as jnp
from jax.experimental import pallas as pl
from jax.experimental.pallas import tpu as pltpu


def _round_up(x, m):
    return (x + m - 1) // m * m


# ---------------------------------------------------------------------------
# model configuration (small shapes standing in for (3,480,640) images)
# ---------------------------------------------------------------------------
FPN_C = 32          # real model: 256
ROI_SIZE = 4        # real model: 7x7 RoIAlign
REP_SIZE = 64       # real model: 1024 (TwoMLPHead)
NUM_CLASSES = 3     # ParamsDetection.output_channels
NUM_ANCHORS = 3
NUM_PROPOSALS = 4   # fixed synthetic proposals per image

VMEM_SPEC = pl.BlockSpec(memory_space=pltpu.MemorySpace.VMEM)


# ---------------------------------------------------------------------------
# activation helper (applied in kernel epilogues; f32 math -> v5e safe)
# ---------------------------------------------------------------------------
def _apply_act(y, act):
    if act == "hardswish":
        return y * jnp.clip(y + 3.0, 0.0, 6.0) * (1.0 / 6.0)
    if act == "relu":
        return jnp.maximum(y, 0.0)
    return y


# ---------------------------------------------------------------------------
# Pallas kernel 1: tiled matmul with fused scale*x+bias+activation epilogue,
# bf16 output.  (All 1x1 convs / BN / bias+act pairs lower to this.)
# ---------------------------------------------------------------------------
TM_MAX = 512        # big-M tile: amortizes ~0.35us/step; >=2 blocks feeds both v7x cores
TN_TILE = 128
TN_WIDE = 256       # v6e/v7x MXU is 2x256^2: use the full result width when N allows
TK_TILE = 256
MAX_SINGLE_K = 512  # below this use one unpadded K block (no K loop, no pad)


def _mm_fused_kernel(a_ref, b_ref, s_ref, c_ref, o_ref, *, act):
    y = jnp.dot(a_ref[...], b_ref[...], preferred_element_type=jnp.float32)
    o_ref[...] = _apply_act(y * s_ref[...] + c_ref[...], act).astype(o_ref.dtype)


def _mm_fused_acc_kernel(a_ref, b_ref, s_ref, c_ref, o_ref, acc_ref, *, act):
    @pl.when(pl.program_id(2) == 0)
    def _init():
        acc_ref[...] = jnp.zeros_like(acc_ref)

    acc_ref[...] += jnp.dot(a_ref[...], b_ref[...],
                            preferred_element_type=jnp.float32)

    @pl.when(pl.program_id(2) == pl.num_programs(2) - 1)
    def _store():
        o_ref[...] = _apply_act(acc_ref[...] * s_ref[...] + c_ref[...],
                                act).astype(o_ref.dtype)


def matmul_bn_act(a, w, scale, bias, act="none"):
    """out = act(scale * (a @ w) + bias), stored in bf16.

    a: (M, K) float;  w: (K, N) bf16 (pre-packed);  scale/bias: (1, N) f32.
    """
    M, K = a.shape
    K2, N = w.shape
    assert K == K2
    a = a.astype(jnp.bfloat16)

    tm = TM_MAX if M > TM_MAX else _round_up(M, 16)
    Mp = _round_up(M, tm)
    if Mp != M:
        a = jnp.pad(a, ((0, Mp - M), (0, 0)))

    if N <= TN_TILE:
        tn, Np = N, N                         # full-dim N block: no padding
    else:
        assert N % TN_TILE == 0, "pre-pad weight N to a multiple of 128"
        tn = TN_WIDE if N % TN_WIDE == 0 else TN_TILE
        Np = N

    if K <= MAX_SINGLE_K:
        grid = (Mp // tm, Np // tn)
        kernel = functools.partial(_mm_fused_kernel, act=act)
        in_specs = [pl.BlockSpec((tm, K), lambda i, j: (i, 0)),
                    pl.BlockSpec((K, tn), lambda i, j: (0, j)),
                    pl.BlockSpec((1, tn), lambda i, j: (0, j)),
                    pl.BlockSpec((1, tn), lambda i, j: (0, j))]
        out_specs = pl.BlockSpec((tm, tn), lambda i, j: (i, j))
        scratch = ()
        dims = ("parallel", "parallel")
    else:
        Kp = _round_up(K, TK_TILE)
        if Kp != K:
            a = jnp.pad(a, ((0, 0), (0, Kp - K)))
            w = jnp.pad(w, ((0, Kp - K), (0, 0)))
        grid = (Mp // tm, Np // tn, Kp // TK_TILE)
        kernel = functools.partial(_mm_fused_acc_kernel, act=act)
        in_specs = [pl.BlockSpec((tm, TK_TILE), lambda i, j, k: (i, k)),
                    pl.BlockSpec((TK_TILE, tn), lambda i, j, k: (k, j)),
                    pl.BlockSpec((1, tn), lambda i, j, k: (0, j)),
                    pl.BlockSpec((1, tn), lambda i, j, k: (0, j))]
        out_specs = pl.BlockSpec((tm, tn), lambda i, j, k: (i, j))
        scratch = (pltpu.VMEM((tm, tn), jnp.float32),)
        dims = ("parallel", "parallel", "arbitrary")

    out = pl.pallas_call(
        kernel,
        out_shape=jax.ShapeDtypeStruct((Mp, Np), jnp.bfloat16),
        grid_spec=pltpu.PrefetchScalarGridSpec(
            num_scalar_prefetch=0, grid=grid,
            in_specs=in_specs, out_specs=out_specs,
            scratch_shapes=scratch),
        compiler_params=pltpu.CompilerParams(dimension_semantics=dims),
    )(a, w, scale, bias)
    return out[:M, :N]


# ---------------------------------------------------------------------------
# Pallas kernel 2: tap-streamed 3x3 conv + BN + act (no im2col).
# The (padded) input is flattened to rows once in XLA (1x bytes, bf16); every
# tap is a static row-offset slice of that flat array matmul'ed against its
# (Cin, Cout) weight slab, accumulated in f32 inside a single kernel call.
# Garbage rows (padding columns / cross-image reads) land only on invalid
# output rows, which are sliced away afterwards.
# ---------------------------------------------------------------------------
def _tap_conv_kernel(x_ref, w_ref, s_ref, b_ref, o_ref, *, taps, m_comp, act):
    # x_ref: (P, m_comp + max_off, Cin) bf16 flattened padded pixels
    # w_ref: (9, Cin, Cout) bf16 tap weights; s_ref/b_ref: (1, Cout) f32
    planes = {}
    acc = None
    for t, (plane, off) in enumerate(taps):
        if plane not in planes:
            planes[plane] = x_ref[plane].astype(jnp.float32)
        a = planes[plane][off:off + m_comp, :]
        y = jnp.dot(a, w_ref[t].astype(jnp.float32),
                    preferred_element_type=jnp.float32)
        acc = y if acc is None else acc + y
    o_ref[...] = _apply_act(acc * s_ref[...] + b_ref[...], act).astype(o_ref.dtype)


def _tap_conv_call(flat, cp, taps, m_comp, act):
    # TODO(synk): for real (480x640) shapes tile the M (row) axis with a
    # manual-DMA halo instead of holding the whole flat image in VMEM.
    cout = cp["cout"]
    return pl.pallas_call(
        functools.partial(_tap_conv_kernel, taps=taps, m_comp=m_comp, act=act),
        out_shape=jax.ShapeDtypeStruct((m_comp, cout), jnp.bfloat16),
        in_specs=[VMEM_SPEC] * 4,
        out_specs=VMEM_SPEC,
        compiler_params=pltpu.CompilerParams(
            vmem_limit_bytes=48 * 1024 * 1024),
    )(flat, cp["w9"], cp["s"], cp["b"])


def conv3x3_s1_bn_act(x, cp, act):
    """3x3 conv, stride 1, padding 1, fused BN/bias + activation."""
    n, h, w, cin = x.shape
    cout = cp["cout"]
    hp, wp = h + 2, w + 2
    m_out = n * hp * wp
    m_comp = _round_up(m_out, 16)
    max_off = 2 * wp + 2
    xp = jnp.pad(x.astype(jnp.bfloat16), ((0, 0), (1, 1), (1, 1), (0, 0)))
    flat = xp.reshape(m_out, cin)
    flat = jnp.pad(flat, ((0, m_comp + max_off - m_out), (0, 0)))[None]
    taps = tuple((0, di * wp + dj) for di in range(3) for dj in range(3))
    out = _tap_conv_call(flat, cp, taps, m_comp, act)
    return out[:m_out].reshape(n, hp, wp, cout)[:, :h, :w, :]


def conv3x3_s2_bn_act(x, cp, act):
    """3x3 conv, stride 2, padding 1, via 4 parity planes (no strided loads)."""
    n, h, w, cin = x.shape
    assert h % 2 == 0 and w % 2 == 0
    ho, wo = h // 2, w // 2
    hq, wq = ho + 1, wo + 1
    cout = cp["cout"]
    m_out = n * hq * wq
    m_comp = _round_up(m_out, 16)
    max_off = wq + 1
    xp = jnp.pad(x.astype(jnp.bfloat16), ((0, 0), (1, 1), (1, 1), (0, 0)))
    planes = jnp.stack(
        [xp[:, rp::2, cpar::2, :] for rp in (0, 1) for cpar in (0, 1)],
        axis=0)                                     # (4, n, hq, wq, cin)
    flat = planes.reshape(4, m_out, cin)
    flat = jnp.pad(flat, ((0, 0), (0, m_comp + max_off - m_out), (0, 0)))
    taps = tuple((2 * (di % 2) + (dj % 2), (di // 2) * wq + (dj // 2))
                 for di in range(3) for dj in range(3))
    out = _tap_conv_call(flat, cp, taps, m_comp, act)
    return out[:m_out].reshape(n, hq, wq, cout)[:, :ho, :wo, :]


def conv_bn_act(x, cp, act="none", stride=1, padding=0):
    """Conv + (BN or bias) + activation; x: (N,H,W,Cin), bf16 output."""
    kh, kw, cout = cp["kh"], cp["kw"], cp["cout"]
    n, h, w, cin = x.shape
    if kh == 1 and kw == 1 and stride == 1 and padding == 0:
        out = matmul_bn_act(x.reshape(n * h * w, cin),
                            cp["w"], cp["s"], cp["b"], act)
        return out.reshape(n, h, w, cout)
    assert kh == 3 and kw == 3 and padding == 1 and stride in (1, 2)
    if stride == 1:
        return conv3x3_s1_bn_act(x, cp, act)
    return conv3x3_s2_bn_act(x, cp, act)


# ---------------------------------------------------------------------------
# Pallas kernel 3: 3x3 stride-2 depthwise conv, all 9 taps + BN + act fused.
# bf16 parity planes (1x input bytes), channel-tiled grid, f32 math inside,
# bf16 output; plane loads / column shifts hoisted out of the tap loops.
# ---------------------------------------------------------------------------
def _dw3x3s2_kernel(x_ref, w_ref, s_ref, b_ref, o_ref, *, ho, wo, act):
    # x_ref: (4, ho+1, wo+1, tc) parity planes; plane = 2*row_par + col_par
    # w_ref: (9, 1, 1, tc) tap weights; s_ref/b_ref: (1, 1, tc) BN scale/shift
    acc = None
    for rp in (0, 1):
        for cpar in (0, 1):
            plane = x_ref[2 * rp + cpar].astype(jnp.float32)   # load plane once
            for co in (0, 1):
                dj = cpar + 2 * co
                if dj > 2:
                    continue
                colsh = plane[:, co:co + wo, :]                # column shift hoisted
                for ro in (0, 1):
                    di = rp + 2 * ro
                    if di > 2:
                        continue
                    term = colsh[ro:ro + ho, :, :] * \
                        w_ref[3 * di + dj].astype(jnp.float32)
                    acc = term if acc is None else acc + term
    y = acc * s_ref[...] + b_ref[...]
    o_ref[0] = _apply_act(y, act).astype(o_ref.dtype)


def depthwise3x3_s2_bn_act(x, dp, act="hardswish"):
    """3x3 depthwise conv, stride 2, padding 1, fused BN + activation (bf16)."""
    n, h, w, c = x.shape
    assert h % 2 == 0 and w % 2 == 0
    ho, wo = h // 2, w // 2
    xp = jnp.pad(x.astype(jnp.bfloat16), ((0, 0), (1, 1), (1, 1), (0, 0)))
    planes = jnp.stack(
        [xp[:, r::2, cc::2, :] for r in (0, 1) for cc in (0, 1)],
        axis=1).reshape(n * 4, ho + 1, wo + 1, c)
    tc = 128 if c % 128 == 0 else c     # channel tiling bounds per-step VMEM
    out = pl.pallas_call(
        functools.partial(_dw3x3s2_kernel, ho=ho, wo=wo, act=act),
        out_shape=jax.ShapeDtypeStruct((n, ho, wo, c), jnp.bfloat16),
        grid_spec=pltpu.PrefetchScalarGridSpec(
            num_scalar_prefetch=0, grid=(n, c // tc),
            in_specs=[
                pl.BlockSpec((4, ho + 1, wo + 1, tc), lambda i, j: (i, 0, 0, j)),
                pl.BlockSpec((9, 1, 1, tc), lambda i, j: (0, 0, 0, j)),
                pl.BlockSpec((1, 1, tc), lambda i, j: (0, 0, j)),
                pl.BlockSpec((1, 1, tc), lambda i, j: (0, 0, j)),
            ],
            out_specs=pl.BlockSpec((1, ho, wo, tc), lambda i, j: (i, 0, 0, j))),
        compiler_params=pltpu.CompilerParams(
            dimension_semantics=("parallel", "parallel"),
            vmem_limit_bytes=48 * 1024 * 1024),
    )(planes, dp["w"], dp["s"], dp["b"])
    return out


# ---------------------------------------------------------------------------
# Pallas kernel 4: whole box head (fc6 -> fc7 -> cls/box predictor) in one call
# ---------------------------------------------------------------------------
def _box_head_kernel(x_ref, w6_ref, b6_ref, w7_ref, b7_ref, wp_ref, bp_ref,
                     o_ref):
    h = jnp.dot(x_ref[...], w6_ref[...], preferred_element_type=jnp.float32)
    h = jnp.maximum(h + b6_ref[...], 0.0)
    h = jnp.dot(h.astype(w7_ref.dtype), w7_ref[...],
                preferred_element_type=jnp.float32)
    h = jnp.maximum(h + b7_ref[...], 0.0)
    o_ref[...] = jnp.dot(h.astype(wp_ref.dtype), wp_ref[...],
                         preferred_element_type=jnp.float32) + bp_ref[...]


def box_head(flat, p):
    """TwoMLPHead (fc6, fc7) + FastRCNNPredictor fused into one pallas_call."""
    # TODO(synk): at real sizes (fc6 = 12544x1024 bf16) tile the K axis so the
    # resident weights fit v7x's 32 MiB scoped-VMEM default.
    m = flat.shape[0]
    npred = NUM_CLASSES + 4 * NUM_CLASSES
    pred = pl.pallas_call(
        _box_head_kernel,
        out_shape=jax.ShapeDtypeStruct((m, npred), jnp.float32),
        in_specs=[VMEM_SPEC] * 7,
        out_specs=VMEM_SPEC,
    )(flat.astype(jnp.bfloat16), p["fc6_w"], p["fc6_b"], p["fc7_w"], p["fc7_b"],
      p["pred_w"], p["pred_b"])
    return pred[:, :NUM_CLASSES], pred[:, NUM_CLASSES:]


# ---------------------------------------------------------------------------
# parameters (pre-reshaped / pre-cast once at init; nothing padded per call)
# ---------------------------------------------------------------------------
def init_params(key):
    cnt = [0]

    def nrm(shape, scale=0.1):
        cnt[0] += 1
        return scale * jax.random.normal(jax.random.fold_in(key, cnt[0]),
                                         shape, jnp.float32)

    def conv(kh, kw, cin, cout, bn=True):
        w = nrm((kh, kw, cin, cout))
        s = (1.0 + nrm((cout,))) if bn else jnp.ones((cout,), jnp.float32)
        b = nrm((cout,))
        d = {"s": s.reshape(1, cout), "b": b.reshape(1, cout),
             "kh": kh, "kw": kw, "cout": cout}
        if kh == 1 and kw == 1:
            d["w"] = w.reshape(cin, cout).astype(jnp.bfloat16)
        else:
            d["w9"] = w.reshape(kh * kw, cin, cout).astype(jnp.bfloat16)
        return d

    def dwconv(c):
        w = nrm((3, 3, c))
        s = 1.0 + nrm((c,))
        b = nrm((c,))
        return {"w": w.reshape(9, 1, 1, c).astype(jnp.bfloat16),
                "s": s.reshape(1, 1, c), "b": b.reshape(1, 1, c)}

    p = {}
    # ---- reduced MobileNetV3-large backbone ----
    p["stem"] = conv(3, 3, 3, 16)
    p["b1_exp"] = conv(1, 1, 16, 32)
    p["b1_dw"] = dwconv(32)
    p["b1_proj"] = conv(1, 1, 32, 24)
    p["b2_exp"] = conv(1, 1, 24, 48)
    p["b2_dw"] = dwconv(48)
    p["b2_proj"] = conv(1, 1, 48, 40)
    # ---- FPN ----
    p["fpn_lat4"] = conv(1, 1, 24, FPN_C, bn=False)
    p["fpn_lat5"] = conv(1, 1, 40, FPN_C, bn=False)
    p["fpn_out4"] = conv(3, 3, FPN_C, FPN_C, bn=False)
    p["fpn_out5"] = conv(3, 3, FPN_C, FPN_C, bn=False)
    # ---- RPN head (cls & reg 1x1 convs fused into one matmul) ----
    p["rpn_conv"] = conv(3, 3, FPN_C, FPN_C, bn=False)
    rpn_cls = conv(1, 1, FPN_C, NUM_ANCHORS, bn=False)
    rpn_reg = conv(1, 1, FPN_C, 4 * NUM_ANCHORS, bn=False)
    p["rpn_pred"] = {"w": jnp.concatenate([rpn_cls["w"], rpn_reg["w"]], axis=1),
                     "s": jnp.concatenate([rpn_cls["s"], rpn_reg["s"]], axis=1),
                     "b": jnp.concatenate([rpn_cls["b"], rpn_reg["b"]], axis=1),
                     "kh": 1, "kw": 1, "cout": 5 * NUM_ANCHORS}
    # ---- box head (TwoMLPHead) + FastRCNNPredictor(in_features, 3) ----
    in_feat = ROI_SIZE * ROI_SIZE * FPN_C
    p["fc6_w"] = nrm((in_feat, REP_SIZE)).astype(jnp.bfloat16)
    p["fc6_b"] = nrm((REP_SIZE,)).reshape(1, REP_SIZE)
    p["fc7_w"] = nrm((REP_SIZE, REP_SIZE)).astype(jnp.bfloat16)
    p["fc7_b"] = nrm((REP_SIZE,)).reshape(1, REP_SIZE)
    cls_w = nrm((REP_SIZE, NUM_CLASSES)); cls_b = nrm((NUM_CLASSES,))
    box_w = nrm((REP_SIZE, 4 * NUM_CLASSES)); box_b = nrm((4 * NUM_CLASSES,))
    p["pred_w"] = jnp.concatenate([cls_w, box_w], axis=1).astype(jnp.bfloat16)
    p["pred_b"] = jnp.concatenate([cls_b, box_b]).reshape(1, 5 * NUM_CLASSES)
    return p


# ---------------------------------------------------------------------------
# forward pass
# ---------------------------------------------------------------------------
def forward(params, images):
    # images: list of (3, H, W) float32 tensors (PyTorch CHW convention)
    x = jnp.stack(images, axis=0)            # (N, 3, H, W)
    x = jnp.transpose(x, (0, 2, 3, 1))       # -> NHWC
    # TODO(synk): GeneralizedRCNNTransform (resize to ~320px, ImageNet mean/std
    # normalization, batch padding) omitted; inputs are consumed as-is.
    N, H, W, _ = x.shape
    p = params

    # ---------- backbone ----------
    t = conv_bn_act(x, p["stem"], "hardswish", stride=2, padding=1)

    u = conv_bn_act(t, p["b1_exp"], "hardswish")
    u = depthwise3x3_s2_bn_act(u, p["b1_dw"], "hardswish")
    c4 = conv_bn_act(u, p["b1_proj"], "none")                 # (N, H/4, W/4, 24)

    v = conv_bn_act(c4, p["b2_exp"], "hardswish")
    v = depthwise3x3_s2_bn_act(v, p["b2_dw"], "hardswish")
    c5 = conv_bn_act(v, p["b2_proj"], "none")                 # (N, H/8, W/8, 40)

    # ---------- FPN ----------
    lat4 = conv_bn_act(c4, p["fpn_lat4"], "none")
    lat5 = conv_bn_act(c5, p["fpn_lat5"], "none")
    p5 = conv_bn_act(lat5, p["fpn_out5"], "none", stride=1, padding=1)
    # TODO(synk): fuse the 2x nearest upsample + add into the fpn_out4 conv's
    # input preparation (currently a bf16 XLA elementwise pass).
    td = jnp.repeat(jnp.repeat(lat5, 2, axis=1), 2, axis=2)   # nearest 2x
    p4 = conv_bn_act(lat4 + td, p["fpn_out4"], "none", stride=1, padding=1)
    p6 = p5[:, ::2, ::2, :]                                    # LastLevelMaxPool

    # ---------- RPN head ----------
    objectness, rpn_deltas = [], []
    for feat in (p4, p5, p6):
        h = conv_bn_act(feat, p["rpn_conv"], "relu", stride=1, padding=1)
        pred = conv_bn_act(h, p["rpn_pred"], "none")   # fused cls+reg 1x1
        cl = pred[..., :NUM_ANCHORS]
        rg = pred[..., NUM_ANCHORS:]
        objectness.append(cl.reshape(N, -1))
        rpn_deltas.append(rg.reshape(N, -1, 4))
    objectness = jnp.concatenate(objectness, axis=1).astype(jnp.float32)
    rpn_deltas = jnp.concatenate(rpn_deltas, axis=1).astype(jnp.float32)

    # TODO(synk): anchor generation, proposal decoding, score top-k and NMS are
    # data-dependent (dynamic shapes / sorting); fixed full-image proposals used.
    proposals = jnp.tile(
        jnp.array([[0.0, 0.0, float(W), float(H)]], jnp.float32),
        (N * NUM_PROPOSALS, 1))

    # TODO(synk): MultiScaleRoIAlign with bilinear sampling of dynamic boxes is
    # replaced by adaptive average pooling of level p4 (full-image proposals).
    Hp4, Wp4 = p4.shape[1], p4.shape[2]
    pooled = p4.astype(jnp.float32).reshape(
        N, ROI_SIZE, Hp4 // ROI_SIZE, ROI_SIZE, Wp4 // ROI_SIZE,
        FPN_C).mean(axis=(2, 4))
    flat = jnp.tile(pooled.reshape(N, 1, -1), (1, NUM_PROPOSALS, 1))
    flat = flat.reshape(N * NUM_PROPOSALS, ROI_SIZE * ROI_SIZE * FPN_C)

    # ---------- box head + FastRCNNPredictor(in_features, 3) ----------
    cls_logits, box_regression = box_head(flat, p)
    scores = jax.nn.softmax(cls_logits, axis=-1)
    labels = jnp.argmax(scores, axis=-1)
    # TODO(synk): per-class box decoding, score thresholding and batched NMS of
    # roi_heads.postprocess_detections omitted (dynamic output sizes).

    return {
        "rpn_objectness": objectness,
        "rpn_box_deltas": rpn_deltas,
        "proposals": proposals.reshape(N, NUM_PROPOSALS, 4),
        "class_logits": cls_logits.reshape(N, NUM_PROPOSALS, NUM_CLASSES),
        "box_regression": box_regression.reshape(N, NUM_PROPOSALS,
                                                 4 * NUM_CLASSES),
        "scores": scores.reshape(N, NUM_PROPOSALS, NUM_CLASSES),
        "labels": labels.reshape(N, NUM_PROPOSALS),
    }


if __name__ == "__main__":
    key = jax.random.PRNGKey(0)
    pkey, ikey = jax.random.split(key)
    params = init_params(pkey)
    k1, k2 = jax.random.split(ikey)
    # module expects a List[Tensor] of CHW images (real size (3,480,640); small here)
    images = [jax.random.uniform(k1, (3, 32, 32), jnp.float32),
              jax.random.uniform(k2, (3, 32, 32), jnp.float32)]
    out = forward(params, images)
    jax.block_until_ready(out)
    print("KERNEL_OK")
</pallas_src>

<mosaic_0001>
module attributes {stable_mosaic.version = 11 : i64} {
  func.func @_tap_conv_kernel(%arg0: memref<4x610x3xbf16, #tpu.memory_space<vmem>>, %arg1: memref<9x3x16xbf16, #tpu.memory_space<vmem>>, %arg2: memref<1x16xf32, #tpu.memory_space<vmem>>, %arg3: memref<1x16xf32, #tpu.memory_space<vmem>>, %arg4: memref<592x16xbf16, #tpu.memory_space<vmem>>) attributes {dimension_semantics = [], scalar_prefetch = 0 : i64, scratch_operands = 0 : i64, tpu.core_type = #tpu.core_type<tc>} {
    %c0 = arith.constant 0 : index
    %c0_0 = arith.constant 0 : index
    %c0_1 = arith.constant 0 : index
    %0 = vector.load %arg0[%c0, %c0_0, %c0_1] : memref<4x610x3xbf16, #tpu.memory_space<vmem>>, vector<1x610x3xbf16>
    %1 = vector.shape_cast %0 : vector<1x610x3xbf16> to vector<610x3xbf16>
    %2 = arith.extf %1 : vector<610x3xbf16> to vector<610x3xf32>
    %3 = vector.extract_strided_slice %2 {offsets = [0, 0], sizes = [592, 3], strides = [1, 1]} : vector<610x3xf32> to vector<592x3xf32>
    %c0_2 = arith.constant 0 : index
    %c0_3 = arith.constant 0 : index
    %c0_4 = arith.constant 0 : index
    %4 = vector.load %arg1[%c0_2, %c0_3, %c0_4] : memref<9x3x16xbf16, #tpu.memory_space<vmem>>, vector<1x3x16xbf16>
    %5 = vector.shape_cast %4 : vector<1x3x16xbf16> to vector<3x16xbf16>
    %6 = arith.extf %5 : vector<3x16xbf16> to vector<3x16xf32>
    %cst = arith.constant dense<0.000000e+00> : vector<592x16xf32>
    %7 = tpu.matmul %3, %6, %cst {dimension_numbers = #tpu.dot_dimension_numbers<[1], [0], [0], [1], [0, 0, 1, 1], [], []>} : vector<592x3xf32>, vector<3x16xf32>, vector<592x16xf32> -> vector<592x16xf32>
    %c1 = arith.constant 1 : index
    %c0_5 = arith.constant 0 : index
    %c0_6 = arith.constant 0 : index
    %8 = vector.load %arg0[%c1, %c0_5, %c0_6] : memref<4x610x3xbf16, #tpu.memory_space<vmem>>, vector<1x610x3xbf16>
    %9 = vector.shape_cast %8 : vector<1x610x3xbf16> to vector<610x3xbf16>
    %10 = arith.extf %9 : vector<610x3xbf16> to vector<610x3xf32>
    %11 = vector.extract_strided_slice %10 {offsets = [0, 0], sizes = [592, 3], strides = [1, 1]} : vector<610x3xf32> to vector<592x3xf32>
    %c1_7 = arith.constant 1 : index
    %c0_8 = arith.constant 0 : index
    %c0_9 = arith.constant 0 : index
    %12 = vector.load %arg1[%c1_7, %c0_8, %c0_9] : memref<9x3x16xbf16, #tpu.memory_space<vmem>>, vector<1x3x16xbf16>
    %13 = vector.shape_cast %12 : vector<1x3x16xbf16> to vector<3x16xbf16>
    %14 = arith.extf %13 : vector<3x16xbf16> to vector<3x16xf32>
    %cst_10 = arith.constant dense<0.000000e+00> : vector<592x16xf32>
    %15 = tpu.matmul %11, %14, %cst_10 {dimension_numbers = #tpu.dot_dimension_numbers<[1], [0], [0], [1], [0, 0, 1, 1], [], []>} : vector<592x3xf32>, vector<3x16xf32>, vector<592x16xf32> -> vector<592x16xf32>
    %16 = arith.addf %7, %15 : vector<592x16xf32>
    %17 = vector.extract_strided_slice %2 {offsets = [1, 0], sizes = [592, 3], strides = [1, 1]} : vector<610x3xf32> to vector<592x3xf32>
    %c2 = arith.constant 2 : index
    %c0_11 = arith.constant 0 : index
    %c0_12 = arith.constant 0 : index
    %18 = vector.load %arg1[%c2, %c0_11, %c0_12] : memref<9x3x16xbf16, #tpu.memory_space<vmem>>, vector<1x3x16xbf16>
    %19 = vector.shape_cast %18 : vector<1x3x16xbf16> to vector<3x16xbf16>
    %20 = arith.extf %19 : vector<3x16xbf16> to vector<3x16xf32>
    %cst_13 = arith.constant dense<0.000000e+00> : vector<592x16xf32>
    %21 = tpu.matmul %17, %20, %cst_13 {dimension_numbers = #tpu.dot_dimension_numbers<[1], [0], [0], [1], [0, 0, 1, 1], [], []>} : vector<592x3xf32>, vector<3x16xf32>, vector<592x16xf32> -> vector<592x16xf32>
    %22 = arith.addf %16, %21 : vector<592x16xf32>
    %c2_14 = arith.constant 2 : index
    %c0_15 = arith.constant 0 : index
    %c0_16 = arith.constant 0 : index
    %23 = vector.load %arg0[%c2_14, %c0_15, %c0_16] : memref<4x610x3xbf16, #tpu.memory_space<vmem>>, vector<1x610x3xbf16>
    %24 = vector.shape_cast %23 : vector<1x610x3xbf16> to vector<610x3xbf16>
    %25 = arith.extf %24 : vector<610x3xbf16> to vector<610x3xf32>
    %26 = vector.extract_strided_slice %25 {offsets = [0, 0], sizes = [592, 3], strides = [1, 1]} : vector<610x3xf32> to vector<592x3xf32>
    %c3 = arith.constant 3 : index
    %c0_17 = arith.constant 0 : index
    %c0_18 = arith.constant 0 : index
    %27 = vector.load %arg1[%c3, %c0_17, %c0_18] : memref<9x3x16xbf16, #tpu.memory_space<vmem>>, vector<1x3x16xbf16>
    %28 = vector.shape_cast %27 : vector<1x3x16xbf16> to vector<3x16xbf16>
    %29 = arith.extf %28 : vector<3x16xbf16> to vector<3x16xf32>
    %cst_19 = arith.constant dense<0.000000e+00> : vector<592x16xf32>
    %30 = tpu.matmul %26, %29, %cst_19 {dimension_numbers = #tpu.dot_dimension_numbers<[1], [0], [0], [1], [0, 0, 1, 1], [], []>} : vector<592x3xf32>, vector<3x16xf32>, vector<592x16xf32> -> vector<592x16xf32>
    %31 = arith.addf %22, %30 : vector<592x16xf32>
    %c3_20 = arith.constant 3 : index
    %c0_21 = arith.constant 0 : index
    %c0_22 = arith.constant 0 : index
    %32 = vector.load %arg0[%c3_20, %c0_21, %c0_22] : memref<4x610x3xbf16, #tpu.memory_space<vmem>>, vector<1x610x3xbf16>
    %33 = vector.shape_cast %32 : vector<1x610x3xbf16> to vector<610x3xbf16>
    %34 = arith.extf %33 : vector<610x3xbf16> to vector<610x3xf32>
    %35 = vector.extract_strided_slice %34 {offsets = [0, 0], sizes = [592, 3], strides = [1, 1]} : vector<610x3xf32> to vector<592x3xf32>
    %c4 = arith.constant 4 : index
    %c0_23 = arith.constant 0 : index
    %c0_24 = arith.constant 0 : index
    %36 = vector.load %arg1[%c4, %c0_23, %c0_24] : memref<9x3x16xbf16, #tpu.memory_space<vmem>>, vector<1x3x16xbf16>
    %37 = vector.shape_cast %36 : vector<1x3x16xbf16> to vector<3x16xbf16>
    %38 = arith.extf %37 : vector<3x16xbf16> to vector<3x16xf32>
    %cst_25 = arith.constant dense<0.000000e+00> : vector<592x16xf32>
    %39 = tpu.matmul %35, %38, %cst_25 {dimension_numbers = #tpu.dot_dimension_numbers<[1], [0], [0], [1], [0, 0, 1, 1], [], []>} : vector<592x3xf32>, vector<3x16xf32>, vector<592x16xf32> -> vector<592x16xf32>
    %40 = arith.addf %31, %39 : vector<592x16xf32>
    %41 = vector.extract_strided_slice %25 {offsets = [1, 0], sizes = [592, 3], strides = [1, 1]} : vector<610x3xf32> to vector<592x3xf32>
    %c5 = arith.constant 5 : index
    %c0_26 = arith.constant 0 : index
    %c0_27 = arith.constant 0 : index
    %42 = vector.load %arg1[%c5, %c0_26, %c0_27] : memref<9x3x16xbf16, #tpu.memory_space<vmem>>, vector<1x3x16xbf16>
    %43 = vector.shape_cast %42 : vector<1x3x16xbf16> to vector<3x16xbf16>
    %44 = arith.extf %43 : vector<3x16xbf16> to vector<3x16xf32>
    %cst_28 = arith.constant dense<0.000000e+00> : vector<592x16xf32>
    %45 = tpu.matmul %41, %44, %cst_28 {dimension_numbers = #tpu.dot_dimension_numbers<[1], [0], [0], [1], [0, 0, 1, 1], [], []>} : vector<592x3xf32>, vector<3x16xf32>, vector<592x16xf32> -> vector<592x16xf32>
    %46 = arith.addf %40, %45 : vector<592x16xf32>
    %47 = vector.extract_strided_slice %2 {offsets = [17, 0], sizes = [592, 3], strides = [1, 1]} : vector<610x3xf32> to vector<592x3xf32>
    %c6 = arith.constant 6 : index
    %c0_29 = arith.constant 0 : index
    %c0_30 = arith.constant 0 : index
    %48 = vector.load %arg1[%c6, %c0_29, %c0_30] : memref<9x3x16xbf16, #tpu.memory_space<vmem>>, vector<1x3x16xbf16>
    %49 = vector.shape_cast %48 : vector<1x3x16xbf16> to vector<3x16xbf16>
    %50 = arith.extf %49 : vector<3x16xbf16> to vector<3x16xf32>
    %cst_31 = arith.constant dense<0.000000e+00> : vector<592x16xf32>
    %51 = tpu.matmul %47, %50, %cst_31 {dimension_numbers = #tpu.dot_dimension_numbers<[1], [0], [0], [1], [0, 0, 1, 1], [], []>} : vector<592x3xf32>, vector<3x16xf32>, vector<592x16xf32> -> vector<592x16xf32>
    %52 = arith.addf %46, %51 : vector<592x16xf32>
    %53 = vector.extract_strided_slice %10 {offsets = [17, 0], sizes = [592, 3], strides = [1, 1]} : vector<610x3xf32> to vector<592x3xf32>
    %c7 = arith.constant 7 : index
    %c0_32 = arith.constant 0 : index
    %c0_33 = arith.constant 0 : index
    %54 = vector.load %arg1[%c7, %c0_32, %c0_33] : memref<9x3x16xbf16, #tpu.memory_space<vmem>>, vector<1x3x16xbf16>
    %55 = vector.shape_cast %54 : vector<1x3x16xbf16> to vector<3x16xbf16>
    %56 = arith.extf %55 : vector<3x16xbf16> to vector<3x16xf32>
    %cst_34 = arith.constant dense<0.000000e+00> : vector<592x16xf32>
    %57 = tpu.matmul %53, %56, %cst_34 {dimension_numbers = #tpu.dot_dimension_numbers<[1], [0], [0], [1], [0, 0, 1, 1], [], []>} : vector<592x3xf32>, vector<3x16xf32>, vector<592x16xf32> -> vector<592x16xf32>
    %58 = arith.addf %52, %57 : vector<592x16xf32>
    %59 = vector.extract_strided_slice %2 {offsets = [18, 0], sizes = [592, 3], strides = [1, 1]} : vector<610x3xf32> to vector<592x3xf32>
    %c8 = arith.constant 8 : index
    %c0_35 = arith.constant 0 : index
    %c0_36 = arith.constant 0 : index
    %60 = vector.load %arg1[%c8, %c0_35, %c0_36] : memref<9x3x16xbf16, #tpu.memory_space<vmem>>, vector<1x3x16xbf16>
    %61 = vector.shape_cast %60 : vector<1x3x16xbf16> to vector<3x16xbf16>
    %62 = arith.extf %61 : vector<3x16xbf16> to vector<3x16xf32>
    %cst_37 = arith.constant dense<0.000000e+00> : vector<592x16xf32>
    %63 = tpu.matmul %59, %62, %cst_37 {dimension_numbers = #tpu.dot_dimension_numbers<[1], [0], [0], [1], [0, 0, 1, 1], [], []>} : vector<592x3xf32>, vector<3x16xf32>, vector<592x16xf32> -> vector<592x16xf32>
    %64 = arith.addf %58, %63 : vector<592x16xf32>
    %c0_38 = arith.constant 0 : index
    %c0_39 = arith.constant 0 : index
    %65 = vector.load %arg2[%c0_38, %c0_39] : memref<1x16xf32, #tpu.memory_space<vmem>>, vector<1x16xf32>
    %66 = vector.broadcast %65 : vector<1x16xf32> to vector<592x16xf32>
    %67 = arith.mulf %64, %66 : vector<592x16xf32>
    %c0_40 = arith.constant 0 : index
    %c0_41 = arith.constant 0 : index
    %68 = vector.load %arg3[%c0_40, %c0_41] : memref<1x16xf32, #tpu.memory_space<vmem>>, vector<1x16xf32>
    %69 = vector.broadcast %68 : vector<1x16xf32> to vector<592x16xf32>
    %70 = arith.addf %67, %69 : vector<592x16xf32>
    %cst_42 = arith.constant 3.000000e+00 : f32
    %71 = vector.broadcast %cst_42 : f32 to vector<592x16xf32>
    %72 = arith.addf %70, %71 : vector<592x16xf32>
    %cst_43 = arith.constant 0.000000e+00 : f32
    %cst_44 = arith.constant 6.000000e+00 : f32
    %73 = vector.broadcast %cst_43 : f32 to vector<592x16xf32>
    %74 = arith.maximumf %73, %72 : vector<592x16xf32>
    %75 = vector.broadcast %cst_44 : f32 to vector<592x16xf32>
    %76 = arith.minimumf %75, %74 : vector<592x16xf32>
    %77 = arith.mulf %70, %76 : vector<592x16xf32>
    %cst_45 = arith.constant 0.166666672 : f32
    %78 = vector.broadcast %cst_45 : f32 to vector<592x16xf32>
    %79 = arith.mulf %77, %78 : vector<592x16xf32>
    %80 = arith.truncf %79 : vector<592x16xf32> to vector<592x16xbf16>
    %c0_46 = arith.constant 0 : index
    %c0_47 = arith.constant 0 : index
    %81 = vector.load %arg4[%c0_46, %c0_47] : memref<592x16xbf16, #tpu.memory_space<vmem>>, vector<592x16xbf16>
    tpu.vector_store %arg4[%c0_46, %c0_47], %80 {strides = array<i32>} : memref<592x16xbf16, #tpu.memory_space<vmem>>, vector<592x16xbf16>,
    return
  }
}

</mosaic_0001>

<llo_original>
// kernel: tpu_custom_call.1
$region0: #{tpu_custom_call.1}
  #allocation0 [shape = 'u32[]', space=smem, size = 0x4, offset = 0x4, fixed_abs, tag = 'smem constant byte address 0x4 - core index']
  #allocation1 [shape = 'u32[144,128]{1,0:T(1,128)}', space=vmem, size = 0x12000, scoped, tag = 'internal scratch']
  %s0 = inlined_call_operand.vmem [shape: bf16[4,610,3], index: 0, kind: input, shape index: {}]
  %s1 = inlined_call_operand.vmem [shape: bf16[9,3,16], index: 1, kind: input, shape index: {}]
  %s2 = inlined_call_operand.vmem [shape: f32[1,16], index: 2, kind: input, shape index: {}]
  %s3 = inlined_call_operand.vmem [shape: f32[1,16], index: 3, kind: input, shape index: {}]
  %s4 = inlined_call_operand.vmem [shape: bf16[592,16], index: 4, kind: output, shape index: {}]
  %s5 = sld [smem:[#allocation0]]
  $region26: #{tpu_custom_call.1} parent=0
    _
  %s7 = ssub.s32 1, %s5
  %s8 = scalar_select 0, %s7, %s5
  // Predicated region
  $region2: #{tpu_custom_call.1} parent=0 // pred_check
    _
  $region3: #{tpu_custom_call.1} parent=0 // pred_check_branch
    %10 = sbr.rel (0) target = $region5
  $region4: #{tpu_custom_call.1} parent=0 // pred_region
    _
  $region5: #{tpu_custom_call.1} parent=0 // pred_fallthru
    _
  // Predicated region
  $region6: #{tpu_custom_call.1} parent=0 // pred_check
    _
  $region7: #{tpu_custom_call.1} parent=0 // pred_check_branch
    %12 = sbr.rel (0) target = $region9
  $region8: #{tpu_custom_call.1} parent=0 // pred_region
    _
  $region9: #{tpu_custom_call.1} parent=0 // pred_fallthru
    _
  // Predicated region
  $region10: #{tpu_custom_call.1} parent=0 // pred_check
    _
  $region11: #{tpu_custom_call.1} parent=0 // pred_check_branch
    %14 = sbr.rel (0) target = $region13
  $region12: #{tpu_custom_call.1} parent=0 // pred_region
    _
  $region13: #{tpu_custom_call.1} parent=0 // pred_fallthru
    _
  // Predicated region
  $region14: #{tpu_custom_call.1} parent=0 // pred_check
    _
  $region15: #{tpu_custom_call.1} parent=0 // pred_check_branch
    %16 = sbr.rel (0) target = $region17
  $region16: #{tpu_custom_call.1} parent=0 // pred_region
    _
  $region17: #{tpu_custom_call.1} parent=0 // pred_fallthru
    _
  %v17 = vld [vmem:[%s0] sm:$0xf]
  %v18 = vld [vmem:[%s0 + $0x4] sm:$0xf]
  %v19 = vld [vmem:[%s0 + $0x8] sm:$0xf]
  %v20 = vld [vmem:[%s0 + $0xc] sm:$0xf]
  %v21 = vld [vmem:[%s0 + $0x10] sm:$0xf]
  %v22 = vld [vmem:[%s0 + $0x14] sm:$0xf]
  %v23 = vld [vmem:[%s0 + $0x18] sm:$0xf]
  %v24 = vld [vmem:[%s0 + $0x1c] sm:$0xf]
  %v25 = vld [vmem:[%s0 + $0x20] sm:$0xf]
  %v26 = vld [vmem:[%s0 + $0x24] sm:$0xf]
  %v27 = vld [vmem:[%s0 + $0x28] sm:$0xf]
  %v28 = vld [vmem:[%s0 + $0x2c] sm:$0xf]
  %v29 = vld [vmem:[%s0 + $0x30] sm:$0xf]
  %v30 = vld [vmem:[%s0 + $0x34] sm:$0xf]
  %v31 = vld [vmem:[%s0 + $0x38] sm:$0xf]
  %v32 = vld [vmem:[%s0 + $0x3c] sm:$0xf]
  %v33 = vld [vmem:[%s0 + $0x40] sm:$0xf]
  %v34 = vld [vmem:[%s0 + $0x44] sm:$0xf]
  %v35 = vld [vmem:[%s0 + $0x48] sm:$0xf]
  %v36 = vld [vmem:[%s0 + $0x4c] sm:$0xf]
  %v37 = vld [vmem:[%s0 + $0x50] sm:$0xf]
  %v38 = vld [vmem:[%s0 + $0x54] sm:$0xf]
  %v39 = vld [vmem:[%s0 + $0x58] sm:$0xf]
  %v40 = vld [vmem:[%s0 + $0x5c] sm:$0xf]
  %v41 = vld [vmem:[%s0 + $0x60] sm:$0xf]
  %v42 = vld [vmem:[%s0 + $0x64] sm:$0xf]
  %v43 = vld [vmem:[%s0 + $0x68] sm:$0xf]
  %v44 = vld [vmem:[%s0 + $0x6c] sm:$0xf]
  %v45 = vld [vmem:[%s0 + $0x70] sm:$0xf]
  %v46 = vld [vmem:[%s0 + $0x74] sm:$0xf]
  %v47 = vld [vmem:[%s0 + $0x78] sm:$0xf]
  %v48 = vld [vmem:[%s0 + $0x7c] sm:$0xf]
  %v49 = vld [vmem:[%s0 + $0x80] sm:$0xf]
  %v50 = vld [vmem:[%s0 + $0x84] sm:$0xf]
  %v51 = vld [vmem:[%s0 + $0x88] sm:$0xf]
  %v52 = vld [vmem:[%s0 + $0x8c] sm:$0xf]
  %v53 = vld [vmem:[%s0 + $0x90] sm:$0xf]
  %v54 = vld [vmem:[%s0 + $0x94] sm:$0xf]
  %v55 = vld [vmem:[%s0 + $0x98] sm:$0xf]
  %v56 = vld [vmem:[%s0 + $0x9c] sm:$0xf]
  %v57 = vld [vmem:[%s0 + $0xa0] sm:$0xf]
  %v58 = vld [vmem:[%s0 + $0xa4] sm:$0xf]
  %v59 = vld [vmem:[%s0 + $0xa8] sm:$0xf]
  %v60 = vld [vmem:[%s0 + $0xac] sm:$0xf]
  %v61 = vld [vmem:[%s0 + $0xb0] sm:$0xf]
  %v62 = vld [vmem:[%s0 + $0xb4] sm:$0xf]
  %v63 = vld [vmem:[%s0 + $0xb8] sm:$0xf]
  %v64 = vld [vmem:[%s0 + $0xbc] sm:$0xf]
  %v65 = vld [vmem:[%s0 + $0xc0] sm:$0xf]
  %v66 = vld [vmem:[%s0 + $0xc4] sm:$0xf]
  %v67 = vld [vmem:[%s0 + $0xc8] sm:$0xf]
  %v68 = vld [vmem:[%s0 + $0xcc] sm:$0xf]
  %v69 = vld [vmem:[%s0 + $0xd0] sm:$0xf]
  %v70 = vld [vmem:[%s0 + $0xd4] sm:$0xf]
  %v71 = vld [vmem:[%s0 + $0xd8] sm:$0xf]
  %v72 = vld [vmem:[%s0 + $0xdc] sm:$0xf]
  %v73 = vld [vmem:[%s0 + $0xe0] sm:$0xf]
  %v74 = vld [vmem:[%s0 + $0xe4] sm:$0xf]
  %v75 = vld [vmem:[%s0 + $0xe8] sm:$0xf]
  %v76 = vld [vmem:[%s0 + $0xec] sm:$0xf]
  %v77 = vld [vmem:[%s0 + $0xf0] sm:$0xf]
  %v78 = vld [vmem:[%s0 + $0xf4] sm:$0xf]
  %v79 = vld [vmem:[%s0 + $0xf8] sm:$0xf]
  %v80 = vld [vmem:[%s0 + $0xfc] sm:$0xf]
  %v81 = vld [vmem:[%s0 + $0x100] sm:$0xf]
  %v82 = vld [vmem:[%s0 + $0x104] sm:$0xf]
  %v83 = vld [vmem:[%s0 + $0x108] sm:$0xf]
  %v84 = vld [vmem:[%s0 + $0x10c] sm:$0xf]
  %v85 = vld [vmem:[%s0 + $0x110] sm:$0xf]
  %v86 = vld [vmem:[%s0 + $0x114] sm:$0xf]
  %v87 = vld [vmem:[%s0 + $0x118] sm:$0xf]
  %v88 = vld [vmem:[%s0 + $0x11c] sm:$0xf]
  %v89 = vld [vmem:[%s0 + $0x120] sm:$0xf]
  %v90 = vld [vmem:[%s0 + $0x124] sm:$0xf]
  %v91 = vld [vmem:[%s0 + $0x128] sm:$0xf]
  %v92 = vld [vmem:[%s0 + $0x12c] sm:$0xf]
  %v93 = vld [vmem:[%s0 + $0x130] sm:$0x1]
  %v94 = vunpack.c.l.bf16 %v17
  %v95 = vunpack.c.l.bf16 %v18
  %v96 = vunpack.c.l.bf16 %v19
  %v97 = vunpack.c.l.bf16 %v20
  %v98 = vunpack.c.l.bf16 %v21
  %v99 = vunpack.c.l.bf16 %v22
  %v100 = vunpack.c.l.bf16 %v23
  %v101 = vunpack.c.l.bf16 %v24
  %v102 = vunpack.c.l.bf16 %v25
  %v103 = vunpack.c.l.bf16 %v26
  %v104 = vunpack.c.l.bf16 %v27
  %v105 = vunpack.c.l.bf16 %v28
  %v106 = vunpack.c.l.bf16 %v29
  %v107 = vunpack.c.l.bf16 %v30
  %v108 = vunpack.c.l.bf16 %v31
  %v109 = vunpack.c.l.bf16 %v32
  %v110 = vunpack.c.l.bf16 %v33
  %v111 = vunpack.c.l.bf16 %v34
  %v112 = vunpack.c.l.bf16 %v35
  %v113 = vunpack.c.l.bf16 %v36
  %v114 = vunpack.c.l.bf16 %v37
  %v115 = vunpack.c.l.bf16 %v38
  %v116 = vunpack.c.l.bf16 %v39
  %v117 = vunpack.c.l.bf16 %v40
  %v118 = vunpack.c.l.bf16 %v41
  %v119 = vunpack.c.l.bf16 %v42
  %v120 = vunpack.c.l.bf16 %v43
  %v121 = vunpack.c.l.bf16 %v44
  %v122 = vunpack.c.l.bf16 %v45
  %v123 = vunpack.c.l.bf16 %v46
  %v124 = vunpack.c.l.bf16 %v47
  %v125 = vunpack.c.l.bf16 %v48
  %v126 = vunpack.c.l.bf16 %v49
  %v127 = vunpack.c.l.bf16 %v50
  %v128 = vunpack.c.l.bf16 %v51
  %v129 = vunpack.c.l.bf16 %v52
  %v130 = vunpack.c.l.bf16 %v53
  %v131 = vunpack.c.l.bf16 %v54
  %v132 = vunpack.c.l.bf16 %v55
  %v133 = vunpack.c.l.bf16 %v56
  %v134 = vunpack.c.l.bf16 %v57
  %v135 = vunpack.c.l.bf16 %v58
  %v136 = vunpack.c.l.bf16 %v59
  %v137 = vunpack.c.l.bf16 %v60
  %v138 = vunpack.c.l.bf16 %v61
  %v139 = vunpack.c.l.bf16 %v62
  %v140 = vunpack.c.l.bf16 %v63
  %v141 = vunpack.c.l.bf16 %v64
  %v142 = vunpack.c.l.bf16 %v65
  %v143 = vunpack.c.l.bf16 %v66
  %v144 = vunpack.c.l.bf16 %v67
  %v145 = vunpack.c.l.bf16 %v68
  %v146 = vunpack.c.l.bf16 %v69
  %v147 = vunpack.c.l.bf16 %v70
  %v148 = vunpack.c.l.bf16 %v71
  %v149 = vunpack.c.l.bf16 %v72
  %v150 = vunpack.c.l.bf16 %v73
  %v151 = vunpack.c.l.bf16 %v74
  %v152 = vunpack.c.l.bf16 %v75
  %v153 = vunpack.c.l.bf16 %v76
  %v154 = vunpack.c.l.bf16 %v77
  %v155 = vunpack.c.l.bf16 %v78
  %v156 = vunpack.c.l.bf16 %v79
  %v157 = vunpack.c.l.bf16 %v80
  %v158 = vunpack.c.l.bf16 %v81
  %v159 = vunpack.c.l.bf16 %v82
  %v160 = vunpack.c.l.bf16 %v83
  %v161 = vunpack.c.l.bf16 %v84
  %v162 = vunpack.c.l.bf16 %v85
  %v163 = vunpack.c.l.bf16 %v86
  %v164 = vunpack.c.l.bf16 %v87
  %v165 = vunpack.c.l.bf16 %v88
  %v166 = vunpack.c.l.bf16 %v89
  %v167 = vunpack.c.l.bf16 %v90
  %v168 = vunpack.c.l.bf16 %v91
  %v169 = vunpack.c.l.bf16 %v92
  %v170 = vunpack.c.l.bf16 %v93
  %v171 = vld [vmem:[%s1] sm:$0x3]
  %v172 = vunpack.c.l.bf16 %v171
  %s173 = scalar_lea.vmem %s0, 308
  %v174 = vld [vmem:[%s173] sm:$0xf]
  %v175 = vld [vmem:[%s173 + $0x4] sm:$0xf]
  %v176 = vld [vmem:[%s173 + $0x8] sm:$0xf]
  %v177 = vld [vmem:[%s173 + $0xc] sm:$0xf]
  %v178 = vld [vmem:[%s173 + $0x10] sm:$0xf]
  %v179 = vld [vmem:[%s173 + $0x14] sm:$0xf]
  %v180 = vld [vmem:[%s173 + $0x18] sm:$0xf]
  %v181 = vld [vmem:[%s173 + $0x1c] sm:$0xf]
  %v182 = vld [vmem:[%s173 + $0x20] sm:$0xf]
  %v183 = vld [vmem:[%s173 + $0x24] sm:$0xf]
  %v184 = vld [vmem:[%s173 + $0x28] sm:$0xf]
  %v185 = vld [vmem:[%s173 + $0x2c] sm:$0xf]
  %v186 = vld [vmem:[%s173 + $0x30] sm:$0xf]
  %v187 = vld [vmem:[%s173 + $0x34] sm:$0xf]
  %v188 = vld [vmem:[%s173 + $0x38] sm:$0xf]
  %v189 = vld [vmem:[%s173 + $0x3c] sm:$0xf]
  %v190 = vld [vmem:[%s173 + $0x40] sm:$0xf]
  %v191 = vld [vmem:[%s173 + $0x44] sm:$0xf]
  %v192 = vld [vmem:[%s173 + $0x48] sm:$0xf]
  %v193 = vld [vmem:[%s173 + $0x4c] sm:$0xf]
  %v194 = vld [vmem:[%s173 + $0x50] sm:$0xf]
  %v195 = vld [vmem:[%s173 + $0x54] sm:$0xf]
  %v196 = vld [vmem:[%s173 + $0x58] sm:$0xf]
  %v197 = vld [vmem:[%s173 + $0x5c] sm:$0xf]
  %v198 = vld [vmem:[%s173 + $0x60] sm:$0xf]
  %v199 = vld [vmem:[%s173 + $0x64] sm:$0xf]
  %v200 = vld [vmem:[%s173 + $0x68] sm:$0xf]
  %v201 = vld [vmem:[%s173 + $0x6c] sm:$0xf]
  %v202 = vld [vmem:[%s173 + $0x70] sm:$0xf]
  %v203 = vld [vmem:[%s173 + $0x74] sm:$0xf]
  %v204 = vld [vmem:[%s173 + $0x78] sm:$0xf]
  %v205 = vld [vmem:[%s173 + $0x7c] sm:$0xf]
  %v206 = vld [vmem:[%s173 + $0x80] sm:$0xf]
  %v207 = vld [vmem:[%s173 + $0x84] sm:$0xf]
  %v208 = vld [vmem:[%s173 + $0x88] sm:$0xf]
  %v209 = vld [vmem:[%s173 + $0x8c] sm:$0xf]
  %v210 = vld [vmem:[%s173 + $0x90] sm:$0xf]
  %v211 = vld [vmem:[%s173 + $0x94] sm:$0xf]
  %v212 = vld [vmem:[%s173 + $0x98] sm:$0xf]
  %v213 = vld [vmem:[%s173 + $0x9c] sm:$0xf]
  %v214 = vld [vmem:[%s173 + $0xa0] sm:$0xf]
  %v215 = vld [vmem:[%s173 + $0xa4] sm:$0xf]
  %v216 = vld [vmem:[%s173 + $0xa8] sm:$0xf]
  %v217 = vld [vmem:[%s173 + $0xac] sm:$0xf]
  %v218 = vld [vmem:[%s173 + $0xb0] sm:$0xf]
  %v219 = vld [vmem:[%s173 + $0xb4] sm:$0xf]
  %v220 = vld [vmem:[%s173 + $0xb8] sm:$0xf]
  %v221 = vld [vmem:[%s173 + $0xbc] sm:$0xf]
  %v222 = vld [vmem:[%s173 + $0xc0] sm:$0xf]
  %v223 = vld [vmem:[%s173 + $0xc4] sm:$0xf]
  %v224 = vld [vmem:[%s173 + $0xc8] sm:$0xf]
  %v225 = vld [vmem:[%s173 + $0xcc] sm:$0xf]
  %v226 = vld [vmem:[%s173 + $0xd0] sm:$0xf]
  %v227 = vld [vmem:[%s173 + $0xd4] sm:$0xf]
  %v228 = vld [vmem:[%s173 + $0xd8] sm:$0xf]
  %v229 = vld [vmem:[%s173 + $0xdc] sm:$0xf]
  %v230 = vld [vmem:[%s173 + $0xe0] sm:$0xf]
  %v231 = vld [vmem:[%s173 + $0xe4] sm:$0xf]
  %v232 = vld [vmem:[%s173 + $0xe8] sm:$0xf]
  %v233 = vld [vmem:[%s173 + $0xec] sm:$0xf]
  %v234 = vld [vmem:[%s173 + $0xf0] sm:$0xf]
  %v235 = vld [vmem:[%s173 + $0xf4] sm:$0xf]
  %v236 = vld [vmem:[%s173 + $0xf8] sm:$0xf]
  %v237 = vld [vmem:[%s173 + $0xfc] sm:$0xf]
  %v238 = vld [vmem:[%s173 + $0x100] sm:$0xf]
  %v239 = vld [vmem:[%s173 + $0x104] sm:$0xf]
  %v240 = vld [vmem:[%s173 + $0x108] sm:$0xf]
  %v241 = vld [vmem:[%s173 + $0x10c] sm:$0xf]
  %v242 = vld [vmem:[%s173 + $0x110] sm:$0xf]
  %v243 = vld [vmem:[%s173 + $0x114] sm:$0xf]
  %v244 = vld [vmem:[%s173 + $0x118] sm:$0xf]
  %v245 = vld [vmem:[%s173 + $0x11c] sm:$0xf]
  %v246 = vld [vmem:[%s173 + $0x120] sm:$0xf]
  %v247 = vld [vmem:[%s173 + $0x124] sm:$0xf]
  %v248 = vld [vmem:[%s173 + $0x128] sm:$0xf]
  %v249 = vld [vmem:[%s173 + $0x12c] sm:$0xf]
  %v250 = vld [vmem:[%s173 + $0x130] sm:$0x1]
  %v251 = vunpack.c.l.bf16 %v174
  %v252 = vunpack.c.l.bf16 %v175
  %v253 = vunpack.c.l.bf16 %v176
  %v254 = vunpack.c.l.bf16 %v177
  %v255 = vunpack.c.l.bf16 %v178
  %v256 = vunpack.c.l.bf16 %v179
  %v257 = vunpack.c.l.bf16 %v180
  %v258 = vunpack.c.l.bf16 %v181
  %v259 = vunpack.c.l.bf16 %v182
  %v260 = vunpack.c.l.bf16 %v183
  %v261 = vunpack.c.l.bf16 %v184
  %v262 = vunpack.c.l.bf16 %v185
  %v263 = vunpack.c.l.bf16 %v186
  %v264 = vunpack.c.l.bf16 %v187
  %v265 = vunpack.c.l.bf16 %v188
  %v266 = vunpack.c.l.bf16 %v189
  %v267 = vunpack.c.l.bf16 %v190
  %v268 = vunpack.c.l.bf16 %v191
  %v269 = vunpack.c.l.bf16 %v192
  %v270 = vunpack.c.l.bf16 %v193
  %v271 = vunpack.c.l.bf16 %v194
  %v272 = vunpack.c.l.bf16 %v195
  %v273 = vunpack.c.l.bf16 %v196
  %v274 = vunpack.c.l.bf16 %v197
  %v275 = vunpack.c.l.bf16 %v198
  %v276 = vunpack.c.l.bf16 %v199
  %v277 = vunpack.c.l.bf16 %v200
  %v278 = vunpack.c.l.bf16 %v201
  %v279 = vunpack.c.l.bf16 %v202
  %v280 = vunpack.c.l.bf16 %v203
  %v281 = vunpack.c.l.bf16 %v204
  %v282 = vunpack.c.l.bf16 %v205
  %v283 = vunpack.c.l.bf16 %v206
  %v284 = vunpack.c.l.bf16 %v207
  %v285 = vunpack.c.l.bf16 %v208
  %v286 = vunpack.c.l.bf16 %v209
  %v287 = vunpack.c.l.bf16 %v210
  %v288 = vunpack.c.l.bf16 %v211
  %v289 = vunpack.c.l.bf16 %v212
  %v290 = vunpack.c.l.bf16 %v213
  %v291 = vunpack.c.l.bf16 %v214
  %v292 = vunpack.c.l.bf16 %v215
  %v293 = vunpack.c.l.bf16 %v216
  %v294 = vunpack.c.l.bf16 %v217
  %v295 = vunpack.c.l.bf16 %v218
  %v296 = vunpack.c.l.bf16 %v219
  %v297 = vunpack.c.l.bf16 %v220
  %v298 = vunpack.c.l.bf16 %v221
  %v299 = vunpack.c.l.bf16 %v222
  %v300 = vunpack.c.l.bf16 %v223
  %v301 = vunpack.c.l.bf16 %v224
  %v302 = vunpack.c.l.bf16 %v225
  %v303 = vunpack.c.l.bf16 %v226
  %v304 = vunpack.c.l.bf16 %v227
  %v305 = vunpack.c.l.bf16 %v228
  %v306 = vunpack.c.l.bf16 %v229
  %v307 = vunpack.c.l.bf16 %v230
  %v308 = vunpack.c.l.bf16 %v231
  %v309 = vunpack.c.l.bf16 %v232
  %v310 = vunpack.c.l.bf16 %v233
  %v311 = vunpack.c.l.bf16 %v234
  %v312 = vunpack.c.l.bf16 %v235
  %v313 = vunpack.c.l.bf16 %v236
  %v314 = vunpack.c.l.bf16 %v237
  %v315 = vunpack.c.l.bf16 %v238
  %v316 = vunpack.c.l.bf16 %v239
  %v317 = vunpack.c.l.bf16 %v240
  %v318 = vunpack.c.l.bf16 %v241
  %v319 = vunpack.c.l.bf16 %v242
  %v320 = vunpack.c.l.bf16 %v243
  %v321 = vunpack.c.l.bf16 %v244
  %v322 = vunpack.c.l.bf16 %v245
  %v323 = vunpack.c.l.bf16 %v246
  %v324 = vunpack.c.l.bf16 %v247
  %v325 = vunpack.c.l.bf16 %v248
  %v326 = vunpack.c.l.bf16 %v249
  %v327 = vunpack.c.l.bf16 %v250
  %s328 = scalar_lea.vmem %s1, 2
  %v329 = vld [vmem:[%s328] sm:$0x3]
  %v330 = vunpack.c.l.bf16 %v329
  %vm331 = vcmask 23552
  %v333 = vsel %vm331, %v251, 0
  %v336 = vsel %vm331, %v252, 0
  %v339 = vsel %vm331, %v253, 0
  %v342 = vsel %vm331, %v254, 0
  %v345 = vsel %vm331, %v255, 0
  %v348 = vsel %vm331, %v256, 0
  %v351 = vsel %vm331, %v257, 0
  %v354 = vsel %vm331, %v258, 0
  %v357 = vsel %vm331, %v259, 0
  %v360 = vsel %vm331, %v260, 0
  %v363 = vsel %vm331, %v261, 0
  %v366 = vsel %vm331, %v262, 0
  %v369 = vsel %vm331, %v263, 0
  %v372 = vsel %vm331, %v264, 0
  %v375 = vsel %vm331, %v265, 0
  %v378 = vsel %vm331, %v266, 0
  %v381 = vsel %vm331, %v267, 0
  %v384 = vsel %vm331, %v268, 0
  %v387 = vsel %vm331, %v269, 0
  %v390 = vsel %vm331, %v270, 0
  %v393 = vsel %vm331, %v271, 0
  %v396 = vsel %vm331, %v272, 0
  %v399 = vsel %vm331, %v273, 0
  %v402 = vsel %vm331, %v274, 0
  %v405 = vsel %vm331, %v275, 0
  %v408 = vsel %vm331, %v276, 0
  %v411 = vsel %vm331, %v277, 0
  %v414 = vsel %vm331, %v278, 0
  %v417 = vsel %vm331, %v279, 0
  %v420 = vsel %vm331, %v280, 0
  %v423 = vsel %vm331, %v281, 0
  %v426 = vsel %vm331, %v282, 0
  %v429 = vsel %vm331, %v283, 0
  %v432 = vsel %vm331, %v284, 0
  %v435 = vsel %vm331, %v285, 0
  %v438 = vsel %vm331, %v286, 0
  %v441 = vsel %vm331, %v287, 0
  %v444 = vsel %vm331, %v288, 0
  %v447 = vsel %vm331, %v289, 0
  %v450 = vsel %vm331, %v290, 0
  %v453 = vsel %vm331, %v291, 0
  %v456 = vsel %vm331, %v292, 0
  %v459 = vsel %vm331, %v293, 0
  %v462 = vsel %vm331, %v294, 0
  %v465 = vsel %vm331, %v295, 0
  %v468 = vsel %vm331, %v296, 0
  %v471 = vsel %vm331, %v297, 0
  %v474 = vsel %vm331, %v298, 0
  %v477 = vsel %vm331, %v299, 0
  %v480 = vsel %vm331, %v300, 0
  %v483 = vsel %vm331, %v301, 0
  %v486 = vsel %vm331, %v302, 0
  %v489 = vsel %vm331, %v303, 0
  %v492 = vsel %vm331, %v304, 0
  %v495 = vsel %vm331, %v305, 0
  %v498 = vsel %vm331, %v306, 0
  %v501 = vsel %vm331, %v307, 0
  %v504 = vsel %vm331, %v308, 0
  %v507 = vsel %vm331, %v309, 0
  %v510 = vsel %vm331, %v310, 0
  %v513 = vsel %vm331, %v311, 0
  %v516 = vsel %vm331, %v312, 0
  %v519 = vsel %vm331, %v313, 0
  %v522 = vsel %vm331, %v314, 0
  %v525 = vsel %vm331, %v315, 0
  %v528 = vsel %vm331, %v316, 0
  %v531 = vsel %vm331, %v317, 0
  %v534 = vsel %vm331, %v318, 0
  %v537 = vsel %vm331, %v319, 0
  %v540 = vsel %vm331, %v320, 0
  %v543 = vsel %vm331, %v321, 0
  %v546 = vsel %vm331, %v322, 0
  %v549 = vsel %vm331, %v323, 0
  %v552 = vsel %vm331, %v324, 0
  %vm554 = vcmask 1042432
  %v556 = vsel %vm554, %v330, 0
  %558 = vmatprep.subr.mxu0 0.0
  %559 = vmatpush1.msra.mxu0 %v556
  %560 = vmatprep.subr.mxu0 0.0
  %561 = vmatpush1.msra.mxu0 0.0
  %562 = vmatprep.subr.mxu0 0.0
  %563 = vmatpush1.msra.mxu0 0.0
  %564 = vmatprep.subr.mxu0 0.0
  %565 = vmatpush1.msra.mxu0 0.0
  %566 = vmatprep.subr.mxu0 0.0
  %567 = vmatpush1.msra.mxu0 0.0
  %568 = vmatprep.subr.mxu0 0.0
  %569 = vmatpush1.msra.mxu0 0.0
  %570 = vmatprep.subr.mxu0 0.0
  %571 = vmatpush1.msra.mxu0 0.0
  %572 = vmatprep.subr.mxu0 0.0
  %573 = vmatpush1.msra.mxu0 0.0
  %574 = vmatprep.subr.mxu0 0.0
  %575 = vmatpush1.msra.mxu0 0.0
  %576 = vmatprep.subr.mxu0 0.0
  %577 = vmatpush1.msra.mxu0 0.0
  %578 = vmatprep.subr.mxu0 0.0
  %579 = vmatpush1.msra.mxu0 0.0
  %580 = vmatprep.subr.mxu0 0.0
  %581 = vmatpush1.msra.mxu0 0.0
  %582 = vmatprep.subr.mxu0 0.0
  %583 = vmatpush1.msra.mxu0 0.0
  %584 = vmatprep.subr.mxu0 0.0
  %585 = vmatpush1.msra.mxu0 0.0
  %586 = vmatprep.subr.mxu0 0.0
  %587 = vmatpush1.msra.mxu0 0.0
  %588 = vmatprep.subr.mxu0 0.0
  %589 = vmatpush1.msra.mxu0 0.0
  %590 = vmatprep.subr.mxu0 0.0
  %591 = vmatpush1.msra.mxu0 0.0
  %592 = vmatprep.subr.mxu0 0.0
  %593 = vmatpush1.msra.mxu0 0.0
  %594 = vmatprep.subr.mxu0 0.0
  %595 = vmatpush1.msra.mxu0 0.0
  %596 = vmatprep.subr.mxu0 0.0
  %597 = vmatpush1.msra.mxu0 0.0
  %598 = vmatprep.subr.mxu0 0.0
  %599 = vmatpush1.msra.mxu0 0.0
  %600 = vmatprep.subr.mxu0 0.0
  %601 = vmatpush1.msra.mxu0 0.0
  %602 = vmatprep.subr.mxu0 0.0
  %603 = vmatpush1.msra.mxu0 0.0
  %604 = vmatprep.subr.mxu0 0.0
  %605 = vmatpush1.msra.mxu0 0.0
  %606 = vmatprep.subr.mxu0 0.0
  %607 = vmatpush1.msra.mxu0 0.0
  %608 = vmatprep.subr.mxu0 0.0
  %609 = vmatpush1.msra.mxu0 0.0
  %610 = vmatprep.subr.mxu0 0.0
  %611 = vmatpush1.msra.mxu0 0.0
  %612 = vmatprep.subr.mxu0 0.0
  %613 = vmatpush1.msra.mxu0 0.0
  %614 = vmatprep.subr.mxu0 0.0
  %615 = vmatpush1.msra.mxu0 0.0
  %616 = vmatprep.subr.mxu0 0.0
  %617 = vmatpush1.msra.mxu0 0.0
  %618 = vmatprep.subr.mxu0 0.0
  %619 = vmatpush1.msra.mxu0 0.0
  %620 = vmatprep.subr.mxu0 0.0
  %621 = vmatpush1.msra.mxu0 0.0
  %622 = vmatprep.mubr.f32.mxu0 0.0
  %623 = vmatmul.mubr.f32.gmra.mrb[0].mxu0 %v333
  %v624 = vpop.f32.mrb[0].mxu0
  %v625 = vadd.f32 0.0, %v624
  %v626 = vpop.f32.mrb[0].mxu0
  %627 = vmatprep.mubr.f32.mxu0 0.0
  %628 = vmatmul.mubr.f32.gmra.mrb[0].mxu0 %v336
  %v629 = vpop.f32.mrb[0].mxu0
  %v630 = vadd.f32 0.0, %v629
  %v631 = vpop.f32.mrb[0].mxu0
  %632 = vmatprep.mubr.f32.mxu0 0.0
  %633 = vmatmul.mubr.f32.gmra.mrb[0].mxu0 %v339
  %v634 = vpop.f32.mrb[0].mxu0
  %v635 = vadd.f32 0.0, %v634
  %v636 = vpop.f32.mrb[0].mxu0
  %637 = vmatprep.mubr.f32.mxu0 0.0
  %638 = vmatmul.mubr.f32.gmra.mrb[0].mxu0 %v342
  %v639 = vpop.f32.mrb[0].mxu0
  %v640 = vadd.f32 0.0, %v639
  %v641 = vpop.f32.mrb[0].mxu0
  %642 = vmatprep.mubr.f32.mxu0 0.0
  %643 = vmatmul.mubr.f32.gmra.mrb[0].mxu0 %v345
  %v644 = vpop.f32.mrb[0].mxu0
  %v645 = vadd.f32 0.0, %v644
  %v646 = vpop.f32.mrb[0].mxu0
  %647 = vmatprep.mubr.f32.mxu0 0.0
  %648 = vmatmul.mubr.f32.gmra.mrb[0].mxu0 %v348
  %v649 = vpop.f32.mrb[0].mxu0
  %v650 = vadd.f32 0.0, %v649
  %v651 = vpop.f32.mrb[0].mxu0
  %652 = vmatprep.mubr.f32.mxu0 0.0
  %653 = vmatmul.mubr.f32.gmra.mrb[0].mxu0 %v351
  %v654 = vpop.f32.mrb[0].mxu0
  %v655 = vadd.f32 0.0, %v654
  %v656 = vpop.f32.mrb[0].mxu0
  %657 = vmatprep.mubr.f32.mxu0 0.0
  %658 = vmatmul.mubr.f32.gmra.mrb[0].mxu0 %v354
  %v659 = vpop.f32.mrb[0].mxu0
  %v660 = vadd.f32 0.0, %v659
  %v661 = vpop.f32.mrb[0].mxu0
  %662 = vmatprep.mubr.f32.mxu0 0.0
  %663 = vmatmul.mubr.f32.gmra.mrb[0].mxu0 %v357
  %v664 = vpop.f32.mrb[0].mxu0
  %v665 = vadd.f32 0.0, %v664
  %v666 = vpop.f32.mrb[0].mxu0
  %667 = vmatprep.mubr.f32.mxu0 0.0
  %668 = vmatmul.mubr.f32.gmra.mrb[0].mxu0 %v360
  %v669 = vpop.f32.mrb[0].mxu0
  %v670 = vadd.f32 0.0, %v669
  %v671 = vpop.f32.mrb[0].mxu0
  %672 = vmatprep.mubr.f32.mxu0 0.0
  %673 = vmatmul.mubr.f32.gmra.mrb[0].mxu0 %v363
  %v674 = vpop.f32.mrb[0].mxu0
  %v675 = vadd.f32 0.0, %v674
  %v676 = vpop.f32.mrb[0].mxu0
  %677 = vmatprep.mubr.f32.mxu0 0.0
  %678 = vmatmul.mubr.f32.gmra.mrb[0].mxu0 %v366
  %v679 = vpop.f32.mrb[0].mxu0
  %v680 = vadd.f32 0.0, %v679
  %v681 = vpop.f32.mrb[0].mxu0
  %682 = vmatprep.mubr.f32.mxu0 0.0
  %683 = vmatmul.mubr.f32.gmra.mrb[0].mxu0 %v369
  %v684 = vpop.f32.mrb[0].mxu0
  %v685 = vadd.f32 0.0, %v684
  %v686 = vpop.f32.mrb[0].mxu0
  %687 = vmatprep.mubr.f32.mxu0 0.0
  %688 = vmatmul.mubr.f32.gmra.mrb[0].mxu0 %v372
  %v689 = vpop.f32.mrb[0].mxu0
  %v690 = vadd.f32 0.0, %v689
  %v691 = vpop.f32.mrb[0].mxu0
  %692 = vmatprep.mubr.f32.mxu0 0.0
  %693 = vmatmul.mubr.f32.gmra.mrb[0].mxu0 %v375
  %v694 = vpop.f32.mrb[0].mxu0
  %v695 = vadd.f32 0.0, %v694
  %v696 = vpop.f32.mrb[0].mxu0
  %697 = vmatprep.mubr.f32.mxu0 0.0
  %698 = vmatmul.mubr.f32.gmra.mrb[0].mxu0 %v378
  %v699 = vpop.f32.mrb[0].mxu0
  %v700 = vadd.f32 0.0, %v699
  %v701 = vpop.f32.mrb[0].mxu0
  %702 = vmatprep.mubr.f32.mxu0 0.0
  %703 = vmatmul.mubr.f32.gmra.mrb[0].mxu0 %v381
  %v704 = vpop.f32.mrb[0].mxu0
  %v705 = vadd.f32 0.0, %v704
  %v706 = vpop.f32.mrb[0].mxu0
  %707 = vmatprep.mubr.f32.mxu0 0.0
  %708 = vmatmul.mubr.f32.gmra.mrb[0].mxu0 %v384
  %v709 = vpop.f32.mrb[0].mxu0
  %v710 = vadd.f32 0.0, %v709
  %v711 = vpop.f32.mrb[0].mxu0
  %712 = vmatprep.mubr.f32.mxu0 0.0
  %713 = vmatmul.mubr.f32.gmra.mrb[0].mxu0 %v387
  %v714 = vpop.f32.mrb[0].mxu0
  %v715 = vadd.f32 0.0, %v714
  %v716 = vpop.f32.mrb[0].mxu0
  %717 = vmatprep.mubr.f32.mxu0 0.0
  %718 = vmatmul.mubr.f32.gmra.mrb[0].mxu0 %v390
  %v719 = vpop.f32.mrb[0].mxu0
  %v720 = vadd.f32 0.0, %v719
  %v721 = vpop.f32.mrb[0].mxu0
  %722 = vmatprep.mubr.f32.mxu0 0.0
  %723 = vmatmul.mubr.f32.gmra.mrb[0].mxu0 %v393
  %v724 = vpop.f32.mrb[0].mxu0
  %v725 = vadd.f32 0.0, %v724
  %v726 = vpop.f32.mrb[0].mxu0
  %727 = vmatprep.mubr.f32.mxu0 0.0
  %728 = vmatmul.mubr.f32.gmra.mrb[0].mxu0 %v396
  %v729 = vpop.f32.mrb[0].mxu0
  %v730 = vadd.f32 0.0, %v729
  %v731 = vpop.f32.mrb[0].mxu0
  %732 = vmatprep.mubr.f32.mxu0 0.0
  %733 = vmatmul.mubr.f32.gmra.mrb[0].mxu0 %v399
  %v734 = vpop.f32.mrb[0].mxu0
  %v735 = vadd.f32 0.0, %v734
  %v736 = vpop.f32.mrb[0].mxu0
  %737 = vmatprep.mubr.f32.mxu0 0.0
  %738 = vmatmul.mubr.f32.gmra.mrb[0].mxu0 %v402
  %v739 = vpop.f32.mrb[0].mxu0
  %v740 = vadd.f32 0.0, %v739
  %v741 = vpop.f32.mrb[0].mxu0
  %742 = vmatprep.mubr.f32.mxu0 0.0
  %743 = vmatmul.mubr.f32.gmra.mrb[0].mxu0 %v405
  %v744 = vpop.f32.mrb[0].mxu0
  %v745 = vadd.f32 0.0, %v744
  %v746 = vpop.f32.mrb[0].mxu0
  %747 = vmatprep.mubr.f32.mxu0 0.0
  %748 = vmatmul.mubr.f32.gmra.mrb[0].mxu0 %v408
  %v749 = vpop.f32.mrb[0].mxu0
  %v750 = vadd.f32 0.0, %v749
  %v751 = vpop.f32.mrb[0].mxu0
  %752 = vmatprep.mubr.f32.mxu0 0.0
  %753 = vmatmul.mubr.f32.gmra.mrb[0].mxu0 %v411
  %v754 = vpop.f32.mrb[0].mxu0
  %v755 = vadd.f32 0.0, %v754
  %v756 = vpop.f32.mrb[0].mxu0
  %757 = vmatprep.mubr.f32.mxu0 0.0
  %758 = vmatmul.mubr.f32.gmra.mrb[0].mxu0 %v414
  %v759 = vpop.f32.mrb[0].mxu0
  %v760 = vadd.f32 0.0, %v759
  %v761 = vpop.f32.mrb[0].mxu0
  %762 = vmatprep.mubr.f32.mxu0 0.0
  %763 = vmatmul.mubr.f32.gmra.mrb[0].mxu0 %v417
  %v764 = vpop.f32.mrb[0].mxu0
  %v765 = vadd.f32 0.0, %v764
  %v766 = vpop.f32.mrb[0].mxu0
  %767 = vmatprep.mubr.f32.mxu0 0.0
  %768 = vmatmul.mubr.f32.gmra.mrb[0].mxu0 %v420
  %v769 = vpop.f32.mrb[0].mxu0
  %v770 = vadd.f32 0.0, %v769
  %v771 = vpop.f32.mrb[0].mxu0
  %772 = vmatprep.mubr.f32.mxu0 0.0
  %773 = vmatmul.mubr.f32.gmra.mrb[0].mxu0 %v423
  %v774 = vpop.f32.mrb[0].mxu0
  %v775 = vadd.f32 0.0, %v774
  %v776 = vpop.f32.mrb[0].mxu0
  %777 = vmatprep.mubr.f32.mxu0 0.0
  %778 = vmatmul.mubr.f32.gmra.mrb[0].mxu0 %v426
  %v779 = vpop.f32.mrb[0].mxu0
  %v780 = vadd.f32 0.0, %v779
  %v781 = vpop.f32.mrb[0].mxu0
  %782 = vmatprep.mubr.f32.mxu0 0.0
  %783 = vmatmul.mubr.f32.gmra.mrb[0].mxu0 %v429
  %v784 = vpop.f32.mrb[0].mxu0
  %v785 = vadd.f32 0.0, %v784
  %v786 = vpop.f32.mrb[0].mxu0
  %787 = vmatprep.mubr.f32.mxu0 0.0
  %788 = vmatmul.mubr.f32.gmra.mrb[0].mxu0 %v432
  %v789 = vpop.f32.mrb[0].mxu0
  %v790 = vadd.f32 0.0, %v789
  %v791 = vpop.f32.mrb[0].mxu0
  %792 = vmatprep.mubr.f32.mxu0 0.0
  %793 = vmatmul.mubr.f32.gmra.mrb[0].mxu0 %v435
  %v794 = vpop.f32.mrb[0].mxu0
  %v795 = vadd.f32 0.0, %v794
  %v796 = vpop.f32.mrb[0].mxu0
  %797 = vmatprep.mubr.f32.mxu0 0.0
  %798 = vmatmul.mubr.f32.gmra.mrb[0].mxu0 %v438
  %v799 = vpop.f32.mrb[0].mxu0
  %v800 = vadd.f32 0.0, %v799
  %v801 = vpop.f32.mrb[0].mxu0
  %802 = vmatprep.mubr.f32.mxu0 0.0
  %803 = vmatmul.mubr.f32.gmra.mrb[0].mxu0 %v441
  %v804 = vpop.f32.mrb[0].mxu0
  %v805 = vadd.f32 0.0, %v804
  %v806 = vpop.f32.mrb[0].mxu0
  %807 = vmatprep.mubr.f32.mxu0 0.0
  %808 = vmatmul.mubr.f32.gmra.mrb[0].mxu0 %v444
  %v809 = vpop.f32.mrb[0].mxu0
  %v810 = vadd.f32 0.0, %v809
  %v811 = vpop.f32.mrb[0].mxu0
  %812 = vmatprep.mubr.f32.mxu0 0.0
  %813 = vmatmul.mubr.f32.gmra.mrb[0].mxu0 %v447
  %v814 = vpop.f32.mrb[0].mxu0
  %v815 = vadd.f32 0.0, %v814
  %v816 = vpop.f32.mrb[0].mxu0
  %817 = vmatprep.mubr.f32.mxu0 0.0
  %818 = vmatmul.mubr.f32.gmra.mrb[0].mxu0 %v450
  %v819 = vpop.f32.mrb[0].mxu0
  %v820 = vadd.f32 0.0, %v819
  %v821 = vpop.f32.mrb[0].mxu0
  %822 = vmatprep.mubr.f32.mxu0 0.0
  %823 = vmatmul.mubr.f32.gmra.mrb[0].mxu0 %v453
  %v824 = vpop.f32.mrb[0].mxu0
  %v825 = vadd.f32 0.0, %v824
  %v826 = vpop.f32.mrb[0].mxu0
  %827 = vmatprep.mubr.f32.mxu0 0.0
  %828 = vmatmul.mubr.f32.gmra.mrb[0].mxu0 %v456
  %v829 = vpop.f32.mrb[0].mxu0
  %v830 = vadd.f32 0.0, %v829
  %v831 = vpop.f32.mrb[0].mxu0
  %832 = vmatprep.mubr.f32.mxu0 0.0
  %833 = vmatmul.mubr.f32.gmra.mrb[0].mxu0 %v459
  %v834 = vpop.f32.mrb[0].mxu0
  %v835 = vadd.f32 0.0, %v834
  %v836 = vpop.f32.mrb[0].mxu0
  %837 = vmatprep.mubr.f32.mxu0 0.0
  %838 = vmatmul.mubr.f32.gmra.mrb[0].mxu0 %v462
  %v839 = vpop.f32.mrb[0].mxu0
  %v840 = vadd.f32 0.0, %v839
  %v841 = vpop.f32.mrb[0].mxu0
  %842 = vmatprep.mubr.f32.mxu0 0.0
  %843 = vmatmul.mubr.f32.gmra.mrb[0].mxu0 %v465
  %v844 = vpop.f32.mrb[0].mxu0
  %v845 = vadd.f32 0.0, %v844
  %v846 = vpop.f32.mrb[0].mxu0
  %847 = vmatprep.mubr.f32.mxu0 0.0
  %848 = vmatmul.mubr.f32.gmra.mrb[0].mxu0 %v468
  %v849 = vpop.f32.mrb[0].mxu0
  %v850 = vadd.f32 0.0, %v849
  %v851 = vpop.f32.mrb[0].mxu0
  %852 = vmatprep.mubr.f32.mxu0 0.0
  %853 = vmatmul.mubr.f32.gmra.mrb[0].mxu0 %v471
  %v854 = vpop.f32.mrb[0].mxu0
  %v855 = vadd.f32 0.0, %v854
  %v856 = vpop.f32.mrb[0].mxu0
  %857 = vmatprep.mubr.f32.mxu0 0.0
  %858 = vmatmul.mubr.f32.gmra.mrb[0].mxu0 %v474
  %v859 = vpop.f32.mrb[0].mxu0
  %v860 = vadd.f32 0.0, %v859
  %v861 = vpop.f32.mrb[0].mxu0
  %862 = vmatprep.mubr.f32.mxu0 0.0
  %863 = vmatmul.mubr.f32.gmra.mrb[0].mxu0 %v477
  %v864 = vpop.f32.mrb[0].mxu0
  %v865 = vadd.f32 0.0, %v864
  %v866 = vpop.f32.mrb[0].mxu0
  %867 = vmatprep.mubr.f32.mxu0 0.0
  %868 = vmatmul.mubr.f32.gmra.mrb[0].mxu0 %v480
  %v869 = vpop.f32.mrb[0].mxu0
  %v870 = vadd.f32 0.0, %v869
  %v871 = vpop.f32.mrb[0].mxu0
  %872 = vmatprep.mubr.f32.mxu0 0.0
  %873 = vmatmul.mubr.f32.gmra.mrb[0].mxu0 %v483
  %v874 = vpop.f32.mrb[0].mxu0
  %v875 = vadd.f32 0.0, %v874
  %v876 = vpop.f32.mrb[0].mxu0
  %877 = vmatprep.mubr.f32.mxu0 0.0
  %878 = vmatmul.mubr.f32.gmra.mrb[0].mxu0 %v486
  %v879 = vpop.f32.mrb[0].mxu0
  %v880 = vadd.f32 0.0, %v879
  %v881 = vpop.f32.mrb[0].mxu0
  %882 = vmatprep.mubr.f32.mxu0 0.0
  %883 = vmatmul.mubr.f32.gmra.mrb[0].mxu0 %v489
  %v884 = vpop.f32.mrb[0].mxu0
  %v885 = vadd.f32 0.0, %v884
  %v886 = vpop.f32.mrb[0].mxu0
  %887 = vmatprep.mubr.f32.mxu0 0.0
  %888 = vmatmul.mubr.f32.gmra.mrb[0].mxu0 %v492
  %v889 = vpop.f32.mrb[0].mxu0
  %v890 = vadd.f32 0.0, %v889
  %v891 = vpop.f32.mrb[0].mxu0
  %892 = vmatprep.mubr.f32.mxu0 0.0
  %893 = vmatmul.mubr.f32.gmra.mrb[0].mxu0 %v495
  %v894 = vpop.f32.mrb[0].mxu0
  %v895 = vadd.f32 0.0, %v894
  %v896 = vpop.f32.mrb[0].mxu0
  %897 = vmatprep.mubr.f32.mxu0 0.0
  %898 = vmatmul.mubr.f32.gmra.mrb[0].mxu0 %v498
  %v899 = vpop.f32.mrb[0].mxu0
  %v900 = vadd.f32 0.0, %v899
  %v901 = vpop.f32.mrb[0].mxu0
  %902 = vmatprep.mubr.f32.mxu0 0.0
  %903 = vmatmul.mubr.f32.gmra.mrb[0].mxu0 %v501
  %v904 = vpop.f32.mrb[0].mxu0
  %v905 = vadd.f32 0.0, %v904
  %v906 = vpop.f32.mrb[0].mxu0
  %907 = vmatprep.mubr.f32.mxu0 0.0
  %908 = vmatmul.mubr.f32.gmra.mrb[0].mxu0 %v504
  %v909 = vpop.f32.mrb[0].mxu0
  %v910 = vadd.f32 0.0, %v909
  %v911 = vpop.f32.mrb[0].mxu0
  %912 = vmatprep.mubr.f32.mxu0 0.0
  %913 = vmatmul.mubr.f32.gmra.mrb[0].mxu0 %v507
  %v914 = vpop.f32.mrb[0].mxu0
  %v915 = vadd.f32 0.0, %v914
  %v916 = vpop.f32.mrb[0].mxu0
  %917 = vmatprep.mubr.f32.mxu0 0.0
  %918 = vmatmul.mubr.f32.gmra.mrb[0].mxu0 %v510
  %v919 = vpop.f32.mrb[0].mxu0
  %v920 = vadd.f32 0.0, %v919
  %v921 = vpop.f32.mrb[0].mxu0
  %922 = vmatprep.mubr.f32.mxu0 0.0
  %923 = vmatmul.mubr.f32.gmra.mrb[0].mxu0 %v513
  %v924 = vpop.f32.mrb[0].mxu0
  %v925 = vadd.f32 0.0, %v924
  %v926 = vpop.f32.mrb[0].mxu0
  %927 = vmatprep.mubr.f32.mxu0 0.0
  %928 = vmatmul.mubr.f32.gmra.mrb[0].mxu0 %v516
  %v929 = vpop.f32.mrb[0].mxu0
  %v930 = vadd.f32 0.0, %v929
  %v931 = vpop.f32.mrb[0].mxu0
  %932 = vmatprep.mubr.f32.mxu0 0.0
  %933 = vmatmul.mubr.f32.gmra.mrb[0].mxu0 %v519
  %v934 = vpop.f32.mrb[0].mxu0
  %v935 = vadd.f32 0.0, %v934
  %v936 = vpop.f32.mrb[0].mxu0
  %937 = vmatprep.mubr.f32.mxu0 0.0
  %938 = vmatmul.mubr.f32.gmra.mrb[0].mxu0 %v522
  %v939 = vpop.f32.mrb[0].mxu0
  %v940 = vadd.f32 0.0, %v939
  %v941 = vpop.f32.mrb[0].mxu0
  %942 = vmatprep.mubr.f32.mxu0 0.0
  %943 = vmatmul.mubr.f32.gmra.mrb[0].mxu0 %v525
  %v944 = vpop.f32.mrb[0].mxu0
  %v945 = vadd.f32 0.0, %v944
  %v946 = vpop.f32.mrb[0].mxu0
  %947 = vmatprep.mubr.f32.mxu0 0.0
  %948 = vmatmul.mubr.f32.gmra.mrb[0].mxu0 %v528
  %v949 = vpop.f32.mrb[0].mxu0
  %v950 = vadd.f32 0.0, %v949
  %v951 = vpop.f32.mrb[0].mxu0
  %952 = vmatprep.mubr.f32.mxu0 0.0
  %953 = vmatmul.mubr.f32.gmra.mrb[0].mxu0 %v531
  %v954 = vpop.f32.mrb[0].mxu0
  %v955 = vadd.f32 0.0, %v954
  %v956 = vpop.f32.mrb[0].mxu0
  %957 = vmatprep.mubr.f32.mxu0 0.0
  %958 = vmatmul.mubr.f32.gmra.mrb[0].mxu0 %v534
  %v959 = vpop.f32.mrb[0].mxu0
  %v960 = vadd.f32 0.0, %v959
  %v961 = vpop.f32.mrb[0].mxu0
  %962 = vmatprep.mubr.f32.mxu0 0.0
  %963 = vmatmul.mubr.f32.gmra.mrb[0].mxu0 %v537
  %v964 = vpop.f32.mrb[0].mxu0
  %v965 = vadd.f32 0.0, %v964
  %v966 = vpop.f32.mrb[0].mxu0
  %967 = vmatprep.mubr.f32.mxu0 0.0
  %968 = vmatmul.mubr.f32.gmra.mrb[0].mxu0 %v540
  %v969 = vpop.f32.mrb[0].mxu0
  %v970 = vadd.f32 0.0, %v969
  %v971 = vpop.f32.mrb[0].mxu0
  %972 = vmatprep.mubr.f32.mxu0 0.0
  %973 = vmatmul.mubr.f32.gmra.mrb[0].mxu0 %v543
  %v974 = vpop.f32.mrb[0].mxu0
  %v975 = vadd.f32 0.0, %v974
  %v976 = vpop.f32.mrb[0].mxu0
  %977 = vmatprep.mubr.f32.mxu0 0.0
  %978 = vmatmul.mubr.f32.gmra.mrb[0].mxu0 %v546
  %v979 = vpop.f32.mrb[0].mxu0
  %v980 = vadd.f32 0.0, %v979
  %v981 = vpop.f32.mrb[0].mxu0
  %982 = vmatprep.mubr.f32.mxu0 0.0
  %983 = vmatmul.mubr.f32.gmra.mrb[0].mxu0 %v549
  %v984 = vpop.f32.mrb[0].mxu0
  %v985 = vadd.f32 0.0, %v984
  %v986 = vpop.f32.mrb[0].mxu0
  %987 = vmatprep.mubr.f32.mxu0 0.0
  %988 = vmatmul.mubr.f32.gmra.mrb[0].mxu0 %v552
  %v989 = vpop.f32.mrb[0].mxu0
  %v990 = vadd.f32 0.0, %v989
  %v991 = vpop.f32.mrb[0].mxu0
  %992 = vdwg.mxu0
  %v994 = vsel %vm331, %v94, 0
  %v997 = vsel %vm331, %v95, 0
  %v1000 = vsel %vm331, %v96, 0
  %v1003 = vsel %vm331, %v97, 0
  %v1006 = vsel %vm331, %v98, 0
  %v1009 = vsel %vm331, %v99, 0
  %v1012 = vsel %vm331, %v100, 0
  %v1015 = vsel %vm331, %v101, 0
  %v1018 = vsel %vm331, %v102, 0
  %v1021 = vsel %vm331, %v103, 0
  %v1024 = vsel %vm331, %v104, 0
  %v1027 = vsel %vm331, %v105, 0
  %v1030 = vsel %vm331, %v106, 0
  %v1033 = vsel %vm331, %v107, 0
  %v1036 = vsel %vm331, %v108, 0
  %v1039 = vsel %vm331, %v109, 0
  %v1042 = vsel %vm331, %v110, 0
  %v1045 = vsel %vm331, %v111, 0
  %v1048 = vsel %vm331, %v112, 0
  %v1051 = vsel %vm331, %v113, 0
  %v1054 = vsel %vm331, %v114, 0
  %v1057 = vsel %vm331, %v115, 0
  %v1060 = vsel %vm331, %v116, 0
  %v1063 = vsel %vm331, %v117, 0
  %v1066 = vsel %vm331, %v118, 0
  %v1069 = vsel %vm331, %v119, 0
  %v1072 = vsel %vm331, %v120, 0
  %v1075 = vsel %vm331, %v121, 0
  %v1078 = vsel %vm331, %v122, 0
  %v1081 = vsel %vm331, %v123, 0
  %v1084 = vsel %vm331, %v124, 0
  %v1087 = vsel %vm331, %v125, 0
  %v1090 = vsel %vm331, %v126, 0
  %v1093 = vsel %vm331, %v127, 0
  %v1096 = vsel %vm331, %v128, 0
  %v1099 = vsel %vm331, %v129, 0
  %v1102 = vsel %vm331, %v130, 0
  %v1105 = vsel %vm331, %v131, 0
  %v1108 = vsel %vm331, %v132, 0
  %v1111 = vsel %vm331, %v133, 0
  %v1114 = vsel %vm331, %v134, 0
  %v1117 = vsel %vm331, %v135, 0
  %v1120 = vsel %vm331, %v136, 0
  %v1123 = vsel %vm331, %v137, 0
  %v1126 = vsel %vm331, %v138, 0
  %v1129 = vsel %vm331, %v139, 0
  %v1132 = vsel %vm331, %v140, 0
  %v1135 = vsel %vm331, %v141, 0
  %v1138 = vsel %vm331, %v142, 0
  %v1141 = vsel %vm331, %v143, 0
  %v1144 = vsel %vm331, %v144, 0
  %v1147 = vsel %vm331, %v145, 0
  %v1150 = vsel %vm331, %v146, 0
  %v1153 = vsel %vm331, %v147, 0
  %v1156 = vsel %vm331, %v148, 0
  %v1159 = vsel %vm331, %v149, 0
  %v1162 = vsel %vm331, %v150, 0
  %v1165 = vsel %vm331, %v151, 0
  %v1168 = vsel %vm331, %v152, 0
  %v1171 = vsel %vm331, %v153, 0
  %v1174 = vsel %vm331, %v154, 0
  %v1177 = vsel %vm331, %v155, 0
  %v1180 = vsel %vm331, %v156, 0
  %v1183 = vsel %vm331, %v157, 0
  %v1186 = vsel %vm331, %v158, 0
  %v1189 = vsel %vm331, %v159, 0
  %v1192 = vsel %vm331, %v160, 0
  %v1195 = vsel %vm331, %v161, 0
  %v1198 = vsel %vm331, %v162, 0
  %v1201 = vsel %vm331, %v163, 0
  %v1204 = vsel %vm331, %v164, 0
  %v1207 = vsel %vm331, %v165, 0
  %v1210 = vsel %vm331, %v166, 0
  %v1213 = vsel %vm331, %v167, 0
  %v1216 = vsel %vm554, %v172, 0
  %1218 = vmatprep.subr.mxu0 0.0
  %1219 = vmatpush1.msra.mxu0 %v1216
  %1220 = vmatprep.subr.mxu0 0.0
  %1221 = vmatpush1.msra.mxu0 0.0
  %1222 = vmatprep.subr.mxu0 0.0
  %1223 = vmatpush1.msra.mxu0 0.0
  %1224 = vmatprep.subr.mxu0 0.0
  %1225 = vmatpush1.msra.mxu0 0.0
  %1226 = vmatprep.subr.mxu0 0.0
  %1227 = vmatpush1.msra.mxu0 0.0
  %1228 = vmatprep.subr.mxu0 0.0
  %1229 = vmatpush1.msra.mxu0 0.0
  %1230 = vmatprep.subr.mxu0 0.0
  %1231 = vmatpush1.msra.mxu0 0.0
  %1232 = vmatprep.subr.mxu0 0.0
  %1233 = vmatpush1.msra.mxu0 0.0
  %1234 = vmatprep.subr.mxu0 0.0
  %1235 = vmatpush1.msra.mxu0 0.0
  %1236 = vmatprep.subr.mxu0 0.0
  %1237 = vmatpush1.msra.mxu0 0.0
  %1238 = vmatprep.subr.mxu0 0.0
  %1239 = vmatpush1.msra.mxu0 0.0
  %1240 = vmatprep.subr.mxu0 0.0
  %1241 = vmatpush1.msra.mxu0 0.0
  %1242 = vmatprep.subr.mxu0 0.0
  %1243 = vmatpush1.msra.mxu0 0.0
  %1244 = vmatprep.subr.mxu0 0.0
  %1245 = vmatpush1.msra.mxu0 0.0
  %1246 = vmatprep.subr.mxu0 0.0
  %1247 = vmatpush1.msra.mxu0 0.0
  %1248 = vmatprep.subr.mxu0 0.0
  %1249 = vmatpush1.msra.mxu0 0.0
  %1250 = vmatprep.subr.mxu0 0.0
  %1251 = vmatpush1.msra.mxu0 0.0
  %1252 = vmatprep.subr.mxu0 0.0
  %1253 = vmatpush1.msra.mxu0 0.0
  %1254 = vmatprep.subr.mxu0 0.0
  %1255 = vmatpush1.msra.mxu0 0.0
  %1256 = vmatprep.subr.mxu0 0.0
  %1257 = vmatpush1.msra.mxu0 0.0
  %1258 = vmatprep.subr.mxu0 0.0
  %1259 = vmatpush1.msra.mxu0 0.0
  %1260 = vmatprep.subr.mxu0 0.0
  %1261 = vmatpush1.msra.mxu0 0.0
  %1262 = vmatprep.subr.mxu0 0.0
  %1263 = vmatpush1.msra.mxu0 0.0
  %1264 = vmatprep.subr.mxu0 0.0
  %1265 = vmatpush1.msra.mxu0 0.0
  %1266 = vmatprep.subr.mxu0 0.0
  %1267 = vmatpush1.msra.mxu0 0.0
  %1268 = vmatprep.subr.mxu0 0.0
  %1269 = vmatpush1.msra.mxu0 0.0
  %1270 = vmatprep.subr.mxu0 0.0
  %1271 = vmatpush1.msra.mxu0 0.0
  %1272 = vmatprep.subr.mxu0 0.0
  %1273 = vmatpush1.msra.mxu0 0.0
  %1274 = vmatprep.subr.mxu0 0.0
  %1275 = vmatpush1.msra.mxu0 0.0
  %1276 = vmatprep.subr.mxu0 0.0
  %1277 = vmatpush1.msra.mxu0 0.0
  %1278 = vmatprep.subr.mxu0 0.0
  %1279 = vmatpush1.msra.mxu0 0.0
  %1280 = vmatprep.subr.mxu0 0.0
  %1281 = vmatpush1.msra.mxu0 0.0
  %1282 = vmatprep.mubr.f32.mxu0 0.0
  %1283 = vmatmul.mubr.f32.gmra.mrb[0].mxu0 %v994
  %v1284 = vpop.f32.mrb[0].mxu0
  %v1285 = vadd.f32 %v625, %v1284
  %v1286 = vpop.f32.mrb[0].mxu0
  %1287 = vmatprep.mubr.f32.mxu0 0.0
  %1288 = vmatmul.mubr.f32.gmra.mrb[0].mxu0 %v997
  %v1289 = vpop.f32.mrb[0].mxu0
  %v1290 = vadd.f32 %v630, %v1289
  %v1291 = vpop.f32.mrb[0].mxu0
  %1292 = vmatprep.mubr.f32.mxu0 0.0
  %1293 = vmatmul.mubr.f32.gmra.mrb[0].mxu0 %v1000
  %v1294 = vpop.f32.mrb[0].mxu0
  %v1295 = vadd.f32 %v635, %v1294
  %v1296 = vpop.f32.mrb[0].mxu0
  %1297 = vmatprep.mubr.f32.mxu0 0.0
  %1298 = vmatmul.mubr.f32.gmra.mrb[0].mxu0 %v1003
  %v1299 = vpop.f32.mrb[0].mxu0
  %v1300 = vadd.f32 %v640, %v1299
  %v1301 = vpop.f32.mrb[0].mxu0
  %1302 = vmatprep.mubr.f32.mxu0 0.0
  %1303 = vmatmul.mubr.f32.gmra.mrb[0].mxu0 %v1006
  %v1304 = vpop.f32.mrb[0].mxu0
  %v1305 = vadd.f32 %v645, %v1304
  %v1306 = vpop.f32.mrb[0].mxu0
  %1307 = vmatprep.mubr.f32.mxu0 0.0
  %1308 = vmatmul.mubr.f32.gmra.mrb[0].mxu0 %v1009
  %v1309 = vpop.f32.mrb[0].mxu0
  %v1310 = vadd.f32 %v650, %v1309
  %v1311 = vpop.f32.mrb[0].mxu0
  %1312 = vmatprep.mubr.f32.mxu0 0.0
  %1313 = vmatmul.mubr.f32.gmra.mrb[0].mxu0 %v1012
  %v1314 = vpop.f32.mrb[0].mxu0
  %v1315 = vadd.f32 %v655, %v1314
  %v1316 = vpop.f32.mrb[0].mxu0
  %1317 = vmatprep.mubr.f32.mxu0 0.0
  %1318 = vmatmul.mubr.f32.gmra.mrb[0].mxu0 %v1015
  %v1319 = vpop.f32.mrb[0].mxu0
  %v1320 = vadd.f32 %v660, %v1319
  %v1321 = vpop.f32.mrb[0].mxu0
  %1322 = vmatprep.mubr.f32.mxu0 0.0
  %1323 = vmatmul.mubr.f32.gmra.mrb[0].mxu0 %v1018
  %v1324 = vpop.f32.mrb[0].mxu0
  %v1325 = vadd.f32 %v665, %v1324
  %v1326 = vpop.f32.mrb[0].mxu0
  %1327 = vmatprep.mubr.f32.mxu0 0.0
  %1328 = vmatmul.mubr.f32.gmra.mrb[0].mxu0 %v1021
  %v1329 = vpop.f32.mrb[0].mxu0
  %v1330 = vadd.f32 %v670, %v1329
  %v1331 = vpop.f32.mrb[0].mxu0
  %1332 = vmatprep.mubr.f32.mxu0 0.0
  %1333 = vmatmul.mubr.f32.gmra.mrb[0].mxu0 %v1024
  %v1334 = vpop.f32.mrb[0].mxu0
  %v1335 = vadd.f32 %v675, %v1334
  %v1336 = vpop.f32.mrb[0].mxu0
  %1337 = vmatprep.mubr.f32.mxu0 0.0
  %1338 = vmatmul.mubr.f32.gmra.mrb[0].mxu0 %v1027
  %v1339 = vpop.f32.mrb[0].mxu0
  %v1340 = vadd.f32 %v680, %v1339
  %v1341 = vpop.f32.mrb[0].mxu0
  %1342 = vmatprep.mubr.f32.mxu0 0.0
  %1343 = vmatmul.mubr.f32.gmra.mrb[0].mxu0 %v1030
  %v1344 = vpop.f32.mrb[0].mxu0
  %v1345 = vadd.f32 %v685, %v1344
  %v1346 = vpop.f32.mrb[0].mxu0
  %1347 = vmatprep.mubr.f32.mxu0 0.0
  %1348 = vmatmul.mubr.f32.gmra.mrb[0].mxu0 %v1033
  %v1349 = vpop.f32.mrb[0].mxu0
  %v1350 = vadd.f32 %v690, %v1349
  %v1351 = vpop.f32.mrb[0].mxu0
  %1352 = vmatprep.mubr.f32.mxu0 0.0
  %1353 = vmatmul.mubr.f32.gmra.mrb[0].mxu0 %v1036
  %v1354 = vpop.f32.mrb[0].mxu0
  %v1355 = vadd.f32 %v695, %v1354
  %v1356 = vpop.f32.mrb[0].mxu0
  %1357 = vmatprep.mubr.f32.mxu0 0.0
  %1358 = vmatmul.mubr.f32.gmra.mrb[0].mxu0 %v1039
  %v1359 = vpop.f32.mrb[0].mxu0
  %v1360 = vadd.f32 %v700, %v1359
  %v1361 = vpop.f32.mrb[0].mxu0
  %1362 = vmatprep.mubr.f32.mxu0 0.0
  %1363 = vmatmul.mubr.f32.gmra.mrb[0].mxu0 %v1042
  %v1364 = vpop.f32.mrb[0].mxu0
  %v1365 = vadd.f32 %v705, %v1364
  %v1366 = vpop.f32.mrb[0].mxu0
  %1367 = vmatprep.mubr.f32.mxu0 0.0
  %1368 = vmatmul.mubr.f32.gmra.mrb[0].mxu0 %v1045
  %v1369 = vpop.f32.mrb[0].mxu0
  %v1370 = vadd.f32 %v710, %v1369
  %v1371 = vpop.f32.mrb[0].mxu0
  %1372 = vmatprep.mubr.f32.mxu0 0.0
  %1373 = vmatmul.mubr.f32.gmra.mrb[0].mxu0 %v1048
  %v1374 = vpop.f32.mrb[0].mxu0
  %v1375 = vadd.f32 %v715, %v1374
  %v1376 = vpop.f32.mrb[0].mxu0
  %1377 = vmatprep.mubr.f32.mxu0 0.0
  %1378 = vmatmul.mubr.f32.gmra.mrb[0].mxu0 %v1051
  %v1379 = vpop.f32.mrb[0].mxu0
  %v1380 = vadd.f32 %v720, %v1379
  %v1381 = vpop.f32.mrb[0].mxu0
  %1382 = vmatprep.mubr.f32.mxu0 0.0
  %1383 = vmatmul.mubr.f32.gmra.mrb[0].mxu0 %v1054
  %v1384 = vpop.f32.mrb[0].mxu0
  %v1385 = vadd.f32 %v725, %v1384
  %v1386 = vpop.f32.mrb[0].mxu0
  %1387 = vmatprep.mubr.f32.mxu0 0.0
  %1388 = vmatmul.mubr.f32.gmra.mrb[0].mxu0 %v1057
  %v1389 = vpop.f32.mrb[0].mxu0
  %v1390 = vadd.f32 %v730, %v1389
  %v1391 = vpop.f32.mrb[0].mxu0
  %1392 = vmatprep.mubr.f32.mxu0 0.0
  %1393 = vmatmul.mubr.f32.gmra.mrb[0].mxu0 %v1060
  %v1394 = vpop.f32.mrb[0].mxu0
  %v1395 = vadd.f32 %v735, %v1394
  %v1396 = vpop.f32.mrb[0].mxu0
  %1397 = vmatprep.mubr.f32.mxu0 0.0
  %1398 = vmatmul.mubr.f32.gmra.mrb[0].mxu0 %v1063
  %v1399 = vpop.f32.mrb[0].mxu0
  %v1400 = vadd.f32 %v740, %v1399
  %v1401 = vpop.f32.mrb[0].mxu0
  %1402 = vmatprep.mubr.f32.mxu0 0.0
  %1403 = vmatmul.mubr.f32.gmra.mrb[0].mxu0 %v1066
  %v1404 = vpop.f32.mrb[0].mxu0
  %v1405 = vadd.f32 %v745, %v1404
  %v1406 = vpop.f32.mrb[0].mxu0
  %1407 = vmatprep.mubr.f32.mxu0 0.0
  %1408 = vmatmul.mubr.f32.gmra.mrb[0].mxu0 %v1069
  %v1409 = vpop.f32.mrb[0].mxu0
  %v1410 = vadd.f32 %v750, %v1409
  %v1411 = vpop.f32.mrb[0].mxu0
  %1412 = vmatprep.mubr.f32.mxu0 0.0
  %1413 = vmatmul.mubr.f32.gmra.mrb[0].mxu0 %v1072
  %v1414 = vpop.f32.mrb[0].mxu0
  %v1415 = vadd.f32 %v755, %v1414
  %v1416 = vpop.f32.mrb[0].mxu0
  %1417 = vmatprep.mubr.f32.mxu0 0.0
  %1418 = vmatmul.mubr.f32.gmra.mrb[0].mxu0 %v1075
  %v1419 = vpop.f32.mrb[0].mxu0
  %v1420 = vadd.f32 %v760, %v1419
  %v1421 = vpop.f32.mrb[0].mxu0
  %1422 = vmatprep.mubr.f32.mxu0 0.0
  %1423 = vmatmul.mubr.f32.gmra.mrb[0].mxu0 %v1078
  %v1424 = vpop.f32.mrb[0].mxu0
  %v1425 = vadd.f32 %v765, %v1424
  %v1426 = vpop.f32.mrb[0].mxu0
  %1427 = vmatprep.mubr.f32.mxu0 0.0
  %1428 = vmatmul.mubr.f32.gmra.mrb[0].mxu0 %v1081
  %v1429 = vpop.f32.mrb[0].mxu0
  %v1430 = vadd.f32 %v770, %v1429
  %v1431 = vpop.f32.mrb[0].mxu0
  %1432 = vmatprep.mubr.f32.mxu0 0.0
  %1433 = vmatmul.mubr.f32.gmra.mrb[0].mxu0 %v1084
  %v1434 = vpop.f32.mrb[0].mxu0
  %v1435 = vadd.f32 %v775, %v1434
  %v1436 = vpop.f32.mrb[0].mxu0
  %1437 = vmatprep.mubr.f32.mxu0 0.0
  %1438 = vmatmul.mubr.f32.gmra.mrb[0].mxu0 %v1087
  %v1439 = vpop.f32.mrb[0].mxu0
  %v1440 = vadd.f32 %v780, %v1439
  %v1441 = vpop.f32.mrb[0].mxu0
  %1442 = vmatprep.mubr.f32.mxu0 0.0
  %1443 = vmatmul.mubr.f32.gmra.mrb[0].mxu0 %v1090
  %v1444 = vpop.f32.mrb[0].mxu0
  %v1445 = vadd.f32 %v785, %v1444
  %v1446 = vpop.f32.mrb[0].mxu0
  %1447 = vmatprep.mubr.f32.mxu0 0.0
  %1448 = vmatmul.mubr.f32.gmra.mrb[0].mxu0 %v1093
  %v1449 = vpop.f32.mrb[0].mxu0
  %v1450 = vadd.f32 %v790, %v1449
  %v1451 = vpop.f32.mrb[0].mxu0
  %1452 = vmatprep.mubr.f32.mxu0 0.0
  %1453 = vmatmul.mubr.f32.gmra.mrb[0].mxu0 %v1096
  %v1454 = vpop.f32.mrb[0].mxu0
  %v1455 = vadd.f32 %v795, %v1454
  %v1456 = vpop.f32.mrb[0].mxu0
  %1457 = vmatprep.mubr.f32.mxu0 0.0
  %1458 = vmatmul.mubr.f32.gmra.mrb[0].mxu0 %v1099
  %v1459 = vpop.f32.mrb[0].mxu0
  %v1460 = vadd.f32 %v800, %v1459
  %v1461 = vpop.f32.mrb[0].mxu0
  %1462 = vmatprep.mubr.f32.mxu0 0.0
  %1463 = vmatmul.mubr.f32.gmra.mrb[0].mxu0 %v1102
  %v1464 = vpop.f32.mrb[0].mxu0
  %v1465 = vadd.f32 %v805, %v1464
  %v1466 = vpop.f32.mrb[0].mxu0
  %1467 = vmatprep.mubr.f32.mxu0 0.0
  %1468 = vmatmul.mubr.f32.gmra.mrb[0].mxu0 %v1105
  %v1469 = vpop.f32.mrb[0].mxu0
  %v1470 = vadd.f32 %v810, %v1469
  %v1471 = vpop.f32.mrb[0].mxu0
  %1472 = vmatprep.mubr.f32.mxu0 0.0
  %1473 = vmatmul.mubr.f32.gmra.mrb[0].mxu0 %v1108
  %v1474 = vpop.f32.mrb[0].mxu0
  %v1475 = vadd.f32 %v815, %v1474
  %v1476 = vpop.f32.mrb[0].mxu0
  %1477 = vmatprep.mubr.f32.mxu0 0.0
  %1478 = vmatmul.mubr.f32.gmra.mrb[0].mxu0 %v1111
  %v1479 = vpop.f32.mrb[0].mxu0
  %v1480 = vadd.f32 %v820, %v1479
  %v1481 = vpop.f32.mrb[0].mxu0
  %1482 = vmatprep.mubr.f32.mxu0 0.0
  %1483 = vmatmul.mubr.f32.gmra.mrb[0].mxu0 %v1114
  %v1484 = vpop.f32.mrb[0].mxu0
  %v1485 = vadd.f32 %v825, %v1484
  %v1486 = vpop.f32.mrb[0].mxu0
  %1487 = vmatprep.mubr.f32.mxu0 0.0
  %1488 = vmatmul.mubr.f32.gmra.mrb[0].mxu0 %v1117
  %v1489 = vpop.f32.mrb[0].mxu0
  %v1490 = vadd.f32 %v830, %v1489
  %v1491 = vpop.f32.mrb[0].mxu0
  %1492 = vmatprep.mubr.f32.mxu0 0.0
  %1493 = vmatmul.mubr.f32.gmra.mrb[0].mxu0 %v1120
  %v1494 = vpop.f32.mrb[0].mxu0
  %v1495 = vadd.f32 %v835, %v1494
  %v1496 = vpop.f32.mrb[0].mxu0
  %1497 = vmatprep.mubr.f32.mxu0 0.0
  %1498 = vmatmul.mubr.f32.gmra.mrb[0].mxu0 %v1123
  %v1499 = vpop.f32.mrb[0].mxu0
  %v1500 = vadd.f32 %v840, %v1499
  %v1501 = vpop.f32.mrb[0].mxu0
  %1502 = vmatprep.mubr.f32.mxu0 0.0
  %1503 = vmatmul.mubr.f32.gmra.mrb[0].mxu0 %v1126
  %v1504 = vpop.f32.mrb[0].mxu0
  %v1505 = vadd.f32 %v845, %v1504
  %v1506 = vpop.f32.mrb[0].mxu0
  %1507 = vmatprep.mubr.f32.mxu0 0.0
  %1508 = vmatmul.mubr.f32.gmra.mrb[0].mxu0 %v1129
  %v1509 = vpop.f32.mrb[0].mxu0
  %v1510 = vadd.f32 %v850, %v1509
  %v1511 = vpop.f32.mrb[0].mxu0
  %1512 = vmatprep.mubr.f32.mxu0 0.0
  %1513 = vmatmul.mubr.f32.gmra.mrb[0].mxu0 %v1132
  %v1514 = vpop.f32.mrb[0].mxu0
  %v1515 = vadd.f32 %v855, %v1514
  %v1516 = vpop.f32.mrb[0].mxu0
  %1517 = vmatprep.mubr.f32.mxu0 0.0
  %1518 = vmatmul.mubr.f32.gmra.mrb[0].mxu0 %v1135
  %v1519 = vpop.f32.mrb[0].mxu0
  %v1520 = vadd.f32 %v860, %v1519
  %v1521 = vpop.f32.mrb[0].mxu0
  %1522 = vmatprep.mubr.f32.mxu0 0.0
  %1523 = vmatmul.mubr.f32.gmra.mrb[0].mxu0 %v1138
  %v1524 = vpop.f32.mrb[0].mxu0
  %v1525 = vadd.f32 %v865, %v1524
  %v1526 = vpop.f32.mrb[0].mxu0
  %1527 = vmatprep.mubr.f32.mxu0 0.0
  %1528 = vmatmul.mubr.f32.gmra.mrb[0].mxu0 %v1141
  %v1529 = vpop.f32.mrb[0].mxu0
  %v1530 = vadd.f32 %v870, %v1529
  %v1531 = vpop.f32.mrb[0].mxu0
  %1532 = vmatprep.mubr.f32.mxu0 0.0
  %1533 = vmatmul.mubr.f32.gmra.mrb[0].mxu0 %v1144
  %v1534 = vpop.f32.mrb[0].mxu0
  %v1535 = vadd.f32 %v875, %v1534
  %v1536 = vpop.f32.mrb[0].mxu0
  %1537 = vmatprep.mubr.f32.mxu0 0.0
  %1538 = vmatmul.mubr.f32.gmra.mrb[0].mxu0 %v1147
  %v1539 = vpop.f32.mrb[0].mxu0
  %v1540 = vadd.f32 %v880, %v1539
  %v1541 = vpop.f32.mrb[0].mxu0
  %1542 = vmatprep.mubr.f32.mxu0 0.0
  %1543 = vmatmul.mubr.f32.gmra.mrb[0].mxu0 %v1150
  %v1544 = vpop.f32.mrb[0].mxu0
  %v1545 = vadd.f32 %v885, %v1544
  %v1546 = vpop.f32.mrb[0].mxu0
  %1547 = vmatprep.mubr.f32.mxu0 0.0
  %1548 = vmatmul.mubr.f32.gmra.mrb[0].mxu0 %v1153
  %v1549 = vpop.f32.mrb[0].mxu0
  %v1550 = vadd.f32 %v890, %v1549
  %v1551 = vpop.f32.mrb[0].mxu0
  %1552 = vmatprep.mubr.f32.mxu0 0.0
  %1553 = vmatmul.mubr.f32.gmra.mrb[0].mxu0 %v1156
  %v1554 = vpop.f32.mrb[0].mxu0
  %v1555 = vadd.f32 %v895, %v1554
  %v1556 = vpop.f32.mrb[0].mxu0
  %1557 = vmatprep.mubr.f32.mxu0 0.0
  %1558 = vmatmul.mubr.f32.gmra.mrb[0].mxu0 %v1159
  %v1559 = vpop.f32.mrb[0].mxu0
  %v1560 = vadd.f32 %v900, %v1559
  %v1561 = vpop.f32.mrb[0].mxu0
  %1562 = vmatprep.mubr.f32.mxu0 0.0
  %1563 = vmatmul.mubr.f32.gmra.mrb[0].mxu0 %v1162
  %v1564 = vpop.f32.mrb[0].mxu0
  %v1565 = vadd.f32 %v905, %v1564
  %v1566 = vpop.f32.mrb[0].mxu0
  %1567 = vmatprep.mubr.f32.mxu0 0.0
  %1568 = vmatmul.mubr.f32.gmra.mrb[0].mxu0 %v1165
  %v1569 = vpop.f32.mrb[0].mxu0
  %v1570 = vadd.f32 %v910, %v1569
  %v1571 = vpop.f32.mrb[0].mxu0
  %1572 = vmatprep.mubr.f32.mxu0 0.0
  %1573 = vmatmul.mubr.f32.gmra.mrb[0].mxu0 %v1168
  %v1574 = vpop.f32.mrb[0].mxu0
  %v1575 = vadd.f32 %v915, %v1574
  %v1576 = vpop.f32.mrb[0].mxu0
  %1577 = vmatprep.mubr.f32.mxu0 0.0
  %1578 = vmatmul.mubr.f32.gmra.mrb[0].mxu0 %v1171
  %v1579 = vpop.f32.mrb[0].mxu0
  %v1580 = vadd.f32 %v920, %v1579
  %v1581 = vpop.f32.mrb[0].mxu0
  %1582 = vmatprep.mubr.f32.mxu0 0.0
  %1583 = vmatmul.mubr.f32.gmra.mrb[0].mxu0 %v1174
  %v1584 = vpop.f32.mrb[0].mxu0
  %v1585 = vadd.f32 %v925, %v1584
  %v1586 = vpop.f32.mrb[0].mxu0
  %1587 = vmatprep.mubr.f32.mxu0 0.0
  %1588 = vmatmul.mubr.f32.gmra.mrb[0].mxu0 %v1177
  %v1589 = vpop.f32.mrb[0].mxu0
  %v1590 = vadd.f32 %v930, %v1589
  %v1591 = vpop.f32.mrb[0].mxu0
  %1592 = vmatprep.mubr.f32.mxu0 0.0
  %1593 = vmatmul.mubr.f32.gmra.mrb[0].mxu0 %v1180
  %v1594 = vpop.f32.mrb[0].mxu0
  %v1595 = vadd.f32 %v935, %v1594
  %v1596 = vpop.f32.mrb[0].mxu0
  %1597 = vmatprep.mubr.f32.mxu0 0.0
  %1598 = vmatmul.mubr.f32.gmra.mrb[0].mxu0 %v1183
  %v1599 = vpop.f32.mrb[0].mxu0
  %v1600 = vadd.f32 %v940, %v1599
  %v1601 = vpop.f32.mrb[0].mxu0
  %1602 = vmatprep.mubr.f32.mxu0 0.0
  %1603 = vmatmul.mubr.f32.gmra.mrb[0].mxu0 %v1186
  %v1604 = vpop.f32.mrb[0].mxu0
  %v1605 = vadd.f32 %v945, %v1604
  %v1606 = vpop.f32.mrb[0].mxu0
  %1607 = vmatprep.mubr.f32.mxu0 0.0
  %1608 = vmatmul.mubr.f32.gmra.mrb[0].mxu0 %v1189
  %v1609 = vpop.f32.mrb[0].mxu0
  %v1610 = vadd.f32 %v950, %v1609
  %v1611 = vpop.f32.mrb[0].mxu0
  %1612 = vmatprep.mubr.f32.mxu0 0.0
  %1613 = vmatmul.mubr.f32.gmra.mrb[0].mxu0 %v1192
  %v1614 = vpop.f32.mrb[0].mxu0
  %v1615 = vadd.f32 %v955, %v1614
  %v1616 = vpop.f32.mrb[0].mxu0
  %1617 = vmatprep.mubr.f32.mxu0 0.0
  %1618 = vmatmul.mubr.f32.gmra.mrb[0].mxu0 %v1195
  %v1619 = vpop.f32.mrb[0].mxu0
  %v1620 = vadd.f32 %v960, %v1619
  %v1621 = vpop.f32.mrb[0].mxu0
  %1622 = vmatprep.mubr.f32.mxu0 0.0
  %1623 = vmatmul.mubr.f32.gmra.mrb[0].mxu0 %v1198
  %v1624 = vpop.f32.mrb[0].mxu0
  %v1625 = vadd.f32 %v965, %v1624
  %v1626 = vpop.f32.mrb[0].mxu0
  %1627 = vmatprep.mubr.f32.mxu0 0.0
  %1628 = vmatmul.mubr.f32.gmra.mrb[0].mxu0 %v1201
  %v1629 = vpop.f32.mrb[0].mxu0
  %v1630 = vadd.f32 %v970, %v1629
  %v1631 = vpop.f32.mrb[0].mxu0
  %1632 = vmatprep.mubr.f32.mxu0 0.0
  %1633 = vmatmul.mubr.f32.gmra.mrb[0].mxu0 %v1204
  %v1634 = vpop.f32.mrb[0].mxu0
  %v1635 = vadd.f32 %v975, %v1634
  %v1636 = vpop.f32.mrb[0].mxu0
  %1637 = vmatprep.mubr.f32.mxu0 0.0
  %1638 = vmatmul.mubr.f32.gmra.mrb[0].mxu0 %v1207
  %v1639 = vpop.f32.mrb[0].mxu0
  %v1640 = vadd.f32 %v980, %v1639
  %v1641 = vpop.f32.mrb[0].mxu0
  %1642 = vmatprep.mubr.f32.mxu0 0.0
  %1643 = vmatmul.mubr.f32.gmra.mrb[0].mxu0 %v1210
  %v1644 = vpop.f32.mrb[0].mxu0
  %v1645 = vadd.f32 %v985, %v1644
  %v1646 = vpop.f32.mrb[0].mxu0
  %1647 = vmatprep.mubr.f32.mxu0 0.0
  %1648 = vmatmul.mubr.f32.gmra.mrb[0].mxu0 %v1213
  %v1649 = vpop.f32.mrb[0].mxu0
  %v1650 = vadd.f32 %v990, %v1649
  %v1651 = vpop.f32.mrb[0].mxu0
  %1652 = vdwg.mxu0
  %s1653 = scalar_lea.vmem %s1, 4
  %v1654 = vld [vmem:[%s1653] sm:$0x3]
  %v1655 = vunpack.c.l.bf16 %v1654
  %vm1657 = vcmask 1046528
  %v1658 = vrot.slane %v94, 1
  %v1659 = vrot.slane %v95, 1
  %v1660 = vsel %vm1657, %v1658, %v1659
  %v1661 = vrot.slane %v96, 1
  %v1662 = vsel %vm1657, %v1659, %v1661
  %v1663 = vrot.slane %v97, 1
  %v1664 = vsel %vm1657, %v1661, %v1663
  %v1665 = vrot.slane %v98, 1
  %v1666 = vsel %vm1657, %v1663, %v1665
  %v1667 = vrot.slane %v99, 1
  %v1668 = vsel %vm1657, %v1665, %v1667
  %v1669 = vrot.slane %v100, 1
  %v1670 = vsel %vm1657, %v1667, %v1669
  %v1671 = vrot.slane %v101, 1
  %v1672 = vsel %vm1657, %v1669, %v1671
  %v1673 = vrot.slane %v102, 1
  %v1674 = vsel %vm1657, %v1671, %v1673
  %v1675 = vrot.slane %v103, 1
  %v1676 = vsel %vm1657, %v1673, %v1675
  %v1677 = vrot.slane %v104, 1
  %v1678 = vsel %vm1657, %v1675, %v1677
  %v1679 = vrot.slane %v105, 1
  %v1680 = vsel %vm1657, %v1677, %v1679
  %v1681 = vrot.slane %v106, 1
  %v1682 = vsel %vm1657, %v1679, %v1681
  %v1683 = vrot.slane %v107, 1
  %v1684 = vsel %vm1657, %v1681, %v1683
  %v1685 = vrot.slane %v108, 1
  %v1686 = vsel %vm1657, %v1683, %v1685
  %v1687 = vrot.slane %v109, 1
  %v1688 = vsel %vm1657, %v1685, %v1687
  %v1689 = vrot.slane %v110, 1
  %v1690 = vsel %vm1657, %v1687, %v1689
  %v1691 = vrot.slane %v111, 1
  %v1692 = vsel %vm1657, %v1689, %v1691
  %v1693 = vrot.slane %v112, 1
  %v1694 = vsel %vm1657, %v1691, %v1693
  %v1695 = vrot.slane %v113, 1
  %v1696 = vsel %vm1657, %v1693, %v1695
  %v1697 = vrot.slane %v114, 1
  %v1698 = vsel %vm1657, %v1695, %v1697
  %v1699 = vrot.slane %v115, 1
  %v1700 = vsel %vm1657, %v1697, %v1699
  %v1701 = vrot.slane %v116, 1
  %v1702 = vsel %vm1657, %v1699, %v1701
  %v1703 = vrot.slane %v117, 1
  %v1704 = vsel %vm1657, %v1701, %v1703
  %v1705 = vrot.slane %v118, 1
  %v1706 = vsel %vm1657, %v1703, %v1705
  %v1707 = vrot.slane %v119, 1
  %v1708 = vsel %vm1657, %v1705, %v1707
  %v1709 = vrot.slane %v120, 1
  %v1710 = vsel %vm1657, %v1707, %v1709
  %v1711 = vrot.slane %v121, 1
  %v1712 = vsel %vm1657, %v1709, %v1711
  %v1713 = vrot.slane %v122, 1
  %v1714 = vsel %vm1657, %v1711, %v1713
  %v1715 = vrot.slane %v123, 1
  %v1716 = vsel %vm1657, %v1713, %v1715
  %v1717 = vrot.slane %v124, 1
  %v1718 = vsel %vm1657, %v1715, %v1717
  %v1719 = vrot.slane %v125, 1
  %v1720 = vsel %vm1657, %v1717, %v1719
  %v1721 = vrot.slane %v126, 1
  %v1722 = vsel %vm1657, %v1719, %v1721
  %v1723 = vrot.slane %v127, 1
  %v1724 = vsel %vm1657, %v1721, %v1723
  %v1725 = vrot.slane %v128, 1
  %v1726 = vsel %vm1657, %v1723, %v1725
  %v1727 = vrot.slane %v129, 1
  %v1728 = vsel %vm1657, %v1725, %v1727
  %v1729 = vrot.slane %v130, 1
  %v1730 = vsel %vm1657, %v1727, %v1729
  %v1731 = vrot.slane %v131, 1
  %v1732 = vsel %vm1657, %v1729, %v1731
  %v1733 = vrot.slane %v132, 1
  %v1734 = vsel %vm1657, %v1731, %v1733
  %v1735 = vrot.slane %v133, 1
  %v1736 = vsel %vm1657, %v1733, %v1735
  %v1737 = vrot.slane %v134, 1
  %v1738 = vsel %vm1657, %v1735, %v1737
  %v1739 = vrot.slane %v135, 1
  %v1740 = vsel %vm1657, %v1737, %v1739
  %v1741 = vrot.slane %v136, 1
  %v1742 = vsel %vm1657, %v1739, %v1741
  %v1743 = vrot.slane %v137, 1
  %v1744 = vsel %vm1657, %v1741, %v1743
  %v1745 = vrot.slane %v138, 1
  %v1746 = vsel %vm1657, %v1743, %v1745
  %v1747 = vrot.slane %v139, 1
  %v1748 = vsel %vm1657, %v1745, %v1747
  %v1749 = vrot.slane %v140, 1
  %v1750 = vsel %vm1657, %v1747, %v1749
  %v1751 = vrot.slane %v141, 1
  %v1752 = vsel %vm1657, %v1749, %v1751
  %v1753 = vrot.slane %v142, 1
  %v1754 = vsel %vm1657, %v1751, %v1753
  %v1755 = vrot.slane %v143, 1
  %v1756 = vsel %vm1657, %v1753, %v1755
  %v1757 = vrot.slane %v144, 1
  %v1758 = vsel %vm1657, %v1755, %v1757
  %v1759 = vrot.slane %v145, 1
  %v1760 = vsel %vm1657, %v1757, %v1759
  %v1761 = vrot.slane %v146, 1
  %v1762 = vsel %vm1657, %v1759, %v1761
  %v1763 = vrot.slane %v147, 1
  %v1764 = vsel %vm1657, %v1761, %v1763
  %v1765 = vrot.slane %v148, 1
  %v1766 = vsel %vm1657, %v1763, %v1765
  %v1767 = vrot.slane %v149, 1
  %v1768 = vsel %vm1657, %v1765, %v1767
  %v1769 = vrot.slane %v150, 1
  %v1770 = vsel %vm1657, %v1767, %v1769
  %v1771 = vrot.slane %v151, 1
  %v1772 = vsel %vm1657, %v1769, %v1771
  %v1773 = vrot.slane %v152, 1
  %v1774 = vsel %vm1657, %v1771, %v1773
  %v1775 = vrot.slane %v153, 1
  %v1776 = vsel %vm1657, %v1773, %v1775
  %v1777 = vrot.slane %v154, 1
  %v1778 = vsel %vm1657, %v1775, %v1777
  %v1779 = vrot.slane %v155, 1
  %v1780 = vsel %vm1657, %v1777, %v1779
  %v1781 = vrot.slane %v156, 1
  %v1782 = vsel %vm1657, %v1779, %v1781
  %v1783 = vrot.slane %v157, 1
  %v1784 = vsel %vm1657, %v1781, %v1783
  %v1785 = vrot.slane %v158, 1
  %v1786 = vsel %vm1657, %v1783, %v1785
  %v1787 = vrot.slane %v159, 1
  %v1788 = vsel %vm1657, %v1785, %v1787
  %v1789 = vrot.slane %v160, 1
  %v1790 = vsel %vm1657, %v1787, %v1789
  %v1791 = vrot.slane %v161, 1
  %v1792 = vsel %vm1657, %v1789, %v1791
  %v1793 = vrot.slane %v162, 1
  %v1794 = vsel %vm1657, %v1791, %v1793
  %v1795 = vrot.slane %v163, 1
  %v1796 = vsel %vm1657, %v1793, %v1795
  %v1797 = vrot.slane %v164, 1
  %v1798 = vsel %vm1657, %v1795, %v1797
  %v1799 = vrot.slane %v165, 1
  %v1800 = vsel %vm1657, %v1797, %v1799
  %v1801 = vrot.slane %v166, 1
  %v1802 = vsel %vm1657, %v1799, %v1801
  %v1803 = vrot.slane %v167, 1
  %v1804 = vsel %vm1657, %v1801, %v1803
  %v1805 = vrot.slane %v168, 1
  %v1806 = vsel %vm1657, %v1803, %v1805
  %v1807 = vsel %vm331, %v1660, 0
  %v1809 = vsel %vm331, %v1662, 0
  %v1811 = vsel %vm331, %v1664, 0
  %v1813 = vsel %vm331, %v1666, 0
  %v1815 = vsel %vm331, %v1668, 0
  %v1817 = vsel %vm331, %v1670, 0
  %v1819 = vsel %vm331, %v1672, 0
  %v1821 = vsel %vm331, %v1674, 0
  %v1823 = vsel %vm331, %v1676, 0
  %v1825 = vsel %vm331, %v1678, 0
  %v1827 = vsel %vm331, %v1680, 0
  %v1829 = vsel %vm331, %v1682, 0
  %v1831 = vsel %vm331, %v1684, 0
  %v1833 = vsel %vm331, %v1686, 0
  %v1835 = vsel %vm331, %v1688, 0
  %v1837 = vsel %vm331, %v1690, 0
  %v1839 = vsel %vm331, %v1692, 0
  %v1841 = vsel %vm331, %v1694, 0
  %v1843 = vsel %vm331, %v1696, 0
  %v1845 = vsel %vm331, %v1698, 0
  %v1847 = vsel %vm331, %v1700, 0
  %v1849 = vsel %vm331, %v1702, 0
  %v1851 = vsel %vm331, %v1704, 0
  %v1853 = vsel %vm331, %v1706, 0
  %v1855 = vsel %vm331, %v1708, 0
  %v1857 = vsel %vm331, %v1710, 0
  %v1859 = vsel %vm331, %v1712, 0
  %v1861 = vsel %vm331, %v1714, 0
  %v1863 = vsel %vm331, %v1716, 0
  %v1865 = vsel %vm331, %v1718, 0
  %v1867 = vsel %vm331, %v1720, 0
  %v1869 = vsel %vm331, %v1722, 0
  %v1871 = vsel %vm331, %v1724, 0
  %v1873 = vsel %vm331, %v1726, 0
  %v1875 = vsel %vm331, %v1728, 0
  %v1877 = vsel %vm331, %v1730, 0
  %v1879 = vsel %vm331, %v1732, 0
  %v1881 = vsel %vm331, %v1734, 0
  %v1883 = vsel %vm331, %v1736, 0
  %v1885 = vsel %vm331, %v1738, 0
  %v1887 = vsel %vm331, %v1740, 0
  %v1889 = vsel %vm331, %v1742, 0
  %v1891 = vsel %vm331, %v1744, 0
  %v1893 = vsel %vm331, %v1746, 0
  %v1895 = vsel %vm331, %v1748, 0
  %v1897 = vsel %vm331, %v1750, 0
  %v1899 = vsel %vm331, %v1752, 0
  %v1901 = vsel %vm331, %v1754, 0
  %v1903 = vsel %vm331, %v1756, 0
  %v1905 = vsel %vm331, %v1758, 0
  %v1907 = vsel %vm331, %v1760, 0
  %v1909 = vsel %vm331, %v1762, 0
  %v1911 = vsel %vm331, %v1764, 0
  %v1913 = vsel %vm331, %v1766, 0
  %v1915 = vsel %vm331, %v1768, 0
  %v1917 = vsel %vm331, %v1770, 0
  %v1919 = vsel %vm331, %v1772, 0
  %v1921 = vsel %vm331, %v1774, 0
  %v1923 = vsel %vm331, %v1776, 0
  %v1925 = vsel %vm331, %v1778, 0
  %v1927 = vsel %vm331, %v1780, 0
  %v1929 = vsel %vm331, %v1782, 0
  %v1931 = vsel %vm331, %v1784, 0
  %v1933 = vsel %vm331, %v1786, 0
  %v1935 = vsel %vm331, %v1788, 0
  %v1937 = vsel %vm331, %v1790, 0
  %v1939 = vsel %vm331, %v1792, 0
  %v1941 = vsel %vm331, %v1794, 0
  %v1943 = vsel %vm331, %v1796, 0
  %v1945 = vsel %vm331, %v1798, 0
  %v1947 = vsel %vm331, %v1800, 0
  %v1949 = vsel %vm331, %v1802, 0
  %v1951 = vsel %vm331, %v1804, 0
  %v1953 = vsel %vm331, %v1806, 0
  %v1956 = vsel %vm554, %v1655, 0
  %1958 = vmatprep.subr.mxu0 0.0
  %1959 = vmatpush1.msra.mxu0 %v1956
  %1960 = vmatprep.subr.mxu0 0.0
  %1961 = vmatpush1.msra.mxu0 0.0
  %1962 = vmatprep.subr.mxu0 0.0
  %1963 = vmatpush1.msra.mxu0 0.0
  %1964 = vmatprep.subr.mxu0 0.0
  %1965 = vmatpush1.msra.mxu0 0.0
  %1966 = vmatprep.subr.mxu0 0.0
  %1967 = vmatpush1.msra.mxu0 0.0
  %1968 = vmatprep.subr.mxu0 0.0
  %1969 = vmatpush1.msra.mxu0 0.0
  %1970 = vmatprep.subr.mxu0 0.0
  %1971 = vmatpush1.msra.mxu0 0.0
  %1972 = vmatprep.subr.mxu0 0.0
  %1973 = vmatpush1.msra.mxu0 0.0
  %1974 = vmatprep.subr.mxu0 0.0
  %1975 = vmatpush1.msra.mxu0 0.0
  %1976 = vmatprep.subr.mxu0 0.0
  %1977 = vmatpush1.msra.mxu0 0.0
  %1978 = vmatprep.subr.mxu0 0.0
  %1979 = vmatpush1.msra.mxu0 0.0
  %1980 = vmatprep.subr.mxu0 0.0
  %1981 = vmatpush1.msra.mxu0 0.0
  %1982 = vmatprep.subr.mxu0 0.0
  %1983 = vmatpush1.msra.mxu0 0.0
  %1984 = vmatprep.subr.mxu0 0.0
  %1985 = vmatpush1.msra.mxu0 0.0
  %1986 = vmatprep.subr.mxu0 0.0
  %1987 = vmatpush1.msra.mxu0 0.0
  %1988 = vmatprep.subr.mxu0 0.0
  %1989 = vmatpush1.msra.mxu0 0.0
  %1990 = vmatprep.subr.mxu0 0.0
  %1991 = vmatpush1.msra.mxu0 0.0
  %1992 = vmatprep.subr.mxu0 0.0
  %1993 = vmatpush1.msra.mxu0 0.0
  %1994 = vmatprep.subr.mxu0 0.0
  %1995 = vmatpush1.msra.mxu0 0.0
  %1996 = vmatprep.subr.mxu0 0.0
  %1997 = vmatpush1.msra.mxu0 0.0
  %1998 = vmatprep.subr.mxu0 0.0
  %1999 = vmatpush1.msra.mxu0 0.0
  %2000 = vmatprep.subr.mxu0 0.0
  %2001 = vmatpush1.msra.mxu0 0.0
  %2002 = vmatprep.subr.mxu0 0.0
  %2003 = vmatpush1.msra.mxu0 0.0
  %2004 = vmatprep.subr.mxu0 0.0
  %2005 = vmatpush1.msra.mxu0 0.0
  %2006 = vmatprep.subr.mxu0 0.0
  %2007 = vmatpush1.msra.mxu0 0.0
  %2008 = vmatprep.subr.mxu0 0.0
  %2009 = vmatpush1.msra.mxu0 0.0
  %2010 = vmatprep.subr.mxu0 0.0
  %2011 = vmatpush1.msra.mxu0 0.0
  %2012 = vmatprep.subr.mxu0 0.0
  %2013 = vmatpush1.msra.mxu0 0.0
  %2014 = vmatprep.subr.mxu0 0.0
  %2015 = vmatpush1.msra.mxu0 0.0
  %2016 = vmatprep.subr.mxu0 0.0
  %2017 = vmatpush1.msra.mxu0 0.0
  %2018 = vmatprep.subr.mxu0 0.0
  %2019 = vmatpush1.msra.mxu0 0.0
  %2020 = vmatprep.subr.mxu0 0.0
  %2021 = vmatpush1.msra.mxu0 0.0
  %2022 = vmatprep.mubr.f32.mxu0 0.0
  %2023 = vmatmul.mubr.f32.gmra.mrb[0].mxu0 %v1807
  %v2024 = vpop.f32.mrb[0].mxu0
  %v2025 = vadd.f32 0.0, %v2024
  %v2026 = vpop.f32.mrb[0].mxu0
  %2027 = vmatprep.mubr.f32.mxu0 0.0
  %2028 = vmatmul.mubr.f32.gmra.mrb[0].mxu0 %v1809
  %v2029 = vpop.f32.mrb[0].mxu0
  %v2030 = vadd.f32 0.0, %v2029
  %v2031 = vpop.f32.mrb[0].mxu0
  %2032 = vmatprep.mubr.f32.mxu0 0.0
  %2033 = vmatmul.mubr.f32.gmra.mrb[0].mxu0 %v1811
  %v2034 = vpop.f32.mrb[0].mxu0
  %v2035 = vadd.f32 0.0, %v2034
  %v2036 = vpop.f32.mrb[0].mxu0
  %2037 = vmatprep.mubr.f32.mxu0 0.0
  %2038 = vmatmul.mubr.f32.gmra.mrb[0].mxu0 %v1813
  %v2039 = vpop.f32.mrb[0].mxu0
  %v2040 = vadd.f32 0.0, %v2039
  %v2041 = vpop.f32.mrb[0].mxu0
  %2042 = vmatprep.mubr.f32.mxu0 0.0
  %2043 = vmatmul.mubr.f32.gmra.mrb[0].mxu0 %v1815
  %v2044 = vpop.f32.mrb[0].mxu0
  %v2045 = vadd.f32 0.0, %v2044
  %v2046 = vpop.f32.mrb[0].mxu0
  %2047 = vmatprep.mubr.f32.mxu0 0.0
  %2048 = vmatmul.mubr.f32.gmra.mrb[0].mxu0 %v1817
  %v2049 = vpop.f32.mrb[0].mxu0
  %v2050 = vadd.f32 0.0, %v2049
  %v2051 = vpop.f32.mrb[0].mxu0
  %2052 = vmatprep.mubr.f32.mxu0 0.0
  %2053 = vmatmul.mubr.f32.gmra.mrb[0].mxu0 %v1819
  %v2054 = vpop.f32.mrb[0].mxu0
  %v2055 = vadd.f32 0.0, %v2054
  %v2056 = vpop.f32.mrb[0].mxu0
  %2057 = vmatprep.mubr.f32.mxu0 0.0
  %2058 = vmatmul.mubr.f32.gmra.mrb[0].mxu0 %v1821
  %v2059 = vpop.f32.mrb[0].mxu0
  %v2060 = vadd.f32 0.0, %v2059
  %v2061 = vpop.f32.mrb[0].mxu0
  %2062 = vmatprep.mubr.f32.mxu0 0.0
  %2063 = vmatmul.mubr.f32.gmra.mrb[0].mxu0 %v1823
  %v2064 = vpop.f32.mrb[0].mxu0
  %v2065 = vadd.f32 0.0, %v2064
  %v2066 = vpop.f32.mrb[0].mxu0
  %2067 = vmatprep.mubr.f32.mxu0 0.0
  %2068 = vmatmul.mubr.f32.gmra.mrb[0].mxu0 %v1825
  %v2069 = vpop.f32.mrb[0].mxu0
  %v2070 = vadd.f32 0.0, %v2069
  %v2071 = vpop.f32.mrb[0].mxu0
  %2072 = vmatprep.mubr.f32.mxu0 0.0
  %2073 = vmatmul.mubr.f32.gmra.mrb[0].mxu0 %v1827
  %v2074 = vpop.f32.mrb[0].mxu0
  %v2075 = vadd.f32 0.0, %v2074
  %v2076 = vpop.f32.mrb[0].mxu0
  %2077 = vmatprep.mubr.f32.mxu0 0.0
  %2078 = vmatmul.mubr.f32.gmra.mrb[0].mxu0 %v1829
  %v2079 = vpop.f32.mrb[0].mxu0
  %v2080 = vadd.f32 0.0, %v2079
  %v2081 = vpop.f32.mrb[0].mxu0
  %2082 = vmatprep.mubr.f32.mxu0 0.0
  %2083 = vmatmul.mubr.f32.gmra.mrb[0].mxu0 %v1831
  %v2084 = vpop.f32.mrb[0].mxu0
  %v2085 = vadd.f32 0.0, %v2084
  %v2086 = vpop.f32.mrb[0].mxu0
  %2087 = vmatprep.mubr.f32.mxu0 0.0
  %2088 = vmatmul.mubr.f32.gmra.mrb[0].mxu0 %v1833
  %v2089 = vpop.f32.mrb[0].mxu0
  %v2090 = vadd.f32 0.0, %v2089
  %v2091 = vpop.f32.mrb[0].mxu0
  %2092 = vmatprep.mubr.f32.mxu0 0.0
  %2093 = vmatmul.mubr.f32.gmra.mrb[0].mxu0 %v1835
  %v2094 = vpop.f32.mrb[0].mxu0
  %v2095 = vadd.f32 0.0, %v2094
  %v2096 = vpop.f32.mrb[0].mxu0
  %2097 = vmatprep.mubr.f32.mxu0 0.0
  %2098 = vmatmul.mubr.f32.gmra.mrb[0].mxu0 %v1837
  %v2099 = vpop.f32.mrb[0].mxu0
  %v2100 = vadd.f32 0.0, %v2099
  %v2101 = vpop.f32.mrb[0].mxu0
  %2102 = vmatprep.mubr.f32.mxu0 0.0
  %2103 = vmatmul.mubr.f32.gmra.mrb[0].mxu0 %v1839
  %v2104 = vpop.f32.mrb[0].mxu0
  %v2105 = vadd.f32 0.0, %v2104
  %v2106 = vpop.f32.mrb[0].mxu0
  %2107 = vmatprep.mubr.f32.mxu0 0.0
  %2108 = vmatmul.mubr.f32.gmra.mrb[0].mxu0 %v1841
  %v2109 = vpop.f32.mrb[0].mxu0
  %v2110 = vadd.f32 0.0, %v2109
  %v2111 = vpop.f32.mrb[0].mxu0
  %2112 = vmatprep.mubr.f32.mxu0 0.0
  %2113 = vmatmul.mubr.f32.gmra.mrb[0].mxu0 %v1843
  %v2114 = vpop.f32.mrb[0].mxu0
  %v2115 = vadd.f32 0.0, %v2114
  %v2116 = vpop.f32.mrb[0].mxu0
  %2117 = vmatprep.mubr.f32.mxu0 0.0
  %2118 = vmatmul.mubr.f32.gmra.mrb[0].mxu0 %v1845
  %v2119 = vpop.f32.mrb[0].mxu0
  %v2120 = vadd.f32 0.0, %v2119
  %v2121 = vpop.f32.mrb[0].mxu0
  %2122 = vmatprep.mubr.f32.mxu0 0.0
  %2123 = vmatmul.mubr.f32.gmra.mrb[0].mxu0 %v1847
  %v2124 = vpop.f32.mrb[0].mxu0
  %v2125 = vadd.f32 0.0, %v2124
  %v2126 = vpop.f32.mrb[0].mxu0
  %2127 = vmatprep.mubr.f32.mxu0 0.0
  %2128 = vmatmul.mubr.f32.gmra.mrb[0].mxu0 %v1849
  %v2129 = vpop.f32.mrb[0].mxu0
  %v2130 = vadd.f32 0.0, %v2129
  %v2131 = vpop.f32.mrb[0].mxu0
  %2132 = vmatprep.mubr.f32.mxu0 0.0
  %2133 = vmatmul.mubr.f32.gmra.mrb[0].mxu0 %v1851
  %v2134 = vpop.f32.mrb[0].mxu0
  %v2135 = vadd.f32 0.0, %v2134
  %v2136 = vpop.f32.mrb[0].mxu0
  %2137 = vmatprep.mubr.f32.mxu0 0.0
  %2138 = vmatmul.mubr.f32.gmra.mrb[0].mxu0 %v1853
  %v2139 = vpop.f32.mrb[0].mxu0
  %v2140 = vadd.f32 0.0, %v2139
  %v2141 = vpop.f32.mrb[0].mxu0
  %2142 = vmatprep.mubr.f32.mxu0 0.0
  %2143 = vmatmul.mubr.f32.gmra.mrb[0].mxu0 %v1855
  %v2144 = vpop.f32.mrb[0].mxu0
  %v2145 = vadd.f32 0.0, %v2144
  %v2146 = vpop.f32.mrb[0].mxu0
  %2147 = vmatprep.mubr.f32.mxu0 0.0
  %2148 = vmatmul.mubr.f32.gmra.mrb[0].mxu0 %v1857
  %v2149 = vpop.f32.mrb[0].mxu0
  %v2150 = vadd.f32 0.0, %v2149
  %v2151 = vpop.f32.mrb[0].mxu0
  %2152 = vmatprep.mubr.f32.mxu0 0.0
  %2153 = vmatmul.mubr.f32.gmra.mrb[0].mxu0 %v1859
  %v2154 = vpop.f32.mrb[0].mxu0
  %v2155 = vadd.f32 0.0, %v2154
  %v2156 = vpop.f32.mrb[0].mxu0
  %2157 = vmatprep.mubr.f32.mxu0 0.0
  %2158 = vmatmul.mubr.f32.gmra.mrb[0].mxu0 %v1861
  %v2159 = vpop.f32.mrb[0].mxu0
  %v2160 = vadd.f32 0.0, %v2159
  %v2161 = vpop.f32.mrb[0].mxu0
  %2162 = vmatprep.mubr.f32.mxu0 0.0
  %2163 = vmatmul.mubr.f32.gmra.mrb[0].mxu0 %v1863
  %v2164 = vpop.f32.mrb[0].mxu0
  %v2165 = vadd.f32 0.0, %v2164
  %v2166 = vpop.f32.mrb[0].mxu0
  %2167 = vmatprep.mubr.f32.mxu0 0.0
  %2168 = vmatmul.mubr.f32.gmra.mrb[0].mxu0 %v1865
  %v2169 = vpop.f32.mrb[0].mxu0
  %v2170 = vadd.f32 0.0, %v2169
  %v2171 = vpop.f32.mrb[0].mxu0
  %2172 = vmatprep.mubr.f32.mxu0 0.0
  %2173 = vmatmul.mubr.f32.gmra.mrb[0].mxu0 %v1867
  %v2174 = vpop.f32.mrb[0].mxu0
  %v2175 = vadd.f32 0.0, %v2174
  %v2176 = vpop.f32.mrb[0].mxu0
  %2177 = vmatprep.mubr.f32.mxu0 0.0
  %2178 = vmatmul.mubr.f32.gmra.mrb[0].mxu0 %v1869
  %v2179 = vpop.f32.mrb[0].mxu0
  %v2180 = vadd.f32 0.0, %v2179
  %v2181 = vpop.f32.mrb[0].mxu0
  %2182 = vmatprep.mubr.f32.mxu0 0.0
  %2183 = vmatmul.mubr.f32.gmra.mrb[0].mxu0 %v1871
  %v2184 = vpop.f32.mrb[0].mxu0
  %v2185 = vadd.f32 0.0, %v2184
  %v2186 = vpop.f32.mrb[0].mxu0
  %2187 = vmatprep.mubr.f32.mxu0 0.0
  %2188 = vmatmul.mubr.f32.gmra.mrb[0].mxu0 %v1873
  %v2189 = vpop.f32.mrb[0].mxu0
  %v2190 = vadd.f32 0.0, %v2189
  %v2191 = vpop.f32.mrb[0].mxu0
  %2192 = vmatprep.mubr.f32.mxu0 0.0
  %2193 = vmatmul.mubr.f32.gmra.mrb[0].mxu0 %v1875
  %v2194 = vpop.f32.mrb[0].mxu0
  %v2195 = vadd.f32 0.0, %v2194
  %v2196 = vpop.f32.mrb[0].mxu0
  %2197 = vmatprep.mubr.f32.mxu0 0.0
  %2198 = vmatmul.mubr.f32.gmra.mrb[0].mxu0 %v1877
  %v2199 = vpop.f32.mrb[0].mxu0
  %v2200 = vadd.f32 0.0, %v2199
  %v2201 = vpop.f32.mrb[0].mxu0
  %2202 = vmatprep.mubr.f32.mxu0 0.0
  %2203 = vmatmul.mubr.f32.gmra.mrb[0].mxu0 %v1879
  %v2204 = vpop.f32.mrb[0].mxu0
  %v2205 = vadd.f32 0.0, %v2204
  %v2206 = vpop.f32.mrb[0].mxu0
  %2207 = vmatprep.mubr.f32.mxu0 0.0
  %2208 = vmatmul.mubr.f32.gmra.mrb[0].mxu0 %v1881
  %v2209 = vpop.f32.mrb[0].mxu0
  %v2210 = vadd.f32 0.0, %v2209
  %v2211 = vpop.f32.mrb[0].mxu0
  %2212 = vmatprep.mubr.f32.mxu0 0.0
  %2213 = vmatmul.mubr.f32.gmra.mrb[0].mxu0 %v1883
  %v2214 = vpop.f32.mrb[0].mxu0
  %v2215 = vadd.f32 0.0, %v2214
  %v2216 = vpop.f32.mrb[0].mxu0
  %2217 = vmatprep.mubr.f32.mxu0 0.0
  %2218 = vmatmul.mubr.f32.gmra.mrb[0].mxu0 %v1885
  %v2219 = vpop.f32.mrb[0].mxu0
  %v2220 = vadd.f32 0.0, %v2219
  %v2221 = vpop.f32.mrb[0].mxu0
  %2222 = vmatprep.mubr.f32.mxu0 0.0
  %2223 = vmatmul.mubr.f32.gmra.mrb[0].mxu0 %v1887
  %v2224 = vpop.f32.mrb[0].mxu0
  %v2225 = vadd.f32 0.0, %v2224
  %v2226 = vpop.f32.mrb[0].mxu0
  %2227 = vmatprep.mubr.f32.mxu0 0.0
  %2228 = vmatmul.mubr.f32.gmra.mrb[0].mxu0 %v1889
  %v2229 = vpop.f32.mrb[0].mxu0
  %v2230 = vadd.f32 0.0, %v2229
  %v2231 = vpop.f32.mrb[0].mxu0
  %2232 = vmatprep.mubr.f32.mxu0 0.0
  %2233 = vmatmul.mubr.f32.gmra.mrb[0].mxu0 %v1891
  %v2234 = vpop.f32.mrb[0].mxu0
  %v2235 = vadd.f32 0.0, %v2234
  %v2236 = vpop.f32.mrb[0].mxu0
  %2237 = vmatprep.mubr.f32.mxu0 0.0
  %2238 = vmatmul.mubr.f32.gmra.mrb[0].mxu0 %v1893
  %v2239 = vpop.f32.mrb[0].mxu0
  %v2240 = vadd.f32 0.0, %v2239
  %v2241 = vpop.f32.mrb[0].mxu0
  %2242 = vmatprep.mubr.f32.mxu0 0.0
  %2243 = vmatmul.mubr.f32.gmra.mrb[0].mxu0 %v1895
  %v2244 = vpop.f32.mrb[0].mxu0
  %v2245 = vadd.f32 0.0, %v2244
  %v2246 = vpop.f32.mrb[0].mxu0
  %2247 = vmatprep.mubr.f32.mxu0 0.0
  %2248 = vmatmul.mubr.f32.gmra.mrb[0].mxu0 %v1897
  %v2249 = vpop.f32.mrb[0].mxu0
  %v2250 = vadd.f32 0.0, %v2249
  %v2251 = vpop.f32.mrb[0].mxu0
  %2252 = vmatprep.mubr.f32.mxu0 0.0
  %2253 = vmatmul.mubr.f32.gmra.mrb[0].mxu0 %v1899
  %v2254 = vpop.f32.mrb[0].mxu0
  %v2255 = vadd.f32 0.0, %v2254
  %v2256 = vpop.f32.mrb[0].mxu0
  %2257 = vmatprep.mubr.f32.mxu0 0.0
  %2258 = vmatmul.mubr.f32.gmra.mrb[0].mxu0 %v1901
  %v2259 = vpop.f32.mrb[0].mxu0
  %v2260 = vadd.f32 0.0, %v2259
  %v2261 = vpop.f32.mrb[0].mxu0
  %2262 = vmatprep.mubr.f32.mxu0 0.0
  %2263 = vmatmul.mubr.f32.gmra.mrb[0].mxu0 %v1903
  %v2264 = vpop.f32.mrb[0].mxu0
  %v2265 = vadd.f32 0.0, %v2264
  %v2266 = vpop.f32.mrb[0].mxu0
  %2267 = vmatprep.mubr.f32.mxu0 0.0
  %2268 = vmatmul.mubr.f32.gmra.mrb[0].mxu0 %v1905
  %v2269 = vpop.f32.mrb[0].mxu0
  %v2270 = vadd.f32 0.0, %v2269
  %v2271 = vpop.f32.mrb[0].mxu0
  %2272 = vmatprep.mubr.f32.mxu0 0.0
  %2273 = vmatmul.mubr.f32.gmra.mrb[0].mxu0 %v1907
  %v2274 = vpop.f32.mrb[0].mxu0
  %v2275 = vadd.f32 0.0, %v2274
  %v2276 = vpop.f32.mrb[0].mxu0
  %2277 = vmatprep.mubr.f32.mxu0 0.0
  %2278 = vmatmul.mubr.f32.gmra.mrb[0].mxu0 %v1909
  %v2279 = vpop.f32.mrb[0].mxu0
  %v2280 = vadd.f32 0.0, %v2279
  %v2281 = vpop.f32.mrb[0].mxu0
  %2282 = vmatprep.mubr.f32.mxu0 0.0
  %2283 = vmatmul.mubr.f32.gmra.mrb[0].mxu0 %v1911
  %v2284 = vpop.f32.mrb[0].mxu0
  %v2285 = vadd.f32 0.0, %v2284
  %v2286 = vpop.f32.mrb[0].mxu0
  %2287 = vmatprep.mubr.f32.mxu0 0.0
  %2288 = vmatmul.mubr.f32.gmra.mrb[0].mxu0 %v1913
  %v2289 = vpop.f32.mrb[0].mxu0
  %v2290 = vadd.f32 0.0, %v2289
  %v2291 = vpop.f32.mrb[0].mxu0
  %2292 = vmatprep.mubr.f32.mxu0 0.0
  %2293 = vmatmul.mubr.f32.gmra.mrb[0].mxu0 %v1915
  %v2294 = vpop.f32.mrb[0].mxu0
  %v2295 = vadd.f32 0.0, %v2294
  %v2296 = vpop.f32.mrb[0].mxu0
  %2297 = vmatprep.mubr.f32.mxu0 0.0
  %2298 = vmatmul.mubr.f32.gmra.mrb[0].mxu0 %v1917
  %v2299 = vpop.f32.mrb[0].mxu0
  %v2300 = vadd.f32 0.0, %v2299
  %v2301 = vpop.f32.mrb[0].mxu0
  %2302 = vmatprep.mubr.f32.mxu0 0.0
  %2303 = vmatmul.mubr.f32.gmra.mrb[0].mxu0 %v1919
  %v2304 = vpop.f32.mrb[0].mxu0
  %v2305 = vadd.f32 0.0, %v2304
  %v2306 = vpop.f32.mrb[0].mxu0
  %2307 = vmatprep.mubr.f32.mxu0 0.0
  %2308 = vmatmul.mubr.f32.gmra.mrb[0].mxu0 %v1921
  %v2309 = vpop.f32.mrb[0].mxu0
  %v2310 = vadd.f32 0.0, %v2309
  %v2311 = vpop.f32.mrb[0].mxu0
  %2312 = vmatprep.mubr.f32.mxu0 0.0
  %2313 = vmatmul.mubr.f32.gmra.mrb[0].mxu0 %v1923
  %v2314 = vpop.f32.mrb[0].mxu0
  %v2315 = vadd.f32 0.0, %v2314
  %v2316 = vpop.f32.mrb[0].mxu0
  %2317 = vmatprep.mubr.f32.mxu0 0.0
  %2318 = vmatmul.mubr.f32.gmra.mrb[0].mxu0 %v1925
  %v2319 = vpop.f32.mrb[0].mxu0
  %v2320 = vadd.f32 0.0, %v2319
  %v2321 = vpop.f32.mrb[0].mxu0
  %2322 = vmatprep.mubr.f32.mxu0 0.0
  %2323 = vmatmul.mubr.f32.gmra.mrb[0].mxu0 %v1927
  %v2324 = vpop.f32.mrb[0].mxu0
  %v2325 = vadd.f32 0.0, %v2324
  %v2326 = vpop.f32.mrb[0].mxu0
  %2327 = vmatprep.mubr.f32.mxu0 0.0
  %2328 = vmatmul.mubr.f32.gmra.mrb[0].mxu0 %v1929
  %v2329 = vpop.f32.mrb[0].mxu0
  %v2330 = vadd.f32 0.0, %v2329
  %v2331 = vpop.f32.mrb[0].mxu0
  %2332 = vmatprep.mubr.f32.mxu0 0.0
  %2333 = vmatmul.mubr.f32.gmra.mrb[0].mxu0 %v1931
  %v2334 = vpop.f32.mrb[0].mxu0
  %v2335 = vadd.f32 0.0, %v2334
  %v2336 = vpop.f32.mrb[0].mxu0
  %2337 = vmatprep.mubr.f32.mxu0 0.0
  %2338 = vmatmul.mubr.f32.gmra.mrb[0].mxu0 %v1933
  %v2339 = vpop.f32.mrb[0].mxu0
  %v2340 = vadd.f32 0.0, %v2339
  %v2341 = vpop.f32.mrb[0].mxu0
  %2342 = vmatprep.mubr.f32.mxu0 0.0
  %2343 = vmatmul.mubr.f32.gmra.mrb[0].mxu0 %v1935
  %v2344 = vpop.f32.mrb[0].mxu0
  %v2345 = vadd.f32 0.0, %v2344
  %v2346 = vpop.f32.mrb[0].mxu0
  %2347 = vmatprep.mubr.f32.mxu0 0.0
  %2348 = vmatmul.mubr.f32.gmra.mrb[0].mxu0 %v1937
  %v2349 = vpop.f32.mrb[0].mxu0
  %v2350 = vadd.f32 0.0, %v2349
  %v2351 = vpop.f32.mrb[0].mxu0
  %2352 = vmatprep.mubr.f32.mxu0 0.0
  %2353 = vmatmul.mubr.f32.gmra.mrb[0].mxu0 %v1939
  %v2354 = vpop.f32.mrb[0].mxu0
  %v2355 = vadd.f32 0.0, %v2354
  %v2356 = vpop.f32.mrb[0].mxu0
  %2357 = vmatprep.mubr.f32.mxu0 0.0
  %2358 = vmatmul.mubr.f32.gmra.mrb[0].mxu0 %v1941
  %v2359 = vpop.f32.mrb[0].mxu0
  %v2360 = vadd.f32 0.0, %v2359
  %v2361 = vpop.f32.mrb[0].mxu0
  %2362 = vmatprep.mubr.f32.mxu0 0.0
  %2363 = vmatmul.mubr.f32.gmra.mrb[0].mxu0 %v1943
  %v2364 = vpop.f32.mrb[0].mxu0
  %v2365 = vadd.f32 0.0, %v2364
  %v2366 = vpop.f32.mrb[0].mxu0
  %2367 = vmatprep.mubr.f32.mxu0 0.0
  %2368 = vmatmul.mubr.f32.gmra.mrb[0].mxu0 %v1945
  %v2369 = vpop.f32.mrb[0].mxu0
  %v2370 = vadd.f32 0.0, %v2369
  %v2371 = vpop.f32.mrb[0].mxu0
  %2372 = vmatprep.mubr.f32.mxu0 0.0
  %2373 = vmatmul.mubr.f32.gmra.mrb[0].mxu0 %v1947
  %v2374 = vpop.f32.mrb[0].mxu0
  %v2375 = vadd.f32 0.0, %v2374
  %v2376 = vpop.f32.mrb[0].mxu0
  %2377 = vmatprep.mubr.f32.mxu0 0.0
  %2378 = vmatmul.mubr.f32.gmra.mrb[0].mxu0 %v1949
  %v2379 = vpop.f32.mrb[0].mxu0
  %v2380 = vadd.f32 0.0, %v2379
  %v2381 = vpop.f32.mrb[0].mxu0
  %2382 = vmatprep.mubr.f32.mxu0 0.0
  %2383 = vmatmul.mubr.f32.gmra.mrb[0].mxu0 %v1951
  %v2384 = vpop.f32.mrb[0].mxu0
  %v2385 = vadd.f32 0.0, %v2384
  %v2386 = vpop.f32.mrb[0].mxu0
  %2387 = vmatprep.mubr.f32.mxu0 0.0
  %2388 = vmatmul.mubr.f32.gmra.mrb[0].mxu0 %v1953
  %v2389 = vpop.f32.mrb[0].mxu0
  %v2390 = vadd.f32 0.0, %v2389
  %v2391 = vpop.f32.mrb[0].mxu0
  %2392 = vdwg.mxu0
  %v2393 = vadd.f32 %v1285, %v2025
  %v2394 = vadd.f32 %v1290, %v2030
  %v2395 = vadd.f32 %v1295, %v2035
  %v2396 = vadd.f32 %v1300, %v2040
  %v2397 = vadd.f32 %v1305, %v2045
  %v2398 = vadd.f32 %v1310, %v2050
  %v2399 = vadd.f32 %v1315, %v2055
  %v2400 = vadd.f32 %v1320, %v2060
  %v2401 = vadd.f32 %v1325, %v2065
  %v2402 = vadd.f32 %v1330, %v2070
  %v2403 = vadd.f32 %v1335, %v2075
  %v2404 = vadd.f32 %v1340, %v2080
  %v2405 = vadd.f32 %v1345, %v2085
  %v2406 = vadd.f32 %v1350, %v2090
  %v2407 = vadd.f32 %v1355, %v2095
  %v2408 = vadd.f32 %v1360, %v2100
  %v2409 = vadd.f32 %v1365, %v2105
  %v2410 = vadd.f32 %v1370, %v2110
  %v2411 = vadd.f32 %v1375, %v2115
  %v2412 = vadd.f32 %v1380, %v2120
  %v2413 = vadd.f32 %v1385, %v2125
  %v2414 = vadd.f32 %v1390, %v2130
  %v2415 = vadd.f32 %v1395, %v2135
  %v2416 = vadd.f32 %v1400, %v2140
  %v2417 = vadd.f32 %v1405, %v2145
  %v2418 = vadd.f32 %v1410, %v2150
  %v2419 = vadd.f32 %v1415, %v2155
  %v2420 = vadd.f32 %v1420, %v2160
  %v2421 = vadd.f32 %v1425, %v2165
  %v2422 = vadd.f32 %v1430, %v2170
  %v2423 = vadd.f32 %v1435, %v2175
  %v2424 = vadd.f32 %v1440, %v2180
  %v2425 = vadd.f32 %v1445, %v2185
  %v2426 = vadd.f32 %v1450, %v2190
  %v2427 = vadd.f32 %v1455, %v2195
  %v2428 = vadd.f32 %v1460, %v2200
  %v2429 = vadd.f32 %v1465, %v2205
  %v2430 = vadd.f32 %v1470, %v2210
  %v2431 = vadd.f32 %v1475, %v2215
  %v2432 = vadd.f32 %v1480, %v2220
  %v2433 = vadd.f32 %v1485, %v2225
  %v2434 = vadd.f32 %v1490, %v2230
  %v2435 = vadd.f32 %v1495, %v2235
  %v2436 = vadd.f32 %v1500, %v2240
  %v2437 = vadd.f32 %v1505, %v2245
  %v2438 = vadd.f32 %v1510, %v2250
  %v2439 = vadd.f32 %v1515, %v2255
  %v2440 = vadd.f32 %v1520, %v2260
  %v2441 = vadd.f32 %v1525, %v2265
  %v2442 = vadd.f32 %v1530, %v2270
  %v2443 = vadd.f32 %v1535, %v2275
  %v2444 = vadd.f32 %v1540, %v2280
  %v2445 = vadd.f32 %v1545, %v2285
  %v2446 = vadd.f32 %v1550, %v2290
  %v2447 = vadd.f32 %v1555, %v2295
  %v2448 = vadd.f32 %v1560, %v2300
  %v2449 = vadd.f32 %v1565, %v2305
  %v2450 = vadd.f32 %v1570, %v2310
  %v2451 = vadd.f32 %v1575, %v2315
  %v2452 = vadd.f32 %v1580, %v2320
  %v2453 = vadd.f32 %v1585, %v2325
  %v2454 = vadd.f32 %v1590, %v2330
  %v2455 = vadd.f32 %v1595, %v2335
  %v2456 = vadd.f32 %v1600, %v2340
  %v2457 = vadd.f32 %v1605, %v2345
  %v2458 = vadd.f32 %v1610, %v2350
  %v2459 = vadd.f32 %v1615, %v2355
  %v2460 = vadd.f32 %v1620, %v2360
  %v2461 = vadd.f32 %v1625, %v2365
  %v2462 = vadd.f32 %v1630, %v2370
  %v2463 = vadd.f32 %v1635, %v2375
  %v2464 = vadd.f32 %v1640, %v2380
  %v2465 = vadd.f32 %v1645, %v2385
  %v2466 = vadd.f32 %v1650, %v2390
  %s2467 = scalar_lea.vmem %s0, 616
  %v2468 = vld [vmem:[%s2467] sm:$0xf]
  %v2469 = vld [vmem:[%s2467 + $0x4] sm:$0xf]
  %v2470 = vld [vmem:[%s2467 + $0x8] sm:$0xf]
  %v2471 = vld [vmem:[%s2467 + $0xc] sm:$0xf]
  %v2472 = vld [vmem:[%s2467 + $0x10] sm:$0xf]
  %v2473 = vld [vmem:[%s2467 + $0x14] sm:$0xf]
  %v2474 = vld [vmem:[%s2467 + $0x18] sm:$0xf]
  %v2475 = vld [vmem:[%s2467 + $0x1c] sm:$0xf]
  %v2476 = vld [vmem:[%s2467 + $0x20] sm:$0xf]
  %v2477 = vld [vmem:[%s2467 + $0x24] sm:$0xf]
  %v2478 = vld [vmem:[%s2467 + $0x28] sm:$0xf]
  %v2479 = vld [vmem:[%s2467 + $0x2c] sm:$0xf]
  %v2480 = vld [vmem:[%s2467 + $0x30] sm:$0xf]
  %v2481 = vld [vmem:[%s2467 + $0x34] sm:$0xf]
  %v2482 = vld [vmem:[%s2467 + $0x38] sm:$0xf]
  %v2483 = vld [vmem:[%s2467 + $0x3c] sm:$0xf]
  %v2484 = vld [vmem:[%s2467 + $0x40] sm:$0xf]
  %v2485 = vld [vmem:[%s2467 + $0x44] sm:$0xf]
  %v2486 = vld [vmem:[%s2467 + $0x48] sm:$0xf]
  %v2487 = vld [vmem:[%s2467 + $0x4c] sm:$0xf]
  %v2488 = vld [vmem:[%s2467 + $0x50] sm:$0xf]
  %v2489 = vld [vmem:[%s2467 + $0x54] sm:$0xf]
  %v2490 = vld [vmem:[%s2467 + $0x58] sm:$0xf]
  %v2491 = vld [vmem:[%s2467 + $0x5c] sm:$0xf]
  %v2492 = vld [vmem:[%s2467 + $0x60] sm:$0xf]
  %v2493 = vld [vmem:[%s2467 + $0x64] sm:$0xf]
  %v2494 = vld [vmem:[%s2467 + $0x68] sm:$0xf]
  %v2495 = vld [vmem:[%s2467 + $0x6c] sm:$0xf]
  %v2496 = vld [vmem:[%s2467 + $0x70] sm:$0xf]
  %v2497 = vld [vmem:[%s2467 + $0x74] sm:$0xf]
  %v2498 = vld [vmem:[%s2467 + $0x78] sm:$0xf]
  %v2499 = vld [vmem:[%s2467 + $0x7c] sm:$0xf]
  %v2500 = vld [vmem:[%s2467 + $0x80] sm:$0xf]
  %v2501 = vld [vmem:[%s2467 + $0x84] sm:$0xf]
  %v2502 = vld [vmem:[%s2467 + $0x88] sm:$0xf]
  %v2503 = vld [vmem:[%s2467 + $0x8c] sm:$0xf]
  %v2504 = vld [vmem:[%s2467 + $0x90] sm:$0xf]
  %v2505 = vld [vmem:[%s2467 + $0x94] sm:$0xf]
  %v2506 = vld [vmem:[%s2467 + $0x98] sm:$0xf]
  %v2507 = vld [vmem:[%s2467 + $0x9c] sm:$0xf]
  %v2508 = vld [vmem:[%s2467 + $0xa0] sm:$0xf]
  %v2509 = vld [vmem:[%s2467 + $0xa4] sm:$0xf]
  %v2510 = vld [vmem:[%s2467 + $0xa8] sm:$0xf]
  %v2511 = vld [vmem:[%s2467 + $0xac] sm:$0xf]
  %v2512 = vld [vmem:[%s2467 + $0xb0] sm:$0xf]
  %v2513 = vld [vmem:[%s2467 + $0xb4] sm:$0xf]
  %v2514 = vld [vmem:[%s2467 + $0xb8] sm:$0xf]
  %v2515 = vld [vmem:[%s2467 + $0xbc] sm:$0xf]
  %v2516 = vld [vmem:[%s2467 + $0xc0] sm:$0xf]
  %v2517 = vld [vmem:[%s2467 + $0xc4] sm:$0xf]
  %v2518 = vld [vmem:[%s2467 + $0xc8] sm:$0xf]
  %v2519 = vld [vmem:[%s2467 + $0xcc] sm:$0xf]
  %v2520 = vld [vmem:[%s2467 + $0xd0] sm:$0xf]
  %v2521 = vld [vmem:[%s2467 + $0xd4] sm:$0xf]
  %v2522 = vld [vmem:[%s2467 + $0xd8] sm:$0xf]
  %v2523 = vld [vmem:[%s2467 + $0xdc] sm:$0xf]
  %v2524 = vld [vmem:[%s2467 + $0xe0] sm:$0xf]
  %v2525 = vld [vmem:[%s2467 + $0xe4] sm:$0xf]
  %v2526 = vld [vmem:[%s2467 + $0xe8] sm:$0xf]
  %v2527 = vld [vmem:[%s2467 + $0xec] sm:$0xf]
  %v2528 = vld [vmem:[%s2467 + $0xf0] sm:$0xf]
  %v2529 = vld [vmem:[%s2467 + $0xf4] sm:$0xf]
  %v2530 = vld [vmem:[%s2467 + $0xf8] sm:$0xf]
  %v2531 = vld [vmem:[%s2467 + $0xfc] sm:$0xf]
  %v2532 = vld [vmem:[%s2467 + $0x100] sm:$0xf]
  %v2533 = vld [vmem:[%s2467 + $0x104] sm:$0xf]
  %v2534 = vld [vmem:[%s2467 + $0x108] sm:$0xf]
  %v2535 = vld [vmem:[%s2467 + $0x10c] sm:$0xf]
  %v2536 = vld [vmem:[%s2467 + $0x110] sm:$0xf]
  %v2537 = vld [vmem:[%s2467 + $0x114] sm:$0xf]
  %v2538 = vld [vmem:[%s2467 + $0x118] sm:$0xf]
  %v2539 = vld [vmem:[%s2467 + $0x11c] sm:$0xf]
  %v2540 = vld [vmem:[%s2467 + $0x120] sm:$0xf]
  %v2541 = vld [vmem:[%s2467 + $0x124] sm:$0xf]
  %v2542 = vld [vmem:[%s2467 + $0x128] sm:$0xf]
  %v2543 = vunpack.c.l.bf16 %v2468
  %v2544 = vunpack.c.l.bf16 %v2469
  %v2545 = vunpack.c.l.bf16 %v2470
  %v2546 = vunpack.c.l.bf16 %v2471
  %v2547 = vunpack.c.l.bf16 %v2472
  %v2548 = vunpack.c.l.bf16 %v2473
  %v2549 = vunpack.c.l.bf16 %v2474
  %v2550 = vunpack.c.l.bf16 %v2475
  %v2551 = vunpack.c.l.bf16 %v2476
  %v2552 = vunpack.c.l.bf16 %v2477
  %v2553 = vunpack.c.l.bf16 %v2478
  %v2554 = vunpack.c.l.bf16 %v2479
  %v2555 = vunpack.c.l.bf16 %v2480
  %v2556 = vunpack.c.l.bf16 %v2481
  %v2557 = vunpack.c.l.bf16 %v2482
  %v2558 = vunpack.c.l.bf16 %v2483
  %v2559 = vunpack.c.l.bf16 %v2484
  %v2560 = vunpack.c.l.bf16 %v2485
  %v2561 = vunpack.c.l.bf16 %v2486
  %v2562 = vunpack.c.l.bf16 %v2487
  %v2563 = vunpack.c.l.bf16 %v2488
  %v2564 = vunpack.c.l.bf16 %v2489
  %v2565 = vunpack.c.l.bf16 %v2490
  %v2566 = vunpack.c.l.bf16 %v2491
  %v2567 = vunpack.c.l.bf16 %v2492
  %v2568 = vunpack.c.l.bf16 %v2493
  %v2569 = vunpack.c.l.bf16 %v2494
  %v2570 = vunpack.c.l.bf16 %v2495
  %v2571 = vunpack.c.l.bf16 %v2496
  %v2572 = vunpack.c.l.bf16 %v2497
  %v2573 = vunpack.c.l.bf16 %v2498
  %v2574 = vunpack.c.l.bf16 %v2499
  %v2575 = vunpack.c.l.bf16 %v2500
  %v2576 = vunpack.c.l.bf16 %v2501
  %v2577 = vunpack.c.l.bf16 %v2502
  %v2578 = vunpack.c.l.bf16 %v2503
  %v2579 = vunpack.c.l.bf16 %v2504
  %v2580 = vunpack.c.l.bf16 %v2505
  %v2581 = vunpack.c.l.bf16 %v2506
  %v2582 = vunpack.c.l.bf16 %v2507
  %v2583 = vunpack.c.l.bf16 %v2508
  %v2584 = vunpack.c.l.bf16 %v2509
  %v2585 = vunpack.c.l.bf16 %v2510
  %v2586 = vunpack.c.l.bf16 %v2511
  %v2587 = vunpack.c.l.bf16 %v2512
  %v2588 = vunpack.c.l.bf16 %v2513
  %v2589 = vunpack.c.l.bf16 %v2514
  %v2590 = vunpack.c.l.bf16 %v2515
  %v2591 = vunpack.c.l.bf16 %v2516
  %v2592 = vunpack.c.l.bf16 %v2517
  %v2593 = vunpack.c.l.bf16 %v2518
  %v2594 = vunpack.c.l.bf16 %v2519
  %v2595 = vunpack.c.l.bf16 %v2520
  %v2596 = vunpack.c.l.bf16 %v2521
  %v2597 = vunpack.c.l.bf16 %v2522
  %v2598 = vunpack.c.l.bf16 %v2523
  %v2599 = vunpack.c.l.bf16 %v2524
  %v2600 = vunpack.c.l.bf16 %v2525
  %v2601 = vunpack.c.l.bf16 %v2526
  %v2602 = vunpack.c.l.bf16 %v2527
  %v2603 = vunpack.c.l.bf16 %v2528
  %v2604 = vunpack.c.l.bf16 %v2529
  %v2605 = vunpack.c.l.bf16 %v2530
  %v2606 = vunpack.c.l.bf16 %v2531
  %v2607 = vunpack.c.l.bf16 %v2532
  %v2608 = vunpack.c.l.bf16 %v2533
  %v2609 = vunpack.c.l.bf16 %v2534
  %v2610 = vunpack.c.l.bf16 %v2535
  %v2611 = vunpack.c.l.bf16 %v2536
  %v2612 = vunpack.c.l.bf16 %v2537
  %v2613 = vunpack.c.l.bf16 %v2538
  %v2614 = vunpack.c.l.bf16 %v2539
  %v2615 = vunpack.c.l.bf16 %v2540
  %v2616 = vunpack.c.l.bf16 %v2541
  %v2617 = vunpack.c.l.bf16 %v2542
  %s2618 = scalar_lea.vmem %s1, 6
  %v2619 = vld [vmem:[%s2618] sm:$0x3]
  %v2620 = vunpack.c.l.bf16 %v2619
  %v2622 = vsel %vm331, %v2543, 0
  %v2625 = vsel %vm331, %v2544, 0
  %v2628 = vsel %vm331, %v2545, 0
  %v2631 = vsel %vm331, %v2546, 0
  %v2634 = vsel %vm331, %v2547, 0
  %v2637 = vsel %vm331, %v2548, 0
  %v2640 = vsel %vm331, %v2549, 0
  %v2643 = vsel %vm331, %v2550, 0
  %v2646 = vsel %vm331, %v2551, 0
  %v2649 = vsel %vm331, %v2552, 0
  %v2652 = vsel %vm331, %v2553, 0
  %v2655 = vsel %vm331, %v2554, 0
  %v2658 = vsel %vm331, %v2555, 0
  %v2661 = vsel %vm331, %v2556, 0
  %v2664 = vsel %vm331, %v2557, 0
  %v2667 = vsel %vm331, %v2558, 0
  %v2670 = vsel %vm331, %v2559, 0
  %v2673 = vsel %vm331, %v2560, 0
  %v2676 = vsel %vm331, %v2561, 0
  %v2679 = vsel %vm331, %v2562, 0
  %v2682 = vsel %vm331, %v2563, 0
  %v2685 = vsel %vm331, %v2564, 0
  %v2688 = vsel %vm331, %v2565, 0
  %v2691 = vsel %vm331, %v2566, 0
  %v2694 = vsel %vm331, %v2567, 0
  %v2697 = vsel %vm331, %v2568, 0
  %v2700 = vsel %vm331, %v2569, 0
  %v2703 = vsel %vm331, %v2570, 0
  %v2706 = vsel %vm331, %v2571, 0
  %v2709 = vsel %vm331, %v2572, 0
  %v2712 = vsel %vm331, %v2573, 0
  %v2715 = vsel %vm331, %v2574, 0
  %v2718 = vsel %vm331, %v2575, 0
  %v2721 = vsel %vm331, %v2576, 0
  %v2724 = vsel %vm331, %v2577, 0
  %v2727 = vsel %vm331, %v2578, 0
  %v2730 = vsel %vm331, %v2579, 0
  %v2733 = vsel %vm331, %v2580, 0
  %v2736 = vsel %vm331, %v2581, 0
  %v2739 = vsel %vm331, %v2582, 0
  %v2742 = vsel %vm331, %v2583, 0
  %v2745 = vsel %vm331, %v2584, 0
  %v2748 = vsel %vm331, %v2585, 0
  %v2751 = vsel %vm331, %v2586, 0
  %v2754 = vsel %vm331, %v2587, 0
  %v2757 = vsel %vm331, %v2588, 0
  %v2760 = vsel %vm331, %v2589, 0
  %v2763 = vsel %vm331, %v2590, 0
  %v2766 = vsel %vm331, %v2591, 0
  %v2769 = vsel %vm331, %v2592, 0
  %v2772 = vsel %vm331, %v2593, 0
  %v2775 = vsel %vm331, %v2594, 0
  %v2778 = vsel %vm331, %v2595, 0
  %v2781 = vsel %vm331, %v2596, 0
  %v2784 = vsel %vm331, %v2597, 0
  %v2787 = vsel %vm331, %v2598, 0
  %v2790 = vsel %vm331, %v2599, 0
  %v2793 = vsel %vm331, %v2600, 0
  %v2796 = vsel %vm331, %v2601, 0
  %v2799 = vsel %vm331, %v2602, 0
  %v2802 = vsel %vm331, %v2603, 0
  %v2805 = vsel %vm331, %v2604, 0
  %v2808 = vsel %vm331, %v2605, 0
  %v2811 = vsel %vm331, %v2606, 0
  %v2814 = vsel %vm331, %v2607, 0
  %v2817 = vsel %vm331, %v2608, 0
  %v2820 = vsel %vm331, %v2609, 0
  %v2823 = vsel %vm331, %v2610, 0
  %v2826 = vsel %vm331, %v2611, 0
  %v2829 = vsel %vm331, %v2612, 0
  %v2832 = vsel %vm331, %v2613, 0
  %v2835 = vsel %vm331, %v2614, 0
  %v2838 = vsel %vm331, %v2615, 0
  %v2841 = vsel %vm331, %v2616, 0
  %v2844 = vsel %vm554, %v2620, 0
  %2846 = vmatprep.subr.mxu0 0.0
  %2847 = vmatpush1.msra.mxu0 %v2844
  %2848 = vmatprep.subr.mxu0 0.0
  %2849 = vmatpush1.msra.mxu0 0.0
  %2850 = vmatprep.subr.mxu0 0.0
  %2851 = vmatpush1.msra.mxu0 0.0
  %2852 = vmatprep.subr.mxu0 0.0
  %2853 = vmatpush1.msra.mxu0 0.0
  %2854 = vmatprep.subr.mxu0 0.0
  %2855 = vmatpush1.msra.mxu0 0.0
  %2856 = vmatprep.subr.mxu0 0.0
  %2857 = vmatpush1.msra.mxu0 0.0
  %2858 = vmatprep.subr.mxu0 0.0
  %2859 = vmatpush1.msra.mxu0 0.0
  %2860 = vmatprep.subr.mxu0 0.0
  %2861 = vmatpush1.msra.mxu0 0.0
  %2862 = vmatprep.subr.mxu0 0.0
  %2863 = vmatpush1.msra.mxu0 0.0
  %2864 = vmatprep.subr.mxu0 0.0
  %2865 = vmatpush1.msra.mxu0 0.0
  %2866 = vmatprep.subr.mxu0 0.0
  %2867 = vmatpush1.msra.mxu0 0.0
  %2868 = vmatprep.subr.mxu0 0.0
  %2869 = vmatpush1.msra.mxu0 0.0
  %2870 = vmatprep.subr.mxu0 0.0
  %2871 = vmatpush1.msra.mxu0 0.0
  %2872 = vmatprep.subr.mxu0 0.0
  %2873 = vmatpush1.msra.mxu0 0.0
  %2874 = vmatprep.subr.mxu0 0.0
  %2875 = vmatpush1.msra.mxu0 0.0
  %2876 = vmatprep.subr.mxu0 0.0
  %2877 = vmatpush1.msra.mxu0 0.0
  %2878 = vmatprep.subr.mxu0 0.0
  %2879 = vmatpush1.msra.mxu0 0.0
  %2880 = vmatprep.subr.mxu0 0.0
  %2881 = vmatpush1.msra.mxu0 0.0
  %2882 = vmatprep.subr.mxu0 0.0
  %2883 = vmatpush1.msra.mxu0 0.0
  %2884 = vmatprep.subr.mxu0 0.0
  %2885 = vmatpush1.msra.mxu0 0.0
  %2886 = vmatprep.subr.mxu0 0.0
  %2887 = vmatpush1.msra.mxu0 0.0
  %2888 = vmatprep.subr.mxu0 0.0
  %2889 = vmatpush1.msra.mxu0 0.0
  %2890 = vmatprep.subr.mxu0 0.0
  %2891 = vmatpush1.msra.mxu0 0.0
  %2892 = vmatprep.subr.mxu0 0.0
  %2893 = vmatpush1.msra.mxu0 0.0
  %2894 = vmatprep.subr.mxu0 0.0
  %2895 = vmatpush1.msra.mxu0 0.0
  %2896 = vmatprep.subr.mxu0 0.0
  %2897 = vmatpush1.msra.mxu0 0.0
  %2898 = vmatprep.subr.mxu0 0.0
  %2899 = vmatpush1.msra.mxu0 0.0
  %2900 = vmatprep.subr.mxu0 0.0
  %2901 = vmatpush1.msra.mxu0 0.0
  %2902 = vmatprep.subr.mxu0 0.0
  %2903 = vmatpush1.msra.mxu0 0.0
  %2904 = vmatprep.subr.mxu0 0.0
  %2905 = vmatpush1.msra.mxu0 0.0
  %2906 = vmatprep.subr.mxu0 0.0
  %2907 = vmatpush1.msra.mxu0 0.0
  %2908 = vmatprep.subr.mxu0 0.0
  %2909 = vmatpush1.msra.mxu0 0.0
  %2910 = vmatprep.mubr.f32.mxu0 0.0
  %2911 = vmatmul.mubr.f32.gmra.mrb[0].mxu0 %v2622
  %v2912 = vpop.f32.mrb[0].mxu0
  %v2913 = vadd.f32 0.0, %v2912
  %v2914 = vpop.f32.mrb[0].mxu0
  %2915 = vmatprep.mubr.f32.mxu0 0.0
  %2916 = vmatmul.mubr.f32.gmra.mrb[0].mxu0 %v2625
  %v2917 = vpop.f32.mrb[0].mxu0
  %v2918 = vadd.f32 0.0, %v2917
  %v2919 = vpop.f32.mrb[0].mxu0
  %2920 = vmatprep.mubr.f32.mxu0 0.0
  %2921 = vmatmul.mubr.f32.gmra.mrb[0].mxu0 %v2628
  %v2922 = vpop.f32.mrb[0].mxu0
  %v2923 = vadd.f32 0.0, %v2922
  %v2924 = vpop.f32.mrb[0].mxu0
  %2925 = vmatprep.mubr.f32.mxu0 0.0
  %2926 = vmatmul.mubr.f32.gmra.mrb[0].mxu0 %v2631
  %v2927 = vpop.f32.mrb[0].mxu0
  %v2928 = vadd.f32 0.0, %v2927
  %v2929 = vpop.f32.mrb[0].mxu0
  %2930 = vmatprep.mubr.f32.mxu0 0.0
  %2931 = vmatmul.mubr.f32.gmra.mrb[0].mxu0 %v2634
  %v2932 = vpop.f32.mrb[0].mxu0
  %v2933 = vadd.f32 0.0, %v2932
  %v2934 = vpop.f32.mrb[0].mxu0
  %2935 = vmatprep.mubr.f32.mxu0 0.0
  %2936 = vmatmul.mubr.f32.gmra.mrb[0].mxu0 %v2637
  %v2937 = vpop.f32.mrb[0].mxu0
  %v2938 = vadd.f32 0.0, %v2937
  %v2939 = vpop.f32.mrb[0].mxu0
  %2940 = vmatprep.mubr.f32.mxu0 0.0
  %2941 = vmatmul.mubr.f32.gmra.mrb[0].mxu0 %v2640
  %v2942 = vpop.f32.mrb[0].mxu0
  %v2943 = vadd.f32 0.0, %v2942
  %v2944 = vpop.f32.mrb[0].mxu0
  %2945 = vmatprep.mubr.f32.mxu0 0.0
  %2946 = vmatmul.mubr.f32.gmra.mrb[0].mxu0 %v2643
  %v2947 = vpop.f32.mrb[0].mxu0
  %v2948 = vadd.f32 0.0, %v2947
  %v2949 = vpop.f32.mrb[0].mxu0
  %2950 = vmatprep.mubr.f32.mxu0 0.0
  %2951 = vmatmul.mubr.f32.gmra.mrb[0].mxu0 %v2646
  %v2952 = vpop.f32.mrb[0].mxu0
  %v2953 = vadd.f32 0.0, %v2952
  %v2954 = vpop.f32.mrb[0].mxu0
  %2955 = vmatprep.mubr.f32.mxu0 0.0
  %2956 = vmatmul.mubr.f32.gmra.mrb[0].mxu0 %v2649
  %v2957 = vpop.f32.mrb[0].mxu0
  %v2958 = vadd.f32 0.0, %v2957
  %v2959 = vpop.f32.mrb[0].mxu0
  %2960 = vmatprep.mubr.f32.mxu0 0.0
  %2961 = vmatmul.mubr.f32.gmra.mrb[0].mxu0 %v2652
  %v2962 = vpop.f32.mrb[0].mxu0
  %v2963 = vadd.f32 0.0, %v2962
  %v2964 = vpop.f32.mrb[0].mxu0
  %2965 = vmatprep.mubr.f32.mxu0 0.0
  %2966 = vmatmul.mubr.f32.gmra.mrb[0].mxu0 %v2655
  %v2967 = vpop.f32.mrb[0].mxu0
  %v2968 = vadd.f32 0.0, %v2967
  %v2969 = vpop.f32.mrb[0].mxu0
  %2970 = vmatprep.mubr.f32.mxu0 0.0
  %2971 = vmatmul.mubr.f32.gmra.mrb[0].mxu0 %v2658
  %v2972 = vpop.f32.mrb[0].mxu0
  %v2973 = vadd.f32 0.0, %v2972
  %v2974 = vpop.f32.mrb[0].mxu0
  %2975 = vmatprep.mubr.f32.mxu0 0.0
  %2976 = vmatmul.mubr.f32.gmra.mrb[0].mxu0 %v2661
  %v2977 = vpop.f32.mrb[0].mxu0
  %v2978 = vadd.f32 0.0, %v2977
  %v2979 = vpop.f32.mrb[0].mxu0
  %2980 = vmatprep.mubr.f32.mxu0 0.0
  %2981 = vmatmul.mubr.f32.gmra.mrb[0].mxu0 %v2664
  %v2982 = vpop.f32.mrb[0].mxu0
  %v2983 = vadd.f32 0.0, %v2982
  %v2984 = vpop.f32.mrb[0].mxu0
  %2985 = vmatprep.mubr.f32.mxu0 0.0
  %2986 = vmatmul.mubr.f32.gmra.mrb[0].mxu0 %v2667
  %v2987 = vpop.f32.mrb[0].mxu0
  %v2988 = vadd.f32 0.0, %v2987
  %v2989 = vpop.f32.mrb[0].mxu0
  %2990 = vmatprep.mubr.f32.mxu0 0.0
  %2991 = vmatmul.mubr.f32.gmra.mrb[0].mxu0 %v2670
  %v2992 = vpop.f32.mrb[0].mxu0
  %v2993 = vadd.f32 0.0, %v2992
  %v2994 = vpop.f32.mrb[0].mxu0
  %2995 = vmatprep.mubr.f32.mxu0 0.0
  %2996 = vmatmul.mubr.f32.gmra.mrb[0].mxu0 %v2673
  %v2997 = vpop.f32.mrb[0].mxu0
  %v2998 = vadd.f32 0.0, %v2997
  %v2999 = vpop.f32.mrb[0].mxu0
  %3000 = vmatprep.mubr.f32.mxu0 0.0
  %3001 = vmatmul.mubr.f32.gmra.mrb[0].mxu0 %v2676
  %v3002 = vpop.f32.mrb[0].mxu0
  %v3003 = vadd.f32 0.0, %v3002
  %v3004 = vpop.f32.mrb[0].mxu0
  %3005 = vmatprep.mubr.f32.mxu0 0.0
  %3006 = vmatmul.mubr.f32.gmra.mrb[0].mxu0 %v2679
  %v3007 = vpop.f32.mrb[0].mxu0
  %v3008 = vadd.f32 0.0, %v3007
  %v3009 = vpop.f32.mrb[0].mxu0
  %3010 = vmatprep.mubr.f32.mxu0 0.0
  %3011 = vmatmul.mubr.f32.gmra.mrb[0].mxu0 %v2682
  %v3012 = vpop.f32.mrb[0].mxu0
  %v3013 = vadd.f32 0.0, %v3012
  %v3014 = vpop.f32.mrb[0].mxu0
  %3015 = vmatprep.mubr.f32.mxu0 0.0
  %3016 = vmatmul.mubr.f32.gmra.mrb[0].mxu0 %v2685
  %v3017 = vpop.f32.mrb[0].mxu0
  %v3018 = vadd.f32 0.0, %v3017
  %v3019 = vpop.f32.mrb[0].mxu0
  %3020 = vmatprep.mubr.f32.mxu0 0.0
  %3021 = vmatmul.mubr.f32.gmra.mrb[0].mxu0 %v2688
  %v3022 = vpop.f32.mrb[0].mxu0
  %v3023 = vadd.f32 0.0, %v3022
  %v3024 = vpop.f32.mrb[0].mxu0
  %3025 = vmatprep.mubr.f32.mxu0 0.0
  %3026 = vmatmul.mubr.f32.gmra.mrb[0].mxu0 %v2691
  %v3027 = vpop.f32.mrb[0].mxu0
  %v3028 = vadd.f32 0.0, %v3027
  %v3029 = vpop.f32.mrb[0].mxu0
  %3030 = vmatprep.mubr.f32.mxu0 0.0
  %3031 = vmatmul.mubr.f32.gmra.mrb[0].mxu0 %v2694
  %v3032 = vpop.f32.mrb[0].mxu0
  %v3033 = vadd.f32 0.0, %v3032
  %v3034 = vpop.f32.mrb[0].mxu0
  %3035 = vmatprep.mubr.f32.mxu0 0.0
  %3036 = vmatmul.mubr.f32.gmra.mrb[0].mxu0 %v2697
  %v3037 = vpop.f32.mrb[0].mxu0
  %v3038 = vadd.f32 0.0, %v3037
  %v3039 = vpop.f32.mrb[0].mxu0
  %3040 = vmatprep.mubr.f32.mxu0 0.0
  %3041 = vmatmul.mubr.f32.gmra.mrb[0].mxu0 %v2700
  %v3042 = vpop.f32.mrb[0].mxu0
  %v3043 = vadd.f32 0.0, %v3042
  %v3044 = vpop.f32.mrb[0].mxu0
  %3045 = vmatprep.mubr.f32.mxu0 0.0
  %3046 = vmatmul.mubr.f32.gmra.mrb[0].mxu0 %v2703
  %v3047 = vpop.f32.mrb[0].mxu0
  %v3048 = vadd.f32 0.0, %v3047
  %v3049 = vpop.f32.mrb[0].mxu0
  %3050 = vmatprep.mubr.f32.mxu0 0.0
  %3051 = vmatmul.mubr.f32.gmra.mrb[0].mxu0 %v2706
  %v3052 = vpop.f32.mrb[0].mxu0
  %v3053 = vadd.f32 0.0, %v3052
  %v3054 = vpop.f32.mrb[0].mxu0
  %3055 = vmatprep.mubr.f32.mxu0 0.0
  %3056 = vmatmul.mubr.f32.gmra.mrb[0].mxu0 %v2709
  %v3057 = vpop.f32.mrb[0].mxu0
  %v3058 = vadd.f32 0.0, %v3057
  %v3059 = vpop.f32.mrb[0].mxu0
  %3060 = vmatprep.mubr.f32.mxu0 0.0
  %3061 = vmatmul.mubr.f32.gmra.mrb[0].mxu0 %v2712
  %v3062 = vpop.f32.mrb[0].mxu0
  %v3063 = vadd.f32 0.0, %v3062
  %v3064 = vpop.f32.mrb[0].mxu0
  %3065 = vmatprep.mubr.f32.mxu0 0.0
  %3066 = vmatmul.mubr.f32.gmra.mrb[0].mxu0 %v2715
  %v3067 = vpop.f32.mrb[0].mxu0
  %v3068 = vadd.f32 0.0, %v3067
  %v3069 = vpop.f32.mrb[0].mxu0
  %3070 = vmatprep.mubr.f32.mxu0 0.0
  %3071 = vmatmul.mubr.f32.gmra.mrb[0].mxu0 %v2718
  %v3072 = vpop.f32.mrb[0].mxu0
  %v3073 = vadd.f32 0.0, %v3072
  %v3074 = vpop.f32.mrb[0].mxu0
  %3075 = vmatprep.mubr.f32.mxu0 0.0
  %3076 = vmatmul.mubr.f32.gmra.mrb[0].mxu0 %v2721
  %v3077 = vpop.f32.mrb[0].mxu0
  %v3078 = vadd.f32 0.0, %v3077
  %v3079 = vpop.f32.mrb[0].mxu0
  %3080 = vmatprep.mubr.f32.mxu0 0.0
  %3081 = vmatmul.mubr.f32.gmra.mrb[0].mxu0 %v2724
  %v3082 = vpop.f32.mrb[0].mxu0
  %v3083 = vadd.f32 0.0, %v3082
  %v3084 = vpop.f32.mrb[0].mxu0
  %3085 = vmatprep.mubr.f32.mxu0 0.0
  %3086 = vmatmul.mubr.f32.gmra.mrb[0].mxu0 %v2727
  %v3087 = vpop.f32.mrb[0].mxu0
  %v3088 = vadd.f32 0.0, %v3087
  %v3089 = vpop.f32.mrb[0].mxu0
  %3090 = vmatprep.mubr.f32.mxu0 0.0
  %3091 = vmatmul.mubr.f32.gmra.mrb[0].mxu0 %v2730
  %v3092 = vpop.f32.mrb[0].mxu0
  %v3093 = vadd.f32 0.0, %v3092
  %v3094 = vpop.f32.mrb[0].mxu0
  %3095 = vmatprep.mubr.f32.mxu0 0.0
  %3096 = vmatmul.mubr.f32.gmra.mrb[0].mxu0 %v2733
  %v3097 = vpop.f32.mrb[0].mxu0
  %v3098 = vadd.f32 0.0, %v3097
  %v3099 = vpop.f32.mrb[0].mxu0
  %3100 = vmatprep.mubr.f32.mxu0 0.0
  %3101 = vmatmul.mubr.f32.gmra.mrb[0].mxu0 %v2736
  %v3102 = vpop.f32.mrb[0].mxu0
  %v3103 = vadd.f32 0.0, %v3102
  %v3104 = vpop.f32.mrb[0].mxu0
  %3105 = vmatprep.mubr.f32.mxu0 0.0
  %3106 = vmatmul.mubr.f32.gmra.mrb[0].mxu0 %v2739
  %v3107 = vpop.f32.mrb[0].mxu0
  %v3108 = vadd.f32 0.0, %v3107
  %v3109 = vpop.f32.mrb[0].mxu0
  %3110 = vmatprep.mubr.f32.mxu0 0.0
  %3111 = vmatmul.mubr.f32.gmra.mrb[0].mxu0 %v2742
  %v3112 = vpop.f32.mrb[0].mxu0
  %v3113 = vadd.f32 0.0, %v3112
  %v3114 = vpop.f32.mrb[0].mxu0
  %3115 = vmatprep.mubr.f32.mxu0 0.0
  %3116 = vmatmul.mubr.f32.gmra.mrb[0].mxu0 %v2745
  %v3117 = vpop.f32.mrb[0].mxu0
  %v3118 = vadd.f32 0.0, %v3117
  %v3119 = vpop.f32.mrb[0].mxu0
  %3120 = vmatprep.mubr.f32.mxu0 0.0
  %3121 = vmatmul.mubr.f32.gmra.mrb[0].mxu0 %v2748
  %v3122 = vpop.f32.mrb[0].mxu0
  %v3123 = vadd.f32 0.0, %v3122
  %v3124 = vpop.f32.mrb[0].mxu0
  %3125 = vmatprep.mubr.f32.mxu0 0.0
  %3126 = vmatmul.mubr.f32.gmra.mrb[0].mxu0 %v2751
  %v3127 = vpop.f32.mrb[0].mxu0
  %v3128 = vadd.f32 0.0, %v3127
  %v3129 = vpop.f32.mrb[0].mxu0
  %3130 = vmatprep.mubr.f32.mxu0 0.0
  %3131 = vmatmul.mubr.f32.gmra.mrb[0].mxu0 %v2754
  %v3132 = vpop.f32.mrb[0].mxu0
  %v3133 = vadd.f32 0.0, %v3132
  %v3134 = vpop.f32.mrb[0].mxu0
  %3135 = vmatprep.mubr.f32.mxu0 0.0
  %3136 = vmatmul.mubr.f32.gmra.mrb[0].mxu0 %v2757
  %v3137 = vpop.f32.mrb[0].mxu0
  %v3138 = vadd.f32 0.0, %v3137
  %v3139 = vpop.f32.mrb[0].mxu0
  %3140 = vmatprep.mubr.f32.mxu0 0.0
  %3141 = vmatmul.mubr.f32.gmra.mrb[0].mxu0 %v2760
  %v3142 = vpop.f32.mrb[0].mxu0
  %v3143 = vadd.f32 0.0, %v3142
  %v3144 = vpop.f32.mrb[0].mxu0
  %3145 = vmatprep.mubr.f32.mxu0 0.0
  %3146 = vmatmul.mubr.f32.gmra.mrb[0].mxu0 %v2763
  %v3147 = vpop.f32.mrb[0].mxu0
  %v3148 = vadd.f32 0.0, %v3147
  %v3149 = vpop.f32.mrb[0].mxu0
  %3150 = vmatprep.mubr.f32.mxu0 0.0
  %3151 = vmatmul.mubr.f32.gmra.mrb[0].mxu0 %v2766
  %v3152 = vpop.f32.mrb[0].mxu0
  %v3153 = vadd.f32 0.0, %v3152
  %v3154 = vpop.f32.mrb[0].mxu0
  %3155 = vmatprep.mubr.f32.mxu0 0.0
  %3156 = vmatmul.mubr.f32.gmra.mrb[0].mxu0 %v2769
  %v3157 = vpop.f32.mrb[0].mxu0
  %v3158 = vadd.f32 0.0, %v3157
  %v3159 = vpop.f32.mrb[0].mxu0
  %3160 = vmatprep.mubr.f32.mxu0 0.0
  %3161 = vmatmul.mubr.f32.gmra.mrb[0].mxu0 %v2772
  %v3162 = vpop.f32.mrb[0].mxu0
  %v3163 = vadd.f32 0.0, %v3162
  %v3164 = vpop.f32.mrb[0].mxu0
  %3165 = vmatprep.mubr.f32.mxu0 0.0
  %3166 = vmatmul.mubr.f32.gmra.mrb[0].mxu0 %v2775
  %v3167 = vpop.f32.mrb[0].mxu0
  %v3168 = vadd.f32 0.0, %v3167
  %v3169 = vpop.f32.mrb[0].mxu0
  %3170 = vmatprep.mubr.f32.mxu0 0.0
  %3171 = vmatmul.mubr.f32.gmra.mrb[0].mxu0 %v2778
  %v3172 = vpop.f32.mrb[0].mxu0
  %v3173 = vadd.f32 0.0, %v3172
  %v3174 = vpop.f32.mrb[0].mxu0
  %3175 = vmatprep.mubr.f32.mxu0 0.0
  %3176 = vmatmul.mubr.f32.gmra.mrb[0].mxu0 %v2781
  %v3177 = vpop.f32.mrb[0].mxu0
  %v3178 = vadd.f32 0.0, %v3177
  %v3179 = vpop.f32.mrb[0].mxu0
  %3180 = vmatprep.mubr.f32.mxu0 0.0
  %3181 = vmatmul.mubr.f32.gmra.mrb[0].mxu0 %v2784
  %v3182 = vpop.f32.mrb[0].mxu0
  %v3183 = vadd.f32 0.0, %v3182
  %v3184 = vpop.f32.mrb[0].mxu0
  %3185 = vmatprep.mubr.f32.mxu0 0.0
  %3186 = vmatmul.mubr.f32.gmra.mrb[0].mxu0 %v2787
  %v3187 = vpop.f32.mrb[0].mxu0
  %v3188 = vadd.f32 0.0, %v3187
  %v3189 = vpop.f32.mrb[0].mxu0
  %3190 = vmatprep.mubr.f32.mxu0 0.0
  %3191 = vmatmul.mubr.f32.gmra.mrb[0].mxu0 %v2790
  %v3192 = vpop.f32.mrb[0].mxu0
  %v3193 = vadd.f32 0.0, %v3192
  %v3194 = vpop.f32.mrb[0].mxu0
  %3195 = vmatprep.mubr.f32.mxu0 0.0
  %3196 = vmatmul.mubr.f32.gmra.mrb[0].mxu0 %v2793
  %v3197 = vpop.f32.mrb[0].mxu0
  %v3198 = vadd.f32 0.0, %v3197
  %v3199 = vpop.f32.mrb[0].mxu0
  %3200 = vmatprep.mubr.f32.mxu0 0.0
  %3201 = vmatmul.mubr.f32.gmra.mrb[0].mxu0 %v2796
  %v3202 = vpop.f32.mrb[0].mxu0
  %v3203 = vadd.f32 0.0, %v3202
  %v3204 = vpop.f32.mrb[0].mxu0
  %3205 = vmatprep.mubr.f32.mxu0 0.0
  %3206 = vmatmul.mubr.f32.gmra.mrb[0].mxu0 %v2799
  %v3207 = vpop.f32.mrb[0].mxu0
  %v3208 = vadd.f32 0.0, %v3207
  %v3209 = vpop.f32.mrb[0].mxu0
  %3210 = vmatprep.mubr.f32.mxu0 0.0
  %3211 = vmatmul.mubr.f32.gmra.mrb[0].mxu0 %v2802
  %v3212 = vpop.f32.mrb[0].mxu0
  %v3213 = vadd.f32 0.0, %v3212
  %v3214 = vpop.f32.mrb[0].mxu0
  %3215 = vmatprep.mubr.f32.mxu0 0.0
  %3216 = vmatmul.mubr.f32.gmra.mrb[0].mxu0 %v2805
  %v3217 = vpop.f32.mrb[0].mxu0
  %v3218 = vadd.f32 0.0, %v3217
  %v3219 = vpop.f32.mrb[0].mxu0
  %3220 = vmatprep.mubr.f32.mxu0 0.0
  %3221 = vmatmul.mubr.f32.gmra.mrb[0].mxu0 %v2808
  %v3222 = vpop.f32.mrb[0].mxu0
  %v3223 = vadd.f32 0.0, %v3222
  %v3224 = vpop.f32.mrb[0].mxu0
  %3225 = vmatprep.mubr.f32.mxu0 0.0
  %3226 = vmatmul.mubr.f32.gmra.mrb[0].mxu0 %v2811
  %v3227 = vpop.f32.mrb[0].mxu0
  %v3228 = vadd.f32 0.0, %v3227
  %v3229 = vpop.f32.mrb[0].mxu0
  %3230 = vmatprep.mubr.f32.mxu0 0.0
  %3231 = vmatmul.mubr.f32.gmra.mrb[0].mxu0 %v2814
  %v3232 = vpop.f32.mrb[0].mxu0
  %v3233 = vadd.f32 0.0, %v3232
  %v3234 = vpop.f32.mrb[0].mxu0
  %3235 = vmatprep.mubr.f32.mxu0 0.0
  %3236 = vmatmul.mubr.f32.gmra.mrb[0].mxu0 %v2817
  %v3237 = vpop.f32.mrb[0].mxu0
  %v3238 = vadd.f32 0.0, %v3237
  %v3239 = vpop.f32.mrb[0].mxu0
  %3240 = vmatprep.mubr.f32.mxu0 0.0
  %3241 = vmatmul.mubr.f32.gmra.mrb[0].mxu0 %v2820
  %v3242 = vpop.f32.mrb[0].mxu0
  %v3243 = vadd.f32 0.0, %v3242
  %v3244 = vpop.f32.mrb[0].mxu0
  %3245 = vmatprep.mubr.f32.mxu0 0.0
  %3246 = vmatmul.mubr.f32.gmra.mrb[0].mxu0 %v2823
  %v3247 = vpop.f32.mrb[0].mxu0
  %v3248 = vadd.f32 0.0, %v3247
  %v3249 = vpop.f32.mrb[0].mxu0
  %3250 = vmatprep.mubr.f32.mxu0 0.0
  %3251 = vmatmul.mubr.f32.gmra.mrb[0].mxu0 %v2826
  %v3252 = vpop.f32.mrb[0].mxu0
  %v3253 = vadd.f32 0.0, %v3252
  %v3254 = vpop.f32.mrb[0].mxu0
  %3255 = vmatprep.mubr.f32.mxu0 0.0
  %3256 = vmatmul.mubr.f32.gmra.mrb[0].mxu0 %v2829
  %v3257 = vpop.f32.mrb[0].mxu0
  %v3258 = vadd.f32 0.0, %v3257
  %v3259 = vpop.f32.mrb[0].mxu0
  %3260 = vmatprep.mubr.f32.mxu0 0.0
  %3261 = vmatmul.mubr.f32.gmra.mrb[0].mxu0 %v2832
  %v3262 = vpop.f32.mrb[0].mxu0
  %v3263 = vadd.f32 0.0, %v3262
  %v3264 = vpop.f32.mrb[0].mxu0
  %3265 = vmatprep.mubr.f32.mxu0 0.0
  %3266 = vmatmul.mubr.f32.gmra.mrb[0].mxu0 %v2835
  %v3267 = vpop.f32.mrb[0].mxu0
  %v3268 = vadd.f32 0.0, %v3267
  %v3269 = vpop.f32.mrb[0].mxu0
  %3270 = vmatprep.mubr.f32.mxu0 0.0
  %3271 = vmatmul.mubr.f32.gmra.mrb[0].mxu0 %v2838
  %v3272 = vpop.f32.mrb[0].mxu0
  %v3273 = vadd.f32 0.0, %v3272
  %v3274 = vpop.f32.mrb[0].mxu0
  %3275 = vmatprep.mubr.f32.mxu0 0.0
  %3276 = vmatmul.mubr.f32.gmra.mrb[0].mxu0 %v2841
  %v3277 = vpop.f32.mrb[0].mxu0
  %v3278 = vadd.f32 0.0, %v3277
  %v3279 = vpop.f32.mrb[0].mxu0
  %3280 = vdwg.mxu0
  %v3281 = vadd.f32 %v2393, %v2913
  %v3282 = vadd.f32 %v2394, %v2918
  %v3283 = vadd.f32 %v2395, %v2923
  %v3284 = vadd.f32 %v2396, %v2928
  %v3285 = vadd.f32 %v2397, %v2933
  %v3286 = vadd.f32 %v2398, %v2938
  %v3287 = vadd.f32 %v2399, %v2943
  %v3288 = vadd.f32 %v2400, %v2948
  %v3289 = vadd.f32 %v2401, %v2953
  %v3290 = vadd.f32 %v2402, %v2958
  %v3291 = vadd.f32 %v2403, %v2963
  %v3292 = vadd.f32 %v2404, %v2968
  %v3293 = vadd.f32 %v2405, %v2973
  %v3294 = vadd.f32 %v2406, %v2978
  %v3295 = vadd.f32 %v2407, %v2983
  %v3296 = vadd.f32 %v2408, %v2988
  %v3297 = vadd.f32 %v2409, %v2993
  %v3298 = vadd.f32 %v2410, %v2998
  %v3299 = vadd.f32 %v2411, %v3003
  %v3300 = vadd.f32 %v2412, %v3008
  %v3301 = vadd.f32 %v2413, %v3013
  %v3302 = vadd.f32 %v2414, %v3018
  %v3303 = vadd.f32 %v2415, %v3023
  %v3304 = vadd.f32 %v2416, %v3028
  %v3305 = vadd.f32 %v2417, %v3033
  %v3306 = vadd.f32 %v2418, %v3038
  %v3307 = vadd.f32 %v2419, %v3043
  %v3308 = vadd.f32 %v2420, %v3048
  %v3309 = vadd.f32 %v2421, %v3053
  %v3310 = vadd.f32 %v2422, %v3058
  %v3311 = vadd.f32 %v2423, %v3063
  %v3312 = vadd.f32 %v2424, %v3068
  %v3313 = vadd.f32 %v2425, %v3073
  %v3314 = vadd.f32 %v2426, %v3078
  %v3315 = vadd.f32 %v2427, %v3083
  %v3316 = vadd.f32 %v2428, %v3088
  %v3317 = vadd.f32 %v2429, %v3093
  %v3318 = vadd.f32 %v2430, %v3098
  %v3319 = vadd.f32 %v2431, %v3103
  %v3320 = vadd.f32 %v2432, %v3108
  %v3321 = vadd.f32 %v2433, %v3113
  %v3322 = vadd.f32 %v2434, %v3118
  %v3323 = vadd.f32 %v2435, %v3123
  %v3324 = vadd.f32 %v2436, %v3128
  %v3325 = vadd.f32 %v2437, %v3133
  %v3326 = vadd.f32 %v2438, %v3138
  %v3327 = vadd.f32 %v2439, %v3143
  %v3328 = vadd.f32 %v2440, %v3148
  %v3329 = vadd.f32 %v2441, %v3153
  %v3330 = vadd.f32 %v2442, %v3158
  %v3331 = vadd.f32 %v2443, %v3163
  %v3332 = vadd.f32 %v2444, %v3168
  %v3333 = vadd.f32 %v2445, %v3173
  %v3334 = vadd.f32 %v2446, %v3178
  %v3335 = vadd.f32 %v2447, %v3183
  %v3336 = vadd.f32 %v2448, %v3188
  %v3337 = vadd.f32 %v2449, %v3193
  %v3338 = vadd.f32 %v2450, %v3198
  %v3339 = vadd.f32 %v2451, %v3203
  %v3340 = vadd.f32 %v2452, %v3208
  %v3341 = vadd.f32 %v2453, %v3213
  %v3342 = vadd.f32 %v2454, %v3218
  %v3343 = vadd.f32 %v2455, %v3223
  %v3344 = vadd.f32 %v2456, %v3228
  %v3345 = vadd.f32 %v2457, %v3233
  %v3346 = vadd.f32 %v2458, %v3238
  %v3347 = vadd.f32 %v2459, %v3243
  %v3348 = vadd.f32 %v2460, %v3248
  %v3349 = vadd.f32 %v2461, %v3253
  %v3350 = vadd.f32 %v2462, %v3258
  %v3351 = vadd.f32 %v2463, %v3263
  %v3352 = vadd.f32 %v2464, %v3268
  %v3353 = vadd.f32 %v2465, %v3273
  %v3354 = vadd.f32 %v2466, %v3278
  %s3355 = scalar_lea.vmem %s0, 924
  %v3356 = vld [vmem:[%s3355] sm:$0xf]
  %v3357 = vld [vmem:[%s3355 + $0x4] sm:$0xf]
  %v3358 = vld [vmem:[%s3355 + $0x8] sm:$0xf]
  %v3359 = vld [vmem:[%s3355 + $0xc] sm:$0xf]
  %v3360 = vld [vmem:[%s3355 + $0x10] sm:$0xf]
  %v3361 = vld [vmem:[%s3355 + $0x14] sm:$0xf]
  %v3362 = vld [vmem:[%s3355 + $0x18] sm:$0xf]
  %v3363 = vld [vmem:[%s3355 + $0x1c] sm:$0xf]
  %v3364 = vld [vmem:[%s3355 + $0x20] sm:$0xf]
  %v3365 = vld [vmem:[%s3355 + $0x24] sm:$0xf]
  %v3366 = vld [vmem:[%s3355 + $0x28] sm:$0xf]
  %v3367 = vld [vmem:[%s3355 + $0x2c] sm:$0xf]
  %v3368 = vld [vmem:[%s3355 + $0x30] sm:$0xf]
  %v3369 = vld [vmem:[%s3355 + $0x34] sm:$0xf]
  %v3370 = vld [vmem:[%s3355 + $0x38] sm:$0xf]
  %v3371 = vld [vmem:[%s3355 + $0x3c] sm:$0xf]
  %v3372 = vld [vmem:[%s3355 + $0x40] sm:$0xf]
  %v3373 = vld [vmem:[%s3355 + $0x44] sm:$0xf]
  %v3374 = vld [vmem:[%s3355 + $0x48] sm:$0xf]
  %v3375 = vld [vmem:[%s3355 + $0x4c] sm:$0xf]
  %v3376 = vld [vmem:[%s3355 + $0x50] sm:$0xf]
  %v3377 = vld [vmem:[%s3355 + $0x54] sm:$0xf]
  %v3378 = vld [vmem:[%s3355 + $0x58] sm:$0xf]
  %v3379 = vld [vmem:[%s3355 + $0x5c] sm:$0xf]
  %v3380 = vld [vmem:[%s3355 + $0x60] sm:$0xf]
  %v3381 = vld [vmem:[%s3355 + $0x64] sm:$0xf]
  %v3382 = vld [vmem:[%s3355 + $0x68] sm:$0xf]
  %v3383 = vld [vmem:[%s3355 + $0x6c] sm:$0xf]
  %v3384 = vld [vmem:[%s3355 + $0x70] sm:$0xf]
  %v3385 = vld [vmem:[%s3355 + $0x74] sm:$0xf]
  %v3386 = vld [vmem:[%s3355 + $0x78] sm:$0xf]
  %v3387 = vld [vmem:[%s3355 + $0x7c] sm:$0xf]
  %v3388 = vld [vmem:[%s3355 + $0x80] sm:$0xf]
  %v3389 = vld [vmem:[%s3355 + $0x84] sm:$0xf]
  %v3390 = vld [vmem:[%s3355 + $0x88] sm:$0xf]
  %v3391 = vld [vmem:[%s3355 + $0x8c] sm:$0xf]
  %v3392 = vld [vmem:[%s3355 + $0x90] sm:$0xf]
  %v3393 = vld [vmem:[%s3355 + $0x94] sm:$0xf]
  %v3394 = vld [vmem:[%s3355 + $0x98] sm:$0xf]
  %v3395 = vld [vmem:[%s3355 + $0x9c] sm:$0xf]
  %v3396 = vld [vmem:[%s3355 + $0xa0] sm:$0xf]
  %v3397 = vld [vmem:[%s3355 + $0xa4] sm:$0xf]
  %v3398 = vld [vmem:[%s3355 + $0xa8] sm:$0xf]
  %v3399 = vld [vmem:[%s3355 + $0xac] sm:$0xf]
  %v3400 = vld [vmem:[%s3355 + $0xb0] sm:$0xf]
  %v3401 = vld [vmem:[%s3355 + $0xb4] sm:$0xf]
  %v3402 = vld [vmem:[%s3355 + $0xb8] sm:$0xf]
  %v3403 = vld [vmem:[%s3355 + $0xbc] sm:$0xf]
  %v3404 = vld [vmem:[%s3355 + $0xc0] sm:$0xf]
  %v3405 = vld [vmem:[%s3355 + $0xc4] sm:$0xf]
  %v3406 = vld [vmem:[%s3355 + $0xc8] sm:$0xf]
  %v3407 = vld [vmem:[%s3355 + $0xcc] sm:$0xf]
  %v3408 = vld [vmem:[%s3355 + $0xd0] sm:$0xf]
  %v3409 = vld [vmem:[%s3355 + $0xd4] sm:$0xf]
  %v3410 = vld [vmem:[%s3355 + $0xd8] sm:$0xf]
  %v3411 = vld [vmem:[%s3355 + $0xdc] sm:$0xf]
  %v3412 = vld [vmem:[%s3355 + $0xe0] sm:$0xf]
  %v3413 = vld [vmem:[%s3355 + $0xe4] sm:$0xf]
  %v3414 = vld [vmem:[%s3355 + $0xe8] sm:$0xf]
  %v3415 = vld [vmem:[%s3355 + $0xec] sm:$0xf]
  %v3416 = vld [vmem:[%s3355 + $0xf0] sm:$0xf]
  %v3417 = vld [vmem:[%s3355 + $0xf4] sm:$0xf]
  %v3418 = vld [vmem:[%s3355 + $0xf8] sm:$0xf]
  %v3419 = vld [vmem:[%s3355 + $0xfc] sm:$0xf]
  %v3420 = vld [vmem:[%s3355 + $0x100] sm:$0xf]
  %v3421 = vld [vmem:[%s3355 + $0x104] sm:$0xf]
  %v3422 = vld [vmem:[%s3355 + $0x108] sm:$0xf]
  %v3423 = vld [vmem:[%s3355 + $0x10c] sm:$0xf]
  %v3424 = vld [vmem:[%s3355 + $0x110] sm:$0xf]
  %v3425 = vld [vmem:[%s3355 + $0x114] sm:$0xf]
  %v3426 = vld [vmem:[%s3355 + $0x118] sm:$0xf]
  %v3427 = vld [vmem:[%s3355 + $0x11c] sm:$0xf]
  %v3428 = vld [vmem:[%s3355 + $0x120] sm:$0xf]
  %v3429 = vld [vmem:[%s3355 + $0x124] sm:$0xf]
  %v3430 = vunpack.c.l.bf16 %v3356
  %v3431 = vunpack.c.l.bf16 %v3357
  %v3432 = vunpack.c.l.bf16 %v3358
  %v3433 = vunpack.c.l.bf16 %v3359
  %v3434 = vunpack.c.l.bf16 %v3360
  %v3435 = vunpack.c.l.bf16 %v3361
  %v3436 = vunpack.c.l.bf16 %v3362
  %v3437 = vunpack.c.l.bf16 %v3363
  %v3438 = vunpack.c.l.bf16 %v3364
  %v3439 = vunpack.c.l.bf16 %v3365
  %v3440 = vunpack.c.l.bf16 %v3366
  %v3441 = vunpack.c.l.bf16 %v3367
  %v3442 = vunpack.c.l.bf16 %v3368
  %v3443 = vunpack.c.l.bf16 %v3369
  %v3444 = vunpack.c.l.bf16 %v3370
  %v3445 = vunpack.c.l.bf16 %v3371
  %v3446 = vunpack.c.l.bf16 %v3372
  %v3447 = vunpack.c.l.bf16 %v3373
  %v3448 = vunpack.c.l.bf16 %v3374
  %v3449 = vunpack.c.l.bf16 %v3375
  %v3450 = vunpack.c.l.bf16 %v3376
  %v3451 = vunpack.c.l.bf16 %v3377
  %v3452 = vunpack.c.l.bf16 %v3378
  %v3453 = vunpack.c.l.bf16 %v3379
  %v3454 = vunpack.c.l.bf16 %v3380
  %v3455 = vunpack.c.l.bf16 %v3381
  %v3456 = vunpack.c.l.bf16 %v3382
  %v3457 = vunpack.c.l.bf16 %v3383
  %v3458 = vunpack.c.l.bf16 %v3384
  %v3459 = vunpack.c.l.bf16 %v3385
  %v3460 = vunpack.c.l.bf16 %v3386
  %v3461 = vunpack.c.l.bf16 %v3387
  %v3462 = vunpack.c.l.bf16 %v3388
  %v3463 = vunpack.c.l.bf16 %v3389
  %v3464 = vunpack.c.l.bf16 %v3390
  %v3465 = vunpack.c.l.bf16 %v3391
  %v3466 = vunpack.c.l.bf16 %v3392
  %v3467 = vunpack.c.l.bf16 %v3393
  %v3468 = vunpack.c.l.bf16 %v3394
  %v3469 = vunpack.c.l.bf16 %v3395
  %v3470 = vunpack.c.l.bf16 %v3396
  %v3471 = vunpack.c.l.bf16 %v3397
  %v3472 = vunpack.c.l.bf16 %v3398
  %v3473 = vunpack.c.l.bf16 %v3399
  %v3474 = vunpack.c.l.bf16 %v3400
  %v3475 = vunpack.c.l.bf16 %v3401
  %v3476 = vunpack.c.l.bf16 %v3402
  %v3477 = vunpack.c.l.bf16 %v3403
  %v3478 = vunpack.c.l.bf16 %v3404
  %v3479 = vunpack.c.l.bf16 %v3405
  %v3480 = vunpack.c.l.bf16 %v3406
  %v3481 = vunpack.c.l.bf16 %v3407
  %v3482 = vunpack.c.l.bf16 %v3408
  %v3483 = vunpack.c.l.bf16 %v3409
  %v3484 = vunpack.c.l.bf16 %v3410
  %v3485 = vunpack.c.l.bf16 %v3411
  %v3486 = vunpack.c.l.bf16 %v3412
  %v3487 = vunpack.c.l.bf16 %v3413
  %v3488 = vunpack.c.l.bf16 %v3414
  %v3489 = vunpack.c.l.bf16 %v3415
  %v3490 = vunpack.c.l.bf16 %v3416
  %v3491 = vunpack.c.l.bf16 %v3417
  %v3492 = vunpack.c.l.bf16 %v3418
  %v3493 = vunpack.c.l.bf16 %v3419
  %v3494 = vunpack.c.l.bf16 %v3420
  %v3495 = vunpack.c.l.bf16 %v3421
  %v3496 = vunpack.c.l.bf16 %v3422
  %v3497 = vunpack.c.l.bf16 %v3423
  %v3498 = vunpack.c.l.bf16 %v3424
  %v3499 = vunpack.c.l.bf16 %v3425
  %v3500 = vunpack.c.l.bf16 %v3426
  %v3501 = vunpack.c.l.bf16 %v3427
  %v3502 = vunpack.c.l.bf16 %v3428
  %v3503 = vunpack.c.l.bf16 %v3429
  %s3504 = scalar_lea.vmem %s1, 8
  %v3505 = vld [vmem:[%s3504] sm:$0x3]
  %v3506 = vunpack.c.l.bf16 %v3505
  %v3508 = vsel %vm331, %v3430, 0
  %v3511 = vsel %vm331, %v3431, 0
  %v3514 = vsel %vm331, %v3432, 0
  %v3517 = vsel %vm331, %v3433, 0
  %v3520 = vsel %vm331, %v3434, 0
  %v3523 = vsel %vm331, %v3435, 0
  %v3526 = vsel %vm331, %v3436, 0
  %v3529 = vsel %vm331, %v3437, 0
  %v3532 = vsel %vm331, %v3438, 0
  %v3535 = vsel %vm331, %v3439, 0
  %v3538 = vsel %vm331, %v3440, 0
  %v3541 = vsel %vm331, %v3441, 0
  %v3544 = vsel %vm331, %v3442, 0
  %v3547 = vsel %vm331, %v3443, 0
  %v3550 = vsel %vm331, %v3444, 0
  %v3553 = vsel %vm331, %v3445, 0
  %v3556 = vsel %vm331, %v3446, 0
  %v3559 = vsel %vm331, %v3447, 0
  %v3562 = vsel %vm331, %v3448, 0
  %v3565 = vsel %vm331, %v3449, 0
  %v3568 = vsel %vm331, %v3450, 0
  %v3571 = vsel %vm331, %v3451, 0
  %v3574 = vsel %vm331, %v3452, 0
  %v3577 = vsel %vm331, %v3453, 0
  %v3580 = vsel %vm331, %v3454, 0
  %v3583 = vsel %vm331, %v3455, 0
  %v3586 = vsel %vm331, %v3456, 0
  %v3589 = vsel %vm331, %v3457, 0
  %v3592 = vsel %vm331, %v3458, 0
  %v3595 = vsel %vm331, %v3459, 0
  %v3598 = vsel %vm331, %v3460, 0
  %v3601 = vsel %vm331, %v3461, 0
  %v3604 = vsel %vm331, %v3462, 0
  %v3607 = vsel %vm331, %v3463, 0
  %v3610 = vsel %vm331, %v3464, 0
  %v3613 = vsel %vm331, %v3465, 0
  %v3616 = vsel %vm331, %v3466, 0
  %v3619 = vsel %vm331, %v3467, 0
  %v3622 = vsel %vm331, %v3468, 0
  %v3625 = vsel %vm331, %v3469, 0
  %v3628 = vsel %vm331, %v3470, 0
  %v3631 = vsel %vm331, %v3471, 0
  %v3634 = vsel %vm331, %v3472, 0
  %v3637 = vsel %vm331, %v3473, 0
  %v3640 = vsel %vm331, %v3474, 0
  %v3643 = vsel %vm331, %v3475, 0
  %v3646 = vsel %vm331, %v3476, 0
  %v3649 = vsel %vm331, %v3477, 0
  %v3652 = vsel %vm331, %v3478, 0
  %v3655 = vsel %vm331, %v3479, 0
  %v3658 = vsel %vm331, %v3480, 0
  %v3661 = vsel %vm331, %v3481, 0
  %v3664 = vsel %vm331, %v3482, 0
  %v3667 = vsel %vm331, %v3483, 0
  %v3670 = vsel %vm331, %v3484, 0
  %v3673 = vsel %vm331, %v3485, 0
  %v3676 = vsel %vm331, %v3486, 0
  %v3679 = vsel %vm331, %v3487, 0
  %v3682 = vsel %vm331, %v3488, 0
  %v3685 = vsel %vm331, %v3489, 0
  %v3688 = vsel %vm331, %v3490, 0
  %v3691 = vsel %vm331, %v3491, 0
  %v3694 = vsel %vm331, %v3492, 0
  %v3697 = vsel %vm331, %v3493, 0
  %v3700 = vsel %vm331, %v3494, 0
  %v3703 = vsel %vm331, %v3495, 0
  %v3706 = vsel %vm331, %v3496, 0
  %v3709 = vsel %vm331, %v3497, 0
  %v3712 = vsel %vm331, %v3498, 0
  %v3715 = vsel %vm331, %v3499, 0
  %v3718 = vsel %vm331, %v3500, 0
  %v3721 = vsel %vm331, %v3501, 0
  %v3724 = vsel %vm331, %v3502, 0
  %v3727 = vsel %vm331, %v3503, 0
  %v3730 = vsel %vm554, %v3506, 0
  %3732 = vmatprep.subr.mxu0 0.0
  %3733 = vmatpush1.msra.mxu0 %v3730
  %3734 = vmatprep.subr.mxu0 0.0
  %3735 = vmatpush1.msra.mxu0 0.0
  %3736 = vmatprep.subr.mxu0 0.0
  %3737 = vmatpush1.msra.mxu0 0.0
  %3738 = vmatprep.subr.mxu0 0.0
  %3739 = vmatpush1.msra.mxu0 0.0
  %3740 = vmatprep.subr.mxu0 0.0
  %3741 = vmatpush1.msra.mxu0 0.0
  %3742 = vmatprep.subr.mxu0 0.0
  %3743 = vmatpush1.msra.mxu0 0.0
  %3744 = vmatprep.subr.mxu0 0.0
  %3745 = vmatpush1.msra.mxu0 0.0
  %3746 = vmatprep.subr.mxu0 0.0
  %3747 = vmatpush1.msra.mxu0 0.0
  %3748 = vmatprep.subr.mxu0 0.0
  %3749 = vmatpush1.msra.mxu0 0.0
  %3750 = vmatprep.subr.mxu0 0.0
  %3751 = vmatpush1.msra.mxu0 0.0
  %3752 = vmatprep.subr.mxu0 0.0
  %3753 = vmatpush1.msra.mxu0 0.0
  %3754 = vmatprep.subr.mxu0 0.0
  %3755 = vmatpush1.msra.mxu0 0.0
  %3756 = vmatprep.subr.mxu0 0.0
  %3757 = vmatpush1.msra.mxu0 0.0
  %3758 = vmatprep.subr.mxu0 0.0
  %3759 = vmatpush1.msra.mxu0 0.0
  %3760 = vmatprep.subr.mxu0 0.0
  %3761 = vmatpush1.msra.mxu0 0.0
  %3762 = vmatprep.subr.mxu0 0.0
  %3763 = vmatpush1.msra.mxu0 0.0
  %3764 = vmatprep.subr.mxu0 0.0
  %3765 = vmatpush1.msra.mxu0 0.0
  %3766 = vmatprep.subr.mxu0 0.0
  %3767 = vmatpush1.msra.mxu0 0.0
  %3768 = vmatprep.subr.mxu0 0.0
  %3769 = vmatpush1.msra.mxu0 0.0
  %3770 = vmatprep.subr.mxu0 0.0
  %3771 = vmatpush1.msra.mxu0 0.0
  %3772 = vmatprep.subr.mxu0 0.0
  %3773 = vmatpush1.msra.mxu0 0.0
  %3774 = vmatprep.subr.mxu0 0.0
  %3775 = vmatpush1.msra.mxu0 0.0
  %3776 = vmatprep.subr.mxu0 0.0
  %3777 = vmatpush1.msra.mxu0 0.0
  %3778 = vmatprep.subr.mxu0 0.0
  %3779 = vmatpush1.msra.mxu0 0.0
  %3780 = vmatprep.subr.mxu0 0.0
  %3781 = vmatpush1.msra.mxu0 0.0
  %3782 = vmatprep.subr.mxu0 0.0
  %3783 = vmatpush1.msra.mxu0 0.0
  %3784 = vmatprep.subr.mxu0 0.0
  %3785 = vmatpush1.msra.mxu0 0.0
  %3786 = vmatprep.subr.mxu0 0.0
  %3787 = vmatpush1.msra.mxu0 0.0
  %3788 = vmatprep.subr.mxu0 0.0
  %3789 = vmatpush1.msra.mxu0 0.0
  %3790 = vmatprep.subr.mxu0 0.0
  %3791 = vmatpush1.msra.mxu0 0.0
  %3792 = vmatprep.subr.mxu0 0.0
  %3793 = vmatpush1.msra.mxu0 0.0
  %3794 = vmatprep.subr.mxu0 0.0
  %3795 = vmatpush1.msra.mxu0 0.0
  %3796 = vmatprep.mubr.f32.mxu0 0.0
  %3797 = vmatmul.mubr.f32.gmra.mrb[0].mxu0 %v3508
  %v3798 = vpop.f32.mrb[0].mxu0
  %v3799 = vadd.f32 0.0, %v3798
  %v3800 = vpop.f32.mrb[0].mxu0
  %3801 = vmatprep.mubr.f32.mxu0 0.0
  %3802 = vmatmul.mubr.f32.gmra.mrb[0].mxu0 %v3511
  %v3803 = vpop.f32.mrb[0].mxu0
  %v3804 = vadd.f32 0.0, %v3803
  %v3805 = vpop.f32.mrb[0].mxu0
  %3806 = vmatprep.mubr.f32.mxu0 0.0
  %3807 = vmatmul.mubr.f32.gmra.mrb[0].mxu0 %v3514
  %v3808 = vpop.f32.mrb[0].mxu0
  %v3809 = vadd.f32 0.0, %v3808
  %v3810 = vpop.f32.mrb[0].mxu0
  %3811 = vmatprep.mubr.f32.mxu0 0.0
  %3812 = vmatmul.mubr.f32.gmra.mrb[0].mxu0 %v3517
  %v3813 = vpop.f32.mrb[0].mxu0
  %v3814 = vadd.f32 0.0, %v3813
  %v3815 = vpop.f32.mrb[0].mxu0
  %3816 = vmatprep.mubr.f32.mxu0 0.0
  %3817 = vmatmul.mubr.f32.gmra.mrb[0].mxu0 %v3520
  %v3818 = vpop.f32.mrb[0].mxu0
  %v3819 = vadd.f32 0.0, %v3818
  %v3820 = vpop.f32.mrb[0].mxu0
  %3821 = vmatprep.mubr.f32.mxu0 0.0
  %3822 = vmatmul.mubr.f32.gmra.mrb[0].mxu0 %v3523
  %v3823 = vpop.f32.mrb[0].mxu0
  %v3824 = vadd.f32 0.0, %v3823
  %v3825 = vpop.f32.mrb[0].mxu0
  %3826 = vmatprep.mubr.f32.mxu0 0.0
  %3827 = vmatmul.mubr.f32.gmra.mrb[0].mxu0 %v3526
  %v3828 = vpop.f32.mrb[0].mxu0
  %v3829 = vadd.f32 0.0, %v3828
  %v3830 = vpop.f32.mrb[0].mxu0
  %3831 = vmatprep.mubr.f32.mxu0 0.0
  %3832 = vmatmul.mubr.f32.gmra.mrb[0].mxu0 %v3529
  %v3833 = vpop.f32.mrb[0].mxu0
  %v3834 = vadd.f32 0.0, %v3833
  %v3835 = vpop.f32.mrb[0].mxu0
  %3836 = vmatprep.mubr.f32.mxu0 0.0
  %3837 = vmatmul.mubr.f32.gmra.mrb[0].mxu0 %v3532
  %v3838 = vpop.f32.mrb[0].mxu0
  %v3839 = vadd.f32 0.0, %v3838
  %v3840 = vpop.f32.mrb[0].mxu0
  %3841 = vmatprep.mubr.f32.mxu0 0.0
  %3842 = vmatmul.mubr.f32.gmra.mrb[0].mxu0 %v3535
  %v3843 = vpop.f32.mrb[0].mxu0
  %v3844 = vadd.f32 0.0, %v3843
  %v3845 = vpop.f32.mrb[0].mxu0
  %3846 = vmatprep.mubr.f32.mxu0 0.0
  %3847 = vmatmul.mubr.f32.gmra.mrb[0].mxu0 %v3538
  %v3848 = vpop.f32.mrb[0].mxu0
  %v3849 = vadd.f32 0.0, %v3848
  %v3850 = vpop.f32.mrb[0].mxu0
  %3851 = vmatprep.mubr.f32.mxu0 0.0
  %3852 = vmatmul.mubr.f32.gmra.mrb[0].mxu0 %v3541
  %v3853 = vpop.f32.mrb[0].mxu0
  %v3854 = vadd.f32 0.0, %v3853
  %v3855 = vpop.f32.mrb[0].mxu0
  %3856 = vmatprep.mubr.f32.mxu0 0.0
  %3857 = vmatmul.mubr.f32.gmra.mrb[0].mxu0 %v3544
  %v3858 = vpop.f32.mrb[0].mxu0
  %v3859 = vadd.f32 0.0, %v3858
  %v3860 = vpop.f32.mrb[0].mxu0
  %3861 = vmatprep.mubr.f32.mxu0 0.0
  %3862 = vmatmul.mubr.f32.gmra.mrb[0].mxu0 %v3547
  %v3863 = vpop.f32.mrb[0].mxu0
  %v3864 = vadd.f32 0.0, %v3863
  %v3865 = vpop.f32.mrb[0].mxu0
  %3866 = vmatprep.mubr.f32.mxu0 0.0
  %3867 = vmatmul.mubr.f32.gmra.mrb[0].mxu0 %v3550
  %v3868 = vpop.f32.mrb[0].mxu0
  %v3869 = vadd.f32 0.0, %v3868
  %v3870 = vpop.f32.mrb[0].mxu0
  %3871 = vmatprep.mubr.f32.mxu0 0.0
  %3872 = vmatmul.mubr.f32.gmra.mrb[0].mxu0 %v3553
  %v3873 = vpop.f32.mrb[0].mxu0
  %v3874 = vadd.f32 0.0, %v3873
  %v3875 = vpop.f32.mrb[0].mxu0
  %3876 = vmatprep.mubr.f32.mxu0 0.0
  %3877 = vmatmul.mubr.f32.gmra.mrb[0].mxu0 %v3556
  %v3878 = vpop.f32.mrb[0].mxu0
  %v3879 = vadd.f32 0.0, %v3878
  %v3880 = vpop.f32.mrb[0].mxu0
  %3881 = vmatprep.mubr.f32.mxu0 0.0
  %3882 = vmatmul.mubr.f32.gmra.mrb[0].mxu0 %v3559
  %v3883 = vpop.f32.mrb[0].mxu0
  %v3884 = vadd.f32 0.0, %v3883
  %v3885 = vpop.f32.mrb[0].mxu0
  %3886 = vmatprep.mubr.f32.mxu0 0.0
  %3887 = vmatmul.mubr.f32.gmra.mrb[0].mxu0 %v3562
  %v3888 = vpop.f32.mrb[0].mxu0
  %v3889 = vadd.f32 0.0, %v3888
  %v3890 = vpop.f32.mrb[0].mxu0
  %3891 = vmatprep.mubr.f32.mxu0 0.0
  %3892 = vmatmul.mubr.f32.gmra.mrb[0].mxu0 %v3565
  %v3893 = vpop.f32.mrb[0].mxu0
  %v3894 = vadd.f32 0.0, %v3893
  %v3895 = vpop.f32.mrb[0].mxu0
  %3896 = vmatprep.mubr.f32.mxu0 0.0
  %3897 = vmatmul.mubr.f32.gmra.mrb[0].mxu0 %v3568
  %v3898 = vpop.f32.mrb[0].mxu0
  %v3899 = vadd.f32 0.0, %v3898
  %v3900 = vpop.f32.mrb[0].mxu0
  %3901 = vmatprep.mubr.f32.mxu0 0.0
  %3902 = vmatmul.mubr.f32.gmra.mrb[0].mxu0 %v3571
  %v3903 = vpop.f32.mrb[0].mxu0
  %v3904 = vadd.f32 0.0, %v3903
  %v3905 = vpop.f32.mrb[0].mxu0
  %3906 = vmatprep.mubr.f32.mxu0 0.0
  %3907 = vmatmul.mubr.f32.gmra.mrb[0].mxu0 %v3574
  %v3908 = vpop.f32.mrb[0].mxu0
  %v3909 = vadd.f32 0.0, %v3908
  %v3910 = vpop.f32.mrb[0].mxu0
  %3911 = vmatprep.mubr.f32.mxu0 0.0
  %3912 = vmatmul.mubr.f32.gmra.mrb[0].mxu0 %v3577
  %v3913 = vpop.f32.mrb[0].mxu0
  %v3914 = vadd.f32 0.0, %v3913
  %v3915 = vpop.f32.mrb[0].mxu0
  %3916 = vmatprep.mubr.f32.mxu0 0.0
  %3917 = vmatmul.mubr.f32.gmra.mrb[0].mxu0 %v3580
  %v3918 = vpop.f32.mrb[0].mxu0
  %v3919 = vadd.f32 0.0, %v3918
  %v3920 = vpop.f32.mrb[0].mxu0
  %3921 = vmatprep.mubr.f32.mxu0 0.0
  %3922 = vmatmul.mubr.f32.gmra.mrb[0].mxu0 %v3583
  %v3923 = vpop.f32.mrb[0].mxu0
  %v3924 = vadd.f32 0.0, %v3923
  %v3925 = vpop.f32.mrb[0].mxu0
  %3926 = vmatprep.mubr.f32.mxu0 0.0
  %3927 = vmatmul.mubr.f32.gmra.mrb[0].mxu0 %v3586
  %v3928 = vpop.f32.mrb[0].mxu0
  %v3929 = vadd.f32 0.0, %v3928
  %v3930 = vpop.f32.mrb[0].mxu0
  %3931 = vmatprep.mubr.f32.mxu0 0.0
  %3932 = vmatmul.mubr.f32.gmra.mrb[0].mxu0 %v3589
  %v3933 = vpop.f32.mrb[0].mxu0
  %v3934 = vadd.f32 0.0, %v3933
  %v3935 = vpop.f32.mrb[0].mxu0
  %3936 = vmatprep.mubr.f32.mxu0 0.0
  %3937 = vmatmul.mubr.f32.gmra.mrb[0].mxu0 %v3592
  %v3938 = vpop.f32.mrb[0].mxu0
  %v3939 = vadd.f32 0.0, %v3938
  %v3940 = vpop.f32.mrb[0].mxu0
  %3941 = vmatprep.mubr.f32.mxu0 0.0
  %3942 = vmatmul.mubr.f32.gmra.mrb[0].mxu0 %v3595
  %v3943 = vpop.f32.mrb[0].mxu0
  %v3944 = vadd.f32 0.0, %v3943
  %v3945 = vpop.f32.mrb[0].mxu0
  %3946 = vmatprep.mubr.f32.mxu0 0.0
  %3947 = vmatmul.mubr.f32.gmra.mrb[0].mxu0 %v3598
  %v3948 = vpop.f32.mrb[0].mxu0
  %v3949 = vadd.f32 0.0, %v3948
  %v3950 = vpop.f32.mrb[0].mxu0
  %3951 = vmatprep.mubr.f32.mxu0 0.0
  %3952 = vmatmul.mubr.f32.gmra.mrb[0].mxu0 %v3601
  %v3953 = vpop.f32.mrb[0].mxu0
  %v3954 = vadd.f32 0.0, %v3953
  %v3955 = vpop.f32.mrb[0].mxu0
  %3956 = vmatprep.mubr.f32.mxu0 0.0
  %3957 = vmatmul.mubr.f32.gmra.mrb[0].mxu0 %v3604
  %v3958 = vpop.f32.mrb[0].mxu0
  %v3959 = vadd.f32 0.0, %v3958
  %v3960 = vpop.f32.mrb[0].mxu0
  %3961 = vmatprep.mubr.f32.mxu0 0.0
  %3962 = vmatmul.mubr.f32.gmra.mrb[0].mxu0 %v3607
  %v3963 = vpop.f32.mrb[0].mxu0
  %v3964 = vadd.f32 0.0, %v3963
  %v3965 = vpop.f32.mrb[0].mxu0
  %3966 = vmatprep.mubr.f32.mxu0 0.0
  %3967 = vmatmul.mubr.f32.gmra.mrb[0].mxu0 %v3610
  %v3968 = vpop.f32.mrb[0].mxu0
  %v3969 = vadd.f32 0.0, %v3968
  %v3970 = vpop.f32.mrb[0].mxu0
  %3971 = vmatprep.mubr.f32.mxu0 0.0
  %3972 = vmatmul.mubr.f32.gmra.mrb[0].mxu0 %v3613
  %v3973 = vpop.f32.mrb[0].mxu0
  %v3974 = vadd.f32 0.0, %v3973
  %v3975 = vpop.f32.mrb[0].mxu0
  %3976 = vmatprep.mubr.f32.mxu0 0.0
  %3977 = vmatmul.mubr.f32.gmra.mrb[0].mxu0 %v3616
  %v3978 = vpop.f32.mrb[0].mxu0
  %v3979 = vadd.f32 0.0, %v3978
  %v3980 = vpop.f32.mrb[0].mxu0
  %3981 = vmatprep.mubr.f32.mxu0 0.0
  %3982 = vmatmul.mubr.f32.gmra.mrb[0].mxu0 %v3619
  %v3983 = vpop.f32.mrb[0].mxu0
  %v3984 = vadd.f32 0.0, %v3983
  %v3985 = vpop.f32.mrb[0].mxu0
  %3986 = vmatprep.mubr.f32.mxu0 0.0
  %3987 = vmatmul.mubr.f32.gmra.mrb[0].mxu0 %v3622
  %v3988 = vpop.f32.mrb[0].mxu0
  %v3989 = vadd.f32 0.0, %v3988
  %v3990 = vpop.f32.mrb[0].mxu0
  %3991 = vmatprep.mubr.f32.mxu0 0.0
  %3992 = vmatmul.mubr.f32.gmra.mrb[0].mxu0 %v3625
  %v3993 = vpop.f32.mrb[0].mxu0
  %v3994 = vadd.f32 0.0, %v3993
  %v3995 = vpop.f32.mrb[0].mxu0
  %3996 = vmatprep.mubr.f32.mxu0 0.0
  %3997 = vmatmul.mubr.f32.gmra.mrb[0].mxu0 %v3628
  %v3998 = vpop.f32.mrb[0].mxu0
  %v3999 = vadd.f32 0.0, %v3998
  %v4000 = vpop.f32.mrb[0].mxu0
  %4001 = vmatprep.mubr.f32.mxu0 0.0
  %4002 = vmatmul.mubr.f32.gmra.mrb[0].mxu0 %v3631
  %v4003 = vpop.f32.mrb[0].mxu0
  %v4004 = vadd.f32 0.0, %v4003
  %v4005 = vpop.f32.mrb[0].mxu0
  %4006 = vmatprep.mubr.f32.mxu0 0.0
  %4007 = vmatmul.mubr.f32.gmra.mrb[0].mxu0 %v3634
  %v4008 = vpop.f32.mrb[0].mxu0
  %v4009 = vadd.f32 0.0, %v4008
  %v4010 = vpop.f32.mrb[0].mxu0
  %4011 = vmatprep.mubr.f32.mxu0 0.0
  %4012 = vmatmul.mubr.f32.gmra.mrb[0].mxu0 %v3637
  %v4013 = vpop.f32.mrb[0].mxu0
  %v4014 = vadd.f32 0.0, %v4013
  %v4015 = vpop.f32.mrb[0].mxu0
  %4016 = vmatprep.mubr.f32.mxu0 0.0
  %4017 = vmatmul.mubr.f32.gmra.mrb[0].mxu0 %v3640
  %v4018 = vpop.f32.mrb[0].mxu0
  %v4019 = vadd.f32 0.0, %v4018
  %v4020 = vpop.f32.mrb[0].mxu0
  %4021 = vmatprep.mubr.f32.mxu0 0.0
  %4022 = vmatmul.mubr.f32.gmra.mrb[0].mxu0 %v3643
  %v4023 = vpop.f32.mrb[0].mxu0
  %v4024 = vadd.f32 0.0, %v4023
  %v4025 = vpop.f32.mrb[0].mxu0
  %4026 = vmatprep.mubr.f32.mxu0 0.0
  %4027 = vmatmul.mubr.f32.gmra.mrb[0].mxu0 %v3646
  %v4028 = vpop.f32.mrb[0].mxu0
  %v4029 = vadd.f32 0.0, %v4028
  %v4030 = vpop.f32.mrb[0].mxu0
  %4031 = vmatprep.mubr.f32.mxu0 0.0
  %4032 = vmatmul.mubr.f32.gmra.mrb[0].mxu0 %v3649
  %v4033 = vpop.f32.mrb[0].mxu0
  %v4034 = vadd.f32 0.0, %v4033
  %v4035 = vpop.f32.mrb[0].mxu0
  %4036 = vmatprep.mubr.f32.mxu0 0.0
  %4037 = vmatmul.mubr.f32.gmra.mrb[0].mxu0 %v3652
  %v4038 = vpop.f32.mrb[0].mxu0
  %v4039 = vadd.f32 0.0, %v4038
  %v4040 = vpop.f32.mrb[0].mxu0
  %4041 = vmatprep.mubr.f32.mxu0 0.0
  %4042 = vmatmul.mubr.f32.gmra.mrb[0].mxu0 %v3655
  %v4043 = vpop.f32.mrb[0].mxu0
  %v4044 = vadd.f32 0.0, %v4043
  %v4045 = vpop.f32.mrb[0].mxu0
  %4046 = vmatprep.mubr.f32.mxu0 0.0
  %4047 = vmatmul.mubr.f32.gmra.mrb[0].mxu0 %v3658
  %v4048 = vpop.f32.mrb[0].mxu0
  %v4049 = vadd.f32 0.0, %v4048
  %v4050 = vpop.f32.mrb[0].mxu0
  %4051 = vmatprep.mubr.f32.mxu0 0.0
  %4052 = vmatmul.mubr.f32.gmra.mrb[0].mxu0 %v3661
  %v4053 = vpop.f32.mrb[0].mxu0
  %v4054 = vadd.f32 0.0, %v4053
  %v4055 = vpop.f32.mrb[0].mxu0
  %4056 = vmatprep.mubr.f32.mxu0 0.0
  %4057 = vmatmul.mubr.f32.gmra.mrb[0].mxu0 %v3664
  %v4058 = vpop.f32.mrb[0].mxu0
  %v4059 = vadd.f32 0.0, %v4058
  %v4060 = vpop.f32.mrb[0].mxu0
  %4061 = vmatprep.mubr.f32.mxu0 0.0
  %4062 = vmatmul.mubr.f32.gmra.mrb[0].mxu0 %v3667
  %v4063 = vpop.f32.mrb[0].mxu0
  %v4064 = vadd.f32 0.0, %v4063
  %v4065 = vpop.f32.mrb[0].mxu0
  %4066 = vmatprep.mubr.f32.mxu0 0.0
  %4067 = vmatmul.mubr.f32.gmra.mrb[0].mxu0 %v3670
  %v4068 = vpop.f32.mrb[0].mxu0
  %v4069 = vadd.f32 0.0, %v4068
  %v4070 = vpop.f32.mrb[0].mxu0
  %4071 = vmatprep.mubr.f32.mxu0 0.0
  %4072 = vmatmul.mubr.f32.gmra.mrb[0].mxu0 %v3673
  %v4073 = vpop.f32.mrb[0].mxu0
  %v4074 = vadd.f32 0.0, %v4073
  %v4075 = vpop.f32.mrb[0].mxu0
  %4076 = vmatprep.mubr.f32.mxu0 0.0
  %4077 = vmatmul.mubr.f32.gmra.mrb[0].mxu0 %v3676
  %v4078 = vpop.f32.mrb[0].mxu0
  %v4079 = vadd.f32 0.0, %v4078
  %v4080 = vpop.f32.mrb[0].mxu0
  %4081 = vmatprep.mubr.f32.mxu0 0.0
  %4082 = vmatmul.mubr.f32.gmra.mrb[0].mxu0 %v3679
  %v4083 = vpop.f32.mrb[0].mxu0
  %v4084 = vadd.f32 0.0, %v4083
  %v4085 = vpop.f32.mrb[0].mxu0
  %4086 = vmatprep.mubr.f32.mxu0 0.0
  %4087 = vmatmul.mubr.f32.gmra.mrb[0].mxu0 %v3682
  %v4088 = vpop.f32.mrb[0].mxu0
  %v4089 = vadd.f32 0.0, %v4088
  %v4090 = vpop.f32.mrb[0].mxu0
  %4091 = vmatprep.mubr.f32.mxu0 0.0
  %4092 = vmatmul.mubr.f32.gmra.mrb[0].mxu0 %v3685
  %v4093 = vpop.f32.mrb[0].mxu0
  %v4094 = vadd.f32 0.0, %v4093
  %v4095 = vpop.f32.mrb[0].mxu0
  %4096 = vmatprep.mubr.f32.mxu0 0.0
  %4097 = vmatmul.mubr.f32.gmra.mrb[0].mxu0 %v3688
  %v4098 = vpop.f32.mrb[0].mxu0
  %v4099 = vadd.f32 0.0, %v4098
  %v4100 = vpop.f32.mrb[0].mxu0
  %4101 = vmatprep.mubr.f32.mxu0 0.0
  %4102 = vmatmul.mubr.f32.gmra.mrb[0].mxu0 %v3691
  %v4103 = vpop.f32.mrb[0].mxu0
  %v4104 = vadd.f32 0.0, %v4103
  %v4105 = vpop.f32.mrb[0].mxu0
  %4106 = vmatprep.mubr.f32.mxu0 0.0
  %4107 = vmatmul.mubr.f32.gmra.mrb[0].mxu0 %v3694
  %v4108 = vpop.f32.mrb[0].mxu0
  %v4109 = vadd.f32 0.0, %v4108
  %v4110 = vpop.f32.mrb[0].mxu0
  %4111 = vmatprep.mubr.f32.mxu0 0.0
  %4112 = vmatmul.mubr.f32.gmra.mrb[0].mxu0 %v3697
  %v4113 = vpop.f32.mrb[0].mxu0
  %v4114 = vadd.f32 0.0, %v4113
  %v4115 = vpop.f32.mrb[0].mxu0
  %4116 = vmatprep.mubr.f32.mxu0 0.0
  %4117 = vmatmul.mubr.f32.gmra.mrb[0].mxu0 %v3700
  %v4118 = vpop.f32.mrb[0].mxu0
  %v4119 = vadd.f32 0.0, %v4118
  %v4120 = vpop.f32.mrb[0].mxu0
  %4121 = vmatprep.mubr.f32.mxu0 0.0
  %4122 = vmatmul.mubr.f32.gmra.mrb[0].mxu0 %v3703
  %v4123 = vpop.f32.mrb[0].mxu0
  %v4124 = vadd.f32 0.0, %v4123
  %v4125 = vpop.f32.mrb[0].mxu0
  %4126 = vmatprep.mubr.f32.mxu0 0.0
  %4127 = vmatmul.mubr.f32.gmra.mrb[0].mxu0 %v3706
  %v4128 = vpop.f32.mrb[0].mxu0
  %v4129 = vadd.f32 0.0, %v4128
  %v4130 = vpop.f32.mrb[0].mxu0
  %4131 = vmatprep.mubr.f32.mxu0 0.0
  %4132 = vmatmul.mubr.f32.gmra.mrb[0].mxu0 %v3709
  %v4133 = vpop.f32.mrb[0].mxu0
  %v4134 = vadd.f32 0.0, %v4133
  %v4135 = vpop.f32.mrb[0].mxu0
  %4136 = vmatprep.mubr.f32.mxu0 0.0
  %4137 = vmatmul.mubr.f32.gmra.mrb[0].mxu0 %v3712
  %v4138 = vpop.f32.mrb[0].mxu0
  %v4139 = vadd.f32 0.0, %v4138
  %v4140 = vpop.f32.mrb[0].mxu0
  %4141 = vmatprep.mubr.f32.mxu0 0.0
  %4142 = vmatmul.mubr.f32.gmra.mrb[0].mxu0 %v3715
  %v4143 = vpop.f32.mrb[0].mxu0
  %v4144 = vadd.f32 0.0, %v4143
  %v4145 = vpop.f32.mrb[0].mxu0
  %4146 = vmatprep.mubr.f32.mxu0 0.0
  %4147 = vmatmul.mubr.f32.gmra.mrb[0].mxu0 %v3718
  %v4148 = vpop.f32.mrb[0].mxu0
  %v4149 = vadd.f32 0.0, %v4148
  %v4150 = vpop.f32.mrb[0].mxu0
  %4151 = vmatprep.mubr.f32.mxu0 0.0
  %4152 = vmatmul.mubr.f32.gmra.mrb[0].mxu0 %v3721
  %v4153 = vpop.f32.mrb[0].mxu0
  %v4154 = vadd.f32 0.0, %v4153
  %v4155 = vpop.f32.mrb[0].mxu0
  %4156 = vmatprep.mubr.f32.mxu0 0.0
  %4157 = vmatmul.mubr.f32.gmra.mrb[0].mxu0 %v3724
  %v4158 = vpop.f32.mrb[0].mxu0
  %v4159 = vadd.f32 0.0, %v4158
  %v4160 = vpop.f32.mrb[0].mxu0
  %4161 = vmatprep.mubr.f32.mxu0 0.0
  %4162 = vmatmul.mubr.f32.gmra.mrb[0].mxu0 %v3727
  %v4163 = vpop.f32.mrb[0].mxu0
  %v4164 = vadd.f32 0.0, %v4163
  %v4165 = vpop.f32.mrb[0].mxu0
  %4166 = vdwg.mxu0
  %v4167 = vadd.f32 %v3281, %v3799
  %v4168 = vadd.f32 %v3282, %v3804
  %v4169 = vadd.f32 %v3283, %v3809
  %v4170 = vadd.f32 %v3284, %v3814
  %v4171 = vadd.f32 %v3285, %v3819
  %v4172 = vadd.f32 %v3286, %v3824
  %v4173 = vadd.f32 %v3287, %v3829
  %v4174 = vadd.f32 %v3288, %v3834
  %v4175 = vadd.f32 %v3289, %v3839
  %v4176 = vadd.f32 %v3290, %v3844
  %v4177 = vadd.f32 %v3291, %v3849
  %v4178 = vadd.f32 %v3292, %v3854
  %v4179 = vadd.f32 %v3293, %v3859
  %v4180 = vadd.f32 %v3294, %v3864
  %v4181 = vadd.f32 %v3295, %v3869
  %v4182 = vadd.f32 %v3296, %v3874
  %v4183 = vadd.f32 %v3297, %v3879
  %v4184 = vadd.f32 %v3298, %v3884
  %v4185 = vadd.f32 %v3299, %v3889
  %v4186 = vadd.f32 %v3300, %v3894
  %v4187 = vadd.f32 %v3301, %v3899
  %v4188 = vadd.f32 %v3302, %v3904
  %v4189 = vadd.f32 %v3303, %v3909
  %v4190 = vadd.f32 %v3304, %v3914
  %v4191 = vadd.f32 %v3305, %v3919
  %v4192 = vadd.f32 %v3306, %v3924
  %v4193 = vadd.f32 %v3307, %v3929
  %v4194 = vadd.f32 %v3308, %v3934
  %v4195 = vadd.f32 %v3309, %v3939
  %v4196 = vadd.f32 %v3310, %v3944
  %v4197 = vadd.f32 %v3311, %v3949
  %v4198 = vadd.f32 %v3312, %v3954
  %v4199 = vadd.f32 %v3313, %v3959
  %v4200 = vadd.f32 %v3314, %v3964
  %v4201 = vadd.f32 %v3315, %v3969
  %v4202 = vadd.f32 %v3316, %v3974
  %v4203 = vadd.f32 %v3317, %v3979
  %v4204 = vadd.f32 %v3318, %v3984
  %v4205 = vadd.f32 %v3319, %v3989
  %v4206 = vadd.f32 %v3320, %v3994
  %v4207 = vadd.f32 %v3321, %v3999
  %v4208 = vadd.f32 %v3322, %v4004
  %v4209 = vadd.f32 %v3323, %v4009
  %v4210 = vadd.f32 %v3324, %v4014
  %v4211 = vadd.f32 %v3325, %v4019
  %v4212 = vadd.f32 %v3326, %v4024
  %v4213 = vadd.f32 %v3327, %v4029
  %v4214 = vadd.f32 %v3328, %v4034
  %v4215 = vadd.f32 %v3329, %v4039
  %v4216 = vadd.f32 %v3330, %v4044
  %v4217 = vadd.f32 %v3331, %v4049
  %v4218 = vadd.f32 %v3332, %v4054
  %v4219 = vadd.f32 %v3333, %v4059
  %v4220 = vadd.f32 %v3334, %v4064
  %v4221 = vadd.f32 %v3335, %v4069
  %v4222 = vadd.f32 %v3336, %v4074
  %v4223 = vadd.f32 %v3337, %v4079
  %v4224 = vadd.f32 %v3338, %v4084
  %v4225 = vadd.f32 %v3339, %v4089
  %v4226 = vadd.f32 %v3340, %v4094
  %v4227 = vadd.f32 %v3341, %v4099
  %v4228 = vadd.f32 %v3342, %v4104
  %v4229 = vadd.f32 %v3343, %v4109
  %v4230 = vadd.f32 %v3344, %v4114
  %v4231 = vadd.f32 %v3345, %v4119
  %v4232 = vadd.f32 %v3346, %v4124
  %v4233 = vadd.f32 %v3347, %v4129
  %v4234 = vadd.f32 %v3348, %v4134
  %v4235 = vadd.f32 %v3349, %v4139
  %v4236 = vadd.f32 %v3350, %v4144
  %v4237 = vadd.f32 %v3351, %v4149
  %v4238 = vadd.f32 %v3352, %v4154
  %v4239 = vadd.f32 %v3353, %v4159
  %v4240 = vadd.f32 %v3354, %v4164
  %s4241 = scalar_lea.vmem %s1, 10
  %v4242 = vld [vmem:[%s4241] sm:$0x3]
  %v4243 = vunpack.c.l.bf16 %v4242
  %v4245 = vrot.slane %v2543, 1
  %v4246 = vrot.slane %v2544, 1
  %v4247 = vsel %vm1657, %v4245, %v4246
  %v4248 = vrot.slane %v2545, 1
  %v4249 = vsel %vm1657, %v4246, %v4248
  %v4250 = vrot.slane %v2546, 1
  %v4251 = vsel %vm1657, %v4248, %v4250
  %v4252 = vrot.slane %v2547, 1
  %v4253 = vsel %vm1657, %v4250, %v4252
  %v4254 = vrot.slane %v2548, 1
  %v4255 = vsel %vm1657, %v4252, %v4254
  %v4256 = vrot.slane %v2549, 1
  %v4257 = vsel %vm1657, %v4254, %v4256
  %v4258 = vrot.slane %v2550, 1
  %v4259 = vsel %vm1657, %v4256, %v4258
  %v4260 = vrot.slane %v2551, 1
  %v4261 = vsel %vm1657, %v4258, %v4260
  %v4262 = vrot.slane %v2552, 1
  %v4263 = vsel %vm1657, %v4260, %v4262
  %v4264 = vrot.slane %v2553, 1
  %v4265 = vsel %vm1657, %v4262, %v4264
  %v4266 = vrot.slane %v2554, 1
  %v4267 = vsel %vm1657, %v4264, %v4266
  %v4268 = vrot.slane %v2555, 1
  %v4269 = vsel %vm1657, %v4266, %v4268
  %v4270 = vrot.slane %v2556, 1
  %v4271 = vsel %vm1657, %v4268, %v4270
  %v4272 = vrot.slane %v2557, 1
  %v4273 = vsel %vm1657, %v4270, %v4272
  %v4274 = vrot.slane %v2558, 1
  %v4275 = vsel %vm1657, %v4272, %v4274
  %v4276 = vrot.slane %v2559, 1
  %v4277 = vsel %vm1657, %v4274, %v4276
  %v4278 = vrot.slane %v2560, 1
  %v4279 = vsel %vm1657, %v4276, %v4278
  %v4280 = vrot.slane %v2561, 1
  %v4281 = vsel %vm1657, %v4278, %v4280
  %v4282 = vrot.slane %v2562, 1
  %v4283 = vsel %vm1657, %v4280, %v4282
  %v4284 = vrot.slane %v2563, 1
  %v4285 = vsel %vm1657, %v4282, %v4284
  %v4286 = vrot.slane %v2564, 1
  %v4287 = vsel %vm1657, %v4284, %v4286
  %v4288 = vrot.slane %v2565, 1
  %v4289 = vsel %vm1657, %v4286, %v4288
  %v4290 = vrot.slane %v2566, 1
  %v4291 = vsel %vm1657, %v4288, %v4290
  %v4292 = vrot.slane %v2567, 1
  %v4293 = vsel %vm1657, %v4290, %v4292
  %v4294 = vrot.slane %v2568, 1
  %v4295 = vsel %vm1657, %v4292, %v4294
  %v4296 = vrot.slane %v2569, 1
  %v4297 = vsel %vm1657, %v4294, %v4296
  %v4298 = vrot.slane %v2570, 1
  %v4299 = vsel %vm1657, %v4296, %v4298
  %v4300 = vrot.slane %v2571, 1
  %v4301 = vsel %vm1657, %v4298, %v4300
  %v4302 = vrot.slane %v2572, 1
  %v4303 = vsel %vm1657, %v4300, %v4302
  %v4304 = vrot.slane %v2573, 1
  %v4305 = vsel %vm1657, %v4302, %v4304
  %v4306 = vrot.slane %v2574, 1
  %v4307 = vsel %vm1657, %v4304, %v4306
  %v4308 = vrot.slane %v2575, 1
  %v4309 = vsel %vm1657, %v4306, %v4308
  %v4310 = vrot.slane %v2576, 1
  %v4311 = vsel %vm1657, %v4308, %v4310
  %v4312 = vrot.slane %v2577, 1
  %v4313 = vsel %vm1657, %v4310, %v4312
  %v4314 = vrot.slane %v2578, 1
  %v4315 = vsel %vm1657, %v4312, %v4314
  %v4316 = vrot.slane %v2579, 1
  %v4317 = vsel %vm1657, %v4314, %v4316
  %v4318 = vrot.slane %v2580, 1
  %v4319 = vsel %vm1657, %v4316, %v4318
  %v4320 = vrot.slane %v2581, 1
  %v4321 = vsel %vm1657, %v4318, %v4320
  %v4322 = vrot.slane %v2582, 1
  %v4323 = vsel %vm1657, %v4320, %v4322
  %v4324 = vrot.slane %v2583, 1
  %v4325 = vsel %vm1657, %v4322, %v4324
  %v4326 = vrot.slane %v2584, 1
  %v4327 = vsel %vm1657, %v4324, %v4326
  %v4328 = vrot.slane %v2585, 1
  %v4329 = vsel %vm1657, %v4326, %v4328
  %v4330 = vrot.slane %v2586, 1
  %v4331 = vsel %vm1657, %v4328, %v4330
  %v4332 = vrot.slane %v2587, 1
  %v4333 = vsel %vm1657, %v4330, %v4332
  %v4334 = vrot.slane %v2588, 1
  %v4335 = vsel %vm1657, %v4332, %v4334
  %v4336 = vrot.slane %v2589, 1
  %v4337 = vsel %vm1657, %v4334, %v4336
  %v4338 = vrot.slane %v2590, 1
  %v4339 = vsel %vm1657, %v4336, %v4338
  %v4340 = vrot.slane %v2591, 1
  %v4341 = vsel %vm1657, %v4338, %v4340
  %v4342 = vrot.slane %v2592, 1
  %v4343 = vsel %vm1657, %v4340, %v4342
  %v4344 = vrot.slane %v2593, 1
  %v4345 = vsel %vm1657, %v4342, %v4344
  %v4346 = vrot.slane %v2594, 1
  %v4347 = vsel %vm1657, %v4344, %v4346
  %v4348 = vrot.slane %v2595, 1
  %v4349 = vsel %vm1657, %v4346, %v4348
  %v4350 = vrot.slane %v2596, 1
  %v4351 = vsel %vm1657, %v4348, %v4350
  %v4352 = vrot.slane %v2597, 1
  %v4353 = vsel %vm1657, %v4350, %v4352
  %v4354 = vrot.slane %v2598, 1
  %v4355 = vsel %vm1657, %v4352, %v4354
  %v4356 = vrot.slane %v2599, 1
  %v4357 = vsel %vm1657, %v4354, %v4356
  %v4358 = vrot.slane %v2600, 1
  %v4359 = vsel %vm1657, %v4356, %v4358
  %v4360 = vrot.slane %v2601, 1
  %v4361 = vsel %vm1657, %v4358, %v4360
  %v4362 = vrot.slane %v2602, 1
  %v4363 = vsel %vm1657, %v4360, %v4362
  %v4364 = vrot.slane %v2603, 1
  %v4365 = vsel %vm1657, %v4362, %v4364
  %v4366 = vrot.slane %v2604, 1
  %v4367 = vsel %vm1657, %v4364, %v4366
  %v4368 = vrot.slane %v2605, 1
  %v4369 = vsel %vm1657, %v4366, %v4368
  %v4370 = vrot.slane %v2606, 1
  %v4371 = vsel %vm1657, %v4368, %v4370
  %v4372 = vrot.slane %v2607, 1
  %v4373 = vsel %vm1657, %v4370, %v4372
  %v4374 = vrot.slane %v2608, 1
  %v4375 = vsel %vm1657, %v4372, %v4374
  %v4376 = vrot.slane %v2609, 1
  %v4377 = vsel %vm1657, %v4374, %v4376
  %v4378 = vrot.slane %v2610, 1
  %v4379 = vsel %vm1657, %v4376, %v4378
  %v4380 = vrot.slane %v2611, 1
  %v4381 = vsel %vm1657, %v4378, %v4380
  %v4382 = vrot.slane %v2612, 1
  %v4383 = vsel %vm1657, %v4380, %v4382
  %v4384 = vrot.slane %v2613, 1
  %v4385 = vsel %vm1657, %v4382, %v4384
  %v4386 = vrot.slane %v2614, 1
  %v4387 = vsel %vm1657, %v4384, %v4386
  %v4388 = vrot.slane %v2615, 1
  %v4389 = vsel %vm1657, %v4386, %v4388
  %v4390 = vrot.slane %v2616, 1
  %v4391 = vsel %vm1657, %v4388, %v4390
  %v4392 = vrot.slane %v2617, 1
  %v4393 = vsel %vm1657, %v4390, %v4392
  %v4394 = vsel %vm331, %v4247, 0
  %v4396 = vsel %vm331, %v4249, 0
  %v4398 = vsel %vm331, %v4251, 0
  %v4400 = vsel %vm331, %v4253, 0
  %v4402 = vsel %vm331, %v4255, 0
  %v4404 = vsel %vm331, %v4257, 0
  %v4406 = vsel %vm331, %v4259, 0
  %v4408 = vsel %vm331, %v4261, 0
  %v4410 = vsel %vm331, %v4263, 0
  %v4412 = vsel %vm331, %v4265, 0
  %v4414 = vsel %vm331, %v4267, 0
  %v4416 = vsel %vm331, %v4269, 0
  %v4418 = vsel %vm331, %v4271, 0
  %v4420 = vsel %vm331, %v4273, 0
  %v4422 = vsel %vm331, %v4275, 0
  %v4424 = vsel %vm331, %v4277, 0
  %v4426 = vsel %vm331, %v4279, 0
  %v4428 = vsel %vm331, %v4281, 0
  %v4430 = vsel %vm331, %v4283, 0
  %v4432 = vsel %vm331, %v4285, 0
  %v4434 = vsel %vm331, %v4287, 0
  %v4436 = vsel %vm331, %v4289, 0
  %v4438 = vsel %vm331, %v4291, 0
  %v4440 = vsel %vm331, %v4293, 0
  %v4442 = vsel %vm331, %v4295, 0
  %v4444 = vsel %vm331, %v4297, 0
  %v4446 = vsel %vm331, %v4299, 0
  %v4448 = vsel %vm331, %v4301, 0
  %v4450 = vsel %vm331, %v4303, 0
  %v4452 = vsel %vm331, %v4305, 0
  %v4454 = vsel %vm331, %v4307, 0
  %v4456 = vsel %vm331, %v4309, 0
  %v4458 = vsel %vm331, %v4311, 0
  %v4460 = vsel %vm331, %v4313, 0
  %v4462 = vsel %vm331, %v4315, 0
  %v4464 = vsel %vm331, %v4317, 0
  %v4466 = vsel %vm331, %v4319, 0
  %v4468 = vsel %vm331, %v4321, 0
  %v4470 = vsel %vm331, %v4323, 0
  %v4472 = vsel %vm331, %v4325, 0
  %v4474 = vsel %vm331, %v4327, 0
  %v4476 = vsel %vm331, %v4329, 0
  %v4478 = vsel %vm331, %v4331, 0
  %v4480 = vsel %vm331, %v4333, 0
  %v4482 = vsel %vm331, %v4335, 0
  %v4484 = vsel %vm331, %v4337, 0
  %v4486 = vsel %vm331, %v4339, 0
  %v4488 = vsel %vm331, %v4341, 0
  %v4490 = vsel %vm331, %v4343, 0
  %v4492 = vsel %vm331, %v4345, 0
  %v4494 = vsel %vm331, %v4347, 0
  %v4496 = vsel %vm331, %v4349, 0
  %v4498 = vsel %vm331, %v4351, 0
  %v4500 = vsel %vm331, %v4353, 0
  %v4502 = vsel %vm331, %v4355, 0
  %v4504 = vsel %vm331, %v4357, 0
  %v4506 = vsel %vm331, %v4359, 0
  %v4508 = vsel %vm331, %v4361, 0
  %v4510 = vsel %vm331, %v4363, 0
  %v4512 = vsel %vm331, %v4365, 0
  %v4514 = vsel %vm331, %v4367, 0
  %v4516 = vsel %vm331, %v4369, 0
  %v4518 = vsel %vm331, %v4371, 0
  %v4520 = vsel %vm331, %v4373, 0
  %v4522 = vsel %vm331, %v4375, 0
  %v4524 = vsel %vm331, %v4377, 0
  %v4526 = vsel %vm331, %v4379, 0
  %v4528 = vsel %vm331, %v4381, 0
  %v4530 = vsel %vm331, %v4383, 0
  %v4532 = vsel %vm331, %v4385, 0
  %v4534 = vsel %vm331, %v4387, 0
  %v4536 = vsel %vm331, %v4389, 0
  %v4538 = vsel %vm331, %v4391, 0
  %v4540 = vsel %vm331, %v4393, 0
  %v4543 = vsel %vm554, %v4243, 0
  %4545 = vmatprep.subr.mxu0 0.0
  %4546 = vmatpush1.msra.mxu0 %v4543
  %4547 = vmatprep.subr.mxu0 0.0
  %4548 = vmatpush1.msra.mxu0 0.0
  %4549 = vmatprep.subr.mxu0 0.0
  %4550 = vmatpush1.msra.mxu0 0.0
  %4551 = vmatprep.subr.mxu0 0.0
  %4552 = vmatpush1.msra.mxu0 0.0
  %4553 = vmatprep.subr.mxu0 0.0
  %4554 = vmatpush1.msra.mxu0 0.0
  %4555 = vmatprep.subr.mxu0 0.0
  %4556 = vmatpush1.msra.mxu0 0.0
  %4557 = vmatprep.subr.mxu0 0.0
  %4558 = vmatpush1.msra.mxu0 0.0
  %4559 = vmatprep.subr.mxu0 0.0
  %4560 = vmatpush1.msra.mxu0 0.0
  %4561 = vmatprep.subr.mxu0 0.0
  %4562 = vmatpush1.msra.mxu0 0.0
  %4563 = vmatprep.subr.mxu0 0.0
  %4564 = vmatpush1.msra.mxu0 0.0
  %4565 = vmatprep.subr.mxu0 0.0
  %4566 = vmatpush1.msra.mxu0 0.0
  %4567 = vmatprep.subr.mxu0 0.0
  %4568 = vmatpush1.msra.mxu0 0.0
  %4569 = vmatprep.subr.mxu0 0.0
  %4570 = vmatpush1.msra.mxu0 0.0
  %4571 = vmatprep.subr.mxu0 0.0
  %4572 = vmatpush1.msra.mxu0 0.0
  %4573 = vmatprep.subr.mxu0 0.0
  %4574 = vmatpush1.msra.mxu0 0.0
  %4575 = vmatprep.subr.mxu0 0.0
  %4576 = vmatpush1.msra.mxu0 0.0
  %4577 = vmatprep.subr.mxu0 0.0
  %4578 = vmatpush1.msra.mxu0 0.0
  %4579 = vmatprep.subr.mxu0 0.0
  %4580 = vmatpush1.msra.mxu0 0.0
  %4581 = vmatprep.subr.mxu0 0.0
  %4582 = vmatpush1.msra.mxu0 0.0
  %4583 = vmatprep.subr.mxu0 0.0
  %4584 = vmatpush1.msra.mxu0 0.0
  %4585 = vmatprep.subr.mxu0 0.0
  %4586 = vmatpush1.msra.mxu0 0.0
  %4587 = vmatprep.subr.mxu0 0.0
  %4588 = vmatpush1.msra.mxu0 0.0
  %4589 = vmatprep.subr.mxu0 0.0
  %4590 = vmatpush1.msra.mxu0 0.0
  %4591 = vmatprep.subr.mxu0 0.0
  %4592 = vmatpush1.msra.mxu0 0.0
  %4593 = vmatprep.subr.mxu0 0.0
  %4594 = vmatpush1.msra.mxu0 0.0
  %4595 = vmatprep.subr.mxu0 0.0
  %4596 = vmatpush1.msra.mxu0 0.0
  %4597 = vmatprep.subr.mxu0 0.0
  %4598 = vmatpush1.msra.mxu0 0.0
  %4599 = vmatprep.subr.mxu0 0.0
  %4600 = vmatpush1.msra.mxu0 0.0
  %4601 = vmatprep.subr.mxu0 0.0
  %4602 = vmatpush1.msra.mxu0 0.0
  %4603 = vmatprep.subr.mxu0 0.0
  %4604 = vmatpush1.msra.mxu0 0.0
  %4605 = vmatprep.subr.mxu0 0.0
  %4606 = vmatpush1.msra.mxu0 0.0
  %4607 = vmatprep.subr.mxu0 0.0
  %4608 = vmatpush1.msra.mxu0 0.0
  %4609 = vmatprep.mubr.f32.mxu0 0.0
  %4610 = vmatmul.mubr.f32.gmra.mrb[0].mxu0 %v4394
  %v4611 = vpop.f32.mrb[0].mxu0
  %v4612 = vadd.f32 0.0, %v4611
  %v4613 = vpop.f32.mrb[0].mxu0
  %4614 = vmatprep.mubr.f32.mxu0 0.0
  %4615 = vmatmul.mubr.f32.gmra.mrb[0].mxu0 %v4396
  %v4616 = vpop.f32.mrb[0].mxu0
  %v4617 = vadd.f32 0.0, %v4616
  %v4618 = vpop.f32.mrb[0].mxu0
  %4619 = vmatprep.mubr.f32.mxu0 0.0
  %4620 = vmatmul.mubr.f32.gmra.mrb[0].mxu0 %v4398
  %v4621 = vpop.f32.mrb[0].mxu0
  %v4622 = vadd.f32 0.0, %v4621
  %v4623 = vpop.f32.mrb[0].mxu0
  %4624 = vmatprep.mubr.f32.mxu0 0.0
  %4625 = vmatmul.mubr.f32.gmra.mrb[0].mxu0 %v4400
  %v4626 = vpop.f32.mrb[0].mxu0
  %v4627 = vadd.f32 0.0, %v4626
  %v4628 = vpop.f32.mrb[0].mxu0
  %4629 = vmatprep.mubr.f32.mxu0 0.0
  %4630 = vmatmul.mubr.f32.gmra.mrb[0].mxu0 %v4402
  %v4631 = vpop.f32.mrb[0].mxu0
  %v4632 = vadd.f32 0.0, %v4631
  %v4633 = vpop.f32.mrb[0].mxu0
  %4634 = vmatprep.mubr.f32.mxu0 0.0
  %4635 = vmatmul.mubr.f32.gmra.mrb[0].mxu0 %v4404
  %v4636 = vpop.f32.mrb[0].mxu0
  %v4637 = vadd.f32 0.0, %v4636
  %v4638 = vpop.f32.mrb[0].mxu0
  %4639 = vmatprep.mubr.f32.mxu0 0.0
  %4640 = vmatmul.mubr.f32.gmra.mrb[0].mxu0 %v4406
  %v4641 = vpop.f32.mrb[0].mxu0
  %v4642 = vadd.f32 0.0, %v4641
  %v4643 = vpop.f32.mrb[0].mxu0
  %4644 = vmatprep.mubr.f32.mxu0 0.0
  %4645 = vmatmul.mubr.f32.gmra.mrb[0].mxu0 %v4408
  %v4646 = vpop.f32.mrb[0].mxu0
  %v4647 = vadd.f32 0.0, %v4646
  %v4648 = vpop.f32.mrb[0].mxu0
  %4649 = vmatprep.mubr.f32.mxu0 0.0
  %4650 = vmatmul.mubr.f32.gmra.mrb[0].mxu0 %v4410
  %v4651 = vpop.f32.mrb[0].mxu0
  %v4652 = vadd.f32 0.0, %v4651
  %v4653 = vpop.f32.mrb[0].mxu0
  %4654 = vmatprep.mubr.f32.mxu0 0.0
  %4655 = vmatmul.mubr.f32.gmra.mrb[0].mxu0 %v4412
  %v4656 = vpop.f32.mrb[0].mxu0
  %v4657 = vadd.f32 0.0, %v4656
  %v4658 = vpop.f32.mrb[0].mxu0
  %4659 = vmatprep.mubr.f32.mxu0 0.0
  %4660 = vmatmul.mubr.f32.gmra.mrb[0].mxu0 %v4414
  %v4661 = vpop.f32.mrb[0].mxu0
  %v4662 = vadd.f32 0.0, %v4661
  %v4663 = vpop.f32.mrb[0].mxu0
  %4664 = vmatprep.mubr.f32.mxu0 0.0
  %4665 = vmatmul.mubr.f32.gmra.mrb[0].mxu0 %v4416
  %v4666 = vpop.f32.mrb[0].mxu0
  %v4667 = vadd.f32 0.0, %v4666
  %v4668 = vpop.f32.mrb[0].mxu0
  %4669 = vmatprep.mubr.f32.mxu0 0.0
  %4670 = vmatmul.mubr.f32.gmra.mrb[0].mxu0 %v4418
  %v4671 = vpop.f32.mrb[0].mxu0
  %v4672 = vadd.f32 0.0, %v4671
  %v4673 = vpop.f32.mrb[0].mxu0
  %4674 = vmatprep.mubr.f32.mxu0 0.0
  %4675 = vmatmul.mubr.f32.gmra.mrb[0].mxu0 %v4420
  %v4676 = vpop.f32.mrb[0].mxu0
  %v4677 = vadd.f32 0.0, %v4676
  %v4678 = vpop.f32.mrb[0].mxu0
  %4679 = vmatprep.mubr.f32.mxu0 0.0
  %4680 = vmatmul.mubr.f32.gmra.mrb[0].mxu0 %v4422
  %v4681 = vpop.f32.mrb[0].mxu0
  %v4682 = vadd.f32 0.0, %v4681
  %v4683 = vpop.f32.mrb[0].mxu0
  %4684 = vmatprep.mubr.f32.mxu0 0.0
  %4685 = vmatmul.mubr.f32.gmra.mrb[0].mxu0 %v4424
  %v4686 = vpop.f32.mrb[0].mxu0
  %v4687 = vadd.f32 0.0, %v4686
  %v4688 = vpop.f32.mrb[0].mxu0
  %4689 = vmatprep.mubr.f32.mxu0 0.0
  %4690 = vmatmul.mubr.f32.gmra.mrb[0].mxu0 %v4426
  %v4691 = vpop.f32.mrb[0].mxu0
  %v4692 = vadd.f32 0.0, %v4691
  %v4693 = vpop.f32.mrb[0].mxu0
  %4694 = vmatprep.mubr.f32.mxu0 0.0
  %4695 = vmatmul.mubr.f32.gmra.mrb[0].mxu0 %v4428
  %v4696 = vpop.f32.mrb[0].mxu0
  %v4697 = vadd.f32 0.0, %v4696
  %v4698 = vpop.f32.mrb[0].mxu0
  %4699 = vmatprep.mubr.f32.mxu0 0.0
  %4700 = vmatmul.mubr.f32.gmra.mrb[0].mxu0 %v4430
  %v4701 = vpop.f32.mrb[0].mxu0
  %v4702 = vadd.f32 0.0, %v4701
  %v4703 = vpop.f32.mrb[0].mxu0
  %4704 = vmatprep.mubr.f32.mxu0 0.0
  %4705 = vmatmul.mubr.f32.gmra.mrb[0].mxu0 %v4432
  %v4706 = vpop.f32.mrb[0].mxu0
  %v4707 = vadd.f32 0.0, %v4706
  %v4708 = vpop.f32.mrb[0].mxu0
  %4709 = vmatprep.mubr.f32.mxu0 0.0
  %4710 = vmatmul.mubr.f32.gmra.mrb[0].mxu0 %v4434
  %v4711 = vpop.f32.mrb[0].mxu0
  %v4712 = vadd.f32 0.0, %v4711
  %v4713 = vpop.f32.mrb[0].mxu0
  %4714 = vmatprep.mubr.f32.mxu0 0.0
  %4715 = vmatmul.mubr.f32.gmra.mrb[0].mxu0 %v4436
  %v4716 = vpop.f32.mrb[0].mxu0
  %v4717 = vadd.f32 0.0, %v4716
  %v4718 = vpop.f32.mrb[0].mxu0
  %4719 = vmatprep.mubr.f32.mxu0 0.0
  %4720 = vmatmul.mubr.f32.gmra.mrb[0].mxu0 %v4438
  %v4721 = vpop.f32.mrb[0].mxu0
  %v4722 = vadd.f32 0.0, %v4721
  %v4723 = vpop.f32.mrb[0].mxu0
  %4724 = vmatprep.mubr.f32.mxu0 0.0
  %4725 = vmatmul.mubr.f32.gmra.mrb[0].mxu0 %v4440
  %v4726 = vpop.f32.mrb[0].mxu0
  %v4727 = vadd.f32 0.0, %v4726
  %v4728 = vpop.f32.mrb[0].mxu0
  %4729 = vmatprep.mubr.f32.mxu0 0.0
  %4730 = vmatmul.mubr.f32.gmra.mrb[0].mxu0 %v4442
  %v4731 = vpop.f32.mrb[0].mxu0
  %v4732 = vadd.f32 0.0, %v4731
  %v4733 = vpop.f32.mrb[0].mxu0
  %4734 = vmatprep.mubr.f32.mxu0 0.0
  %4735 = vmatmul.mubr.f32.gmra.mrb[0].mxu0 %v4444
  %v4736 = vpop.f32.mrb[0].mxu0
  %v4737 = vadd.f32 0.0, %v4736
  %v4738 = vpop.f32.mrb[0].mxu0
  %4739 = vmatprep.mubr.f32.mxu0 0.0
  %4740 = vmatmul.mubr.f32.gmra.mrb[0].mxu0 %v4446
  %v4741 = vpop.f32.mrb[0].mxu0
  %v4742 = vadd.f32 0.0, %v4741
  %v4743 = vpop.f32.mrb[0].mxu0
  %4744 = vmatprep.mubr.f32.mxu0 0.0
  %4745 = vmatmul.mubr.f32.gmra.mrb[0].mxu0 %v4448
  %v4746 = vpop.f32.mrb[0].mxu0
  %v4747 = vadd.f32 0.0, %v4746
  %v4748 = vpop.f32.mrb[0].mxu0
  %4749 = vmatprep.mubr.f32.mxu0 0.0
  %4750 = vmatmul.mubr.f32.gmra.mrb[0].mxu0 %v4450
  %v4751 = vpop.f32.mrb[0].mxu0
  %v4752 = vadd.f32 0.0, %v4751
  %v4753 = vpop.f32.mrb[0].mxu0
  %4754 = vmatprep.mubr.f32.mxu0 0.0
  %4755 = vmatmul.mubr.f32.gmra.mrb[0].mxu0 %v4452
  %v4756 = vpop.f32.mrb[0].mxu0
  %v4757 = vadd.f32 0.0, %v4756
  %v4758 = vpop.f32.mrb[0].mxu0
  %4759 = vmatprep.mubr.f32.mxu0 0.0
  %4760 = vmatmul.mubr.f32.gmra.mrb[0].mxu0 %v4454
  %v4761 = vpop.f32.mrb[0].mxu0
  %v4762 = vadd.f32 0.0, %v4761
  %v4763 = vpop.f32.mrb[0].mxu0
  %4764 = vmatprep.mubr.f32.mxu0 0.0
  %4765 = vmatmul.mubr.f32.gmra.mrb[0].mxu0 %v4456
  %v4766 = vpop.f32.mrb[0].mxu0
  %v4767 = vadd.f32 0.0, %v4766
  %v4768 = vpop.f32.mrb[0].mxu0
  %4769 = vmatprep.mubr.f32.mxu0 0.0
  %4770 = vmatmul.mubr.f32.gmra.mrb[0].mxu0 %v4458
  %v4771 = vpop.f32.mrb[0].mxu0
  %v4772 = vadd.f32 0.0, %v4771
  %v4773 = vpop.f32.mrb[0].mxu0
  %4774 = vmatprep.mubr.f32.mxu0 0.0
  %4775 = vmatmul.mubr.f32.gmra.mrb[0].mxu0 %v4460
  %v4776 = vpop.f32.mrb[0].mxu0
  %v4777 = vadd.f32 0.0, %v4776
  %v4778 = vpop.f32.mrb[0].mxu0
  %4779 = vmatprep.mubr.f32.mxu0 0.0
  %4780 = vmatmul.mubr.f32.gmra.mrb[0].mxu0 %v4462
  %v4781 = vpop.f32.mrb[0].mxu0
  %v4782 = vadd.f32 0.0, %v4781
  %v4783 = vpop.f32.mrb[0].mxu0
  %4784 = vmatprep.mubr.f32.mxu0 0.0
  %4785 = vmatmul.mubr.f32.gmra.mrb[0].mxu0 %v4464
  %v4786 = vpop.f32.mrb[0].mxu0
  %v4787 = vadd.f32 0.0, %v4786
  %v4788 = vpop.f32.mrb[0].mxu0
  %4789 = vmatprep.mubr.f32.mxu0 0.0
  %4790 = vmatmul.mubr.f32.gmra.mrb[0].mxu0 %v4466
  %v4791 = vpop.f32.mrb[0].mxu0
  %v4792 = vadd.f32 0.0, %v4791
  %v4793 = vpop.f32.mrb[0].mxu0
  %4794 = vmatprep.mubr.f32.mxu0 0.0
  %4795 = vmatmul.mubr.f32.gmra.mrb[0].mxu0 %v4468
  %v4796 = vpop.f32.mrb[0].mxu0
  %v4797 = vadd.f32 0.0, %v4796
  %v4798 = vpop.f32.mrb[0].mxu0
  %4799 = vmatprep.mubr.f32.mxu0 0.0
  %4800 = vmatmul.mubr.f32.gmra.mrb[0].mxu0 %v4470
  %v4801 = vpop.f32.mrb[0].mxu0
  %v4802 = vadd.f32 0.0, %v4801
  %v4803 = vpop.f32.mrb[0].mxu0
  %4804 = vmatprep.mubr.f32.mxu0 0.0
  %4805 = vmatmul.mubr.f32.gmra.mrb[0].mxu0 %v4472
  %v4806 = vpop.f32.mrb[0].mxu0
  %v4807 = vadd.f32 0.0, %v4806
  %v4808 = vpop.f32.mrb[0].mxu0
  %4809 = vmatprep.mubr.f32.mxu0 0.0
  %4810 = vmatmul.mubr.f32.gmra.mrb[0].mxu0 %v4474
  %v4811 = vpop.f32.mrb[0].mxu0
  %v4812 = vadd.f32 0.0, %v4811
  %v4813 = vpop.f32.mrb[0].mxu0
  %4814 = vmatprep.mubr.f32.mxu0 0.0
  %4815 = vmatmul.mubr.f32.gmra.mrb[0].mxu0 %v4476
  %v4816 = vpop.f32.mrb[0].mxu0
  %v4817 = vadd.f32 0.0, %v4816
  %v4818 = vpop.f32.mrb[0].mxu0
  %4819 = vmatprep.mubr.f32.mxu0 0.0
  %4820 = vmatmul.mubr.f32.gmra.mrb[0].mxu0 %v4478
  %v4821 = vpop.f32.mrb[0].mxu0
  %v4822 = vadd.f32 0.0, %v4821
  %v4823 = vpop.f32.mrb[0].mxu0
  %4824 = vmatprep.mubr.f32.mxu0 0.0
  %4825 = vmatmul.mubr.f32.gmra.mrb[0].mxu0 %v4480
  %v4826 = vpop.f32.mrb[0].mxu0
  %v4827 = vadd.f32 0.0, %v4826
  %v4828 = vpop.f32.mrb[0].mxu0
  %4829 = vmatprep.mubr.f32.mxu0 0.0
  %4830 = vmatmul.mubr.f32.gmra.mrb[0].mxu0 %v4482
  %v4831 = vpop.f32.mrb[0].mxu0
  %v4832 = vadd.f32 0.0, %v4831
  %v4833 = vpop.f32.mrb[0].mxu0
  %4834 = vmatprep.mubr.f32.mxu0 0.0
  %4835 = vmatmul.mubr.f32.gmra.mrb[0].mxu0 %v4484
  %v4836 = vpop.f32.mrb[0].mxu0
  %v4837 = vadd.f32 0.0, %v4836
  %v4838 = vpop.f32.mrb[0].mxu0
  %4839 = vmatprep.mubr.f32.mxu0 0.0
  %4840 = vmatmul.mubr.f32.gmra.mrb[0].mxu0 %v4486
  %v4841 = vpop.f32.mrb[0].mxu0
  %v4842 = vadd.f32 0.0, %v4841
  %v4843 = vpop.f32.mrb[0].mxu0
  %4844 = vmatprep.mubr.f32.mxu0 0.0
  %4845 = vmatmul.mubr.f32.gmra.mrb[0].mxu0 %v4488
  %v4846 = vpop.f32.mrb[0].mxu0
  %v4847 = vadd.f32 0.0, %v4846
  %v4848 = vpop.f32.mrb[0].mxu0
  %4849 = vmatprep.mubr.f32.mxu0 0.0
  %4850 = vmatmul.mubr.f32.gmra.mrb[0].mxu0 %v4490
  %v4851 = vpop.f32.mrb[0].mxu0
  %v4852 = vadd.f32 0.0, %v4851
  %v4853 = vpop.f32.mrb[0].mxu0
  %4854 = vmatprep.mubr.f32.mxu0 0.0
  %4855 = vmatmul.mubr.f32.gmra.mrb[0].mxu0 %v4492
  %v4856 = vpop.f32.mrb[0].mxu0
  %v4857 = vadd.f32 0.0, %v4856
  %v4858 = vpop.f32.mrb[0].mxu0
  %4859 = vmatprep.mubr.f32.mxu0 0.0
  %4860 = vmatmul.mubr.f32.gmra.mrb[0].mxu0 %v4494
  %v4861 = vpop.f32.mrb[0].mxu0
  %v4862 = vadd.f32 0.0, %v4861
  %v4863 = vpop.f32.mrb[0].mxu0
  %4864 = vmatprep.mubr.f32.mxu0 0.0
  %4865 = vmatmul.mubr.f32.gmra.mrb[0].mxu0 %v4496
  %v4866 = vpop.f32.mrb[0].mxu0
  %v4867 = vadd.f32 0.0, %v4866
  %v4868 = vpop.f32.mrb[0].mxu0
  %4869 = vmatprep.mubr.f32.mxu0 0.0
  %4870 = vmatmul.mubr.f32.gmra.mrb[0].mxu0 %v4498
  %v4871 = vpop.f32.mrb[0].mxu0
  %v4872 = vadd.f32 0.0, %v4871
  %v4873 = vpop.f32.mrb[0].mxu0
  %4874 = vmatprep.mubr.f32.mxu0 0.0
  %4875 = vmatmul.mubr.f32.gmra.mrb[0].mxu0 %v4500
  %v4876 = vpop.f32.mrb[0].mxu0
  %v4877 = vadd.f32 0.0, %v4876
  %v4878 = vpop.f32.mrb[0].mxu0
  %4879 = vmatprep.mubr.f32.mxu0 0.0
  %4880 = vmatmul.mubr.f32.gmra.mrb[0].mxu0 %v4502
  %v4881 = vpop.f32.mrb[0].mxu0
  %v4882 = vadd.f32 0.0, %v4881
  %v4883 = vpop.f32.mrb[0].mxu0
  %4884 = vmatprep.mubr.f32.mxu0 0.0
  %4885 = vmatmul.mubr.f32.gmra.mrb[0].mxu0 %v4504
  %v4886 = vpop.f32.mrb[0].mxu0
  %v4887 = vadd.f32 0.0, %v4886
  %v4888 = vpop.f32.mrb[0].mxu0
  %4889 = vmatprep.mubr.f32.mxu0 0.0
  %4890 = vmatmul.mubr.f32.gmra.mrb[0].mxu0 %v4506
  %v4891 = vpop.f32.mrb[0].mxu0
  %v4892 = vadd.f32 0.0, %v4891
  %v4893 = vpop.f32.mrb[0].mxu0
  %4894 = vmatprep.mubr.f32.mxu0 0.0
  %4895 = vmatmul.mubr.f32.gmra.mrb[0].mxu0 %v4508
  %v4896 = vpop.f32.mrb[0].mxu0
  %v4897 = vadd.f32 0.0, %v4896
  %v4898 = vpop.f32.mrb[0].mxu0
  %4899 = vmatprep.mubr.f32.mxu0 0.0
  %4900 = vmatmul.mubr.f32.gmra.mrb[0].mxu0 %v4510
  %v4901 = vpop.f32.mrb[0].mxu0
  %v4902 = vadd.f32 0.0, %v4901
  %v4903 = vpop.f32.mrb[0].mxu0
  %4904 = vmatprep.mubr.f32.mxu0 0.0
  %4905 = vmatmul.mubr.f32.gmra.mrb[0].mxu0 %v4512
  %v4906 = vpop.f32.mrb[0].mxu0
  %v4907 = vadd.f32 0.0, %v4906
  %v4908 = vpop.f32.mrb[0].mxu0
  %4909 = vmatprep.mubr.f32.mxu0 0.0
  %4910 = vmatmul.mubr.f32.gmra.mrb[0].mxu0 %v4514
  %v4911 = vpop.f32.mrb[0].mxu0
  %v4912 = vadd.f32 0.0, %v4911
  %v4913 = vpop.f32.mrb[0].mxu0
  %4914 = vmatprep.mubr.f32.mxu0 0.0
  %4915 = vmatmul.mubr.f32.gmra.mrb[0].mxu0 %v4516
  %v4916 = vpop.f32.mrb[0].mxu0
  %v4917 = vadd.f32 0.0, %v4916
  %v4918 = vpop.f32.mrb[0].mxu0
  %4919 = vmatprep.mubr.f32.mxu0 0.0
  %4920 = vmatmul.mubr.f32.gmra.mrb[0].mxu0 %v4518
  %v4921 = vpop.f32.mrb[0].mxu0
  %v4922 = vadd.f32 0.0, %v4921
  %v4923 = vpop.f32.mrb[0].mxu0
  %4924 = vmatprep.mubr.f32.mxu0 0.0
  %4925 = vmatmul.mubr.f32.gmra.mrb[0].mxu0 %v4520
  %v4926 = vpop.f32.mrb[0].mxu0
  %v4927 = vadd.f32 0.0, %v4926
  %v4928 = vpop.f32.mrb[0].mxu0
  %4929 = vmatprep.mubr.f32.mxu0 0.0
  %4930 = vmatmul.mubr.f32.gmra.mrb[0].mxu0 %v4522
  %v4931 = vpop.f32.mrb[0].mxu0
  %v4932 = vadd.f32 0.0, %v4931
  %v4933 = vpop.f32.mrb[0].mxu0
  %4934 = vmatprep.mubr.f32.mxu0 0.0
  %4935 = vmatmul.mubr.f32.gmra.mrb[0].mxu0 %v4524
  %v4936 = vpop.f32.mrb[0].mxu0
  %v4937 = vadd.f32 0.0, %v4936
  %v4938 = vpop.f32.mrb[0].mxu0
  %4939 = vmatprep.mubr.f32.mxu0 0.0
  %4940 = vmatmul.mubr.f32.gmra.mrb[0].mxu0 %v4526
  %v4941 = vpop.f32.mrb[0].mxu0
  %v4942 = vadd.f32 0.0, %v4941
  %v4943 = vpop.f32.mrb[0].mxu0
  %4944 = vmatprep.mubr.f32.mxu0 0.0
  %4945 = vmatmul.mubr.f32.gmra.mrb[0].mxu0 %v4528
  %v4946 = vpop.f32.mrb[0].mxu0
  %v4947 = vadd.f32 0.0, %v4946
  %v4948 = vpop.f32.mrb[0].mxu0
  %4949 = vmatprep.mubr.f32.mxu0 0.0
  %4950 = vmatmul.mubr.f32.gmra.mrb[0].mxu0 %v4530
  %v4951 = vpop.f32.mrb[0].mxu0
  %v4952 = vadd.f32 0.0, %v4951
  %v4953 = vpop.f32.mrb[0].mxu0
  %4954 = vmatprep.mubr.f32.mxu0 0.0
  %4955 = vmatmul.mubr.f32.gmra.mrb[0].mxu0 %v4532
  %v4956 = vpop.f32.mrb[0].mxu0
  %v4957 = vadd.f32 0.0, %v4956
  %v4958 = vpop.f32.mrb[0].mxu0
  %4959 = vmatprep.mubr.f32.mxu0 0.0
  %4960 = vmatmul.mubr.f32.gmra.mrb[0].mxu0 %v4534
  %v4961 = vpop.f32.mrb[0].mxu0
  %v4962 = vadd.f32 0.0, %v4961
  %v4963 = vpop.f32.mrb[0].mxu0
  %4964 = vmatprep.mubr.f32.mxu0 0.0
  %4965 = vmatmul.mubr.f32.gmra.mrb[0].mxu0 %v4536
  %v4966 = vpop.f32.mrb[0].mxu0
  %v4967 = vadd.f32 0.0, %v4966
  %v4968 = vpop.f32.mrb[0].mxu0
  %4969 = vmatprep.mubr.f32.mxu0 0.0
  %4970 = vmatmul.mubr.f32.gmra.mrb[0].mxu0 %v4538
  %v4971 = vpop.f32.mrb[0].mxu0
  %v4972 = vadd.f32 0.0, %v4971
  %v4973 = vpop.f32.mrb[0].mxu0
  %4974 = vmatprep.mubr.f32.mxu0 0.0
  %4975 = vmatmul.mubr.f32.gmra.mrb[0].mxu0 %v4540
  %v4976 = vpop.f32.mrb[0].mxu0
  %v4977 = vadd.f32 0.0, %v4976
  %v4978 = vpop.f32.mrb[0].mxu0
  %4979 = vdwg.mxu0
  %v4980 = vadd.f32 %v4167, %v4612
  %v4981 = vadd.f32 %v4168, %v4617
  %v4982 = vadd.f32 %v4169, %v4622
  %v4983 = vadd.f32 %v4170, %v4627
  %v4984 = vadd.f32 %v4171, %v4632
  %v4985 = vadd.f32 %v4172, %v4637
  %v4986 = vadd.f32 %v4173, %v4642
  %v4987 = vadd.f32 %v4174, %v4647
  %v4988 = vadd.f32 %v4175, %v4652
  %v4989 = vadd.f32 %v4176, %v4657
  %v4990 = vadd.f32 %v4177, %v4662
  %v4991 = vadd.f32 %v4178, %v4667
  %v4992 = vadd.f32 %v4179, %v4672
  %v4993 = vadd.f32 %v4180, %v4677
  %v4994 = vadd.f32 %v4181, %v4682
  %v4995 = vadd.f32 %v4182, %v4687
  %v4996 = vadd.f32 %v4183, %v4692
  %v4997 = vadd.f32 %v4184, %v4697
  %v4998 = vadd.f32 %v4185, %v4702
  %v4999 = vadd.f32 %v4186, %v4707
  %v5000 = vadd.f32 %v4187, %v4712
  %v5001 = vadd.f32 %v4188, %v4717
  %v5002 = vadd.f32 %v4189, %v4722
  %v5003 = vadd.f32 %v4190, %v4727
  %v5004 = vadd.f32 %v4191, %v4732
  %v5005 = vadd.f32 %v4192, %v4737
  %v5006 = vadd.f32 %v4193, %v4742
  %v5007 = vadd.f32 %v4194, %v4747
  %v5008 = vadd.f32 %v4195, %v4752
  %v5009 = vadd.f32 %v4196, %v4757
  %v5010 = vadd.f32 %v4197, %v4762
  %v5011 = vadd.f32 %v4198, %v4767
  %v5012 = vadd.f32 %v4199, %v4772
  %v5013 = vadd.f32 %v4200, %v4777
  %v5014 = vadd.f32 %v4201, %v4782
  %v5015 = vadd.f32 %v4202, %v4787
  %v5016 = vadd.f32 %v4203, %v4792
  %v5017 = vadd.f32 %v4204, %v4797
  %v5018 = vadd.f32 %v4205, %v4802
  %v5019 = vadd.f32 %v4206, %v4807
  %v5020 = vadd.f32 %v4207, %v4812
  %v5021 = vadd.f32 %v4208, %v4817
  %v5022 = vadd.f32 %v4209, %v4822
  %v5023 = vadd.f32 %v4210, %v4827
  %v5024 = vadd.f32 %v4211, %v4832
  %v5025 = vadd.f32 %v4212, %v4837
  %v5026 = vadd.f32 %v4213, %v4842
  %v5027 = vadd.f32 %v4214, %v4847
  %v5028 = vadd.f32 %v4215, %v4852
  %v5029 = vadd.f32 %v4216, %v4857
  %v5030 = vadd.f32 %v4217, %v4862
  %v5031 = vadd.f32 %v4218, %v4867
  %v5032 = vadd.f32 %v4219, %v4872
  %v5033 = vadd.f32 %v4220, %v4877
  %v5034 = vadd.f32 %v4221, %v4882
  %v5035 = vadd.f32 %v4222, %v4887
  %v5036 = vadd.f32 %v4223, %v4892
  %v5037 = vadd.f32 %v4224, %v4897
  %v5038 = vadd.f32 %v4225, %v4902
  %v5039 = vadd.f32 %v4226, %v4907
  %v5040 = vadd.f32 %v4227, %v4912
  %v5041 = vadd.f32 %v4228, %v4917
  %v5042 = vadd.f32 %v4229, %v4922
  %v5043 = vadd.f32 %v4230, %v4927
  %v5044 = vadd.f32 %v4231, %v4932
  %v5045 = vadd.f32 %v4232, %v4937
  %v5046 = vadd.f32 %v4233, %v4942
  %v5047 = vadd.f32 %v4234, %v4947
  %v5048 = vadd.f32 %v4235, %v4952
  %v5049 = vadd.f32 %v4236, %v4957
  %v5050 = vadd.f32 %v4237, %v4962
  %v5051 = vadd.f32 %v4238, %v4967
  %v5052 = vadd.f32 %v4239, %v4972
  %v5053 = vadd.f32 %v4240, %v4977
  %s5054 = scalar_lea.vmem %s1, 12
  %v5055 = vld [vmem:[%s5054] sm:$0x3]
  %v5056 = vunpack.c.l.bf16 %v5055
  %v5059 = vrot.slane %v169, 1
  %v5060 = vsel %vm1657, %v1805, %v5059
  %v5061 = vrot.slane %v170, 1
  %v5062 = vsel %vm1657, %v5059, %v5061
  %v5063 = vsel %vm331, %v5060, 0
  %v5065 = vsel %vm331, %v5062, 0
  %v5068 = vsel %vm554, %v5056, 0
  %5070 = vmatprep.subr.mxu0 0.0
  %5071 = vmatpush1.msra.mxu0 %v5068
  %5072 = vmatprep.subr.mxu0 0.0
  %5073 = vmatpush1.msra.mxu0 0.0
  %5074 = vmatprep.subr.mxu0 0.0
  %5075 = vmatpush1.msra.mxu0 0.0
  %5076 = vmatprep.subr.mxu0 0.0
  %5077 = vmatpush1.msra.mxu0 0.0
  %5078 = vmatprep.subr.mxu0 0.0
  %5079 = vmatpush1.msra.mxu0 0.0
  %5080 = vmatprep.subr.mxu0 0.0
  %5081 = vmatpush1.msra.mxu0 0.0
  %5082 = vmatprep.subr.mxu0 0.0
  %5083 = vmatpush1.msra.mxu0 0.0
  %5084 = vmatprep.subr.mxu0 0.0
  %5085 = vmatpush1.msra.mxu0 0.0
  %5086 = vmatprep.subr.mxu0 0.0
  %5087 = vmatpush1.msra.mxu0 0.0
  %5088 = vmatprep.subr.mxu0 0.0
  %5089 = vmatpush1.msra.mxu0 0.0
  %5090 = vmatprep.subr.mxu0 0.0
  %5091 = vmatpush1.msra.mxu0 0.0
  %5092 = vmatprep.subr.mxu0 0.0
  %5093 = vmatpush1.msra.mxu0 0.0
  %5094 = vmatprep.subr.mxu0 0.0
  %5095 = vmatpush1.msra.mxu0 0.0
  %5096 = vmatprep.subr.mxu0 0.0
  %5097 = vmatpush1.msra.mxu0 0.0
  %5098 = vmatprep.subr.mxu0 0.0
  %5099 = vmatpush1.msra.mxu0 0.0
  %5100 = vmatprep.subr.mxu0 0.0
  %5101 = vmatpush1.msra.mxu0 0.0
  %5102 = vmatprep.subr.mxu0 0.0
  %5103 = vmatpush1.msra.mxu0 0.0
  %5104 = vmatprep.subr.mxu0 0.0
  %5105 = vmatpush1.msra.mxu0 0.0
  %5106 = vmatprep.subr.mxu0 0.0
  %5107 = vmatpush1.msra.mxu0 0.0
  %5108 = vmatprep.subr.mxu0 0.0
  %5109 = vmatpush1.msra.mxu0 0.0
  %5110 = vmatprep.subr.mxu0 0.0
  %5111 = vmatpush1.msra.mxu0 0.0
  %5112 = vmatprep.subr.mxu0 0.0
  %5113 = vmatpush1.msra.mxu0 0.0
  %5114 = vmatprep.subr.mxu0 0.0
  %5115 = vmatpush1.msra.mxu0 0.0
  %5116 = vmatprep.subr.mxu0 0.0
  %5117 = vmatpush1.msra.mxu0 0.0
  %5118 = vmatprep.subr.mxu0 0.0
  %5119 = vmatpush1.msra.mxu0 0.0
  %5120 = vmatprep.subr.mxu0 0.0
  %5121 = vmatpush1.msra.mxu0 0.0
  %5122 = vmatprep.subr.mxu0 0.0
  %5123 = vmatpush1.msra.mxu0 0.0
  %5124 = vmatprep.subr.mxu0 0.0
  %5125 = vmatpush1.msra.mxu0 0.0
  %5126 = vmatprep.subr.mxu0 0.0
  %5127 = vmatpush1.msra.mxu0 0.0
  %5128 = vmatprep.subr.mxu0 0.0
  %5129 = vmatpush1.msra.mxu0 0.0
  %5130 = vmatprep.subr.mxu0 0.0
  %5131 = vmatpush1.msra.mxu0 0.0
  %5132 = vmatprep.subr.mxu0 0.0
  %5133 = vmatpush1.msra.mxu0 0.0
  %5134 = vmatprep.mubr.f32.mxu0 0.0
  %5135 = vmatmul.mubr.f32.gmra.mrb[0].mxu0 %v1811
  %v5136 = vpop.f32.mrb[0].mxu0
  %v5137 = vadd.f32 0.0, %v5136
  %v5138 = vpop.f32.mrb[0].mxu0
  %5139 = vmatprep.mubr.f32.mxu0 0.0
  %5140 = vmatmul.mubr.f32.gmra.mrb[0].mxu0 %v1813
  %v5141 = vpop.f32.mrb[0].mxu0
  %v5142 = vadd.f32 0.0, %v5141
  %v5143 = vpop.f32.mrb[0].mxu0
  %5144 = vmatprep.mubr.f32.mxu0 0.0
  %5145 = vmatmul.mubr.f32.gmra.mrb[0].mxu0 %v1815
  %v5146 = vpop.f32.mrb[0].mxu0
  %v5147 = vadd.f32 0.0, %v5146
  %v5148 = vpop.f32.mrb[0].mxu0
  %5149 = vmatprep.mubr.f32.mxu0 0.0
  %5150 = vmatmul.mubr.f32.gmra.mrb[0].mxu0 %v1817
  %v5151 = vpop.f32.mrb[0].mxu0
  %v5152 = vadd.f32 0.0, %v5151
  %v5153 = vpop.f32.mrb[0].mxu0
  %5154 = vmatprep.mubr.f32.mxu0 0.0
  %5155 = vmatmul.mubr.f32.gmra.mrb[0].mxu0 %v1819
  %v5156 = vpop.f32.mrb[0].mxu0
  %v5157 = vadd.f32 0.0, %v5156
  %v5158 = vpop.f32.mrb[0].mxu0
  %5159 = vmatprep.mubr.f32.mxu0 0.0
  %5160 = vmatmul.mubr.f32.gmra.mrb[0].mxu0 %v1821
  %v5161 = vpop.f32.mrb[0].mxu0
  %v5162 = vadd.f32 0.0, %v5161
  %v5163 = vpop.f32.mrb[0].mxu0
  %5164 = vmatprep.mubr.f32.mxu0 0.0
  %5165 = vmatmul.mubr.f32.gmra.mrb[0].mxu0 %v1823
  %v5166 = vpop.f32.mrb[0].mxu0
  %v5167 = vadd.f32 0.0, %v5166
  %v5168 = vpop.f32.mrb[0].mxu0
  %5169 = vmatprep.mubr.f32.mxu0 0.0
  %5170 = vmatmul.mubr.f32.gmra.mrb[0].mxu0 %v1825
  %v5171 = vpop.f32.mrb[0].mxu0
  %v5172 = vadd.f32 0.0, %v5171
  %v5173 = vpop.f32.mrb[0].mxu0
  %5174 = vmatprep.mubr.f32.mxu0 0.0
  %5175 = vmatmul.mubr.f32.gmra.mrb[0].mxu0 %v1827
  %v5176 = vpop.f32.mrb[0].mxu0
  %v5177 = vadd.f32 0.0, %v5176
  %v5178 = vpop.f32.mrb[0].mxu0
  %5179 = vmatprep.mubr.f32.mxu0 0.0
  %5180 = vmatmul.mubr.f32.gmra.mrb[0].mxu0 %v1829
  %v5181 = vpop.f32.mrb[0].mxu0
  %v5182 = vadd.f32 0.0, %v5181
  %v5183 = vpop.f32.mrb[0].mxu0
  %5184 = vmatprep.mubr.f32.mxu0 0.0
  %5185 = vmatmul.mubr.f32.gmra.mrb[0].mxu0 %v1831
  %v5186 = vpop.f32.mrb[0].mxu0
  %v5187 = vadd.f32 0.0, %v5186
  %v5188 = vpop.f32.mrb[0].mxu0
  %5189 = vmatprep.mubr.f32.mxu0 0.0
  %5190 = vmatmul.mubr.f32.gmra.mrb[0].mxu0 %v1833
  %v5191 = vpop.f32.mrb[0].mxu0
  %v5192 = vadd.f32 0.0, %v5191
  %v5193 = vpop.f32.mrb[0].mxu0
  %5194 = vmatprep.mubr.f32.mxu0 0.0
  %5195 = vmatmul.mubr.f32.gmra.mrb[0].mxu0 %v1835
  %v5196 = vpop.f32.mrb[0].mxu0
  %v5197 = vadd.f32 0.0, %v5196
  %v5198 = vpop.f32.mrb[0].mxu0
  %5199 = vmatprep.mubr.f32.mxu0 0.0
  %5200 = vmatmul.mubr.f32.gmra.mrb[0].mxu0 %v1837
  %v5201 = vpop.f32.mrb[0].mxu0
  %v5202 = vadd.f32 0.0, %v5201
  %v5203 = vpop.f32.mrb[0].mxu0
  %5204 = vmatprep.mubr.f32.mxu0 0.0
  %5205 = vmatmul.mubr.f32.gmra.mrb[0].mxu0 %v1839
  %v5206 = vpop.f32.mrb[0].mxu0
  %v5207 = vadd.f32 0.0, %v5206
  %v5208 = vpop.f32.mrb[0].mxu0
  %5209 = vmatprep.mubr.f32.mxu0 0.0
  %5210 = vmatmul.mubr.f32.gmra.mrb[0].mxu0 %v1841
  %v5211 = vpop.f32.mrb[0].mxu0
  %v5212 = vadd.f32 0.0, %v5211
  %v5213 = vpop.f32.mrb[0].mxu0
  %5214 = vmatprep.mubr.f32.mxu0 0.0
  %5215 = vmatmul.mubr.f32.gmra.mrb[0].mxu0 %v1843
  %v5216 = vpop.f32.mrb[0].mxu0
  %v5217 = vadd.f32 0.0, %v5216
  %v5218 = vpop.f32.mrb[0].mxu0
  %5219 = vmatprep.mubr.f32.mxu0 0.0
  %5220 = vmatmul.mubr.f32.gmra.mrb[0].mxu0 %v1845
  %v5221 = vpop.f32.mrb[0].mxu0
  %v5222 = vadd.f32 0.0, %v5221
  %v5223 = vpop.f32.mrb[0].mxu0
  %5224 = vmatprep.mubr.f32.mxu0 0.0
  %5225 = vmatmul.mubr.f32.gmra.mrb[0].mxu0 %v1847
  %v5226 = vpop.f32.mrb[0].mxu0
  %v5227 = vadd.f32 0.0, %v5226
  %v5228 = vpop.f32.mrb[0].mxu0
  %5229 = vmatprep.mubr.f32.mxu0 0.0
  %5230 = vmatmul.mubr.f32.gmra.mrb[0].mxu0 %v1849
  %v5231 = vpop.f32.mrb[0].mxu0
  %v5232 = vadd.f32 0.0, %v5231
  %v5233 = vpop.f32.mrb[0].mxu0
  %5234 = vmatprep.mubr.f32.mxu0 0.0
  %5235 = vmatmul.mubr.f32.gmra.mrb[0].mxu0 %v1851
  %v5236 = vpop.f32.mrb[0].mxu0
  %v5237 = vadd.f32 0.0, %v5236
  %v5238 = vpop.f32.mrb[0].mxu0
  %5239 = vmatprep.mubr.f32.mxu0 0.0
  %5240 = vmatmul.mubr.f32.gmra.mrb[0].mxu0 %v1853
  %v5241 = vpop.f32.mrb[0].mxu0
  %v5242 = vadd.f32 0.0, %v5241
  %v5243 = vpop.f32.mrb[0].mxu0
  %5244 = vmatprep.mubr.f32.mxu0 0.0
  %5245 = vmatmul.mubr.f32.gmra.mrb[0].mxu0 %v1855
  %v5246 = vpop.f32.mrb[0].mxu0
  %v5247 = vadd.f32 0.0, %v5246
  %v5248 = vpop.f32.mrb[0].mxu0
  %5249 = vmatprep.mubr.f32.mxu0 0.0
  %5250 = vmatmul.mubr.f32.gmra.mrb[0].mxu0 %v1857
  %v5251 = vpop.f32.mrb[0].mxu0
  %v5252 = vadd.f32 0.0, %v5251
  %v5253 = vpop.f32.mrb[0].mxu0
  %5254 = vmatprep.mubr.f32.mxu0 0.0
  %5255 = vmatmul.mubr.f32.gmra.mrb[0].mxu0 %v1859
  %v5256 = vpop.f32.mrb[0].mxu0
  %v5257 = vadd.f32 0.0, %v5256
  %v5258 = vpop.f32.mrb[0].mxu0
  %5259 = vmatprep.mubr.f32.mxu0 0.0
  %5260 = vmatmul.mubr.f32.gmra.mrb[0].mxu0 %v1861
  %v5261 = vpop.f32.mrb[0].mxu0
  %v5262 = vadd.f32 0.0, %v5261
  %v5263 = vpop.f32.mrb[0].mxu0
  %5264 = vmatprep.mubr.f32.mxu0 0.0
  %5265 = vmatmul.mubr.f32.gmra.mrb[0].mxu0 %v1863
  %v5266 = vpop.f32.mrb[0].mxu0
  %v5267 = vadd.f32 0.0, %v5266
  %v5268 = vpop.f32.mrb[0].mxu0
  %5269 = vmatprep.mubr.f32.mxu0 0.0
  %5270 = vmatmul.mubr.f32.gmra.mrb[0].mxu0 %v1865
  %v5271 = vpop.f32.mrb[0].mxu0
  %v5272 = vadd.f32 0.0, %v5271
  %v5273 = vpop.f32.mrb[0].mxu0
  %5274 = vmatprep.mubr.f32.mxu0 0.0
  %5275 = vmatmul.mubr.f32.gmra.mrb[0].mxu0 %v1867
  %v5276 = vpop.f32.mrb[0].mxu0
  %v5277 = vadd.f32 0.0, %v5276
  %v5278 = vpop.f32.mrb[0].mxu0
  %5279 = vmatprep.mubr.f32.mxu0 0.0
  %5280 = vmatmul.mubr.f32.gmra.mrb[0].mxu0 %v1869
  %v5281 = vpop.f32.mrb[0].mxu0
  %v5282 = vadd.f32 0.0, %v5281
  %v5283 = vpop.f32.mrb[0].mxu0
  %5284 = vmatprep.mubr.f32.mxu0 0.0
  %5285 = vmatmul.mubr.f32.gmra.mrb[0].mxu0 %v1871
  %v5286 = vpop.f32.mrb[0].mxu0
  %v5287 = vadd.f32 0.0, %v5286
  %v5288 = vpop.f32.mrb[0].mxu0
  %5289 = vmatprep.mubr.f32.mxu0 0.0
  %5290 = vmatmul.mubr.f32.gmra.mrb[0].mxu0 %v1873
  %v5291 = vpop.f32.mrb[0].mxu0
  %v5292 = vadd.f32 0.0, %v5291
  %v5293 = vpop.f32.mrb[0].mxu0
  %5294 = vmatprep.mubr.f32.mxu0 0.0
  %5295 = vmatmul.mubr.f32.gmra.mrb[0].mxu0 %v1875
  %v5296 = vpop.f32.mrb[0].mxu0
  %v5297 = vadd.f32 0.0, %v5296
  %v5298 = vpop.f32.mrb[0].mxu0
  %5299 = vmatprep.mubr.f32.mxu0 0.0
  %5300 = vmatmul.mubr.f32.gmra.mrb[0].mxu0 %v1877
  %v5301 = vpop.f32.mrb[0].mxu0
  %v5302 = vadd.f32 0.0, %v5301
  %v5303 = vpop.f32.mrb[0].mxu0
  %5304 = vmatprep.mubr.f32.mxu0 0.0
  %5305 = vmatmul.mubr.f32.gmra.mrb[0].mxu0 %v1879
  %v5306 = vpop.f32.mrb[0].mxu0
  %v5307 = vadd.f32 0.0, %v5306
  %v5308 = vpop.f32.mrb[0].mxu0
  %5309 = vmatprep.mubr.f32.mxu0 0.0
  %5310 = vmatmul.mubr.f32.gmra.mrb[0].mxu0 %v1881
  %v5311 = vpop.f32.mrb[0].mxu0
  %v5312 = vadd.f32 0.0, %v5311
  %v5313 = vpop.f32.mrb[0].mxu0
  %5314 = vmatprep.mubr.f32.mxu0 0.0
  %5315 = vmatmul.mubr.f32.gmra.mrb[0].mxu0 %v1883
  %v5316 = vpop.f32.mrb[0].mxu0
  %v5317 = vadd.f32 0.0, %v5316
  %v5318 = vpop.f32.mrb[0].mxu0
  %5319 = vmatprep.mubr.f32.mxu0 0.0
  %5320 = vmatmul.mubr.f32.gmra.mrb[0].mxu0 %v1885
  %v5321 = vpop.f32.mrb[0].mxu0
  %v5322 = vadd.f32 0.0, %v5321
  %v5323 = vpop.f32.mrb[0].mxu0
  %5324 = vmatprep.mubr.f32.mxu0 0.0
  %5325 = vmatmul.mubr.f32.gmra.mrb[0].mxu0 %v1887
  %v5326 = vpop.f32.mrb[0].mxu0
  %v5327 = vadd.f32 0.0, %v5326
  %v5328 = vpop.f32.mrb[0].mxu0
  %5329 = vmatprep.mubr.f32.mxu0 0.0
  %5330 = vmatmul.mubr.f32.gmra.mrb[0].mxu0 %v1889
  %v5331 = vpop.f32.mrb[0].mxu0
  %v5332 = vadd.f32 0.0, %v5331
  %v5333 = vpop.f32.mrb[0].mxu0
  %5334 = vmatprep.mubr.f32.mxu0 0.0
  %5335 = vmatmul.mubr.f32.gmra.mrb[0].mxu0 %v1891
  %v5336 = vpop.f32.mrb[0].mxu0
  %v5337 = vadd.f32 0.0, %v5336
  %v5338 = vpop.f32.mrb[0].mxu0
  %5339 = vmatprep.mubr.f32.mxu0 0.0
  %5340 = vmatmul.mubr.f32.gmra.mrb[0].mxu0 %v1893
  %v5341 = vpop.f32.mrb[0].mxu0
  %v5342 = vadd.f32 0.0, %v5341
  %v5343 = vpop.f32.mrb[0].mxu0
  %5344 = vmatprep.mubr.f32.mxu0 0.0
  %5345 = vmatmul.mubr.f32.gmra.mrb[0].mxu0 %v1895
  %v5346 = vpop.f32.mrb[0].mxu0
  %v5347 = vadd.f32 0.0, %v5346
  %v5348 = vpop.f32.mrb[0].mxu0
  %5349 = vmatprep.mubr.f32.mxu0 0.0
  %5350 = vmatmul.mubr.f32.gmra.mrb[0].mxu0 %v1897
  %v5351 = vpop.f32.mrb[0].mxu0
  %v5352 = vadd.f32 0.0, %v5351
  %v5353 = vpop.f32.mrb[0].mxu0
  %5354 = vmatprep.mubr.f32.mxu0 0.0
  %5355 = vmatmul.mubr.f32.gmra.mrb[0].mxu0 %v1899
  %v5356 = vpop.f32.mrb[0].mxu0
  %v5357 = vadd.f32 0.0, %v5356
  %v5358 = vpop.f32.mrb[0].mxu0
  %5359 = vmatprep.mubr.f32.mxu0 0.0
  %5360 = vmatmul.mubr.f32.gmra.mrb[0].mxu0 %v1901
  %v5361 = vpop.f32.mrb[0].mxu0
  %v5362 = vadd.f32 0.0, %v5361
  %v5363 = vpop.f32.mrb[0].mxu0
  %5364 = vmatprep.mubr.f32.mxu0 0.0
  %5365 = vmatmul.mubr.f32.gmra.mrb[0].mxu0 %v1903
  %v5366 = vpop.f32.mrb[0].mxu0
  %v5367 = vadd.f32 0.0, %v5366
  %v5368 = vpop.f32.mrb[0].mxu0
  %5369 = vmatprep.mubr.f32.mxu0 0.0
  %5370 = vmatmul.mubr.f32.gmra.mrb[0].mxu0 %v1905
  %v5371 = vpop.f32.mrb[0].mxu0
  %v5372 = vadd.f32 0.0, %v5371
  %v5373 = vpop.f32.mrb[0].mxu0
  %5374 = vmatprep.mubr.f32.mxu0 0.0
  %5375 = vmatmul.mubr.f32.gmra.mrb[0].mxu0 %v1907
  %v5376 = vpop.f32.mrb[0].mxu0
  %v5377 = vadd.f32 0.0, %v5376
  %v5378 = vpop.f32.mrb[0].mxu0
  %5379 = vmatprep.mubr.f32.mxu0 0.0
  %5380 = vmatmul.mubr.f32.gmra.mrb[0].mxu0 %v1909
  %v5381 = vpop.f32.mrb[0].mxu0
  %v5382 = vadd.f32 0.0, %v5381
  %v5383 = vpop.f32.mrb[0].mxu0
  %5384 = vmatprep.mubr.f32.mxu0 0.0
  %5385 = vmatmul.mubr.f32.gmra.mrb[0].mxu0 %v1911
  %v5386 = vpop.f32.mrb[0].mxu0
  %v5387 = vadd.f32 0.0, %v5386
  %v5388 = vpop.f32.mrb[0].mxu0
  %5389 = vmatprep.mubr.f32.mxu0 0.0
  %5390 = vmatmul.mubr.f32.gmra.mrb[0].mxu0 %v1913
  %v5391 = vpop.f32.mrb[0].mxu0
  %v5392 = vadd.f32 0.0, %v5391
  %v5393 = vpop.f32.mrb[0].mxu0
  %5394 = vmatprep.mubr.f32.mxu0 0.0
  %5395 = vmatmul.mubr.f32.gmra.mrb[0].mxu0 %v1915
  %v5396 = vpop.f32.mrb[0].mxu0
  %v5397 = vadd.f32 0.0, %v5396
  %v5398 = vpop.f32.mrb[0].mxu0
  %5399 = vmatprep.mubr.f32.mxu0 0.0
  %5400 = vmatmul.mubr.f32.gmra.mrb[0].mxu0 %v1917
  %v5401 = vpop.f32.mrb[0].mxu0
  %v5402 = vadd.f32 0.0, %v5401
  %v5403 = vpop.f32.mrb[0].mxu0
  %5404 = vmatprep.mubr.f32.mxu0 0.0
  %5405 = vmatmul.mubr.f32.gmra.mrb[0].mxu0 %v1919
  %v5406 = vpop.f32.mrb[0].mxu0
  %v5407 = vadd.f32 0.0, %v5406
  %v5408 = vpop.f32.mrb[0].mxu0
  %5409 = vmatprep.mubr.f32.mxu0 0.0
  %5410 = vmatmul.mubr.f32.gmra.mrb[0].mxu0 %v1921
  %v5411 = vpop.f32.mrb[0].mxu0
  %v5412 = vadd.f32 0.0, %v5411
  %v5413 = vpop.f32.mrb[0].mxu0
  %5414 = vmatprep.mubr.f32.mxu0 0.0
  %5415 = vmatmul.mubr.f32.gmra.mrb[0].mxu0 %v1923
  %v5416 = vpop.f32.mrb[0].mxu0
  %v5417 = vadd.f32 0.0, %v5416
  %v5418 = vpop.f32.mrb[0].mxu0
  %5419 = vmatprep.mubr.f32.mxu0 0.0
  %5420 = vmatmul.mubr.f32.gmra.mrb[0].mxu0 %v1925
  %v5421 = vpop.f32.mrb[0].mxu0
  %v5422 = vadd.f32 0.0, %v5421
  %v5423 = vpop.f32.mrb[0].mxu0
  %5424 = vmatprep.mubr.f32.mxu0 0.0
  %5425 = vmatmul.mubr.f32.gmra.mrb[0].mxu0 %v1927
  %v5426 = vpop.f32.mrb[0].mxu0
  %v5427 = vadd.f32 0.0, %v5426
  %v5428 = vpop.f32.mrb[0].mxu0
  %5429 = vmatprep.mubr.f32.mxu0 0.0
  %5430 = vmatmul.mubr.f32.gmra.mrb[0].mxu0 %v1929
  %v5431 = vpop.f32.mrb[0].mxu0
  %v5432 = vadd.f32 0.0, %v5431
  %v5433 = vpop.f32.mrb[0].mxu0
  %5434 = vmatprep.mubr.f32.mxu0 0.0
  %5435 = vmatmul.mubr.f32.gmra.mrb[0].mxu0 %v1931
  %v5436 = vpop.f32.mrb[0].mxu0
  %v5437 = vadd.f32 0.0, %v5436
  %v5438 = vpop.f32.mrb[0].mxu0
  %5439 = vmatprep.mubr.f32.mxu0 0.0
  %5440 = vmatmul.mubr.f32.gmra.mrb[0].mxu0 %v1933
  %v5441 = vpop.f32.mrb[0].mxu0
  %v5442 = vadd.f32 0.0, %v5441
  %v5443 = vpop.f32.mrb[0].mxu0
  %5444 = vmatprep.mubr.f32.mxu0 0.0
  %5445 = vmatmul.mubr.f32.gmra.mrb[0].mxu0 %v1935
  %v5446 = vpop.f32.mrb[0].mxu0
  %v5447 = vadd.f32 0.0, %v5446
  %v5448 = vpop.f32.mrb[0].mxu0
  %5449 = vmatprep.mubr.f32.mxu0 0.0
  %5450 = vmatmul.mubr.f32.gmra.mrb[0].mxu0 %v1937
  %v5451 = vpop.f32.mrb[0].mxu0
  %v5452 = vadd.f32 0.0, %v5451
  %v5453 = vpop.f32.mrb[0].mxu0
  %5454 = vmatprep.mubr.f32.mxu0 0.0
  %5455 = vmatmul.mubr.f32.gmra.mrb[0].mxu0 %v1939
  %v5456 = vpop.f32.mrb[0].mxu0
  %v5457 = vadd.f32 0.0, %v5456
  %v5458 = vpop.f32.mrb[0].mxu0
  %5459 = vmatprep.mubr.f32.mxu0 0.0
  %5460 = vmatmul.mubr.f32.gmra.mrb[0].mxu0 %v1941
  %v5461 = vpop.f32.mrb[0].mxu0
  %v5462 = vadd.f32 0.0, %v5461
  %v5463 = vpop.f32.mrb[0].mxu0
  %5464 = vmatprep.mubr.f32.mxu0 0.0
  %5465 = vmatmul.mubr.f32.gmra.mrb[0].mxu0 %v1943
  %v5466 = vpop.f32.mrb[0].mxu0
  %v5467 = vadd.f32 0.0, %v5466
  %v5468 = vpop.f32.mrb[0].mxu0
  %5469 = vmatprep.mubr.f32.mxu0 0.0
  %5470 = vmatmul.mubr.f32.gmra.mrb[0].mxu0 %v1945
  %v5471 = vpop.f32.mrb[0].mxu0
  %v5472 = vadd.f32 0.0, %v5471
  %v5473 = vpop.f32.mrb[0].mxu0
  %5474 = vmatprep.mubr.f32.mxu0 0.0
  %5475 = vmatmul.mubr.f32.gmra.mrb[0].mxu0 %v1947
  %v5476 = vpop.f32.mrb[0].mxu0
  %v5477 = vadd.f32 0.0, %v5476
  %v5478 = vpop.f32.mrb[0].mxu0
  %5479 = vmatprep.mubr.f32.mxu0 0.0
  %5480 = vmatmul.mubr.f32.gmra.mrb[0].mxu0 %v1949
  %v5481 = vpop.f32.mrb[0].mxu0
  %v5482 = vadd.f32 0.0, %v5481
  %v5483 = vpop.f32.mrb[0].mxu0
  %5484 = vmatprep.mubr.f32.mxu0 0.0
  %5485 = vmatmul.mubr.f32.gmra.mrb[0].mxu0 %v1951
  %v5486 = vpop.f32.mrb[0].mxu0
  %v5487 = vadd.f32 0.0, %v5486
  %v5488 = vpop.f32.mrb[0].mxu0
  %5489 = vmatprep.mubr.f32.mxu0 0.0
  %5490 = vmatmul.mubr.f32.gmra.mrb[0].mxu0 %v1953
  %v5491 = vpop.f32.mrb[0].mxu0
  %v5492 = vadd.f32 0.0, %v5491
  %v5493 = vpop.f32.mrb[0].mxu0
  %5494 = vmatprep.mubr.f32.mxu0 0.0
  %5495 = vmatmul.mubr.f32.gmra.mrb[0].mxu0 %v5063
  %v5496 = vpop.f32.mrb[0].mxu0
  %v5497 = vadd.f32 0.0, %v5496
  %v5498 = vpop.f32.mrb[0].mxu0
  %5499 = vmatprep.mubr.f32.mxu0 0.0
  %5500 = vmatmul.mubr.f32.gmra.mrb[0].mxu0 %v5065
  %v5501 = vpop.f32.mrb[0].mxu0
  %v5502 = vadd.f32 0.0, %v5501
  %v5503 = vpop.f32.mrb[0].mxu0
  %5504 = vdwg.mxu0
  %v5505 = vadd.f32 %v4980, %v5137
  %v5506 = vadd.f32 %v4981, %v5142
  %v5507 = vadd.f32 %v4982, %v5147
  %v5508 = vadd.f32 %v4983, %v5152
  %v5509 = vadd.f32 %v4984, %v5157
  %v5510 = vadd.f32 %v4985, %v5162
  %v5511 = vadd.f32 %v4986, %v5167
  %v5512 = vadd.f32 %v4987, %v5172
  %v5513 = vadd.f32 %v4988, %v5177
  %v5514 = vadd.f32 %v4989, %v5182
  %v5515 = vadd.f32 %v4990, %v5187
  %v5516 = vadd.f32 %v4991, %v5192
  %v5517 = vadd.f32 %v4992, %v5197
  %v5518 = vadd.f32 %v4993, %v5202
  %v5519 = vadd.f32 %v4994, %v5207
  %v5520 = vadd.f32 %v4995, %v5212
  %v5521 = vadd.f32 %v4996, %v5217
  %v5522 = vadd.f32 %v4997, %v5222
  %v5523 = vadd.f32 %v4998, %v5227
  %v5524 = vadd.f32 %v4999, %v5232
  %v5525 = vadd.f32 %v5000, %v5237
  %v5526 = vadd.f32 %v5001, %v5242
  %v5527 = vadd.f32 %v5002, %v5247
  %v5528 = vadd.f32 %v5003, %v5252
  %v5529 = vadd.f32 %v5004, %v5257
  %v5530 = vadd.f32 %v5005, %v5262
  %v5531 = vadd.f32 %v5006, %v5267
  %v5532 = vadd.f32 %v5007, %v5272
  %v5533 = vadd.f32 %v5008, %v5277
  %v5534 = vadd.f32 %v5009, %v5282
  %v5535 = vadd.f32 %v5010, %v5287
  %v5536 = vadd.f32 %v5011, %v5292
  %v5537 = vadd.f32 %v5012, %v5297
  %v5538 = vadd.f32 %v5013, %v5302
  %v5539 = vadd.f32 %v5014, %v5307
  %v5540 = vadd.f32 %v5015, %v5312
  %v5541 = vadd.f32 %v5016, %v5317
  %v5542 = vadd.f32 %v5017, %v5322
  %v5543 = vadd.f32 %v5018, %v5327
  %v5544 = vadd.f32 %v5019, %v5332
  %v5545 = vadd.f32 %v5020, %v5337
  %v5546 = vadd.f32 %v5021, %v5342
  %v5547 = vadd.f32 %v5022, %v5347
  %v5548 = vadd.f32 %v5023, %v5352
  %v5549 = vadd.f32 %v5024, %v5357
  %v5550 = vadd.f32 %v5025, %v5362
  %v5551 = vadd.f32 %v5026, %v5367
  %v5552 = vadd.f32 %v5027, %v5372
  %v5553 = vadd.f32 %v5028, %v5377
  %v5554 = vadd.f32 %v5029, %v5382
  %v5555 = vadd.f32 %v5030, %v5387
  %v5556 = vadd.f32 %v5031, %v5392
  %v5557 = vadd.f32 %v5032, %v5397
  %v5558 = vadd.f32 %v5033, %v5402
  %v5559 = vadd.f32 %v5034, %v5407
  %v5560 = vadd.f32 %v5035, %v5412
  %v5561 = vadd.f32 %v5036, %v5417
  %v5562 = vadd.f32 %v5037, %v5422
  %v5563 = vadd.f32 %v5038, %v5427
  %v5564 = vadd.f32 %v5039, %v5432
  %v5565 = vadd.f32 %v5040, %v5437
  %v5566 = vadd.f32 %v5041, %v5442
  %v5567 = vadd.f32 %v5042, %v5447
  %v5568 = vadd.f32 %v5043, %v5452
  %v5569 = vadd.f32 %v5044, %v5457
  %v5570 = vadd.f32 %v5045, %v5462
  %v5571 = vadd.f32 %v5046, %v5467
  %v5572 = vadd.f32 %v5047, %v5472
  %v5573 = vadd.f32 %v5048, %v5477
  %v5574 = vadd.f32 %v5049, %v5482
  %v5575 = vadd.f32 %v5050, %v5487
  %v5576 = vadd.f32 %v5051, %v5492
  %v5577 = vadd.f32 %v5052, %v5497
  %v5578 = vadd.f32 %v5053, %v5502
  %s5579 = scalar_lea.vmem %s1, 14
  %v5580 = vld [vmem:[%s5579] sm:$0x3]
  %v5581 = vunpack.c.l.bf16 %v5580
  %v5585 = vrot.slane %v253, 1
  %v5586 = vrot.slane %v254, 1
  %v5587 = vsel %vm1657, %v5585, %v5586
  %v5588 = vrot.slane %v255, 1
  %v5589 = vsel %vm1657, %v5586, %v5588
  %v5590 = vrot.slane %v256, 1
  %v5591 = vsel %vm1657, %v5588, %v5590
  %v5592 = vrot.slane %v257, 1
  %v5593 = vsel %vm1657, %v5590, %v5592
  %v5594 = vrot.slane %v258, 1
  %v5595 = vsel %vm1657, %v5592, %v5594
  %v5596 = vrot.slane %v259, 1
  %v5597 = vsel %vm1657, %v5594, %v5596
  %v5598 = vrot.slane %v260, 1
  %v5599 = vsel %vm1657, %v5596, %v5598
  %v5600 = vrot.slane %v261, 1
  %v5601 = vsel %vm1657, %v5598, %v5600
  %v5602 = vrot.slane %v262, 1
  %v5603 = vsel %vm1657, %v5600, %v5602
  %v5604 = vrot.slane %v263, 1
  %v5605 = vsel %vm1657, %v5602, %v5604
  %v5606 = vrot.slane %v264, 1
  %v5607 = vsel %vm1657, %v5604, %v5606
  %v5608 = vrot.slane %v265, 1
  %v5609 = vsel %vm1657, %v5606, %v5608
  %v5610 = vrot.slane %v266, 1
  %v5611 = vsel %vm1657, %v5608, %v5610
  %v5612 = vrot.slane %v267, 1
  %v5613 = vsel %vm1657, %v5610, %v5612
  %v5614 = vrot.slane %v268, 1
  %v5615 = vsel %vm1657, %v5612, %v5614
  %v5616 = vrot.slane %v269, 1
  %v5617 = vsel %vm1657, %v5614, %v5616
  %v5618 = vrot.slane %v270, 1
  %v5619 = vsel %vm1657, %v5616, %v5618
  %v5620 = vrot.slane %v271, 1
  %v5621 = vsel %vm1657, %v5618, %v5620
  %v5622 = vrot.slane %v272, 1
  %v5623 = vsel %vm1657, %v5620, %v5622
  %v5624 = vrot.slane %v273, 1
  %v5625 = vsel %vm1657, %v5622, %v5624
  %v5626 = vrot.slane %v274, 1
  %v5627 = vsel %vm1657, %v5624, %v5626
  %v5628 = vrot.slane %v275, 1
  %v5629 = vsel %vm1657, %v5626, %v5628
  %v5630 = vrot.slane %v276, 1
  %v5631 = vsel %vm1657, %v5628, %v5630
  %v5632 = vrot.slane %v277, 1
  %v5633 = vsel %vm1657, %v5630, %v5632
  %v5634 = vrot.slane %v278, 1
  %v5635 = vsel %vm1657, %v5632, %v5634
  %v5636 = vrot.slane %v279, 1
  %v5637 = vsel %vm1657, %v5634, %v5636
  %v5638 = vrot.slane %v280, 1
  %v5639 = vsel %vm1657, %v5636, %v5638
  %v5640 = vrot.slane %v281, 1
  %v5641 = vsel %vm1657, %v5638, %v5640
  %v5642 = vrot.slane %v282, 1
  %v5643 = vsel %vm1657, %v5640, %v5642
  %v5644 = vrot.slane %v283, 1
  %v5645 = vsel %vm1657, %v5642, %v5644
  %v5646 = vrot.slane %v284, 1
  %v5647 = vsel %vm1657, %v5644, %v5646
  %v5648 = vrot.slane %v285, 1
  %v5649 = vsel %vm1657, %v5646, %v5648
  %v5650 = vrot.slane %v286, 1
  %v5651 = vsel %vm1657, %v5648, %v5650
  %v5652 = vrot.slane %v287, 1
  %v5653 = vsel %vm1657, %v5650, %v5652
  %v5654 = vrot.slane %v288, 1
  %v5655 = vsel %vm1657, %v5652, %v5654
  %v5656 = vrot.slane %v289, 1
  %v5657 = vsel %vm1657, %v5654, %v5656
  %v5658 = vrot.slane %v290, 1
  %v5659 = vsel %vm1657, %v5656, %v5658
  %v5660 = vrot.slane %v291, 1
  %v5661 = vsel %vm1657, %v5658, %v5660
  %v5662 = vrot.slane %v292, 1
  %v5663 = vsel %vm1657, %v5660, %v5662
  %v5664 = vrot.slane %v293, 1
  %v5665 = vsel %vm1657, %v5662, %v5664
  %v5666 = vrot.slane %v294, 1
  %v5667 = vsel %vm1657, %v5664, %v5666
  %v5668 = vrot.slane %v295, 1
  %v5669 = vsel %vm1657, %v5666, %v5668
  %v5670 = vrot.slane %v296, 1
  %v5671 = vsel %vm1657, %v5668, %v5670
  %v5672 = vrot.slane %v297, 1
  %v5673 = vsel %vm1657, %v5670, %v5672
  %v5674 = vrot.slane %v298, 1
  %v5675 = vsel %vm1657, %v5672, %v5674
  %v5676 = vrot.slane %v299, 1
  %v5677 = vsel %vm1657, %v5674, %v5676
  %v5678 = vrot.slane %v300, 1
  %v5679 = vsel %vm1657, %v5676, %v5678
  %v5680 = vrot.slane %v301, 1
  %v5681 = vsel %vm1657, %v5678, %v5680
  %v5682 = vrot.slane %v302, 1
  %v5683 = vsel %vm1657, %v5680, %v5682
  %v5684 = vrot.slane %v303, 1
  %v5685 = vsel %vm1657, %v5682, %v5684
  %v5686 = vrot.slane %v304, 1
  %v5687 = vsel %vm1657, %v5684, %v5686
  %v5688 = vrot.slane %v305, 1
  %v5689 = vsel %vm1657, %v5686, %v5688
  %v5690 = vrot.slane %v306, 1
  %v5691 = vsel %vm1657, %v5688, %v5690
  %v5692 = vrot.slane %v307, 1
  %v5693 = vsel %vm1657, %v5690, %v5692
  %v5694 = vrot.slane %v308, 1
  %v5695 = vsel %vm1657, %v5692, %v5694
  %v5696 = vrot.slane %v309, 1
  %v5697 = vsel %vm1657, %v5694, %v5696
  %v5698 = vrot.slane %v310, 1
  %v5699 = vsel %vm1657, %v5696, %v5698
  %v5700 = vrot.slane %v311, 1
  %v5701 = vsel %vm1657, %v5698, %v5700
  %v5702 = vrot.slane %v312, 1
  %v5703 = vsel %vm1657, %v5700, %v5702
  %v5704 = vrot.slane %v313, 1
  %v5705 = vsel %vm1657, %v5702, %v5704
  %v5706 = vrot.slane %v314, 1
  %v5707 = vsel %vm1657, %v5704, %v5706
  %v5708 = vrot.slane %v315, 1
  %v5709 = vsel %vm1657, %v5706, %v5708
  %v5710 = vrot.slane %v316, 1
  %v5711 = vsel %vm1657, %v5708, %v5710
  %v5712 = vrot.slane %v317, 1
  %v5713 = vsel %vm1657, %v5710, %v5712
  %v5714 = vrot.slane %v318, 1
  %v5715 = vsel %vm1657, %v5712, %v5714
  %v5716 = vrot.slane %v319, 1
  %v5717 = vsel %vm1657, %v5714, %v5716
  %v5718 = vrot.slane %v320, 1
  %v5719 = vsel %vm1657, %v5716, %v5718
  %v5720 = vrot.slane %v321, 1
  %v5721 = vsel %vm1657, %v5718, %v5720
  %v5722 = vrot.slane %v322, 1
  %v5723 = vsel %vm1657, %v5720, %v5722
  %v5724 = vrot.slane %v323, 1
  %v5725 = vsel %vm1657, %v5722, %v5724
  %v5726 = vrot.slane %v324, 1
  %v5727 = vsel %vm1657, %v5724, %v5726
  %v5728 = vrot.slane %v325, 1
  %v5729 = vsel %vm1657, %v5726, %v5728
  %v5730 = vrot.slane %v326, 1
  %v5731 = vsel %vm1657, %v5728, %v5730
  %v5732 = vrot.slane %v327, 1
  %v5733 = vsel %vm1657, %v5730, %v5732
  %v5734 = vsel %vm331, %v5587, 0
  %v5736 = vsel %vm331, %v5589, 0
  %v5738 = vsel %vm331, %v5591, 0
  %v5740 = vsel %vm331, %v5593, 0
  %v5742 = vsel %vm331, %v5595, 0
  %v5744 = vsel %vm331, %v5597, 0
  %v5746 = vsel %vm331, %v5599, 0
  %v5748 = vsel %vm331, %v5601, 0
  %v5750 = vsel %vm331, %v5603, 0
  %v5752 = vsel %vm331, %v5605, 0
  %v5754 = vsel %vm331, %v5607, 0
  %v5756 = vsel %vm331, %v5609, 0
  %v5758 = vsel %vm331, %v5611, 0
  %v5760 = vsel %vm331, %v5613, 0
  %v5762 = vsel %vm331, %v5615, 0
  %v5764 = vsel %vm331, %v5617, 0
  %v5766 = vsel %vm331, %v5619, 0
  %v5768 = vsel %vm331, %v5621, 0
  %v5770 = vsel %vm331, %v5623, 0
  %v5772 = vsel %vm331, %v5625, 0
  %v5774 = vsel %vm331, %v5627, 0
  %v5776 = vsel %vm331, %v5629, 0
  %v5778 = vsel %vm331, %v5631, 0
  %v5780 = vsel %vm331, %v5633, 0
  %v5782 = vsel %vm331, %v5635, 0
  %v5784 = vsel %vm331, %v5637, 0
  %v5786 = vsel %vm331, %v5639, 0
  %v5788 = vsel %vm331, %v5641, 0
  %v5790 = vsel %vm331, %v5643, 0
  %v5792 = vsel %vm331, %v5645, 0
  %v5794 = vsel %vm331, %v5647, 0
  %v5796 = vsel %vm331, %v5649, 0
  %v5798 = vsel %vm331, %v5651, 0
  %v5800 = vsel %vm331, %v5653, 0
  %v5802 = vsel %vm331, %v5655, 0
  %v5804 = vsel %vm331, %v5657, 0
  %v5806 = vsel %vm331, %v5659, 0
  %v5808 = vsel %vm331, %v5661, 0
  %v5810 = vsel %vm331, %v5663, 0
  %v5812 = vsel %vm331, %v5665, 0
  %v5814 = vsel %vm331, %v5667, 0
  %v5816 = vsel %vm331, %v5669, 0
  %v5818 = vsel %vm331, %v5671, 0
  %v5820 = vsel %vm331, %v5673, 0
  %v5822 = vsel %vm331, %v5675, 0
  %v5824 = vsel %vm331, %v5677, 0
  %v5826 = vsel %vm331, %v5679, 0
  %v5828 = vsel %vm331, %v5681, 0
  %v5830 = vsel %vm331, %v5683, 0
  %v5832 = vsel %vm331, %v5685, 0
  %v5834 = vsel %vm331, %v5687, 0
  %v5836 = vsel %vm331, %v5689, 0
  %v5838 = vsel %vm331, %v5691, 0
  %v5840 = vsel %vm331, %v5693, 0
  %v5842 = vsel %vm331, %v5695, 0
  %v5844 = vsel %vm331, %v5697, 0
  %v5846 = vsel %vm331, %v5699, 0
  %v5848 = vsel %vm331, %v5701, 0
  %v5850 = vsel %vm331, %v5703, 0
  %v5852 = vsel %vm331, %v5705, 0
  %v5854 = vsel %vm331, %v5707, 0
  %v5856 = vsel %vm331, %v5709, 0
  %v5858 = vsel %vm331, %v5711, 0
  %v5860 = vsel %vm331, %v5713, 0
  %v5862 = vsel %vm331, %v5715, 0
  %v5864 = vsel %vm331, %v5717, 0
  %v5866 = vsel %vm331, %v5719, 0
  %v5868 = vsel %vm331, %v5721, 0
  %v5870 = vsel %vm331, %v5723, 0
  %v5872 = vsel %vm331, %v5725, 0
  %v5874 = vsel %vm331, %v5727, 0
  %v5876 = vsel %vm331, %v5729, 0
  %v5878 = vsel %vm331, %v5731, 0
  %v5880 = vsel %vm331, %v5733, 0
  %v5883 = vsel %vm554, %v5581, 0
  %5885 = vmatprep.subr.mxu0 0.0
  %5886 = vmatpush1.msra.mxu0 %v5883
  %5887 = vmatprep.subr.mxu0 0.0
  %5888 = vmatpush1.msra.mxu0 0.0
  %5889 = vmatprep.subr.mxu0 0.0
  %5890 = vmatpush1.msra.mxu0 0.0
  %5891 = vmatprep.subr.mxu0 0.0
  %5892 = vmatpush1.msra.mxu0 0.0
  %5893 = vmatprep.subr.mxu0 0.0
  %5894 = vmatpush1.msra.mxu0 0.0
  %5895 = vmatprep.subr.mxu0 0.0
  %5896 = vmatpush1.msra.mxu0 0.0
  %5897 = vmatprep.subr.mxu0 0.0
  %5898 = vmatpush1.msra.mxu0 0.0
  %5899 = vmatprep.subr.mxu0 0.0
  %5900 = vmatpush1.msra.mxu0 0.0
  %5901 = vmatprep.subr.mxu0 0.0
  %5902 = vmatpush1.msra.mxu0 0.0
  %5903 = vmatprep.subr.mxu0 0.0
  %5904 = vmatpush1.msra.mxu0 0.0
  %5905 = vmatprep.subr.mxu0 0.0
  %5906 = vmatpush1.msra.mxu0 0.0
  %5907 = vmatprep.subr.mxu0 0.0
  %5908 = vmatpush1.msra.mxu0 0.0
  %5909 = vmatprep.subr.mxu0 0.0
  %5910 = vmatpush1.msra.mxu0 0.0
  %5911 = vmatprep.subr.mxu0 0.0
  %5912 = vmatpush1.msra.mxu0 0.0
  %5913 = vmatprep.subr.mxu0 0.0
  %5914 = vmatpush1.msra.mxu0 0.0
  %5915 = vmatprep.subr.mxu0 0.0
  %5916 = vmatpush1.msra.mxu0 0.0
  %5917 = vmatprep.subr.mxu0 0.0
  %5918 = vmatpush1.msra.mxu0 0.0
  %5919 = vmatprep.subr.mxu0 0.0
  %5920 = vmatpush1.msra.mxu0 0.0
  %5921 = vmatprep.subr.mxu0 0.0
  %5922 = vmatpush1.msra.mxu0 0.0
  %5923 = vmatprep.subr.mxu0 0.0
  %5924 = vmatpush1.msra.mxu0 0.0
  %5925 = vmatprep.subr.mxu0 0.0
  %5926 = vmatpush1.msra.mxu0 0.0
  %5927 = vmatprep.subr.mxu0 0.0
  %5928 = vmatpush1.msra.mxu0 0.0
  %5929 = vmatprep.subr.mxu0 0.0
  %5930 = vmatpush1.msra.mxu0 0.0
  %5931 = vmatprep.subr.mxu0 0.0
  %5932 = vmatpush1.msra.mxu0 0.0
  %5933 = vmatprep.subr.mxu0 0.0
  %5934 = vmatpush1.msra.mxu0 0.0
  %5935 = vmatprep.subr.mxu0 0.0
  %5936 = vmatpush1.msra.mxu0 0.0
  %5937 = vmatprep.subr.mxu0 0.0
  %5938 = vmatpush1.msra.mxu0 0.0
  %5939 = vmatprep.subr.mxu0 0.0
  %5940 = vmatpush1.msra.mxu0 0.0
  %5941 = vmatprep.subr.mxu0 0.0
  %5942 = vmatpush1.msra.mxu0 0.0
  %5943 = vmatprep.subr.mxu0 0.0
  %5944 = vmatpush1.msra.mxu0 0.0
  %5945 = vmatprep.subr.mxu0 0.0
  %5946 = vmatpush1.msra.mxu0 0.0
  %5947 = vmatprep.subr.mxu0 0.0
  %5948 = vmatpush1.msra.mxu0 0.0
  %5949 = vmatprep.mubr.f32.mxu0 0.0
  %5950 = vmatmul.mubr.f32.gmra.mrb[0].mxu0 %v5734
  %v5951 = vpop.f32.mrb[0].mxu0
  %v5952 = vadd.f32 0.0, %v5951
  %v5953 = vpop.f32.mrb[0].mxu0
  %5954 = vmatprep.mubr.f32.mxu0 0.0
  %5955 = vmatmul.mubr.f32.gmra.mrb[0].mxu0 %v5736
  %v5956 = vpop.f32.mrb[0].mxu0
  %v5957 = vadd.f32 0.0, %v5956
  %v5958 = vpop.f32.mrb[0].mxu0
  %5959 = vmatprep.mubr.f32.mxu0 0.0
  %5960 = vmatmul.mubr.f32.gmra.mrb[0].mxu0 %v5738
  %v5961 = vpop.f32.mrb[0].mxu0
  %v5962 = vadd.f32 0.0, %v5961
  %v5963 = vpop.f32.mrb[0].mxu0
  %5964 = vmatprep.mubr.f32.mxu0 0.0
  %5965 = vmatmul.mubr.f32.gmra.mrb[0].mxu0 %v5740
  %v5966 = vpop.f32.mrb[0].mxu0
  %v5967 = vadd.f32 0.0, %v5966
  %v5968 = vpop.f32.mrb[0].mxu0
  %5969 = vmatprep.mubr.f32.mxu0 0.0
  %5970 = vmatmul.mubr.f32.gmra.mrb[0].mxu0 %v5742
  %v5971 = vpop.f32.mrb[0].mxu0
  %v5972 = vadd.f32 0.0, %v5971
  %v5973 = vpop.f32.mrb[0].mxu0
  %5974 = vmatprep.mubr.f32.mxu0 0.0
  %5975 = vmatmul.mubr.f32.gmra.mrb[0].mxu0 %v5744
  %v5976 = vpop.f32.mrb[0].mxu0
  %v5977 = vadd.f32 0.0, %v5976
  %v5978 = vpop.f32.mrb[0].mxu0
  %5979 = vmatprep.mubr.f32.mxu0 0.0
  %5980 = vmatmul.mubr.f32.gmra.mrb[0].mxu0 %v5746
  %v5981 = vpop.f32.mrb[0].mxu0
  %v5982 = vadd.f32 0.0, %v5981
  %v5983 = vpop.f32.mrb[0].mxu0
  %5984 = vmatprep.mubr.f32.mxu0 0.0
  %5985 = vmatmul.mubr.f32.gmra.mrb[0].mxu0 %v5748
  %v5986 = vpop.f32.mrb[0].mxu0
  %v5987 = vadd.f32 0.0, %v5986
  %v5988 = vpop.f32.mrb[0].mxu0
  %5989 = vmatprep.mubr.f32.mxu0 0.0
  %5990 = vmatmul.mubr.f32.gmra.mrb[0].mxu0 %v5750
  %v5991 = vpop.f32.mrb[0].mxu0
  %v5992 = vadd.f32 0.0, %v5991
  %v5993 = vpop.f32.mrb[0].mxu0
  %5994 = vmatprep.mubr.f32.mxu0 0.0
  %5995 = vmatmul.mubr.f32.gmra.mrb[0].mxu0 %v5752
  %v5996 = vpop.f32.mrb[0].mxu0
  %v5997 = vadd.f32 0.0, %v5996
  %v5998 = vpop.f32.mrb[0].mxu0
  %5999 = vmatprep.mubr.f32.mxu0 0.0
  %6000 = vmatmul.mubr.f32.gmra.mrb[0].mxu0 %v5754
  %v6001 = vpop.f32.mrb[0].mxu0
  %v6002 = vadd.f32 0.0, %v6001
  %v6003 = vpop.f32.mrb[0].mxu0
  %6004 = vmatprep.mubr.f32.mxu0 0.0
  %6005 = vmatmul.mubr.f32.gmra.mrb[0].mxu0 %v5756
  %v6006 = vpop.f32.mrb[0].mxu0
  %v6007 = vadd.f32 0.0, %v6006
  %v6008 = vpop.f32.mrb[0].mxu0
  %6009 = vmatprep.mubr.f32.mxu0 0.0
  %6010 = vmatmul.mubr.f32.gmra.mrb[0].mxu0 %v5758
  %v6011 = vpop.f32.mrb[0].mxu0
  %v6012 = vadd.f32 0.0, %v6011
  %v6013 = vpop.f32.mrb[0].mxu0
  %6014 = vmatprep.mubr.f32.mxu0 0.0
  %6015 = vmatmul.mubr.f32.gmra.mrb[0].mxu0 %v5760
  %v6016 = vpop.f32.mrb[0].mxu0
  %v6017 = vadd.f32 0.0, %v6016
  %v6018 = vpop.f32.mrb[0].mxu0
  %6019 = vmatprep.mubr.f32.mxu0 0.0
  %6020 = vmatmul.mubr.f32.gmra.mrb[0].mxu0 %v5762
  %v6021 = vpop.f32.mrb[0].mxu0
  %v6022 = vadd.f32 0.0, %v6021
  %v6023 = vpop.f32.mrb[0].mxu0
  %6024 = vmatprep.mubr.f32.mxu0 0.0
  %6025 = vmatmul.mubr.f32.gmra.mrb[0].mxu0 %v5764
  %v6026 = vpop.f32.mrb[0].mxu0
  %v6027 = vadd.f32 0.0, %v6026
  %v6028 = vpop.f32.mrb[0].mxu0
  %6029 = vmatprep.mubr.f32.mxu0 0.0
  %6030 = vmatmul.mubr.f32.gmra.mrb[0].mxu0 %v5766
  %v6031 = vpop.f32.mrb[0].mxu0
  %v6032 = vadd.f32 0.0, %v6031
  %v6033 = vpop.f32.mrb[0].mxu0
  %6034 = vmatprep.mubr.f32.mxu0 0.0
  %6035 = vmatmul.mubr.f32.gmra.mrb[0].mxu0 %v5768
  %v6036 = vpop.f32.mrb[0].mxu0
  %v6037 = vadd.f32 0.0, %v6036
  %v6038 = vpop.f32.mrb[0].mxu0
  %6039 = vmatprep.mubr.f32.mxu0 0.0
  %6040 = vmatmul.mubr.f32.gmra.mrb[0].mxu0 %v5770
  %v6041 = vpop.f32.mrb[0].mxu0
  %v6042 = vadd.f32 0.0, %v6041
  %v6043 = vpop.f32.mrb[0].mxu0
  %6044 = vmatprep.mubr.f32.mxu0 0.0
  %6045 = vmatmul.mubr.f32.gmra.mrb[0].mxu0 %v5772
  %v6046 = vpop.f32.mrb[0].mxu0
  %v6047 = vadd.f32 0.0, %v6046
  %v6048 = vpop.f32.mrb[0].mxu0
  %6049 = vmatprep.mubr.f32.mxu0 0.0
  %6050 = vmatmul.mubr.f32.gmra.mrb[0].mxu0 %v5774
  %v6051 = vpop.f32.mrb[0].mxu0
  %v6052 = vadd.f32 0.0, %v6051
  %v6053 = vpop.f32.mrb[0].mxu0
  %6054 = vmatprep.mubr.f32.mxu0 0.0
  %6055 = vmatmul.mubr.f32.gmra.mrb[0].mxu0 %v5776
  %v6056 = vpop.f32.mrb[0].mxu0
  %v6057 = vadd.f32 0.0, %v6056
  %v6058 = vpop.f32.mrb[0].mxu0
  %6059 = vmatprep.mubr.f32.mxu0 0.0
  %6060 = vmatmul.mubr.f32.gmra.mrb[0].mxu0 %v5778
  %v6061 = vpop.f32.mrb[0].mxu0
  %v6062 = vadd.f32 0.0, %v6061
  %v6063 = vpop.f32.mrb[0].mxu0
  %6064 = vmatprep.mubr.f32.mxu0 0.0
  %6065 = vmatmul.mubr.f32.gmra.mrb[0].mxu0 %v5780
  %v6066 = vpop.f32.mrb[0].mxu0
  %v6067 = vadd.f32 0.0, %v6066
  %v6068 = vpop.f32.mrb[0].mxu0
  %6069 = vmatprep.mubr.f32.mxu0 0.0
  %6070 = vmatmul.mubr.f32.gmra.mrb[0].mxu0 %v5782
  %v6071 = vpop.f32.mrb[0].mxu0
  %v6072 = vadd.f32 0.0, %v6071
  %v6073 = vpop.f32.mrb[0].mxu0
  %6074 = vmatprep.mubr.f32.mxu0 0.0
  %6075 = vmatmul.mubr.f32.gmra.mrb[0].mxu0 %v5784
  %v6076 = vpop.f32.mrb[0].mxu0
  %v6077 = vadd.f32 0.0, %v6076
  %v6078 = vpop.f32.mrb[0].mxu0
  %6079 = vmatprep.mubr.f32.mxu0 0.0
  %6080 = vmatmul.mubr.f32.gmra.mrb[0].mxu0 %v5786
  %v6081 = vpop.f32.mrb[0].mxu0
  %v6082 = vadd.f32 0.0, %v6081
  %v6083 = vpop.f32.mrb[0].mxu0
  %6084 = vmatprep.mubr.f32.mxu0 0.0
  %6085 = vmatmul.mubr.f32.gmra.mrb[0].mxu0 %v5788
  %v6086 = vpop.f32.mrb[0].mxu0
  %v6087 = vadd.f32 0.0, %v6086
  %v6088 = vpop.f32.mrb[0].mxu0
  %6089 = vmatprep.mubr.f32.mxu0 0.0
  %6090 = vmatmul.mubr.f32.gmra.mrb[0].mxu0 %v5790
  %v6091 = vpop.f32.mrb[0].mxu0
  %v6092 = vadd.f32 0.0, %v6091
  %v6093 = vpop.f32.mrb[0].mxu0
  %6094 = vmatprep.mubr.f32.mxu0 0.0
  %6095 = vmatmul.mubr.f32.gmra.mrb[0].mxu0 %v5792
  %v6096 = vpop.f32.mrb[0].mxu0
  %v6097 = vadd.f32 0.0, %v6096
  %v6098 = vpop.f32.mrb[0].mxu0
  %6099 = vmatprep.mubr.f32.mxu0 0.0
  %6100 = vmatmul.mubr.f32.gmra.mrb[0].mxu0 %v5794
  %v6101 = vpop.f32.mrb[0].mxu0
  %v6102 = vadd.f32 0.0, %v6101
  %v6103 = vpop.f32.mrb[0].mxu0
  %6104 = vmatprep.mubr.f32.mxu0 0.0
  %6105 = vmatmul.mubr.f32.gmra.mrb[0].mxu0 %v5796
  %v6106 = vpop.f32.mrb[0].mxu0
  %v6107 = vadd.f32 0.0, %v6106
  %v6108 = vpop.f32.mrb[0].mxu0
  %6109 = vmatprep.mubr.f32.mxu0 0.0
  %6110 = vmatmul.mubr.f32.gmra.mrb[0].mxu0 %v5798
  %v6111 = vpop.f32.mrb[0].mxu0
  %v6112 = vadd.f32 0.0, %v6111
  %v6113 = vpop.f32.mrb[0].mxu0
  %6114 = vmatprep.mubr.f32.mxu0 0.0
  %6115 = vmatmul.mubr.f32.gmra.mrb[0].mxu0 %v5800
  %v6116 = vpop.f32.mrb[0].mxu0
  %v6117 = vadd.f32 0.0, %v6116
  %v6118 = vpop.f32.mrb[0].mxu0
  %6119 = vmatprep.mubr.f32.mxu0 0.0
  %6120 = vmatmul.mubr.f32.gmra.mrb[0].mxu0 %v5802
  %v6121 = vpop.f32.mrb[0].mxu0
  %v6122 = vadd.f32 0.0, %v6121
  %v6123 = vpop.f32.mrb[0].mxu0
  %6124 = vmatprep.mubr.f32.mxu0 0.0
  %6125 = vmatmul.mubr.f32.gmra.mrb[0].mxu0 %v5804
  %v6126 = vpop.f32.mrb[0].mxu0
  %v6127 = vadd.f32 0.0, %v6126
  %v6128 = vpop.f32.mrb[0].mxu0
  %6129 = vmatprep.mubr.f32.mxu0 0.0
  %6130 = vmatmul.mubr.f32.gmra.mrb[0].mxu0 %v5806
  %v6131 = vpop.f32.mrb[0].mxu0
  %v6132 = vadd.f32 0.0, %v6131
  %v6133 = vpop.f32.mrb[0].mxu0
  %6134 = vmatprep.mubr.f32.mxu0 0.0
  %6135 = vmatmul.mubr.f32.gmra.mrb[0].mxu0 %v5808
  %v6136 = vpop.f32.mrb[0].mxu0
  %v6137 = vadd.f32 0.0, %v6136
  %v6138 = vpop.f32.mrb[0].mxu0
  %6139 = vmatprep.mubr.f32.mxu0 0.0
  %6140 = vmatmul.mubr.f32.gmra.mrb[0].mxu0 %v5810
  %v6141 = vpop.f32.mrb[0].mxu0
  %v6142 = vadd.f32 0.0, %v6141
  %v6143 = vpop.f32.mrb[0].mxu0
  %6144 = vmatprep.mubr.f32.mxu0 0.0
  %6145 = vmatmul.mubr.f32.gmra.mrb[0].mxu0 %v5812
  %v6146 = vpop.f32.mrb[0].mxu0
  %v6147 = vadd.f32 0.0, %v6146
  %v6148 = vpop.f32.mrb[0].mxu0
  %6149 = vmatprep.mubr.f32.mxu0 0.0
  %6150 = vmatmul.mubr.f32.gmra.mrb[0].mxu0 %v5814
  %v6151 = vpop.f32.mrb[0].mxu0
  %v6152 = vadd.f32 0.0, %v6151
  %v6153 = vpop.f32.mrb[0].mxu0
  %6154 = vmatprep.mubr.f32.mxu0 0.0
  %6155 = vmatmul.mubr.f32.gmra.mrb[0].mxu0 %v5816
  %v6156 = vpop.f32.mrb[0].mxu0
  %v6157 = vadd.f32 0.0, %v6156
  %v6158 = vpop.f32.mrb[0].mxu0
  %6159 = vmatprep.mubr.f32.mxu0 0.0
  %6160 = vmatmul.mubr.f32.gmra.mrb[0].mxu0 %v5818
  %v6161 = vpop.f32.mrb[0].mxu0
  %v6162 = vadd.f32 0.0, %v6161
  %v6163 = vpop.f32.mrb[0].mxu0
  %6164 = vmatprep.mubr.f32.mxu0 0.0
  %6165 = vmatmul.mubr.f32.gmra.mrb[0].mxu0 %v5820
  %v6166 = vpop.f32.mrb[0].mxu0
  %v6167 = vadd.f32 0.0, %v6166
  %v6168 = vpop.f32.mrb[0].mxu0
  %6169 = vmatprep.mubr.f32.mxu0 0.0
  %6170 = vmatmul.mubr.f32.gmra.mrb[0].mxu0 %v5822
  %v6171 = vpop.f32.mrb[0].mxu0
  %v6172 = vadd.f32 0.0, %v6171
  %v6173 = vpop.f32.mrb[0].mxu0
  %6174 = vmatprep.mubr.f32.mxu0 0.0
  %6175 = vmatmul.mubr.f32.gmra.mrb[0].mxu0 %v5824
  %v6176 = vpop.f32.mrb[0].mxu0
  %v6177 = vadd.f32 0.0, %v6176
  %v6178 = vpop.f32.mrb[0].mxu0
  %6179 = vmatprep.mubr.f32.mxu0 0.0
  %6180 = vmatmul.mubr.f32.gmra.mrb[0].mxu0 %v5826
  %v6181 = vpop.f32.mrb[0].mxu0
  %v6182 = vadd.f32 0.0, %v6181
  %v6183 = vpop.f32.mrb[0].mxu0
  %6184 = vmatprep.mubr.f32.mxu0 0.0
  %6185 = vmatmul.mubr.f32.gmra.mrb[0].mxu0 %v5828
  %v6186 = vpop.f32.mrb[0].mxu0
  %v6187 = vadd.f32 0.0, %v6186
  %v6188 = vpop.f32.mrb[0].mxu0
  %6189 = vmatprep.mubr.f32.mxu0 0.0
  %6190 = vmatmul.mubr.f32.gmra.mrb[0].mxu0 %v5830
  %v6191 = vpop.f32.mrb[0].mxu0
  %v6192 = vadd.f32 0.0, %v6191
  %v6193 = vpop.f32.mrb[0].mxu0
  %6194 = vmatprep.mubr.f32.mxu0 0.0
  %6195 = vmatmul.mubr.f32.gmra.mrb[0].mxu0 %v5832
  %v6196 = vpop.f32.mrb[0].mxu0
  %v6197 = vadd.f32 0.0, %v6196
  %v6198 = vpop.f32.mrb[0].mxu0
  %6199 = vmatprep.mubr.f32.mxu0 0.0
  %6200 = vmatmul.mubr.f32.gmra.mrb[0].mxu0 %v5834
  %v6201 = vpop.f32.mrb[0].mxu0
  %v6202 = vadd.f32 0.0, %v6201
  %v6203 = vpop.f32.mrb[0].mxu0
  %6204 = vmatprep.mubr.f32.mxu0 0.0
  %6205 = vmatmul.mubr.f32.gmra.mrb[0].mxu0 %v5836
  %v6206 = vpop.f32.mrb[0].mxu0
  %v6207 = vadd.f32 0.0, %v6206
  %v6208 = vpop.f32.mrb[0].mxu0
  %6209 = vmatprep.mubr.f32.mxu0 0.0
  %6210 = vmatmul.mubr.f32.gmra.mrb[0].mxu0 %v5838
  %v6211 = vpop.f32.mrb[0].mxu0
  %v6212 = vadd.f32 0.0, %v6211
  %v6213 = vpop.f32.mrb[0].mxu0
  %6214 = vmatprep.mubr.f32.mxu0 0.0
  %6215 = vmatmul.mubr.f32.gmra.mrb[0].mxu0 %v5840
  %v6216 = vpop.f32.mrb[0].mxu0
  %v6217 = vadd.f32 0.0, %v6216
  %v6218 = vpop.f32.mrb[0].mxu0
  %6219 = vmatprep.mubr.f32.mxu0 0.0
  %6220 = vmatmul.mubr.f32.gmra.mrb[0].mxu0 %v5842
  %v6221 = vpop.f32.mrb[0].mxu0
  %v6222 = vadd.f32 0.0, %v6221
  %v6223 = vpop.f32.mrb[0].mxu0
  %6224 = vmatprep.mubr.f32.mxu0 0.0
  %6225 = vmatmul.mubr.f32.gmra.mrb[0].mxu0 %v5844
  %v6226 = vpop.f32.mrb[0].mxu0
  %v6227 = vadd.f32 0.0, %v6226
  %v6228 = vpop.f32.mrb[0].mxu0
  %6229 = vmatprep.mubr.f32.mxu0 0.0
  %6230 = vmatmul.mubr.f32.gmra.mrb[0].mxu0 %v5846
  %v6231 = vpop.f32.mrb[0].mxu0
  %v6232 = vadd.f32 0.0, %v6231
  %v6233 = vpop.f32.mrb[0].mxu0
  %6234 = vmatprep.mubr.f32.mxu0 0.0
  %6235 = vmatmul.mubr.f32.gmra.mrb[0].mxu0 %v5848
  %v6236 = vpop.f32.mrb[0].mxu0
  %v6237 = vadd.f32 0.0, %v6236
  %v6238 = vpop.f32.mrb[0].mxu0
  %6239 = vmatprep.mubr.f32.mxu0 0.0
  %6240 = vmatmul.mubr.f32.gmra.mrb[0].mxu0 %v5850
  %v6241 = vpop.f32.mrb[0].mxu0
  %v6242 = vadd.f32 0.0, %v6241
  %v6243 = vpop.f32.mrb[0].mxu0
  %6244 = vmatprep.mubr.f32.mxu0 0.0
  %6245 = vmatmul.mubr.f32.gmra.mrb[0].mxu0 %v5852
  %v6246 = vpop.f32.mrb[0].mxu0
  %v6247 = vadd.f32 0.0, %v6246
  %v6248 = vpop.f32.mrb[0].mxu0
  %6249 = vmatprep.mubr.f32.mxu0 0.0
  %6250 = vmatmul.mubr.f32.gmra.mrb[0].mxu0 %v5854
  %v6251 = vpop.f32.mrb[0].mxu0
  %v6252 = vadd.f32 0.0, %v6251
  %v6253 = vpop.f32.mrb[0].mxu0
  %6254 = vmatprep.mubr.f32.mxu0 0.0
  %6255 = vmatmul.mubr.f32.gmra.mrb[0].mxu0 %v5856
  %v6256 = vpop.f32.mrb[0].mxu0
  %v6257 = vadd.f32 0.0, %v6256
  %v6258 = vpop.f32.mrb[0].mxu0
  %6259 = vmatprep.mubr.f32.mxu0 0.0
  %6260 = vmatmul.mubr.f32.gmra.mrb[0].mxu0 %v5858
  %v6261 = vpop.f32.mrb[0].mxu0
  %v6262 = vadd.f32 0.0, %v6261
  %v6263 = vpop.f32.mrb[0].mxu0
  %6264 = vmatprep.mubr.f32.mxu0 0.0
  %6265 = vmatmul.mubr.f32.gmra.mrb[0].mxu0 %v5860
  %v6266 = vpop.f32.mrb[0].mxu0
  %v6267 = vadd.f32 0.0, %v6266
  %v6268 = vpop.f32.mrb[0].mxu0
  %6269 = vmatprep.mubr.f32.mxu0 0.0
  %6270 = vmatmul.mubr.f32.gmra.mrb[0].mxu0 %v5862
  %v6271 = vpop.f32.mrb[0].mxu0
  %v6272 = vadd.f32 0.0, %v6271
  %v6273 = vpop.f32.mrb[0].mxu0
  %6274 = vmatprep.mubr.f32.mxu0 0.0
  %6275 = vmatmul.mubr.f32.gmra.mrb[0].mxu0 %v5864
  %v6276 = vpop.f32.mrb[0].mxu0
  %v6277 = vadd.f32 0.0, %v6276
  %v6278 = vpop.f32.mrb[0].mxu0
  %6279 = vmatprep.mubr.f32.mxu0 0.0
  %6280 = vmatmul.mubr.f32.gmra.mrb[0].mxu0 %v5866
  %v6281 = vpop.f32.mrb[0].mxu0
  %v6282 = vadd.f32 0.0, %v6281
  %v6283 = vpop.f32.mrb[0].mxu0
  %6284 = vmatprep.mubr.f32.mxu0 0.0
  %6285 = vmatmul.mubr.f32.gmra.mrb[0].mxu0 %v5868
  %v6286 = vpop.f32.mrb[0].mxu0
  %v6287 = vadd.f32 0.0, %v6286
  %v6288 = vpop.f32.mrb[0].mxu0
  %6289 = vmatprep.mubr.f32.mxu0 0.0
  %6290 = vmatmul.mubr.f32.gmra.mrb[0].mxu0 %v5870
  %v6291 = vpop.f32.mrb[0].mxu0
  %v6292 = vadd.f32 0.0, %v6291
  %v6293 = vpop.f32.mrb[0].mxu0
  %6294 = vmatprep.mubr.f32.mxu0 0.0
  %6295 = vmatmul.mubr.f32.gmra.mrb[0].mxu0 %v5872
  %v6296 = vpop.f32.mrb[0].mxu0
  %v6297 = vadd.f32 0.0, %v6296
  %v6298 = vpop.f32.mrb[0].mxu0
  %6299 = vmatprep.mubr.f32.mxu0 0.0
  %6300 = vmatmul.mubr.f32.gmra.mrb[0].mxu0 %v5874
  %v6301 = vpop.f32.mrb[0].mxu0
  %v6302 = vadd.f32 0.0, %v6301
  %v6303 = vpop.f32.mrb[0].mxu0
  %6304 = vmatprep.mubr.f32.mxu0 0.0
  %6305 = vmatmul.mubr.f32.gmra.mrb[0].mxu0 %v5876
  %v6306 = vpop.f32.mrb[0].mxu0
  %v6307 = vadd.f32 0.0, %v6306
  %v6308 = vpop.f32.mrb[0].mxu0
  %6309 = vmatprep.mubr.f32.mxu0 0.0
  %6310 = vmatmul.mubr.f32.gmra.mrb[0].mxu0 %v5878
  %v6311 = vpop.f32.mrb[0].mxu0
  %v6312 = vadd.f32 0.0, %v6311
  %v6313 = vpop.f32.mrb[0].mxu0
  %6314 = vmatprep.mubr.f32.mxu0 0.0
  %6315 = vmatmul.mubr.f32.gmra.mrb[0].mxu0 %v5880
  %v6316 = vpop.f32.mrb[0].mxu0
  %v6317 = vadd.f32 0.0, %v6316
  %v6318 = vpop.f32.mrb[0].mxu0
  %6319 = vdwg.mxu0
  %v6320 = vadd.f32 %v5505, %v5952
  %v6321 = vadd.f32 %v5506, %v5957
  %v6322 = vadd.f32 %v5507, %v5962
  %v6323 = vadd.f32 %v5508, %v5967
  %v6324 = vadd.f32 %v5509, %v5972
  %v6325 = vadd.f32 %v5510, %v5977
  %v6326 = vadd.f32 %v5511, %v5982
  %v6327 = vadd.f32 %v5512, %v5987
  %v6328 = vadd.f32 %v5513, %v5992
  %v6329 = vadd.f32 %v5514, %v5997
  %v6330 = vadd.f32 %v5515, %v6002
  %v6331 = vadd.f32 %v5516, %v6007
  %v6332 = vadd.f32 %v5517, %v6012
  %v6333 = vadd.f32 %v5518, %v6017
  %v6334 = vadd.f32 %v5519, %v6022
  %v6335 = vadd.f32 %v5520, %v6027
  %v6336 = vadd.f32 %v5521, %v6032
  %v6337 = vadd.f32 %v5522, %v6037
  %v6338 = vadd.f32 %v5523, %v6042
  %v6339 = vadd.f32 %v5524, %v6047
  %v6340 = vadd.f32 %v5525, %v6052
  %v6341 = vadd.f32 %v5526, %v6057
  %v6342 = vadd.f32 %v5527, %v6062
  %v6343 = vadd.f32 %v5528, %v6067
  %v6344 = vadd.f32 %v5529, %v6072
  %v6345 = vadd.f32 %v5530, %v6077
  %v6346 = vadd.f32 %v5531, %v6082
  %v6347 = vadd.f32 %v5532, %v6087
  %v6348 = vadd.f32 %v5533, %v6092
  %v6349 = vadd.f32 %v5534, %v6097
  %v6350 = vadd.f32 %v5535, %v6102
  %v6351 = vadd.f32 %v5536, %v6107
  %v6352 = vadd.f32 %v5537, %v6112
  %v6353 = vadd.f32 %v5538, %v6117
  %v6354 = vadd.f32 %v5539, %v6122
  %v6355 = vadd.f32 %v5540, %v6127
  %v6356 = vadd.f32 %v5541, %v6132
  %v6357 = vadd.f32 %v5542, %v6137
  %v6358 = vadd.f32 %v5543, %v6142
  %v6359 = vadd.f32 %v5544, %v6147
  %v6360 = vadd.f32 %v5545, %v6152
  %v6361 = vadd.f32 %v5546, %v6157
  %v6362 = vadd.f32 %v5547, %v6162
  %v6363 = vadd.f32 %v5548, %v6167
  %v6364 = vadd.f32 %v5549, %v6172
  %v6365 = vadd.f32 %v5550, %v6177
  %v6366 = vadd.f32 %v5551, %v6182
  %v6367 = vadd.f32 %v5552, %v6187
  %v6368 = vadd.f32 %v5553, %v6192
  %v6369 = vadd.f32 %v5554, %v6197
  %v6370 = vadd.f32 %v5555, %v6202
  %v6371 = vadd.f32 %v5556, %v6207
  %v6372 = vadd.f32 %v5557, %v6212
  %v6373 = vadd.f32 %v5558, %v6217
  %v6374 = vadd.f32 %v5559, %v6222
  %v6375 = vadd.f32 %v5560, %v6227
  %v6376 = vadd.f32 %v5561, %v6232
  %v6377 = vadd.f32 %v5562, %v6237
  %v6378 = vadd.f32 %v5563, %v6242
  %v6379 = vadd.f32 %v5564, %v6247
  %v6380 = vadd.f32 %v5565, %v6252
  %v6381 = vadd.f32 %v5566, %v6257
  %v6382 = vadd.f32 %v5567, %v6262
  %v6383 = vadd.f32 %v5568, %v6267
  %v6384 = vadd.f32 %v5569, %v6272
  %v6385 = vadd.f32 %v5570, %v6277
  %v6386 = vadd.f32 %v5571, %v6282
  %v6387 = vadd.f32 %v5572, %v6287
  %v6388 = vadd.f32 %v5573, %v6292
  %v6389 = vadd.f32 %v5574, %v6297
  %v6390 = vadd.f32 %v5575, %v6302
  %v6391 = vadd.f32 %v5576, %v6307
  %v6392 = vadd.f32 %v5577, %v6312
  %v6393 = vadd.f32 %v5578, %v6317
  %s6394 = scalar_lea.vmem %s1, 16
  %v6395 = vld [vmem:[%s6394] sm:$0x3]
  %v6396 = vunpack.c.l.bf16 %v6395
  %vm6397 = vcmask 1045504
  %v6398 = vrot.slane %v96, 2
  %v6399 = vrot.slane %v97, 2
  %v6400 = vsel %vm6397, %v6398, %v6399
  %v6401 = vrot.slane %v98, 2
  %v6402 = vsel %vm6397, %v6399, %v6401
  %v6403 = vrot.slane %v99, 2
  %v6404 = vsel %vm6397, %v6401, %v6403
  %v6405 = vrot.slane %v100, 2
  %v6406 = vsel %vm6397, %v6403, %v6405
  %v6407 = vrot.slane %v101, 2
  %v6408 = vsel %vm6397, %v6405, %v6407
  %v6409 = vrot.slane %v102, 2
  %v6410 = vsel %vm6397, %v6407, %v6409
  %v6411 = vrot.slane %v103, 2
  %v6412 = vsel %vm6397, %v6409, %v6411
  %v6413 = vrot.slane %v104, 2
  %v6414 = vsel %vm6397, %v6411, %v6413
  %v6415 = vrot.slane %v105, 2
  %v6416 = vsel %vm6397, %v6413, %v6415
  %v6417 = vrot.slane %v106, 2
  %v6418 = vsel %vm6397, %v6415, %v6417
  %v6419 = vrot.slane %v107, 2
  %v6420 = vsel %vm6397, %v6417, %v6419
  %v6421 = vrot.slane %v108, 2
  %v6422 = vsel %vm6397, %v6419, %v6421
  %v6423 = vrot.slane %v109, 2
  %v6424 = vsel %vm6397, %v6421, %v6423
  %v6425 = vrot.slane %v110, 2
  %v6426 = vsel %vm6397, %v6423, %v6425
  %v6427 = vrot.slane %v111, 2
  %v6428 = vsel %vm6397, %v6425, %v6427
  %v6429 = vrot.slane %v112, 2
  %v6430 = vsel %vm6397, %v6427, %v6429
  %v6431 = vrot.slane %v113, 2
  %v6432 = vsel %vm6397, %v6429, %v6431
  %v6433 = vrot.slane %v114, 2
  %v6434 = vsel %vm6397, %v6431, %v6433
  %v6435 = vrot.slane %v115, 2
  %v6436 = vsel %vm6397, %v6433, %v6435
  %v6437 = vrot.slane %v116, 2
  %v6438 = vsel %vm6397, %v6435, %v6437
  %v6439 = vrot.slane %v117, 2
  %v6440 = vsel %vm6397, %v6437, %v6439
  %v6441 = vrot.slane %v118, 2
  %v6442 = vsel %vm6397, %v6439, %v6441
  %v6443 = vrot.slane %v119, 2
  %v6444 = vsel %vm6397, %v6441, %v6443
  %v6445 = vrot.slane %v120, 2
  %v6446 = vsel %vm6397, %v6443, %v6445
  %v6447 = vrot.slane %v121, 2
  %v6448 = vsel %vm6397, %v6445, %v6447
  %v6449 = vrot.slane %v122, 2
  %v6450 = vsel %vm6397, %v6447, %v6449
  %v6451 = vrot.slane %v123, 2
  %v6452 = vsel %vm6397, %v6449, %v6451
  %v6453 = vrot.slane %v124, 2
  %v6454 = vsel %vm6397, %v6451, %v6453
  %v6455 = vrot.slane %v125, 2
  %v6456 = vsel %vm6397, %v6453, %v6455
  %v6457 = vrot.slane %v126, 2
  %v6458 = vsel %vm6397, %v6455, %v6457
  %v6459 = vrot.slane %v127, 2
  %v6460 = vsel %vm6397, %v6457, %v6459
  %v6461 = vrot.slane %v128, 2
  %v6462 = vsel %vm6397, %v6459, %v6461
  %v6463 = vrot.slane %v129, 2
  %v6464 = vsel %vm6397, %v6461, %v6463
  %v6465 = vrot.slane %v130, 2
  %v6466 = vsel %vm6397, %v6463, %v6465
  %v6467 = vrot.slane %v131, 2
  %v6468 = vsel %vm6397, %v6465, %v6467
  %v6469 = vrot.slane %v132, 2
  %v6470 = vsel %vm6397, %v6467, %v6469
  %v6471 = vrot.slane %v133, 2
  %v6472 = vsel %vm6397, %v6469, %v6471
  %v6473 = vrot.slane %v134, 2
  %v6474 = vsel %vm6397, %v6471, %v6473
  %v6475 = vrot.slane %v135, 2
  %v6476 = vsel %vm6397, %v6473, %v6475
  %v6477 = vrot.slane %v136, 2
  %v6478 = vsel %vm6397, %v6475, %v6477
  %v6479 = vrot.slane %v137, 2
  %v6480 = vsel %vm6397, %v6477, %v6479
  %v6481 = vrot.slane %v138, 2
  %v6482 = vsel %vm6397, %v6479, %v6481
  %v6483 = vrot.slane %v139, 2
  %v6484 = vsel %vm6397, %v6481, %v6483
  %v6485 = vrot.slane %v140, 2
  %v6486 = vsel %vm6397, %v6483, %v6485
  %v6487 = vrot.slane %v141, 2
  %v6488 = vsel %vm6397, %v6485, %v6487
  %v6489 = vrot.slane %v142, 2
  %v6490 = vsel %vm6397, %v6487, %v6489
  %v6491 = vrot.slane %v143, 2
  %v6492 = vsel %vm6397, %v6489, %v6491
  %v6493 = vrot.slane %v144, 2
  %v6494 = vsel %vm6397, %v6491, %v6493
  %v6495 = vrot.slane %v145, 2
  %v6496 = vsel %vm6397, %v6493, %v6495
  %v6497 = vrot.slane %v146, 2
  %v6498 = vsel %vm6397, %v6495, %v6497
  %v6499 = vrot.slane %v147, 2
  %v6500 = vsel %vm6397, %v6497, %v6499
  %v6501 = vrot.slane %v148, 2
  %v6502 = vsel %vm6397, %v6499, %v6501
  %v6503 = vrot.slane %v149, 2
  %v6504 = vsel %vm6397, %v6501, %v6503
  %v6505 = vrot.slane %v150, 2
  %v6506 = vsel %vm6397, %v6503, %v6505
  %v6507 = vrot.slane %v151, 2
  %v6508 = vsel %vm6397, %v6505, %v6507
  %v6509 = vrot.slane %v152, 2
  %v6510 = vsel %vm6397, %v6507, %v6509
  %v6511 = vrot.slane %v153, 2
  %v6512 = vsel %vm6397, %v6509, %v6511
  %v6513 = vrot.slane %v154, 2
  %v6514 = vsel %vm6397, %v6511, %v6513
  %v6515 = vrot.slane %v155, 2
  %v6516 = vsel %vm6397, %v6513, %v6515
  %v6517 = vrot.slane %v156, 2
  %v6518 = vsel %vm6397, %v6515, %v6517
  %v6519 = vrot.slane %v157, 2
  %v6520 = vsel %vm6397, %v6517, %v6519
  %v6521 = vrot.slane %v158, 2
  %v6522 = vsel %vm6397, %v6519, %v6521
  %v6523 = vrot.slane %v159, 2
  %v6524 = vsel %vm6397, %v6521, %v6523
  %v6525 = vrot.slane %v160, 2
  %v6526 = vsel %vm6397, %v6523, %v6525
  %v6527 = vrot.slane %v161, 2
  %v6528 = vsel %vm6397, %v6525, %v6527
  %v6529 = vrot.slane %v162, 2
  %v6530 = vsel %vm6397, %v6527, %v6529
  %v6531 = vrot.slane %v163, 2
  %v6532 = vsel %vm6397, %v6529, %v6531
  %v6533 = vrot.slane %v164, 2
  %v6534 = vsel %vm6397, %v6531, %v6533
  %v6535 = vrot.slane %v165, 2
  %v6536 = vsel %vm6397, %v6533, %v6535
  %v6537 = vrot.slane %v166, 2
  %v6538 = vsel %vm6397, %v6535, %v6537
  %v6539 = vrot.slane %v167, 2
  %v6540 = vsel %vm6397, %v6537, %v6539
  %v6541 = vrot.slane %v168, 2
  %v6542 = vsel %vm6397, %v6539, %v6541
  %v6543 = vrot.slane %v169, 2
  %v6544 = vsel %vm6397, %v6541, %v6543
  %v6545 = vrot.slane %v170, 2
  %v6546 = vsel %vm6397, %v6543, %v6545
  %v6547 = vsel %vm331, %v6400, 0
  %v6549 = vsel %vm331, %v6402, 0
  %v6551 = vsel %vm331, %v6404, 0
  %v6553 = vsel %vm331, %v6406, 0
  %v6555 = vsel %vm331, %v6408, 0
  %v6557 = vsel %vm331, %v6410, 0
  %v6559 = vsel %vm331, %v6412, 0
  %v6561 = vsel %vm331, %v6414, 0
  %v6563 = vsel %vm331, %v6416, 0
  %v6565 = vsel %vm331, %v6418, 0
  %v6567 = vsel %vm331, %v6420, 0
  %v6569 = vsel %vm331, %v6422, 0
  %v6571 = vsel %vm331, %v6424, 0
  %v6573 = vsel %vm331, %v6426, 0
  %v6575 = vsel %vm331, %v6428, 0
  %v6577 = vsel %vm331, %v6430, 0
  %v6579 = vsel %vm331, %v6432, 0
  %v6581 = vsel %vm331, %v6434, 0
  %v6583 = vsel %vm331, %v6436, 0
  %v6585 = vsel %vm331, %v6438, 0
  %v6587 = vsel %vm331, %v6440, 0
  %v6589 = vsel %vm331, %v6442, 0
  %v6591 = vsel %vm331, %v6444, 0
  %v6593 = vsel %vm331, %v6446, 0
  %v6595 = vsel %vm331, %v6448, 0
  %v6597 = vsel %vm331, %v6450, 0
  %v6599 = vsel %vm331, %v6452, 0
  %v6601 = vsel %vm331, %v6454, 0
  %v6603 = vsel %vm331, %v6456, 0
  %v6605 = vsel %vm331, %v6458, 0
  %v6607 = vsel %vm331, %v6460, 0
  %v6609 = vsel %vm331, %v6462, 0
  %v6611 = vsel %vm331, %v6464, 0
  %v6613 = vsel %vm331, %v6466, 0
  %v6615 = vsel %vm331, %v6468, 0
  %v6617 = vsel %vm331, %v6470, 0
  %v6619 = vsel %vm331, %v6472, 0
  %v6621 = vsel %vm331, %v6474, 0
  %v6623 = vsel %vm331, %v6476, 0
  %v6625 = vsel %vm331, %v6478, 0
  %v6627 = vsel %vm331, %v6480, 0
  %v6629 = vsel %vm331, %v6482, 0
  %v6631 = vsel %vm331, %v6484, 0
  %v6633 = vsel %vm331, %v6486, 0
  %v6635 = vsel %vm331, %v6488, 0
  %v6637 = vsel %vm331, %v6490, 0
  %v6639 = vsel %vm331, %v6492, 0
  %v6641 = vsel %vm331, %v6494, 0
  %v6643 = vsel %vm331, %v6496, 0
  %v6645 = vsel %vm331, %v6498, 0
  %v6647 = vsel %vm331, %v6500, 0
  %v6649 = vsel %vm331, %v6502, 0
  %v6651 = vsel %vm331, %v6504, 0
  %v6653 = vsel %vm331, %v6506, 0
  %v6655 = vsel %vm331, %v6508, 0
  %v6657 = vsel %vm331, %v6510, 0
  %v6659 = vsel %vm331, %v6512, 0
  %v6661 = vsel %vm331, %v6514, 0
  %v6663 = vsel %vm331, %v6516, 0
  %v6665 = vsel %vm331, %v6518, 0
  %v6667 = vsel %vm331, %v6520, 0
  %v6669 = vsel %vm331, %v6522, 0
  %v6671 = vsel %vm331, %v6524, 0
  %v6673 = vsel %vm331, %v6526, 0
  %v6675 = vsel %vm331, %v6528, 0
  %v6677 = vsel %vm331, %v6530, 0
  %v6679 = vsel %vm331, %v6532, 0
  %v6681 = vsel %vm331, %v6534, 0
  %v6683 = vsel %vm331, %v6536, 0
  %v6685 = vsel %vm331, %v6538, 0
  %v6687 = vsel %vm331, %v6540, 0
  %v6689 = vsel %vm331, %v6542, 0
  %v6691 = vsel %vm331, %v6544, 0
  %v6693 = vsel %vm331, %v6546, 0
  %v6696 = vsel %vm554, %v6396, 0
  %6698 = vmatprep.subr.mxu0 0.0
  %6699 = vmatpush1.msra.mxu0 %v6696
  %6700 = vmatprep.subr.mxu0 0.0
  %6701 = vmatpush1.msra.mxu0 0.0
  %6702 = vmatprep.subr.mxu0 0.0
  %6703 = vmatpush1.msra.mxu0 0.0
  %6704 = vmatprep.subr.mxu0 0.0
  %6705 = vmatpush1.msra.mxu0 0.0
  %6706 = vmatprep.subr.mxu0 0.0
  %6707 = vmatpush1.msra.mxu0 0.0
  %6708 = vmatprep.subr.mxu0 0.0
  %6709 = vmatpush1.msra.mxu0 0.0
  %6710 = vmatprep.subr.mxu0 0.0
  %6711 = vmatpush1.msra.mxu0 0.0
  %6712 = vmatprep.subr.mxu0 0.0
  %6713 = vmatpush1.msra.mxu0 0.0
  %6714 = vmatprep.subr.mxu0 0.0
  %6715 = vmatpush1.msra.mxu0 0.0
  %6716 = vmatprep.subr.mxu0 0.0
  %6717 = vmatpush1.msra.mxu0 0.0
  %6718 = vmatprep.subr.mxu0 0.0
  %6719 = vmatpush1.msra.mxu0 0.0
  %6720 = vmatprep.subr.mxu0 0.0
  %6721 = vmatpush1.msra.mxu0 0.0
  %6722 = vmatprep.subr.mxu0 0.0
  %6723 = vmatpush1.msra.mxu0 0.0
  %6724 = vmatprep.subr.mxu0 0.0
  %6725 = vmatpush1.msra.mxu0 0.0
  %6726 = vmatprep.subr.mxu0 0.0
  %6727 = vmatpush1.msra.mxu0 0.0
  %6728 = vmatprep.subr.mxu0 0.0
  %6729 = vmatpush1.msra.mxu0 0.0
  %6730 = vmatprep.subr.mxu0 0.0
  %6731 = vmatpush1.msra.mxu0 0.0
  %6732 = vmatprep.subr.mxu0 0.0
  %6733 = vmatpush1.msra.mxu0 0.0
  %6734 = vmatprep.subr.mxu0 0.0
  %6735 = vmatpush1.msra.mxu0 0.0
  %6736 = vmatprep.subr.mxu0 0.0
  %6737 = vmatpush1.msra.mxu0 0.0
  %6738 = vmatprep.subr.mxu0 0.0
  %6739 = vmatpush1.msra.mxu0 0.0
  %6740 = vmatprep.subr.mxu0 0.0
  %6741 = vmatpush1.msra.mxu0 0.0
  %6742 = vmatprep.subr.mxu0 0.0
  %6743 = vmatpush1.msra.mxu0 0.0
  %6744 = vmatprep.subr.mxu0 0.0
  %6745 = vmatpush1.msra.mxu0 0.0
  %6746 = vmatprep.subr.mxu0 0.0
  %6747 = vmatpush1.msra.mxu0 0.0
  %6748 = vmatprep.subr.mxu0 0.0
  %6749 = vmatpush1.msra.mxu0 0.0
  %6750 = vmatprep.subr.mxu0 0.0
  %6751 = vmatpush1.msra.mxu0 0.0
  %6752 = vmatprep.subr.mxu0 0.0
  %6753 = vmatpush1.msra.mxu0 0.0
  %6754 = vmatprep.subr.mxu0 0.0
  %6755 = vmatpush1.msra.mxu0 0.0
  %6756 = vmatprep.subr.mxu0 0.0
  %6757 = vmatpush1.msra.mxu0 0.0
  %6758 = vmatprep.subr.mxu0 0.0
  %6759 = vmatpush1.msra.mxu0 0.0
  %6760 = vmatprep.subr.mxu0 0.0
  %6761 = vmatpush1.msra.mxu0 0.0
  %6762 = vmatprep.mubr.f32.mxu0 0.0
  %6763 = vmatmul.mubr.f32.gmra.mrb[0].mxu0 %v6547
  %v6764 = vpop.f32.mrb[0].mxu0
  %v6765 = vadd.f32 0.0, %v6764
  %v6766 = vpop.f32.mrb[0].mxu0
  %6767 = vmatprep.mubr.f32.mxu0 0.0
  %6768 = vmatmul.mubr.f32.gmra.mrb[0].mxu0 %v6549
  %v6769 = vpop.f32.mrb[0].mxu0
  %v6770 = vadd.f32 0.0, %v6769
  %v6771 = vpop.f32.mrb[0].mxu0
  %6772 = vmatprep.mubr.f32.mxu0 0.0
  %6773 = vmatmul.mubr.f32.gmra.mrb[0].mxu0 %v6551
  %v6774 = vpop.f32.mrb[0].mxu0
  %v6775 = vadd.f32 0.0, %v6774
  %v6776 = vpop.f32.mrb[0].mxu0
  %6777 = vmatprep.mubr.f32.mxu0 0.0
  %6778 = vmatmul.mubr.f32.gmra.mrb[0].mxu0 %v6553
  %v6779 = vpop.f32.mrb[0].mxu0
  %v6780 = vadd.f32 0.0, %v6779
  %v6781 = vpop.f32.mrb[0].mxu0
  %6782 = vmatprep.mubr.f32.mxu0 0.0
  %6783 = vmatmul.mubr.f32.gmra.mrb[0].mxu0 %v6555
  %v6784 = vpop.f32.mrb[0].mxu0
  %v6785 = vadd.f32 0.0, %v6784
  %v6786 = vpop.f32.mrb[0].mxu0
  %6787 = vmatprep.mubr.f32.mxu0 0.0
  %6788 = vmatmul.mubr.f32.gmra.mrb[0].mxu0 %v6557
  %v6789 = vpop.f32.mrb[0].mxu0
  %v6790 = vadd.f32 0.0, %v6789
  %v6791 = vpop.f32.mrb[0].mxu0
  %6792 = vmatprep.mubr.f32.mxu0 0.0
  %6793 = vmatmul.mubr.f32.gmra.mrb[0].mxu0 %v6559
  %v6794 = vpop.f32.mrb[0].mxu0
  %v6795 = vadd.f32 0.0, %v6794
  %v6796 = vpop.f32.mrb[0].mxu0
  %6797 = vmatprep.mubr.f32.mxu0 0.0
  %6798 = vmatmul.mubr.f32.gmra.mrb[0].mxu0 %v6561
  %v6799 = vpop.f32.mrb[0].mxu0
  %v6800 = vadd.f32 0.0, %v6799
  %v6801 = vpop.f32.mrb[0].mxu0
  %6802 = vmatprep.mubr.f32.mxu0 0.0
  %6803 = vmatmul.mubr.f32.gmra.mrb[0].mxu0 %v6563
  %v6804 = vpop.f32.mrb[0].mxu0
  %v6805 = vadd.f32 0.0, %v6804
  %v6806 = vpop.f32.mrb[0].mxu0
  %6807 = vmatprep.mubr.f32.mxu0 0.0
  %6808 = vmatmul.mubr.f32.gmra.mrb[0].mxu0 %v6565
  %v6809 = vpop.f32.mrb[0].mxu0
  %v6810 = vadd.f32 0.0, %v6809
  %v6811 = vpop.f32.mrb[0].mxu0
  %6812 = vmatprep.mubr.f32.mxu0 0.0
  %6813 = vmatmul.mubr.f32.gmra.mrb[0].mxu0 %v6567
  %v6814 = vpop.f32.mrb[0].mxu0
  %v6815 = vadd.f32 0.0, %v6814
  %v6816 = vpop.f32.mrb[0].mxu0
  %6817 = vmatprep.mubr.f32.mxu0 0.0
  %6818 = vmatmul.mubr.f32.gmra.mrb[0].mxu0 %v6569
  %v6819 = vpop.f32.mrb[0].mxu0
  %v6820 = vadd.f32 0.0, %v6819
  %v6821 = vpop.f32.mrb[0].mxu0
  %6822 = vmatprep.mubr.f32.mxu0 0.0
  %6823 = vmatmul.mubr.f32.gmra.mrb[0].mxu0 %v6571
  %v6824 = vpop.f32.mrb[0].mxu0
  %v6825 = vadd.f32 0.0, %v6824
  %v6826 = vpop.f32.mrb[0].mxu0
  %6827 = vmatprep.mubr.f32.mxu0 0.0
  %6828 = vmatmul.mubr.f32.gmra.mrb[0].mxu0 %v6573
  %v6829 = vpop.f32.mrb[0].mxu0
  %v6830 = vadd.f32 0.0, %v6829
  %v6831 = vpop.f32.mrb[0].mxu0
  %6832 = vmatprep.mubr.f32.mxu0 0.0
  %6833 = vmatmul.mubr.f32.gmra.mrb[0].mxu0 %v6575
  %v6834 = vpop.f32.mrb[0].mxu0
  %v6835 = vadd.f32 0.0, %v6834
  %v6836 = vpop.f32.mrb[0].mxu0
  %6837 = vmatprep.mubr.f32.mxu0 0.0
  %6838 = vmatmul.mubr.f32.gmra.mrb[0].mxu0 %v6577
  %v6839 = vpop.f32.mrb[0].mxu0
  %v6840 = vadd.f32 0.0, %v6839
  %v6841 = vpop.f32.mrb[0].mxu0
  %6842 = vmatprep.mubr.f32.mxu0 0.0
  %6843 = vmatmul.mubr.f32.gmra.mrb[0].mxu0 %v6579
  %v6844 = vpop.f32.mrb[0].mxu0
  %v6845 = vadd.f32 0.0, %v6844
  %v6846 = vpop.f32.mrb[0].mxu0
  %6847 = vmatprep.mubr.f32.mxu0 0.0
  %6848 = vmatmul.mubr.f32.gmra.mrb[0].mxu0 %v6581
  %v6849 = vpop.f32.mrb[0].mxu0
  %v6850 = vadd.f32 0.0, %v6849
  %v6851 = vpop.f32.mrb[0].mxu0
  %6852 = vmatprep.mubr.f32.mxu0 0.0
  %6853 = vmatmul.mubr.f32.gmra.mrb[0].mxu0 %v6583
  %v6854 = vpop.f32.mrb[0].mxu0
  %v6855 = vadd.f32 0.0, %v6854
  %v6856 = vpop.f32.mrb[0].mxu0
  %6857 = vmatprep.mubr.f32.mxu0 0.0
  %6858 = vmatmul.mubr.f32.gmra.mrb[0].mxu0 %v6585
  %v6859 = vpop.f32.mrb[0].mxu0
  %v6860 = vadd.f32 0.0, %v6859
  %v6861 = vpop.f32.mrb[0].mxu0
  %6862 = vmatprep.mubr.f32.mxu0 0.0
  %6863 = vmatmul.mubr.f32.gmra.mrb[0].mxu0 %v6587
  %v6864 = vpop.f32.mrb[0].mxu0
  %v6865 = vadd.f32 0.0, %v6864
  %v6866 = vpop.f32.mrb[0].mxu0
  %6867 = vmatprep.mubr.f32.mxu0 0.0
  %6868 = vmatmul.mubr.f32.gmra.mrb[0].mxu0 %v6589
  %v6869 = vpop.f32.mrb[0].mxu0
  %v6870 = vadd.f32 0.0, %v6869
  %v6871 = vpop.f32.mrb[0].mxu0
  %6872 = vmatprep.mubr.f32.mxu0 0.0
  %6873 = vmatmul.mubr.f32.gmra.mrb[0].mxu0 %v6591
  %v6874 = vpop.f32.mrb[0].mxu0
  %v6875 = vadd.f32 0.0, %v6874
  %v6876 = vpop.f32.mrb[0].mxu0
  %6877 = vmatprep.mubr.f32.mxu0 0.0
  %6878 = vmatmul.mubr.f32.gmra.mrb[0].mxu0 %v6593
  %v6879 = vpop.f32.mrb[0].mxu0
  %v6880 = vadd.f32 0.0, %v6879
  %v6881 = vpop.f32.mrb[0].mxu0
  %6882 = vmatprep.mubr.f32.mxu0 0.0
  %6883 = vmatmul.mubr.f32.gmra.mrb[0].mxu0 %v6595
  %v6884 = vpop.f32.mrb[0].mxu0
  %v6885 = vadd.f32 0.0, %v6884
  %v6886 = vpop.f32.mrb[0].mxu0
  %6887 = vmatprep.mubr.f32.mxu0 0.0
  %6888 = vmatmul.mubr.f32.gmra.mrb[0].mxu0 %v6597
  %v6889 = vpop.f32.mrb[0].mxu0
  %v6890 = vadd.f32 0.0, %v6889
  %v6891 = vpop.f32.mrb[0].mxu0
  %6892 = vmatprep.mubr.f32.mxu0 0.0
  %6893 = vmatmul.mubr.f32.gmra.mrb[0].mxu0 %v6599
  %v6894 = vpop.f32.mrb[0].mxu0
  %v6895 = vadd.f32 0.0, %v6894
  %v6896 = vpop.f32.mrb[0].mxu0
  %6897 = vmatprep.mubr.f32.mxu0 0.0
  %6898 = vmatmul.mubr.f32.gmra.mrb[0].mxu0 %v6601
  %v6899 = vpop.f32.mrb[0].mxu0
  %v6900 = vadd.f32 0.0, %v6899
  %v6901 = vpop.f32.mrb[0].mxu0
  %6902 = vmatprep.mubr.f32.mxu0 0.0
  %6903 = vmatmul.mubr.f32.gmra.mrb[0].mxu0 %v6603
  %v6904 = vpop.f32.mrb[0].mxu0
  %v6905 = vadd.f32 0.0, %v6904
  %v6906 = vpop.f32.mrb[0].mxu0
  %6907 = vmatprep.mubr.f32.mxu0 0.0
  %6908 = vmatmul.mubr.f32.gmra.mrb[0].mxu0 %v6605
  %v6909 = vpop.f32.mrb[0].mxu0
  %v6910 = vadd.f32 0.0, %v6909
  %v6911 = vpop.f32.mrb[0].mxu0
  %6912 = vmatprep.mubr.f32.mxu0 0.0
  %6913 = vmatmul.mubr.f32.gmra.mrb[0].mxu0 %v6607
  %v6914 = vpop.f32.mrb[0].mxu0
  %v6915 = vadd.f32 0.0, %v6914
  %v6916 = vpop.f32.mrb[0].mxu0
  %6917 = vmatprep.mubr.f32.mxu0 0.0
  %6918 = vmatmul.mubr.f32.gmra.mrb[0].mxu0 %v6609
  %v6919 = vpop.f32.mrb[0].mxu0
  %v6920 = vadd.f32 0.0, %v6919
  %v6921 = vpop.f32.mrb[0].mxu0
  %6922 = vmatprep.mubr.f32.mxu0 0.0
  %6923 = vmatmul.mubr.f32.gmra.mrb[0].mxu0 %v6611
  %v6924 = vpop.f32.mrb[0].mxu0
  %v6925 = vadd.f32 0.0, %v6924
  %v6926 = vpop.f32.mrb[0].mxu0
  %6927 = vmatprep.mubr.f32.mxu0 0.0
  %6928 = vmatmul.mubr.f32.gmra.mrb[0].mxu0 %v6613
  %v6929 = vpop.f32.mrb[0].mxu0
  %v6930 = vadd.f32 0.0, %v6929
  %v6931 = vpop.f32.mrb[0].mxu0
  %6932 = vmatprep.mubr.f32.mxu0 0.0
  %6933 = vmatmul.mubr.f32.gmra.mrb[0].mxu0 %v6615
  %v6934 = vpop.f32.mrb[0].mxu0
  %v6935 = vadd.f32 0.0, %v6934
  %v6936 = vpop.f32.mrb[0].mxu0
  %6937 = vmatprep.mubr.f32.mxu0 0.0
  %6938 = vmatmul.mubr.f32.gmra.mrb[0].mxu0 %v6617
  %v6939 = vpop.f32.mrb[0].mxu0
  %v6940 = vadd.f32 0.0, %v6939
  %v6941 = vpop.f32.mrb[0].mxu0
  %6942 = vmatprep.mubr.f32.mxu0 0.0
  %6943 = vmatmul.mubr.f32.gmra.mrb[0].mxu0 %v6619
  %v6944 = vpop.f32.mrb[0].mxu0
  %v6945 = vadd.f32 0.0, %v6944
  %v6946 = vpop.f32.mrb[0].mxu0
  %6947 = vmatprep.mubr.f32.mxu0 0.0
  %6948 = vmatmul.mubr.f32.gmra.mrb[0].mxu0 %v6621
  %v6949 = vpop.f32.mrb[0].mxu0
  %v6950 = vadd.f32 0.0, %v6949
  %v6951 = vpop.f32.mrb[0].mxu0
  %6952 = vmatprep.mubr.f32.mxu0 0.0
  %6953 = vmatmul.mubr.f32.gmra.mrb[0].mxu0 %v6623
  %v6954 = vpop.f32.mrb[0].mxu0
  %v6955 = vadd.f32 0.0, %v6954
  %v6956 = vpop.f32.mrb[0].mxu0
  %6957 = vmatprep.mubr.f32.mxu0 0.0
  %6958 = vmatmul.mubr.f32.gmra.mrb[0].mxu0 %v6625
  %v6959 = vpop.f32.mrb[0].mxu0
  %v6960 = vadd.f32 0.0, %v6959
  %v6961 = vpop.f32.mrb[0].mxu0
  %6962 = vmatprep.mubr.f32.mxu0 0.0
  %6963 = vmatmul.mubr.f32.gmra.mrb[0].mxu0 %v6627
  %v6964 = vpop.f32.mrb[0].mxu0
  %v6965 = vadd.f32 0.0, %v6964
  %v6966 = vpop.f32.mrb[0].mxu0
  %6967 = vmatprep.mubr.f32.mxu0 0.0
  %6968 = vmatmul.mubr.f32.gmra.mrb[0].mxu0 %v6629
  %v6969 = vpop.f32.mrb[0].mxu0
  %v6970 = vadd.f32 0.0, %v6969
  %v6971 = vpop.f32.mrb[0].mxu0
  %6972 = vmatprep.mubr.f32.mxu0 0.0
  %6973 = vmatmul.mubr.f32.gmra.mrb[0].mxu0 %v6631
  %v6974 = vpop.f32.mrb[0].mxu0
  %v6975 = vadd.f32 0.0, %v6974
  %v6976 = vpop.f32.mrb[0].mxu0
  %6977 = vmatprep.mubr.f32.mxu0 0.0
  %6978 = vmatmul.mubr.f32.gmra.mrb[0].mxu0 %v6633
  %v6979 = vpop.f32.mrb[0].mxu0
  %v6980 = vadd.f32 0.0, %v6979
  %v6981 = vpop.f32.mrb[0].mxu0
  %6982 = vmatprep.mubr.f32.mxu0 0.0
  %6983 = vmatmul.mubr.f32.gmra.mrb[0].mxu0 %v6635
  %v6984 = vpop.f32.mrb[0].mxu0
  %v6985 = vadd.f32 0.0, %v6984
  %v6986 = vpop.f32.mrb[0].mxu0
  %6987 = vmatprep.mubr.f32.mxu0 0.0
  %6988 = vmatmul.mubr.f32.gmra.mrb[0].mxu0 %v6637
  %v6989 = vpop.f32.mrb[0].mxu0
  %v6990 = vadd.f32 0.0, %v6989
  %v6991 = vpop.f32.mrb[0].mxu0
  %6992 = vmatprep.mubr.f32.mxu0 0.0
  %6993 = vmatmul.mubr.f32.gmra.mrb[0].mxu0 %v6639
  %v6994 = vpop.f32.mrb[0].mxu0
  %v6995 = vadd.f32 0.0, %v6994
  %v6996 = vpop.f32.mrb[0].mxu0
  %6997 = vmatprep.mubr.f32.mxu0 0.0
  %6998 = vmatmul.mubr.f32.gmra.mrb[0].mxu0 %v6641
  %v6999 = vpop.f32.mrb[0].mxu0
  %v7000 = vadd.f32 0.0, %v6999
  %v7001 = vpop.f32.mrb[0].mxu0
  %7002 = vmatprep.mubr.f32.mxu0 0.0
  %7003 = vmatmul.mubr.f32.gmra.mrb[0].mxu0 %v6643
  %v7004 = vpop.f32.mrb[0].mxu0
  %v7005 = vadd.f32 0.0, %v7004
  %v7006 = vpop.f32.mrb[0].mxu0
  %7007 = vmatprep.mubr.f32.mxu0 0.0
  %7008 = vmatmul.mubr.f32.gmra.mrb[0].mxu0 %v6645
  %v7009 = vpop.f32.mrb[0].mxu0
  %v7010 = vadd.f32 0.0, %v7009
  %v7011 = vpop.f32.mrb[0].mxu0
  %7012 = vmatprep.mubr.f32.mxu0 0.0
  %7013 = vmatmul.mubr.f32.gmra.mrb[0].mxu0 %v6647
  %v7014 = vpop.f32.mrb[0].mxu0
  %v7015 = vadd.f32 0.0, %v7014
  %v7016 = vpop.f32.mrb[0].mxu0
  %7017 = vmatprep.mubr.f32.mxu0 0.0
  %7018 = vmatmul.mubr.f32.gmra.mrb[0].mxu0 %v6649
  %v7019 = vpop.f32.mrb[0].mxu0
  %v7020 = vadd.f32 0.0, %v7019
  %v7021 = vpop.f32.mrb[0].mxu0
  %7022 = vmatprep.mubr.f32.mxu0 0.0
  %7023 = vmatmul.mubr.f32.gmra.mrb[0].mxu0 %v6651
  %v7024 = vpop.f32.mrb[0].mxu0
  %v7025 = vadd.f32 0.0, %v7024
  %v7026 = vpop.f32.mrb[0].mxu0
  %7027 = vmatprep.mubr.f32.mxu0 0.0
  %7028 = vmatmul.mubr.f32.gmra.mrb[0].mxu0 %v6653
  %v7029 = vpop.f32.mrb[0].mxu0
  %v7030 = vadd.f32 0.0, %v7029
  %v7031 = vpop.f32.mrb[0].mxu0
  %7032 = vmatprep.mubr.f32.mxu0 0.0
  %7033 = vmatmul.mubr.f32.gmra.mrb[0].mxu0 %v6655
  %v7034 = vpop.f32.mrb[0].mxu0
  %v7035 = vadd.f32 0.0, %v7034
  %v7036 = vpop.f32.mrb[0].mxu0
  %7037 = vmatprep.mubr.f32.mxu0 0.0
  %7038 = vmatmul.mubr.f32.gmra.mrb[0].mxu0 %v6657
  %v7039 = vpop.f32.mrb[0].mxu0
  %v7040 = vadd.f32 0.0, %v7039
  %v7041 = vpop.f32.mrb[0].mxu0
  %7042 = vmatprep.mubr.f32.mxu0 0.0
  %7043 = vmatmul.mubr.f32.gmra.mrb[0].mxu0 %v6659
  %v7044 = vpop.f32.mrb[0].mxu0
  %v7045 = vadd.f32 0.0, %v7044
  %v7046 = vpop.f32.mrb[0].mxu0
  %7047 = vmatprep.mubr.f32.mxu0 0.0
  %7048 = vmatmul.mubr.f32.gmra.mrb[0].mxu0 %v6661
  %v7049 = vpop.f32.mrb[0].mxu0
  %v7050 = vadd.f32 0.0, %v7049
  %v7051 = vpop.f32.mrb[0].mxu0
  %7052 = vmatprep.mubr.f32.mxu0 0.0
  %7053 = vmatmul.mubr.f32.gmra.mrb[0].mxu0 %v6663
  %v7054 = vpop.f32.mrb[0].mxu0
  %v7055 = vadd.f32 0.0, %v7054
  %v7056 = vpop.f32.mrb[0].mxu0
  %7057 = vmatprep.mubr.f32.mxu0 0.0
  %7058 = vmatmul.mubr.f32.gmra.mrb[0].mxu0 %v6665
  %v7059 = vpop.f32.mrb[0].mxu0
  %v7060 = vadd.f32 0.0, %v7059
  %v7061 = vpop.f32.mrb[0].mxu0
  %7062 = vmatprep.mubr.f32.mxu0 0.0
  %7063 = vmatmul.mubr.f32.gmra.mrb[0].mxu0 %v6667
  %v7064 = vpop.f32.mrb[0].mxu0
  %v7065 = vadd.f32 0.0, %v7064
  %v7066 = vpop.f32.mrb[0].mxu0
  %7067 = vmatprep.mubr.f32.mxu0 0.0
  %7068 = vmatmul.mubr.f32.gmra.mrb[0].mxu0 %v6669
  %v7069 = vpop.f32.mrb[0].mxu0
  %v7070 = vadd.f32 0.0, %v7069
  %v7071 = vpop.f32.mrb[0].mxu0
  %7072 = vmatprep.mubr.f32.mxu0 0.0
  %7073 = vmatmul.mubr.f32.gmra.mrb[0].mxu0 %v6671
  %v7074 = vpop.f32.mrb[0].mxu0
  %v7075 = vadd.f32 0.0, %v7074
  %v7076 = vpop.f32.mrb[0].mxu0
  %7077 = vmatprep.mubr.f32.mxu0 0.0
  %7078 = vmatmul.mubr.f32.gmra.mrb[0].mxu0 %v6673
  %v7079 = vpop.f32.mrb[0].mxu0
  %v7080 = vadd.f32 0.0, %v7079
  %v7081 = vpop.f32.mrb[0].mxu0
  %7082 = vmatprep.mubr.f32.mxu0 0.0
  %7083 = vmatmul.mubr.f32.gmra.mrb[0].mxu0 %v6675
  %v7084 = vpop.f32.mrb[0].mxu0
  %v7085 = vadd.f32 0.0, %v7084
  %v7086 = vpop.f32.mrb[0].mxu0
  %7087 = vmatprep.mubr.f32.mxu0 0.0
  %7088 = vmatmul.mubr.f32.gmra.mrb[0].mxu0 %v6677
  %v7089 = vpop.f32.mrb[0].mxu0
  %v7090 = vadd.f32 0.0, %v7089
  %v7091 = vpop.f32.mrb[0].mxu0
  %7092 = vmatprep.mubr.f32.mxu0 0.0
  %7093 = vmatmul.mubr.f32.gmra.mrb[0].mxu0 %v6679
  %v7094 = vpop.f32.mrb[0].mxu0
  %v7095 = vadd.f32 0.0, %v7094
  %v7096 = vpop.f32.mrb[0].mxu0
  %7097 = vmatprep.mubr.f32.mxu0 0.0
  %7098 = vmatmul.mubr.f32.gmra.mrb[0].mxu0 %v6681
  %v7099 = vpop.f32.mrb[0].mxu0
  %v7100 = vadd.f32 0.0, %v7099
  %v7101 = vpop.f32.mrb[0].mxu0
  %7102 = vmatprep.mubr.f32.mxu0 0.0
  %7103 = vmatmul.mubr.f32.gmra.mrb[0].mxu0 %v6683
  %v7104 = vpop.f32.mrb[0].mxu0
  %v7105 = vadd.f32 0.0, %v7104
  %v7106 = vpop.f32.mrb[0].mxu0
  %7107 = vmatprep.mubr.f32.mxu0 0.0
  %7108 = vmatmul.mubr.f32.gmra.mrb[0].mxu0 %v6685
  %v7109 = vpop.f32.mrb[0].mxu0
  %v7110 = vadd.f32 0.0, %v7109
  %v7111 = vpop.f32.mrb[0].mxu0
  %7112 = vmatprep.mubr.f32.mxu0 0.0
  %7113 = vmatmul.mubr.f32.gmra.mrb[0].mxu0 %v6687
  %v7114 = vpop.f32.mrb[0].mxu0
  %v7115 = vadd.f32 0.0, %v7114
  %v7116 = vpop.f32.mrb[0].mxu0
  %7117 = vmatprep.mubr.f32.mxu0 0.0
  %7118 = vmatmul.mubr.f32.gmra.mrb[0].mxu0 %v6689
  %v7119 = vpop.f32.mrb[0].mxu0
  %v7120 = vadd.f32 0.0, %v7119
  %v7121 = vpop.f32.mrb[0].mxu0
  %7122 = vmatprep.mubr.f32.mxu0 0.0
  %7123 = vmatmul.mubr.f32.gmra.mrb[0].mxu0 %v6691
  %v7124 = vpop.f32.mrb[0].mxu0
  %v7125 = vadd.f32 0.0, %v7124
  %v7126 = vpop.f32.mrb[0].mxu0
  %7127 = vmatprep.mubr.f32.mxu0 0.0
  %7128 = vmatmul.mubr.f32.gmra.mrb[0].mxu0 %v6693
  %v7129 = vpop.f32.mrb[0].mxu0
  %v7130 = vadd.f32 0.0, %v7129
  %v7131 = vpop.f32.mrb[0].mxu0
  %7132 = vdwg.mxu0
  %v7133 = vadd.f32 %v6320, %v6765
  %v7134 = vadd.f32 %v6321, %v6770
  %v7135 = vadd.f32 %v6322, %v6775
  %v7136 = vadd.f32 %v6323, %v6780
  %v7137 = vadd.f32 %v6324, %v6785
  %v7138 = vadd.f32 %v6325, %v6790
  %v7139 = vadd.f32 %v6326, %v6795
  %v7140 = vadd.f32 %v6327, %v6800
  %v7141 = vadd.f32 %v6328, %v6805
  %v7142 = vadd.f32 %v6329, %v6810
  %v7143 = vadd.f32 %v6330, %v6815
  %v7144 = vadd.f32 %v6331, %v6820
  %v7145 = vadd.f32 %v6332, %v6825
  %v7146 = vadd.f32 %v6333, %v6830
  %v7147 = vadd.f32 %v6334, %v6835
  %v7148 = vadd.f32 %v6335, %v6840
  %v7149 = vadd.f32 %v6336, %v6845
  %v7150 = vadd.f32 %v6337, %v6850
  %v7151 = vadd.f32 %v6338, %v6855
  %v7152 = vadd.f32 %v6339, %v6860
  %v7153 = vadd.f32 %v6340, %v6865
  %v7154 = vadd.f32 %v6341, %v6870
  %v7155 = vadd.f32 %v6342, %v6875
  %v7156 = vadd.f32 %v6343, %v6880
  %v7157 = vadd.f32 %v6344, %v6885
  %v7158 = vadd.f32 %v6345, %v6890
  %v7159 = vadd.f32 %v6346, %v6895
  %v7160 = vadd.f32 %v6347, %v6900
  %v7161 = vadd.f32 %v6348, %v6905
  %v7162 = vadd.f32 %v6349, %v6910
  %v7163 = vadd.f32 %v6350, %v6915
  %v7164 = vadd.f32 %v6351, %v6920
  %v7165 = vadd.f32 %v6352, %v6925
  %v7166 = vadd.f32 %v6353, %v6930
  %v7167 = vadd.f32 %v6354, %v6935
  %v7168 = vadd.f32 %v6355, %v6940
  %v7169 = vadd.f32 %v6356, %v6945
  %v7170 = vadd.f32 %v6357, %v6950
  %v7171 = vadd.f32 %v6358, %v6955
  %v7172 = vadd.f32 %v6359, %v6960
  %v7173 = vadd.f32 %v6360, %v6965
  %v7174 = vadd.f32 %v6361, %v6970
  %v7175 = vadd.f32 %v6362, %v6975
  %v7176 = vadd.f32 %v6363, %v6980
  %v7177 = vadd.f32 %v6364, %v6985
  %v7178 = vadd.f32 %v6365, %v6990
  %v7179 = vadd.f32 %v6366, %v6995
  %v7180 = vadd.f32 %v6367, %v7000
  %v7181 = vadd.f32 %v6368, %v7005
  %v7182 = vadd.f32 %v6369, %v7010
  %v7183 = vadd.f32 %v6370, %v7015
  %v7184 = vadd.f32 %v6371, %v7020
  %v7185 = vadd.f32 %v6372, %v7025
  %v7186 = vadd.f32 %v6373, %v7030
  %v7187 = vadd.f32 %v6374, %v7035
  %v7188 = vadd.f32 %v6375, %v7040
  %v7189 = vadd.f32 %v6376, %v7045
  %v7190 = vadd.f32 %v6377, %v7050
  %v7191 = vadd.f32 %v6378, %v7055
  %v7192 = vadd.f32 %v6379, %v7060
  %v7193 = vadd.f32 %v6380, %v7065
  %v7194 = vadd.f32 %v6381, %v7070
  %v7195 = vadd.f32 %v6382, %v7075
  %v7196 = vadd.f32 %v6383, %v7080
  %v7197 = vadd.f32 %v6384, %v7085
  %v7198 = vadd.f32 %v6385, %v7090
  %v7199 = vadd.f32 %v6386, %v7095
  %v7200 = vadd.f32 %v6387, %v7100
  %v7201 = vadd.f32 %v6388, %v7105
  %v7202 = vadd.f32 %v6389, %v7110
  %v7203 = vadd.f32 %v6390, %v7115
  %v7204 = vadd.f32 %v6391, %v7120
  %v7205 = vadd.f32 %v6392, %v7125
  %v7206 = vadd.f32 %v6393, %v7130
  %v7207 = vld [vmem:[%s2] sm:$0x1]
  %v7209 = vlaneseq
  %v7210 = vshrl.u32 %v7209, 7
  %v7211 = vsub.s32 0, %v7210
  %v7212 = vrot.slane %v7207, %v7211
  %v7214 = vmul.f32 %v7133, %v7212
  %v7215 = vmul.f32 %v7134, %v7212
  %v7216 = vmul.f32 %v7135, %v7212
  %v7217 = vmul.f32 %v7136, %v7212
  %v7218 = vmul.f32 %v7137, %v7212
  %v7219 = vmul.f32 %v7138, %v7212
  %v7220 = vmul.f32 %v7139, %v7212
  %v7221 = vmul.f32 %v7140, %v7212
  %v7222 = vmul.f32 %v7141, %v7212
  %v7223 = vmul.f32 %v7142, %v7212
  %v7224 = vmul.f32 %v7143, %v7212
  %v7225 = vmul.f32 %v7144, %v7212
  %v7226 = vmul.f32 %v7145, %v7212
  %v7227 = vmul.f32 %v7146, %v7212
  %v7228 = vmul.f32 %v7147, %v7212
  %v7229 = vmul.f32 %v7148, %v7212
  %v7230 = vmul.f32 %v7149, %v7212
  %v7231 = vmul.f32 %v7150, %v7212
  %v7232 = vmul.f32 %v7151, %v7212
  %v7233 = vmul.f32 %v7152, %v7212
  %v7234 = vmul.f32 %v7153, %v7212
  %v7235 = vmul.f32 %v7154, %v7212
  %v7236 = vmul.f32 %v7155, %v7212
  %v7237 = vmul.f32 %v7156, %v7212
  %v7238 = vmul.f32 %v7157, %v7212
  %v7239 = vmul.f32 %v7158, %v7212
  %v7240 = vmul.f32 %v7159, %v7212
  %v7241 = vmul.f32 %v7160, %v7212
  %v7242 = vmul.f32 %v7161, %v7212
  %v7243 = vmul.f32 %v7162, %v7212
  %v7244 = vmul.f32 %v7163, %v7212
  %v7245 = vmul.f32 %v7164, %v7212
  %v7246 = vmul.f32 %v7165, %v7212
  %v7247 = vmul.f32 %v7166, %v7212
  %v7248 = vmul.f32 %v7167, %v7212
  %v7249 = vmul.f32 %v7168, %v7212
  %v7250 = vmul.f32 %v7169, %v7212
  %v7251 = vmul.f32 %v7170, %v7212
  %v7252 = vmul.f32 %v7171, %v7212
  %v7253 = vmul.f32 %v7172, %v7212
  %v7254 = vmul.f32 %v7173, %v7212
  %v7255 = vmul.f32 %v7174, %v7212
  %v7256 = vmul.f32 %v7175, %v7212
  %v7257 = vmul.f32 %v7176, %v7212
  %v7258 = vmul.f32 %v7177, %v7212
  %v7259 = vmul.f32 %v7178, %v7212
  %v7260 = vmul.f32 %v7179, %v7212
  %v7261 = vmul.f32 %v7180, %v7212
  %v7262 = vmul.f32 %v7181, %v7212
  %v7263 = vmul.f32 %v7182, %v7212
  %v7264 = vmul.f32 %v7183, %v7212
  %v7265 = vmul.f32 %v7184, %v7212
  %v7266 = vmul.f32 %v7185, %v7212
  %v7267 = vmul.f32 %v7186, %v7212
  %v7268 = vmul.f32 %v7187, %v7212
  %v7269 = vmul.f32 %v7188, %v7212
  %v7270 = vmul.f32 %v7189, %v7212
  %v7271 = vmul.f32 %v7190, %v7212
  %v7272 = vmul.f32 %v7191, %v7212
  %v7273 = vmul.f32 %v7192, %v7212
  %v7274 = vmul.f32 %v7193, %v7212
  %v7275 = vmul.f32 %v7194, %v7212
  %v7276 = vmul.f32 %v7195, %v7212
  %v7277 = vmul.f32 %v7196, %v7212
  %v7278 = vmul.f32 %v7197, %v7212
  %v7279 = vmul.f32 %v7198, %v7212
  %v7280 = vmul.f32 %v7199, %v7212
  %v7281 = vmul.f32 %v7200, %v7212
  %v7282 = vmul.f32 %v7201, %v7212
  %v7283 = vmul.f32 %v7202, %v7212
  %v7284 = vmul.f32 %v7203, %v7212
  %v7285 = vmul.f32 %v7204, %v7212
  %v7286 = vmul.f32 %v7205, %v7212
  %v7287 = vmul.f32 %v7206, %v7212
  %v7288 = vld [vmem:[%s3] sm:$0x1]
  %v7290 = vlaneseq
  %v7291 = vshrl.u32 %v7290, 7
  %v7292 = vsub.s32 0, %v7291
  %v7293 = vrot.slane %v7288, %v7292
  %v7295 = vadd.f32 %v7214, %v7293
  %v7296 = vadd.f32 %v7215, %v7293
  %v7297 = vadd.f32 %v7216, %v7293
  %v7298 = vadd.f32 %v7217, %v7293
  %v7299 = vadd.f32 %v7218, %v7293
  %v7300 = vadd.f32 %v7219, %v7293
  %v7301 = vadd.f32 %v7220, %v7293
  %v7302 = vadd.f32 %v7221, %v7293
  %v7303 = vadd.f32 %v7222, %v7293
  %v7304 = vadd.f32 %v7223, %v7293
  %v7305 = vadd.f32 %v7224, %v7293
  %v7306 = vadd.f32 %v7225, %v7293
  %v7307 = vadd.f32 %v7226, %v7293
  %v7308 = vadd.f32 %v7227, %v7293
  %v7309 = vadd.f32 %v7228, %v7293
  %v7310 = vadd.f32 %v7229, %v7293
  %v7311 = vadd.f32 %v7230, %v7293
  %v7312 = vadd.f32 %v7231, %v7293
  %v7313 = vadd.f32 %v7232, %v7293
  %v7314 = vadd.f32 %v7233, %v7293
  %v7315 = vadd.f32 %v7234, %v7293
  %v7316 = vadd.f32 %v7235, %v7293
  %v7317 = vadd.f32 %v7236, %v7293
  %v7318 = vadd.f32 %v7237, %v7293
  %v7319 = vadd.f32 %v7238, %v7293
  %v7320 = vadd.f32 %v7239, %v7293
  %v7321 = vadd.f32 %v7240, %v7293
  %v7322 = vadd.f32 %v7241, %v7293
  %v7323 = vadd.f32 %v7242, %v7293
  %v7324 = vadd.f32 %v7243, %v7293
  %v7325 = vadd.f32 %v7244, %v7293
  %v7326 = vadd.f32 %v7245, %v7293
  %v7327 = vadd.f32 %v7246, %v7293
  %v7328 = vadd.f32 %v7247, %v7293
  %v7329 = vadd.f32 %v7248, %v7293
  %v7330 = vadd.f32 %v7249, %v7293
  %v7331 = vadd.f32 %v7250, %v7293
  %v7332 = vadd.f32 %v7251, %v7293
  %v7333 = vadd.f32 %v7252, %v7293
  %v7334 = vadd.f32 %v7253, %v7293
  %v7335 = vadd.f32 %v7254, %v7293
  %v7336 = vadd.f32 %v7255, %v7293
  %v7337 = vadd.f32 %v7256, %v7293
  %v7338 = vadd.f32 %v7257, %v7293
  %v7339 = vadd.f32 %v7258, %v7293
  %v7340 = vadd.f32 %v7259, %v7293
  %v7341 = vadd.f32 %v7260, %v7293
  %v7342 = vadd.f32 %v7261, %v7293
  %v7343 = vadd.f32 %v7262, %v7293
  %v7344 = vadd.f32 %v7263, %v7293
  %v7345 = vadd.f32 %v7264, %v7293
  %v7346 = vadd.f32 %v7265, %v7293
  %v7347 = vadd.f32 %v7266, %v7293
  %v7348 = vadd.f32 %v7267, %v7293
  %v7349 = vadd.f32 %v7268, %v7293
  %v7350 = vadd.f32 %v7269, %v7293
  %v7351 = vadd.f32 %v7270, %v7293
  %v7352 = vadd.f32 %v7271, %v7293
  %v7353 = vadd.f32 %v7272, %v7293
  %v7354 = vadd.f32 %v7273, %v7293
  %v7355 = vadd.f32 %v7274, %v7293
  %v7356 = vadd.f32 %v7275, %v7293
  %v7357 = vadd.f32 %v7276, %v7293
  %v7358 = vadd.f32 %v7277, %v7293
  %v7359 = vadd.f32 %v7278, %v7293
  %v7360 = vadd.f32 %v7279, %v7293
  %v7361 = vadd.f32 %v7280, %v7293
  %v7362 = vadd.f32 %v7281, %v7293
  %v7363 = vadd.f32 %v7282, %v7293
  %v7364 = vadd.f32 %v7283, %v7293
  %v7365 = vadd.f32 %v7284, %v7293
  %v7366 = vadd.f32 %v7285, %v7293
  %v7367 = vadd.f32 %v7286, %v7293
  %v7368 = vadd.f32 %v7287, %v7293
  %v7369 = vadd.f32 %v7295, 3.0
  %v7370 = vadd.f32 %v7296, 3.0
  %v7371 = vadd.f32 %v7297, 3.0
  %v7372 = vadd.f32 %v7298, 3.0
  %v7373 = vadd.f32 %v7299, 3.0
  %v7374 = vadd.f32 %v7300, 3.0
  %v7375 = vadd.f32 %v7301, 3.0
  %v7376 = vadd.f32 %v7302, 3.0
  %v7377 = vadd.f32 %v7303, 3.0
  %v7378 = vadd.f32 %v7304, 3.0
  %v7379 = vadd.f32 %v7305, 3.0
  %v7380 = vadd.f32 %v7306, 3.0
  %v7381 = vadd.f32 %v7307, 3.0
  %v7382 = vadd.f32 %v7308, 3.0
  %v7383 = vadd.f32 %v7309, 3.0
  %v7384 = vadd.f32 %v7310, 3.0
  %v7385 = vadd.f32 %v7311, 3.0
  %v7386 = vadd.f32 %v7312, 3.0
  %v7387 = vadd.f32 %v7313, 3.0
  %v7388 = vadd.f32 %v7314, 3.0
  %v7389 = vadd.f32 %v7315, 3.0
  %v7390 = vadd.f32 %v7316, 3.0
  %v7391 = vadd.f32 %v7317, 3.0
  %v7392 = vadd.f32 %v7318, 3.0
  %v7393 = vadd.f32 %v7319, 3.0
  %v7394 = vadd.f32 %v7320, 3.0
  %v7395 = vadd.f32 %v7321, 3.0
  %v7396 = vadd.f32 %v7322, 3.0
  %v7397 = vadd.f32 %v7323, 3.0
  %v7398 = vadd.f32 %v7324, 3.0
  %v7399 = vadd.f32 %v7325, 3.0
  %v7400 = vadd.f32 %v7326, 3.0
  %v7401 = vadd.f32 %v7327, 3.0
  %v7402 = vadd.f32 %v7328, 3.0
  %v7403 = vadd.f32 %v7329, 3.0
  %v7404 = vadd.f32 %v7330, 3.0
  %v7405 = vadd.f32 %v7331, 3.0
  %v7406 = vadd.f32 %v7332, 3.0
  %v7407 = vadd.f32 %v7333, 3.0
  %v7408 = vadd.f32 %v7334, 3.0
  %v7409 = vadd.f32 %v7335, 3.0
  %v7410 = vadd.f32 %v7336, 3.0
  %v7411 = vadd.f32 %v7337, 3.0
  %v7412 = vadd.f32 %v7338, 3.0
  %v7413 = vadd.f32 %v7339, 3.0
  %v7414 = vadd.f32 %v7340, 3.0
  %v7415 = vadd.f32 %v7341, 3.0
  %v7416 = vadd.f32 %v7342, 3.0
  %v7417 = vadd.f32 %v7343, 3.0
  %v7418 = vadd.f32 %v7344, 3.0
  %v7419 = vadd.f32 %v7345, 3.0
  %v7420 = vadd.f32 %v7346, 3.0
  %v7421 = vadd.f32 %v7347, 3.0
  %v7422 = vadd.f32 %v7348, 3.0
  %v7423 = vadd.f32 %v7349, 3.0
  %v7424 = vadd.f32 %v7350, 3.0
  %v7425 = vadd.f32 %v7351, 3.0
  %v7426 = vadd.f32 %v7352, 3.0
  %v7427 = vadd.f32 %v7353, 3.0
  %v7428 = vadd.f32 %v7354, 3.0
  %v7429 = vadd.f32 %v7355, 3.0
  %v7430 = vadd.f32 %v7356, 3.0
  %v7431 = vadd.f32 %v7357, 3.0
  %v7432 = vadd.f32 %v7358, 3.0
  %v7433 = vadd.f32 %v7359, 3.0
  %v7434 = vadd.f32 %v7360, 3.0
  %v7435 = vadd.f32 %v7361, 3.0
  %v7436 = vadd.f32 %v7362, 3.0
  %v7437 = vadd.f32 %v7363, 3.0
  %v7438 = vadd.f32 %v7364, 3.0
  %v7439 = vadd.f32 %v7365, 3.0
  %v7440 = vadd.f32 %v7366, 3.0
  %v7441 = vadd.f32 %v7367, 3.0
  %v7442 = vadd.f32 %v7368, 3.0
  %v7443 = vmax.f32 %v7369, 0.0
  %v7444 = vmax.f32 %v7370, 0.0
  %v7445 = vmax.f32 %v7371, 0.0
  %v7446 = vmax.f32 %v7372, 0.0
  %v7447 = vmax.f32 %v7373, 0.0
  %v7448 = vmax.f32 %v7374, 0.0
  %v7449 = vmax.f32 %v7375, 0.0
  %v7450 = vmax.f32 %v7376, 0.0
  %v7451 = vmax.f32 %v7377, 0.0
  %v7452 = vmax.f32 %v7378, 0.0
  %v7453 = vmax.f32 %v7379, 0.0
  %v7454 = vmax.f32 %v7380, 0.0
  %v7455 = vmax.f32 %v7381, 0.0
  %v7456 = vmax.f32 %v7382, 0.0
  %v7457 = vmax.f32 %v7383, 0.0
  %v7458 = vmax.f32 %v7384, 0.0
  %v7459 = vmax.f32 %v7385, 0.0
  %v7460 = vmax.f32 %v7386, 0.0
  %v7461 = vmax.f32 %v7387, 0.0
  %v7462 = vmax.f32 %v7388, 0.0
  %v7463 = vmax.f32 %v7389, 0.0
  %v7464 = vmax.f32 %v7390, 0.0
  %v7465 = vmax.f32 %v7391, 0.0
  %v7466 = vmax.f32 %v7392, 0.0
  %v7467 = vmax.f32 %v7393, 0.0
  %v7468 = vmax.f32 %v7394, 0.0
  %v7469 = vmax.f32 %v7395, 0.0
  %v7470 = vmax.f32 %v7396, 0.0
  %v7471 = vmax.f32 %v7397, 0.0
  %v7472 = vmax.f32 %v7398, 0.0
  %v7473 = vmax.f32 %v7399, 0.0
  %v7474 = vmax.f32 %v7400, 0.0
  %v7475 = vmax.f32 %v7401, 0.0
  %v7476 = vmax.f32 %v7402, 0.0
  %v7477 = vmax.f32 %v7403, 0.0
  %v7478 = vmax.f32 %v7404, 0.0
  %v7479 = vmax.f32 %v7405, 0.0
  %v7480 = vmax.f32 %v7406, 0.0
  %v7481 = vmax.f32 %v7407, 0.0
  %v7482 = vmax.f32 %v7408, 0.0
  %v7483 = vmax.f32 %v7409, 0.0
  %v7484 = vmax.f32 %v7410, 0.0
  %v7485 = vmax.f32 %v7411, 0.0
  %v7486 = vmax.f32 %v7412, 0.0
  %v7487 = vmax.f32 %v7413, 0.0
  %v7488 = vmax.f32 %v7414, 0.0
  %v7489 = vmax.f32 %v7415, 0.0
  %v7490 = vmax.f32 %v7416, 0.0
  %v7491 = vmax.f32 %v7417, 0.0
  %v7492 = vmax.f32 %v7418, 0.0
  %v7493 = vmax.f32 %v7419, 0.0
  %v7494 = vmax.f32 %v7420, 0.0
  %v7495 = vmax.f32 %v7421, 0.0
  %v7496 = vmax.f32 %v7422, 0.0
  %v7497 = vmax.f32 %v7423, 0.0
  %v7498 = vmax.f32 %v7424, 0.0
  %v7499 = vmax.f32 %v7425, 0.0
  %v7500 = vmax.f32 %v7426, 0.0
  %v7501 = vmax.f32 %v7427, 0.0
  %v7502 = vmax.f32 %v7428, 0.0
  %v7503 = vmax.f32 %v7429, 0.0
  %v7504 = vmax.f32 %v7430, 0.0
  %v7505 = vmax.f32 %v7431, 0.0
  %v7506 = vmax.f32 %v7432, 0.0
  %v7507 = vmax.f32 %v7433, 0.0
  %v7508 = vmax.f32 %v7434, 0.0
  %v7509 = vmax.f32 %v7435, 0.0
  %v7510 = vmax.f32 %v7436, 0.0
  %v7511 = vmax.f32 %v7437, 0.0
  %v7512 = vmax.f32 %v7438, 0.0
  %v7513 = vmax.f32 %v7439, 0.0
  %v7514 = vmax.f32 %v7440, 0.0
  %v7515 = vmax.f32 %v7441, 0.0
  %v7516 = vmax.f32 %v7442, 0.0
  %v7517 = vmin.f32 %v7443, 6.0
  %v7518 = vmin.f32 %v7444, 6.0
  %v7519 = vmin.f32 %v7445, 6.0
  %v7520 = vmin.f32 %v7446, 6.0
  %v7521 = vmin.f32 %v7447, 6.0
  %v7522 = vmin.f32 %v7448, 6.0
  %v7523 = vmin.f32 %v7449, 6.0
  %v7524 = vmin.f32 %v7450, 6.0
  %v7525 = vmin.f32 %v7451, 6.0
  %v7526 = vmin.f32 %v7452, 6.0
  %v7527 = vmin.f32 %v7453, 6.0
  %v7528 = vmin.f32 %v7454, 6.0
  %v7529 = vmin.f32 %v7455, 6.0
  %v7530 = vmin.f32 %v7456, 6.0
  %v7531 = vmin.f32 %v7457, 6.0
  %v7532 = vmin.f32 %v7458, 6.0
  %v7533 = vmin.f32 %v7459, 6.0
  %v7534 = vmin.f32 %v7460, 6.0
  %v7535 = vmin.f32 %v7461, 6.0
  %v7536 = vmin.f32 %v7462, 6.0
  %v7537 = vmin.f32 %v7463, 6.0
  %v7538 = vmin.f32 %v7464, 6.0
  %v7539 = vmin.f32 %v7465, 6.0
  %v7540 = vmin.f32 %v7466, 6.0
  %v7541 = vmin.f32 %v7467, 6.0
  %v7542 = vmin.f32 %v7468, 6.0
  %v7543 = vmin.f32 %v7469, 6.0
  %v7544 = vmin.f32 %v7470, 6.0
  %v7545 = vmin.f32 %v7471, 6.0
  %v7546 = vmin.f32 %v7472, 6.0
  %v7547 = vmin.f32 %v7473, 6.0
  %v7548 = vmin.f32 %v7474, 6.0
  %v7549 = vmin.f32 %v7475, 6.0
  %v7550 = vmin.f32 %v7476, 6.0
  %v7551 = vmin.f32 %v7477, 6.0
  %v7552 = vmin.f32 %v7478, 6.0
  %v7553 = vmin.f32 %v7479, 6.0
  %v7554 = vmin.f32 %v7480, 6.0
  %v7555 = vmin.f32 %v7481, 6.0
  %v7556 = vmin.f32 %v7482, 6.0
  %v7557 = vmin.f32 %v7483, 6.0
  %v7558 = vmin.f32 %v7484, 6.0
  %v7559 = vmin.f32 %v7485, 6.0
  %v7560 = vmin.f32 %v7486, 6.0
  %v7561 = vmin.f32 %v7487, 6.0
  %v7562 = vmin.f32 %v7488, 6.0
  %v7563 = vmin.f32 %v7489, 6.0
  %v7564 = vmin.f32 %v7490, 6.0
  %v7565 = vmin.f32 %v7491, 6.0
  %v7566 = vmin.f32 %v7492, 6.0
  %v7567 = vmin.f32 %v7493, 6.0
  %v7568 = vmin.f32 %v7494, 6.0
  %v7569 = vmin.f32 %v7495, 6.0
  %v7570 = vmin.f32 %v7496, 6.0
  %v7571 = vmin.f32 %v7497, 6.0
  %v7572 = vmin.f32 %v7498, 6.0
  %v7573 = vmin.f32 %v7499, 6.0
  %v7574 = vmin.f32 %v7500, 6.0
  %v7575 = vmin.f32 %v7501, 6.0
  %v7576 = vmin.f32 %v7502, 6.0
  %v7577 = vmin.f32 %v7503, 6.0
  %v7578 = vmin.f32 %v7504, 6.0
  %v7579 = vmin.f32 %v7505, 6.0
  %v7580 = vmin.f32 %v7506, 6.0
  %v7581 = vmin.f32 %v7507, 6.0
  %v7582 = vmin.f32 %v7508, 6.0
  %v7583 = vmin.f32 %v7509, 6.0
  %v7584 = vmin.f32 %v7510, 6.0
  %v7585 = vmin.f32 %v7511, 6.0
  %v7586 = vmin.f32 %v7512, 6.0
  %v7587 = vmin.f32 %v7513, 6.0
  %v7588 = vmin.f32 %v7514, 6.0
  %v7589 = vmin.f32 %v7515, 6.0
  %v7590 = vmin.f32 %v7516, 6.0
  %v7591 = vmul.f32 %v7295, %v7517
  %v7592 = vmul.f32 %v7296, %v7518
  %v7593 = vmul.f32 %v7297, %v7519
  %v7594 = vmul.f32 %v7298, %v7520
  %v7595 = vmul.f32 %v7299, %v7521
  %v7596 = vmul.f32 %v7300, %v7522
  %v7597 = vmul.f32 %v7301, %v7523
  %v7598 = vmul.f32 %v7302, %v7524
  %v7599 = vmul.f32 %v7303, %v7525
  %v7600 = vmul.f32 %v7304, %v7526
  %v7601 = vmul.f32 %v7305, %v7527
  %v7602 = vmul.f32 %v7306, %v7528
  %v7603 = vmul.f32 %v7307, %v7529
  %v7604 = vmul.f32 %v7308, %v7530
  %v7605 = vmul.f32 %v7309, %v7531
  %v7606 = vmul.f32 %v7310, %v7532
  %v7607 = vmul.f32 %v7311, %v7533
  %v7608 = vmul.f32 %v7312, %v7534
  %v7609 = vmul.f32 %v7313, %v7535
  %v7610 = vmul.f32 %v7314, %v7536
  %v7611 = vmul.f32 %v7315, %v7537
  %v7612 = vmul.f32 %v7316, %v7538
  %v7613 = vmul.f32 %v7317, %v7539
  %v7614 = vmul.f32 %v7318, %v7540
  %v7615 = vmul.f32 %v7319, %v7541
  %v7616 = vmul.f32 %v7320, %v7542
  %v7617 = vmul.f32 %v7321, %v7543
  %v7618 = vmul.f32 %v7322, %v7544
  %v7619 = vmul.f32 %v7323, %v7545
  %v7620 = vmul.f32 %v7324, %v7546
  %v7621 = vmul.f32 %v7325, %v7547
  %v7622 = vmul.f32 %v7326, %v7548
  %v7623 = vmul.f32 %v7327, %v7549
  %v7624 = vmul.f32 %v7328, %v7550
  %v7625 = vmul.f32 %v7329, %v7551
  %v7626 = vmul.f32 %v7330, %v7552
  %v7627 = vmul.f32 %v7331, %v7553
  %v7628 = vmul.f32 %v7332, %v7554
  %v7629 = vmul.f32 %v7333, %v7555
  %v7630 = vmul.f32 %v7334, %v7556
  %v7631 = vmul.f32 %v7335, %v7557
  %v7632 = vmul.f32 %v7336, %v7558
  %v7633 = vmul.f32 %v7337, %v7559
  %v7634 = vmul.f32 %v7338, %v7560
  %v7635 = vmul.f32 %v7339, %v7561
  %v7636 = vmul.f32 %v7340, %v7562
  %v7637 = vmul.f32 %v7341, %v7563
  %v7638 = vmul.f32 %v7342, %v7564
  %v7639 = vmul.f32 %v7343, %v7565
  %v7640 = vmul.f32 %v7344, %v7566
  %v7641 = vmul.f32 %v7345, %v7567
  %v7642 = vmul.f32 %v7346, %v7568
  %v7643 = vmul.f32 %v7347, %v7569
  %v7644 = vmul.f32 %v7348, %v7570
  %v7645 = vmul.f32 %v7349, %v7571
  %v7646 = vmul.f32 %v7350, %v7572
  %v7647 = vmul.f32 %v7351, %v7573
  %v7648 = vmul.f32 %v7352, %v7574
  %v7649 = vmul.f32 %v7353, %v7575
  %v7650 = vmul.f32 %v7354, %v7576
  %v7651 = vmul.f32 %v7355, %v7577
  %v7652 = vmul.f32 %v7356, %v7578
  %v7653 = vmul.f32 %v7357, %v7579
  %v7654 = vmul.f32 %v7358, %v7580
  %v7655 = vmul.f32 %v7359, %v7581
  %v7656 = vmul.f32 %v7360, %v7582
  %v7657 = vmul.f32 %v7361, %v7583
  %v7658 = vmul.f32 %v7362, %v7584
  %v7659 = vmul.f32 %v7363, %v7585
  %v7660 = vmul.f32 %v7364, %v7586
  %v7661 = vmul.f32 %v7365, %v7587
  %v7662 = vmul.f32 %v7366, %v7588
  %v7663 = vmul.f32 %v7367, %v7589
  %v7664 = vmul.f32 %v7368, %v7590
  %v7665 = vmul.f32 %v7591, 0.16666667
  %v7666 = vmul.f32 %v7592, 0.16666667
  %v7667 = vmul.f32 %v7593, 0.16666667
  %v7668 = vmul.f32 %v7594, 0.16666667
  %v7669 = vmul.f32 %v7595, 0.16666667
  %v7670 = vmul.f32 %v7596, 0.16666667
  %v7671 = vmul.f32 %v7597, 0.16666667
  %v7672 = vmul.f32 %v7598, 0.16666667
  %v7673 = vmul.f32 %v7599, 0.16666667
  %v7674 = vmul.f32 %v7600, 0.16666667
  %v7675 = vmul.f32 %v7601, 0.16666667
  %v7676 = vmul.f32 %v7602, 0.16666667
  %v7677 = vmul.f32 %v7603, 0.16666667
  %v7678 = vmul.f32 %v7604, 0.16666667
  %v7679 = vmul.f32 %v7605, 0.16666667
  %v7680 = vmul.f32 %v7606, 0.16666667
  %v7681 = vmul.f32 %v7607, 0.16666667
  %v7682 = vmul.f32 %v7608, 0.16666667
  %v7683 = vmul.f32 %v7609, 0.16666667
  %v7684 = vmul.f32 %v7610, 0.16666667
  %v7685 = vmul.f32 %v7611, 0.16666667
  %v7686 = vmul.f32 %v7612, 0.16666667
  %v7687 = vmul.f32 %v7613, 0.16666667
  %v7688 = vmul.f32 %v7614, 0.16666667
  %v7689 = vmul.f32 %v7615, 0.16666667
  %v7690 = vmul.f32 %v7616, 0.16666667
  %v7691 = vmul.f32 %v7617, 0.16666667
  %v7692 = vmul.f32 %v7618, 0.16666667
  %v7693 = vmul.f32 %v7619, 0.16666667
  %v7694 = vmul.f32 %v7620, 0.16666667
  %v7695 = vmul.f32 %v7621, 0.16666667
  %v7696 = vmul.f32 %v7622, 0.16666667
  %v7697 = vmul.f32 %v7623, 0.16666667
  %v7698 = vmul.f32 %v7624, 0.16666667
  %v7699 = vmul.f32 %v7625, 0.16666667
  %v7700 = vmul.f32 %v7626, 0.16666667
  %v7701 = vmul.f32 %v7627, 0.16666667
  %v7702 = vmul.f32 %v7628, 0.16666667
  %v7703 = vmul.f32 %v7629, 0.16666667
  %v7704 = vmul.f32 %v7630, 0.16666667
  %v7705 = vmul.f32 %v7631, 0.16666667
  %v7706 = vmul.f32 %v7632, 0.16666667
  %v7707 = vmul.f32 %v7633, 0.16666667
  %v7708 = vmul.f32 %v7634, 0.16666667
  %v7709 = vmul.f32 %v7635, 0.16666667
  %v7710 = vmul.f32 %v7636, 0.16666667
  %v7711 = vmul.f32 %v7637, 0.16666667
  %v7712 = vmul.f32 %v7638, 0.16666667
  %v7713 = vmul.f32 %v7639, 0.16666667
  %v7714 = vmul.f32 %v7640, 0.16666667
  %v7715 = vmul.f32 %v7641, 0.16666667
  %v7716 = vmul.f32 %v7642, 0.16666667
  %v7717 = vmul.f32 %v7643, 0.16666667
  %v7718 = vmul.f32 %v7644, 0.16666667
  %v7719 = vmul.f32 %v7645, 0.16666667
  %v7720 = vmul.f32 %v7646, 0.16666667
  %v7721 = vmul.f32 %v7647, 0.16666667
  %v7722 = vmul.f32 %v7648, 0.16666667
  %v7723 = vmul.f32 %v7649, 0.16666667
  %v7724 = vmul.f32 %v7650, 0.16666667
  %v7725 = vmul.f32 %v7651, 0.16666667
  %v7726 = vmul.f32 %v7652, 0.16666667
  %v7727 = vmul.f32 %v7653, 0.16666667
  %v7728 = vmul.f32 %v7654, 0.16666667
  %v7729 = vmul.f32 %v7655, 0.16666667
  %v7730 = vmul.f32 %v7656, 0.16666667
  %v7731 = vmul.f32 %v7657, 0.16666667
  %v7732 = vmul.f32 %v7658, 0.16666667
  %v7733 = vmul.f32 %v7659, 0.16666667
  %v7734 = vmul.f32 %v7660, 0.16666667
  %v7735 = vmul.f32 %v7661, 0.16666667
  %v7736 = vmul.f32 %v7662, 0.16666667
  %v7737 = vmul.f32 %v7663, 0.16666667
  %v7738 = vmul.f32 %v7664, 0.16666667
  %v7739 = vpack.c.bf16 %v7666, %v7665
  %v7740 = vpack.c.bf16 %v7668, %v7667
  %v7741 = vpack.c.bf16 %v7670, %v7669
  %v7742 = vpack.c.bf16 %v7672, %v7671
  %v7743 = vpack.c.bf16 %v7674, %v7673
  %v7744 = vpack.c.bf16 %v7676, %v7675
  %v7745 = vpack.c.bf16 %v7678, %v7677
  %v7746 = vpack.c.bf16 %v7680, %v7679
  %v7747 = vpack.c.bf16 %v7682, %v7681
  %v7748 = vpack.c.bf16 %v7684, %v7683
  %v7749 = vpack.c.bf16 %v7686, %v7685
  %v7750 = vpack.c.bf16 %v7688, %v7687
  %v7751 = vpack.c.bf16 %v7690, %v7689
  %v7752 = vpack.c.bf16 %v7692, %v7691
  %v7753 = vpack.c.bf16 %v7694, %v7693
  %v7754 = vpack.c.bf16 %v7696, %v7695
  %v7755 = vpack.c.bf16 %v7698, %v7697
  %v7756 = vpack.c.bf16 %v7700, %v7699
  %v7757 = vpack.c.bf16 %v7702, %v7701
  %v7758 = vpack.c.bf16 %v7704, %v7703
  %v7759 = vpack.c.bf16 %v7706, %v7705
  %v7760 = vpack.c.bf16 %v7708, %v7707
  %v7761 = vpack.c.bf16 %v7710, %v7709
  %v7762 = vpack.c.bf16 %v7712, %v7711
  %v7763 = vpack.c.bf16 %v7714, %v7713
  %v7764 = vpack.c.bf16 %v7716, %v7715
  %v7765 = vpack.c.bf16 %v7718, %v7717
  %v7766 = vpack.c.bf16 %v7720, %v7719
  %v7767 = vpack.c.bf16 %v7722, %v7721
  %v7768 = vpack.c.bf16 %v7724, %v7723
  %v7769 = vpack.c.bf16 %v7726, %v7725
  %v7770 = vpack.c.bf16 %v7728, %v7727
  %v7771 = vpack.c.bf16 %v7730, %v7729
  %v7772 = vpack.c.bf16 %v7732, %v7731
  %v7773 = vpack.c.bf16 %v7734, %v7733
  %v7774 = vpack.c.bf16 %v7736, %v7735
  %v7775 = vpack.c.bf16 %v7738, %v7737
  %v7813 = vunpack.c.l.b16 %v7739
  %v7814 = vunpack.c.h.b16 %v7739
  %v7815 = vunpack.c.l.b16 %v7740
  %v7816 = vunpack.c.h.b16 %v7740
  %v7817 = vunpack.c.l.b16 %v7741
  %v7818 = vunpack.c.h.b16 %v7741
  %v7819 = vunpack.c.l.b16 %v7742
  %v7820 = vunpack.c.h.b16 %v7742
  %v7821 = vunpack.c.l.b16 %v7743
  %v7822 = vunpack.c.h.b16 %v7743
  %v7823 = vunpack.c.l.b16 %v7744
  %v7824 = vunpack.c.h.b16 %v7744
  %v7825 = vunpack.c.l.b16 %v7745
  %v7826 = vunpack.c.h.b16 %v7745
  %v7827 = vunpack.c.l.b16 %v7746
  %v7828 = vunpack.c.h.b16 %v7746
  %v7829 = vunpack.c.l.b16 %v7747
  %v7830 = vunpack.c.h.b16 %v7747
  %v7831 = vunpack.c.l.b16 %v7748
  %v7832 = vunpack.c.h.b16 %v7748
  %v7833 = vunpack.c.l.b16 %v7749
  %v7834 = vunpack.c.h.b16 %v7749
  %v7835 = vunpack.c.l.b16 %v7750
  %v7836 = vunpack.c.h.b16 %v7750
  %v7837 = vunpack.c.l.b16 %v7751
  %v7838 = vunpack.c.h.b16 %v7751
  %v7839 = vunpack.c.l.b16 %v7752
  %v7840 = vunpack.c.h.b16 %v7752
  %v7841 = vunpack.c.l.b16 %v7753
  %v7842 = vunpack.c.h.b16 %v7753
  %v7843 = vunpack.c.l.b16 %v7754
  %v7844 = vunpack.c.h.b16 %v7754
  %v7845 = vunpack.c.l.b16 %v7755
  %v7846 = vunpack.c.h.b16 %v7755
  %v7847 = vunpack.c.l.b16 %v7756
  %v7848 = vunpack.c.h.b16 %v7756
  %v7849 = vunpack.c.l.b16 %v7757
  %v7850 = vunpack.c.h.b16 %v7757
  %v7851 = vunpack.c.l.b16 %v7758
  %v7852 = vunpack.c.h.b16 %v7758
  %v7853 = vunpack.c.l.b16 %v7759
  %v7854 = vunpack.c.h.b16 %v7759
  %v7855 = vunpack.c.l.b16 %v7760
  %v7856 = vunpack.c.h.b16 %v7760
  %v7857 = vunpack.c.l.b16 %v7761
  %v7858 = vunpack.c.h.b16 %v7761
  %v7859 = vunpack.c.l.b16 %v7762
  %v7860 = vunpack.c.h.b16 %v7762
  %v7861 = vunpack.c.l.b16 %v7763
  %v7862 = vunpack.c.h.b16 %v7763
  %v7863 = vunpack.c.l.b16 %v7764
  %v7864 = vunpack.c.h.b16 %v7764
  %v7865 = vunpack.c.l.b16 %v7765
  %v7866 = vunpack.c.h.b16 %v7765
  %v7867 = vunpack.c.l.b16 %v7766
  %v7868 = vunpack.c.h.b16 %v7766
  %v7869 = vunpack.c.l.b16 %v7767
  %v7870 = vunpack.c.h.b16 %v7767
  %v7871 = vunpack.c.l.b16 %v7768
  %v7872 = vunpack.c.h.b16 %v7768
  %v7873 = vunpack.c.l.b16 %v7769
  %v7874 = vunpack.c.h.b16 %v7769
  %v7875 = vunpack.c.l.b16 %v7770
  %v7876 = vunpack.c.h.b16 %v7770
  %v7877 = vunpack.c.l.b16 %v7771
  %v7878 = vunpack.c.h.b16 %v7771
  %v7879 = vunpack.c.l.b16 %v7772
  %v7880 = vunpack.c.h.b16 %v7772
  %v7881 = vunpack.c.l.b16 %v7773
  %v7882 = vunpack.c.h.b16 %v7773
  %v7883 = vunpack.c.l.b16 %v7774
  %v7884 = vunpack.c.h.b16 %v7774
  %v7885 = vunpack.c.l.b16 %v7775
  %v7886 = vunpack.c.h.b16 %v7775
  %v7887 = vpack.c.b16 %v7813, %v7813
  %v7888 = vpack.c.b16 %v7814, %v7814
  %v7889 = vpack.c.b16 %v7815, %v7815
  %v7890 = vpack.c.b16 %v7816, %v7816
  %v7891 = vpack.c.b16 %v7817, %v7817
  %v7892 = vpack.c.b16 %v7818, %v7818
  %v7893 = vpack.c.b16 %v7819, %v7819
  %v7894 = vpack.c.b16 %v7820, %v7820
  %v7895 = vpack.c.b16 %v7821, %v7821
  %v7896 = vpack.c.b16 %v7822, %v7822
  %v7897 = vpack.c.b16 %v7823, %v7823
  %v7898 = vpack.c.b16 %v7824, %v7824
  %v7899 = vpack.c.b16 %v7825, %v7825
  %v7900 = vpack.c.b16 %v7826, %v7826
  %v7901 = vpack.c.b16 %v7827, %v7827
  %v7902 = vpack.c.b16 %v7828, %v7828
  %v7903 = vpack.c.b16 %v7829, %v7829
  %v7904 = vpack.c.b16 %v7830, %v7830
  %v7905 = vpack.c.b16 %v7831, %v7831
  %v7906 = vpack.c.b16 %v7832, %v7832
  %v7907 = vpack.c.b16 %v7833, %v7833
  %v7908 = vpack.c.b16 %v7834, %v7834
  %v7909 = vpack.c.b16 %v7835, %v7835
  %v7910 = vpack.c.b16 %v7836, %v7836
  %v7911 = vpack.c.b16 %v7837, %v7837
  %v7912 = vpack.c.b16 %v7838, %v7838
  %v7913 = vpack.c.b16 %v7839, %v7839
  %v7914 = vpack.c.b16 %v7840, %v7840
  %v7915 = vpack.c.b16 %v7841, %v7841
  %v7916 = vpack.c.b16 %v7842, %v7842
  %v7917 = vpack.c.b16 %v7843, %v7843
  %v7918 = vpack.c.b16 %v7844, %v7844
  %v7919 = vpack.c.b16 %v7845, %v7845
  %v7920 = vpack.c.b16 %v7846, %v7846
  %v7921 = vpack.c.b16 %v7847, %v7847
  %v7922 = vpack.c.b16 %v7848, %v7848
  %v7923 = vpack.c.b16 %v7849, %v7849
  %v7924 = vpack.c.b16 %v7850, %v7850
  %v7925 = vpack.c.b16 %v7851, %v7851
  %v7926 = vpack.c.b16 %v7852, %v7852
  %v7927 = vpack.c.b16 %v7853, %v7853
  %v7928 = vpack.c.b16 %v7854, %v7854
  %v7929 = vpack.c.b16 %v7855, %v7855
  %v7930 = vpack.c.b16 %v7856, %v7856
  %v7931 = vpack.c.b16 %v7857, %v7857
  %v7932 = vpack.c.b16 %v7858, %v7858
  %v7933 = vpack.c.b16 %v7859, %v7859
  %v7934 = vpack.c.b16 %v7860, %v7860
  %v7935 = vpack.c.b16 %v7861, %v7861
  %v7936 = vpack.c.b16 %v7862, %v7862
  %v7937 = vpack.c.b16 %v7863, %v7863
  %v7938 = vpack.c.b16 %v7864, %v7864
  %v7939 = vpack.c.b16 %v7865, %v7865
  %v7940 = vpack.c.b16 %v7866, %v7866
  %v7941 = vpack.c.b16 %v7867, %v7867
  %v7942 = vpack.c.b16 %v7868, %v7868
  %v7943 = vpack.c.b16 %v7869, %v7869
  %v7944 = vpack.c.b16 %v7870, %v7870
  %v7945 = vpack.c.b16 %v7871, %v7871
  %v7946 = vpack.c.b16 %v7872, %v7872
  %v7947 = vpack.c.b16 %v7873, %v7873
  %v7948 = vpack.c.b16 %v7874, %v7874
  %v7949 = vpack.c.b16 %v7875, %v7875
  %v7950 = vpack.c.b16 %v7876, %v7876
  %v7951 = vpack.c.b16 %v7877, %v7877
  %v7952 = vpack.c.b16 %v7878, %v7878
  %v7953 = vpack.c.b16 %v7879, %v7879
  %v7954 = vpack.c.b16 %v7880, %v7880
  %v7955 = vpack.c.b16 %v7881, %v7881
  %v7956 = vpack.c.b16 %v7882, %v7882
  %v7957 = vpack.c.b16 %v7883, %v7883
  %v7958 = vpack.c.b16 %v7884, %v7884
  %v7959 = vpack.c.b16 %v7885, %v7885
  %v7960 = vpack.c.b16 %v7886, %v7886
  %vm8035 = vcmask 125952
  %8036 = vst.msk [vmem:[%s4] sm:$0xf] %vm8035, %v7887
  %8037 = vst.msk [vmem:[%s4 + $0x4] sm:$0xf] %vm8035, %v7888
  %8038 = vst.msk [vmem:[%s4 + $0x8] sm:$0xf] %vm8035, %v7889
  %8039 = vst.msk [vmem:[%s4 + $0xc] sm:$0xf] %vm8035, %v7890
  %8040 = vst.msk [vmem:[%s4 + $0x10] sm:$0xf] %vm8035, %v7891
  %8041 = vst.msk [vmem:[%s4 + $0x14] sm:$0xf] %vm8035, %v7892
  %8042 = vst.msk [vmem:[%s4 + $0x18] sm:$0xf] %vm8035, %v7893
  %8043 = vst.msk [vmem:[%s4 + $0x1c] sm:$0xf] %vm8035, %v7894
  %8044 = vst.msk [vmem:[%s4 + $0x20] sm:$0xf] %vm8035, %v7895
  %8045 = vst.msk [vmem:[%s4 + $0x24] sm:$0xf] %vm8035, %v7896
  %8046 = vst.msk [vmem:[%s4 + $0x28] sm:$0xf] %vm8035, %v7897
  %8047 = vst.msk [vmem:[%s4 + $0x2c] sm:$0xf] %vm8035, %v7898
  %8048 = vst.msk [vmem:[%s4 + $0x30] sm:$0xf] %vm8035, %v7899
  %8049 = vst.msk [vmem:[%s4 + $0x34] sm:$0xf] %vm8035, %v7900
  %8050 = vst.msk [vmem:[%s4 + $0x38] sm:$0xf] %vm8035, %v7901
  %8051 = vst.msk [vmem:[%s4 + $0x3c] sm:$0xf] %vm8035, %v7902
  %8052 = vst.msk [vmem:[%s4 + $0x40] sm:$0xf] %vm8035, %v7903
  %8053 = vst.msk [vmem:[%s4 + $0x44] sm:$0xf] %vm8035, %v7904
  %8054 = vst.msk [vmem:[%s4 + $0x48] sm:$0xf] %vm8035, %v7905
  %8055 = vst.msk [vmem:[%s4 + $0x4c] sm:$0xf] %vm8035, %v7906
  %8056 = vst.msk [vmem:[%s4 + $0x50] sm:$0xf] %vm8035, %v7907
  %8057 = vst.msk [vmem:[%s4 + $0x54] sm:$0xf] %vm8035, %v7908
  %8058 = vst.msk [vmem:[%s4 + $0x58] sm:$0xf] %vm8035, %v7909
  %8059 = vst.msk [vmem:[%s4 + $0x5c] sm:$0xf] %vm8035, %v7910
  %8060 = vst.msk [vmem:[%s4 + $0x60] sm:$0xf] %vm8035, %v7911
  %8061 = vst.msk [vmem:[%s4 + $0x64] sm:$0xf] %vm8035, %v7912
  %8062 = vst.msk [vmem:[%s4 + $0x68] sm:$0xf] %vm8035, %v7913
  %8063 = vst.msk [vmem:[%s4 + $0x6c] sm:$0xf] %vm8035, %v7914
  %8064 = vst.msk [vmem:[%s4 + $0x70] sm:$0xf] %vm8035, %v7915
  %8065 = vst.msk [vmem:[%s4 + $0x74] sm:$0xf] %vm8035, %v7916
  %8066 = vst.msk [vmem:[%s4 + $0x78] sm:$0xf] %vm8035, %v7917
  %8067 = vst.msk [vmem:[%s4 + $0x7c] sm:$0xf] %vm8035, %v7918
  %8068 = vst.msk [vmem:[%s4 + $0x80] sm:$0xf] %vm8035, %v7919
  %8069 = vst.msk [vmem:[%s4 + $0x84] sm:$0xf] %vm8035, %v7920
  %8070 = vst.msk [vmem:[%s4 + $0x88] sm:$0xf] %vm8035, %v7921
  %8071 = vst.msk [vmem:[%s4 + $0x8c] sm:$0xf] %vm8035, %v7922
  %8072 = vst.msk [vmem:[%s4 + $0x90] sm:$0xf] %vm8035, %v7923
  %8073 = vst.msk [vmem:[%s4 + $0x94] sm:$0xf] %vm8035, %v7924
  %8074 = vst.msk [vmem:[%s4 + $0x98] sm:$0xf] %vm8035, %v7925
  %8075 = vst.msk [vmem:[%s4 + $0x9c] sm:$0xf] %vm8035, %v7926
  %8076 = vst.msk [vmem:[%s4 + $0xa0] sm:$0xf] %vm8035, %v7927
  %8077 = vst.msk [vmem:[%s4 + $0xa4] sm:$0xf] %vm8035, %v7928
  %8078 = vst.msk [vmem:[%s4 + $0xa8] sm:$0xf] %vm8035, %v7929
  %8079 = vst.msk [vmem:[%s4 + $0xac] sm:$0xf] %vm8035, %v7930
  %8080 = vst.msk [vmem:[%s4 + $0xb0] sm:$0xf] %vm8035, %v7931
  %8081 = vst.msk [vmem:[%s4 + $0xb4] sm:$0xf] %vm8035, %v7932
  %8082 = vst.msk [vmem:[%s4 + $0xb8] sm:$0xf] %vm8035, %v7933
  %8083 = vst.msk [vmem:[%s4 + $0xbc] sm:$0xf] %vm8035, %v7934
  %8084 = vst.msk [vmem:[%s4 + $0xc0] sm:$0xf] %vm8035, %v7935
  %8085 = vst.msk [vmem:[%s4 + $0xc4] sm:$0xf] %vm8035, %v7936
  %8086 = vst.msk [vmem:[%s4 + $0xc8] sm:$0xf] %vm8035, %v7937
  %8087 = vst.msk [vmem:[%s4 + $0xcc] sm:$0xf] %vm8035, %v7938
  %8088 = vst.msk [vmem:[%s4 + $0xd0] sm:$0xf] %vm8035, %v7939
  %8089 = vst.msk [vmem:[%s4 + $0xd4] sm:$0xf] %vm8035, %v7940
  %8090 = vst.msk [vmem:[%s4 + $0xd8] sm:$0xf] %vm8035, %v7941
  %8091 = vst.msk [vmem:[%s4 + $0xdc] sm:$0xf] %vm8035, %v7942
  %8092 = vst.msk [vmem:[%s4 + $0xe0] sm:$0xf] %vm8035, %v7943
  %8093 = vst.msk [vmem:[%s4 + $0xe4] sm:$0xf] %vm8035, %v7944
  %8094 = vst.msk [vmem:[%s4 + $0xe8] sm:$0xf] %vm8035, %v7945
  %8095 = vst.msk [vmem:[%s4 + $0xec] sm:$0xf] %vm8035, %v7946
  %8096 = vst.msk [vmem:[%s4 + $0xf0] sm:$0xf] %vm8035, %v7947
  %8097 = vst.msk [vmem:[%s4 + $0xf4] sm:$0xf] %vm8035, %v7948
  %8098 = vst.msk [vmem:[%s4 + $0xf8] sm:$0xf] %vm8035, %v7949
  %8099 = vst.msk [vmem:[%s4 + $0xfc] sm:$0xf] %vm8035, %v7950
  %8100 = vst.msk [vmem:[%s4 + $0x100] sm:$0xf] %vm8035, %v7951
  %8101 = vst.msk [vmem:[%s4 + $0x104] sm:$0xf] %vm8035, %v7952
  %8102 = vst.msk [vmem:[%s4 + $0x108] sm:$0xf] %vm8035, %v7953
  %8103 = vst.msk [vmem:[%s4 + $0x10c] sm:$0xf] %vm8035, %v7954
  %8104 = vst.msk [vmem:[%s4 + $0x110] sm:$0xf] %vm8035, %v7955
  %8105 = vst.msk [vmem:[%s4 + $0x114] sm:$0xf] %vm8035, %v7956
  %8106 = vst.msk [vmem:[%s4 + $0x118] sm:$0xf] %vm8035, %v7957
  %8107 = vst.msk [vmem:[%s4 + $0x11c] sm:$0xf] %vm8035, %v7958
  %8108 = vst.msk [vmem:[%s4 + $0x120] sm:$0xf] %vm8035, %v7959
  %8109 = vst.msk [vmem:[%s4 + $0x124] sm:$0xf] %vm8035, %v7960
  // Predicated region
  $region18: #{tpu_custom_call.1} parent=0 // pred_check
    _
  $region19: #{tpu_custom_call.1} parent=0 // pred_check_branch
    %8111 = sbr.rel (0) target = $region21
  $region20: #{tpu_custom_call.1} parent=0 // pred_region
    _
  $region21: #{tpu_custom_call.1} parent=0 // pred_fallthru
    _
  // Predicated region
  $region22: #{tpu_custom_call.1} parent=0 // pred_check
    _
  $region23: #{tpu_custom_call.1} parent=0 // pred_check_branch
    %8113 = sbr.rel (0) target = $region25
  $region24: #{tpu_custom_call.1} parent=0 // pred_region
    _
  $region25: #{tpu_custom_call.1} parent=0 // pred_fallthru
    _

</llo_original>
